<compile_context>
chip_gen: v6e
topology: v6e:2x2x1
jax: 0.10.0
libtpu: 0.0.40
codegen_flags: <defaults>
</compile_context>

<pallas_src>
import functools

import jax
import jax.numpy as jnp
from jax.experimental import pallas as pl
from jax.experimental.pallas import tpu as pltpu

EPS = 1e-5      # nn.BatchNorm2d default eps
C_PAD = 128     # lane-dense padded channel count


def _conv_bn_relu_kernel(x_ref, w_ref, g_ref, b_ref, mask_ref, o_ref,
                         sum_ref, sq_ref, *, offsets, tile_m, halo, inv_m):
    # x_ref:    (Mp_pad + halo, Cin)  padded/flattened input, full-extent block (loaded once)
    # w_ref:    (KK, Cin, C_PAD)      conv weights, Cout zero-padded to 128 lanes
    # g_ref:    (1, C_PAD)            BN gamma (padded)
    # b_ref:    (1, C_PAD)            BN beta  (padded)
    # mask_ref: (tile_m, 1)           1.0 where the row is a real output pixel
    # o_ref:    (tile_m, C_PAD)       output tile
    # sum_ref, sq_ref: (1, C_PAD)     f32 scratch accumulators (persist across grid steps)
    phase = pl.program_id(0)
    i = pl.program_id(1)
    base = pl.multiple_of(i * tile_m, 8)

    def conv_tile():
        # One aligned dynamic window load, then 9 static shifted slices -> 9 small MXU dots.
        win = x_ref[pl.ds(base, tile_m + halo), :]
        acc = jnp.zeros((tile_m, C_PAD), jnp.float32)
        for j, off in enumerate(offsets):
            rows = win[off:off + tile_m, :]
            acc = acc + jnp.dot(rows, w_ref[j], preferred_element_type=jnp.float32)
        return acc

    @pl.when(phase == 0)
    def _stats_phase():
        @pl.when(i == 0)
        def _init():
            sum_ref[...] = jnp.zeros_like(sum_ref)
            sq_ref[...] = jnp.zeros_like(sq_ref)

        y = conv_tile()
        ym = y * mask_ref[...]                      # exclude halo / tail rows from stats
        sum_ref[...] += jnp.sum(ym, axis=0, keepdims=True)
        sq_ref[...] += jnp.sum(ym * y, axis=0, keepdims=True)
        o_ref[...] = y                              # deterministic writeback; overwritten in phase 1

    @pl.when(phase == 1)
    def _normalize_phase():
        y = conv_tile()
        mean = sum_ref[...] * inv_m
        var = sq_ref[...] * inv_m - mean * mean     # biased batch variance (training mode)
        scale = g_ref[...] * jax.lax.rsqrt(var + EPS)
        shift = b_ref[...] - mean * scale
        o_ref[...] = jnp.maximum(y * scale + shift, 0.0)


def conv2d_bn_relu(x_nchw, weight, bias, gamma, beta, *, ks=3, st=1, padding=1, tile_m=256):
    """x_nchw: (N, Cin, H, W); weight: (Cout, Cin, KH, KW) — PyTorch layouts."""
    assert st == 1, "stride 1 only (module default)"  # TODO(synk): strided variant if needed
    del bias  # conv bias is exactly cancelled by training-mode BN mean subtraction
    N, Cin, H, W = x_nchw.shape
    Cout = weight.shape[0]
    Hp, Wp = H + 2 * padding, W + 2 * padding
    Ho, Wo = Hp - ks + 1, Wp - ks + 1
    assert tile_m % 8 == 0 and Cout <= C_PAD

    # ---- glue: pad + flatten input to (rows, Cin); no 9x im2col slab in HBM ----
    x_nhwc = jnp.transpose(x_nchw, (0, 2, 3, 1)).astype(jnp.float32)
    xp = jnp.pad(x_nhwc, ((0, 0), (padding, padding), (padding, padding), (0, 0)))
    Mp = N * Hp * Wp                                   # rows of the over-sized output grid
    n_tiles = pl.cdiv(Mp, tile_m)
    Mp_pad = n_tiles * tile_m
    max_off = (ks - 1) * Wp + (ks - 1)
    halo = (max_off + 7) // 8 * 8                      # window slack, multiple of 8
    x_flat = xp.reshape(Mp, Cin)
    x_flat = jnp.pad(x_flat, ((0, Mp_pad - Mp + halo), (0, 0)))

    # weights: (Cout, Cin, KH, KW) -> (KH*KW, Cin, C_PAD), Cout zero-padded to 128 lanes
    w = jnp.transpose(weight, (2, 3, 1, 0)).reshape(ks * ks, Cin, Cout).astype(jnp.float32)
    w = jnp.pad(w, ((0, 0), (0, 0), (0, C_PAD - Cout)))
    # TODO(synk): cast x_flat / w to bfloat16 (f32 accumulation) for MXU-bound sizes on v6e/v7x.

    g = jnp.pad(gamma.astype(jnp.float32).reshape(1, Cout), ((0, 0), (0, C_PAD - Cout)))
    b = jnp.pad(beta.astype(jnp.float32).reshape(1, Cout), ((0, 0), (0, C_PAD - Cout)))

    # validity mask: 1.0 for rows that correspond to a real output pixel (y < Ho, x < Wo)
    r = jnp.arange(Mp_pad, dtype=jnp.int32)
    rem = r % (Hp * Wp)
    valid = (r < Mp) & (rem // Wp < Ho) & (rem % Wp < Wo)
    mask = valid.astype(jnp.float32).reshape(Mp_pad, 1)

    m_valid = N * Ho * Wo
    offsets = tuple(dy * Wp + dx for dy in range(ks) for dx in range(ks))
    kernel = functools.partial(_conv_bn_relu_kernel, offsets=offsets, tile_m=tile_m,
                               halo=halo, inv_m=1.0 / float(m_valid))

    kk_cin = ks * ks * Cin
    cost = pl.CostEstimate(
        flops=int(2 * 2 * Mp_pad * kk_cin * C_PAD),    # both phases recompute the conv
        transcendentals=0,
        bytes_accessed=int(x_flat.size * 4 + w.size * 4 + 2 * Mp_pad * C_PAD * 4))

    out_flat = pl.pallas_call(
        kernel,
        out_shape=jax.ShapeDtypeStruct((Mp_pad, C_PAD), jnp.float32),
        grid=(2, n_tiles),                             # (phase, M tile); phase must be outer
        in_specs=[
            pl.BlockSpec((Mp_pad + halo, Cin), lambda p, i: (0, 0)),     # resident, loaded once
            pl.BlockSpec((ks * ks, Cin, C_PAD), lambda p, i: (0, 0, 0)),
            pl.BlockSpec((1, C_PAD), lambda p, i: (0, 0)),
            pl.BlockSpec((1, C_PAD), lambda p, i: (0, 0)),
            pl.BlockSpec((tile_m, 1), lambda p, i: (i, 0)),
        ],
        out_specs=pl.BlockSpec((tile_m, C_PAD), lambda p, i: (i, 0)),
        scratch_shapes=[pltpu.VMEM((1, C_PAD), jnp.float32),
                        pltpu.VMEM((1, C_PAD), jnp.float32)],
        compiler_params=pltpu.CompilerParams(
            # M axis is NOT 'parallel': global BN stats live in per-core scratch.
            # Default scoped VMEM is ample for these tiles, so no vmem_limit_bytes request.
            dimension_semantics=("arbitrary", "arbitrary")),
        cost_estimate=cost,
    )(x_flat, w, g, b, mask)

    out = out_flat[:Mp].reshape(N, Hp, Wp, C_PAD)[:, :Ho, :Wo, :Cout]
    return jnp.transpose(out, (0, 3, 1, 2))            # back to NCHW


def _reference(x, weight, bias, gamma, beta):
    y = jax.lax.conv_general_dilated(
        x, weight, window_strides=(1, 1), padding=[(1, 1), (1, 1)],
        dimension_numbers=("NCHW", "OIHW", "NCHW"),
        precision=jax.lax.Precision.HIGHEST)
    y = y + bias[None, :, None, None]
    mean = y.mean(axis=(0, 2, 3), keepdims=True)
    var = ((y - mean) ** 2).mean(axis=(0, 2, 3), keepdims=True)
    y = gamma[None, :, None, None] * (y - mean) / jnp.sqrt(var + EPS) + beta[None, :, None, None]
    return jnp.maximum(y, 0.0)


if __name__ == "__main__":
    nin, nout, ks = 8, 11, 3
    N, H, W = 2, 16, 16

    key = jax.random.PRNGKey(0)
    kx, kw, kb, kg, kbe = jax.random.split(key, 5)
    x = jax.random.normal(kx, (N, nin, H, W), dtype=jnp.float32)

    # Deterministic synthetic parameters (shapes match nn.Conv2d(8,11,3) / nn.BatchNorm2d(11)).
    fan_in = nin * ks * ks
    weight = jax.random.normal(kw, (nout, nin, ks, ks), dtype=jnp.float32) / jnp.sqrt(fan_in)
    bias = jax.random.normal(kb, (nout,), dtype=jnp.float32) * 0.1
    gamma = 1.0 + 0.1 * jax.random.normal(kg, (nout,), dtype=jnp.float32)
    beta = 0.1 * jax.random.normal(kbe, (nout,), dtype=jnp.float32)

    out = conv2d_bn_relu(x, weight, bias, gamma, beta, ks=ks, st=1, padding=1)
    out = jax.block_until_ready(out)

    ref = _reference(x, weight, bias, gamma, beta)
    assert out.shape == (N, nout, H, W), out.shape
    err = float(jnp.max(jnp.abs(out - ref)))
    assert jnp.allclose(out, ref, atol=5e-4, rtol=5e-4), err

    print("KERNEL_OK")
</pallas_src>

<mosaic_0001>
module attributes {stable_mosaic.version = 11 : i64} {
  func.func @_conv_bn_relu_kernel(%arg0: i32, %arg1: i32, %arg2: memref<808x8xf32, #tpu.memory_space<vmem>>, %arg3: memref<9x8x128xf32, #tpu.memory_space<vmem>>, %arg4: memref<1x128xf32, #tpu.memory_space<vmem>>, %arg5: memref<1x128xf32, #tpu.memory_space<vmem>>, %arg6: memref<256x1xf32, #tpu.memory_space<vmem>>, %arg7: memref<256x128xf32, #tpu.memory_space<vmem>>, %arg8: memref<1x128xf32, #tpu.memory_space<vmem>>, %arg9: memref<1x128xf32, #tpu.memory_space<vmem>>) attributes {dimension_semantics = [#tpu.dimension_semantics<arbitrary>, #tpu.dimension_semantics<arbitrary>], iteration_bounds = array<i64: 2, 3>, scalar_prefetch = 0 : i64, scratch_operands = 2 : i64, tpu.core_type = #tpu.core_type<tc>, window_params = [{pipeline_mode = #tpu.pipeline_mode<synchronous>, transform_indices = @transform_0, window_bounds = array<i64: 808, 8>}, {pipeline_mode = #tpu.pipeline_mode<synchronous>, transform_indices = @transform_1, window_bounds = array<i64: 9, 8, 128>}, {pipeline_mode = #tpu.pipeline_mode<synchronous>, transform_indices = @transform_2, window_bounds = array<i64: 1, 128>}, {pipeline_mode = #tpu.pipeline_mode<synchronous>, transform_indices = @transform_3, window_bounds = array<i64: 1, 128>}, {transform_indices = @transform_4, window_bounds = array<i64: 256, 1>}, {transform_indices = @transform_5, window_bounds = array<i64: 256, 128>}]} {
    %c256_i32 = arith.constant 256 : i32
    %0 = arith.muli %arg1, %c256_i32 : i32
    %1 = tpu.assume_multiple %0, 8 : i32
    %c0_i32 = arith.constant 0 : i32
    %2 = arith.cmpi eq, %arg0, %c0_i32 : i32
    %3 = arith.extui %2 : i1 to i32
    %c0_i32_0 = arith.constant 0 : i32
    %4 = arith.cmpi ne, %3, %c0_i32_0 : i32
    scf.if %4 {
      %c0_i32_2 = arith.constant 0 : i32
      %8 = arith.cmpi eq, %arg1, %c0_i32_2 : i32
      %9 = arith.extui %8 : i1 to i32
      %c0_i32_3 = arith.constant 0 : i32
      %10 = arith.cmpi ne, %9, %c0_i32_3 : i32
      scf.if %10 {
        %cst_46 = arith.constant 0.000000e+00 : f32
        %74 = vector.broadcast %cst_46 : f32 to vector<1x128xf32>
        %c0_47 = arith.constant 0 : index
        %c0_48 = arith.constant 0 : index
        %75 = vector.load %arg8[%c0_47, %c0_48] : memref<1x128xf32, #tpu.memory_space<vmem>>, vector<1x128xf32>
        tpu.vector_store %arg8[%c0_47, %c0_48], %74 {strides = array<i32>} : memref<1x128xf32, #tpu.memory_space<vmem>>, vector<1x128xf32>,
        %cst_49 = arith.constant 0.000000e+00 : f32
        %76 = vector.broadcast %cst_49 : f32 to vector<1x128xf32>
        %c0_50 = arith.constant 0 : index
        %c0_51 = arith.constant 0 : index
        %77 = vector.load %arg9[%c0_50, %c0_51] : memref<1x128xf32, #tpu.memory_space<vmem>>, vector<1x128xf32>
        tpu.vector_store %arg9[%c0_50, %c0_51], %76 {strides = array<i32>} : memref<1x128xf32, #tpu.memory_space<vmem>>, vector<1x128xf32>,
      } else {
      }
      %11 = arith.index_cast %1 : i32 to index
      %c0 = arith.constant 0 : index
      %12 = vector.load %arg2[%11, %c0] : memref<808x8xf32, #tpu.memory_space<vmem>>, vector<296x8xf32>
      %cst = arith.constant 0.000000e+00 : f32
      %13 = vector.broadcast %cst : f32 to vector<256x128xf32>
      %14 = vector.extract_strided_slice %12 {offsets = [0, 0], sizes = [256, 8], strides = [1, 1]} : vector<296x8xf32> to vector<256x8xf32>
      %c0_4 = arith.constant 0 : index
      %c0_5 = arith.constant 0 : index
      %c0_6 = arith.constant 0 : index
      %15 = vector.load %arg3[%c0_4, %c0_5, %c0_6] : memref<9x8x128xf32, #tpu.memory_space<vmem>>, vector<1x8x128xf32>
      %16 = vector.shape_cast %15 : vector<1x8x128xf32> to vector<8x128xf32>
      %cst_7 = arith.constant dense<0.000000e+00> : vector<256x128xf32>
      %17 = tpu.matmul %14, %16, %cst_7 {dimension_numbers = #tpu.dot_dimension_numbers<[1], [0], [0], [1], [0, 0, 1, 1], [], []>} : vector<256x8xf32>, vector<8x128xf32>, vector<256x128xf32> -> vector<256x128xf32>
      %18 = arith.addf %13, %17 : vector<256x128xf32>
      %19 = vector.extract_strided_slice %12 {offsets = [1, 0], sizes = [256, 8], strides = [1, 1]} : vector<296x8xf32> to vector<256x8xf32>
      %c1 = arith.constant 1 : index
      %c0_8 = arith.constant 0 : index
      %c0_9 = arith.constant 0 : index
      %20 = vector.load %arg3[%c1, %c0_8, %c0_9] : memref<9x8x128xf32, #tpu.memory_space<vmem>>, vector<1x8x128xf32>
      %21 = vector.shape_cast %20 : vector<1x8x128xf32> to vector<8x128xf32>
      %cst_10 = arith.constant dense<0.000000e+00> : vector<256x128xf32>
      %22 = tpu.matmul %19, %21, %cst_10 {dimension_numbers = #tpu.dot_dimension_numbers<[1], [0], [0], [1], [0, 0, 1, 1], [], []>} : vector<256x8xf32>, vector<8x128xf32>, vector<256x128xf32> -> vector<256x128xf32>
      %23 = arith.addf %18, %22 : vector<256x128xf32>
      %24 = vector.extract_strided_slice %12 {offsets = [2, 0], sizes = [256, 8], strides = [1, 1]} : vector<296x8xf32> to vector<256x8xf32>
      %c2 = arith.constant 2 : index
      %c0_11 = arith.constant 0 : index
      %c0_12 = arith.constant 0 : index
      %25 = vector.load %arg3[%c2, %c0_11, %c0_12] : memref<9x8x128xf32, #tpu.memory_space<vmem>>, vector<1x8x128xf32>
      %26 = vector.shape_cast %25 : vector<1x8x128xf32> to vector<8x128xf32>
      %cst_13 = arith.constant dense<0.000000e+00> : vector<256x128xf32>
      %27 = tpu.matmul %24, %26, %cst_13 {dimension_numbers = #tpu.dot_dimension_numbers<[1], [0], [0], [1], [0, 0, 1, 1], [], []>} : vector<256x8xf32>, vector<8x128xf32>, vector<256x128xf32> -> vector<256x128xf32>
      %28 = arith.addf %23, %27 : vector<256x128xf32>
      %29 = vector.extract_strided_slice %12 {offsets = [18, 0], sizes = [256, 8], strides = [1, 1]} : vector<296x8xf32> to vector<256x8xf32>
      %c3 = arith.constant 3 : index
      %c0_14 = arith.constant 0 : index
      %c0_15 = arith.constant 0 : index
      %30 = vector.load %arg3[%c3, %c0_14, %c0_15] : memref<9x8x128xf32, #tpu.memory_space<vmem>>, vector<1x8x128xf32>
      %31 = vector.shape_cast %30 : vector<1x8x128xf32> to vector<8x128xf32>
      %cst_16 = arith.constant dense<0.000000e+00> : vector<256x128xf32>
      %32 = tpu.matmul %29, %31, %cst_16 {dimension_numbers = #tpu.dot_dimension_numbers<[1], [0], [0], [1], [0, 0, 1, 1], [], []>} : vector<256x8xf32>, vector<8x128xf32>, vector<256x128xf32> -> vector<256x128xf32>
      %33 = arith.addf %28, %32 : vector<256x128xf32>
      %34 = vector.extract_strided_slice %12 {offsets = [19, 0], sizes = [256, 8], strides = [1, 1]} : vector<296x8xf32> to vector<256x8xf32>
      %c4 = arith.constant 4 : index
      %c0_17 = arith.constant 0 : index
      %c0_18 = arith.constant 0 : index
      %35 = vector.load %arg3[%c4, %c0_17, %c0_18] : memref<9x8x128xf32, #tpu.memory_space<vmem>>, vector<1x8x128xf32>
      %36 = vector.shape_cast %35 : vector<1x8x128xf32> to vector<8x128xf32>
      %cst_19 = arith.constant dense<0.000000e+00> : vector<256x128xf32>
      %37 = tpu.matmul %34, %36, %cst_19 {dimension_numbers = #tpu.dot_dimension_numbers<[1], [0], [0], [1], [0, 0, 1, 1], [], []>} : vector<256x8xf32>, vector<8x128xf32>, vector<256x128xf32> -> vector<256x128xf32>
      %38 = arith.addf %33, %37 : vector<256x128xf32>
      %39 = vector.extract_strided_slice %12 {offsets = [20, 0], sizes = [256, 8], strides = [1, 1]} : vector<296x8xf32> to vector<256x8xf32>
      %c5 = arith.constant 5 : index
      %c0_20 = arith.constant 0 : index
      %c0_21 = arith.constant 0 : index
      %40 = vector.load %arg3[%c5, %c0_20, %c0_21] : memref<9x8x128xf32, #tpu.memory_space<vmem>>, vector<1x8x128xf32>
      %41 = vector.shape_cast %40 : vector<1x8x128xf32> to vector<8x128xf32>
      %cst_22 = arith.constant dense<0.000000e+00> : vector<256x128xf32>
      %42 = tpu.matmul %39, %41, %cst_22 {dimension_numbers = #tpu.dot_dimension_numbers<[1], [0], [0], [1], [0, 0, 1, 1], [], []>} : vector<256x8xf32>, vector<8x128xf32>, vector<256x128xf32> -> vector<256x128xf32>
      %43 = arith.addf %38, %42 : vector<256x128xf32>
      %44 = vector.extract_strided_slice %12 {offsets = [36, 0], sizes = [256, 8], strides = [1, 1]} : vector<296x8xf32> to vector<256x8xf32>
      %c6 = arith.constant 6 : index
      %c0_23 = arith.constant 0 : index
      %c0_24 = arith.constant 0 : index
      %45 = vector.load %arg3[%c6, %c0_23, %c0_24] : memref<9x8x128xf32, #tpu.memory_space<vmem>>, vector<1x8x128xf32>
      %46 = vector.shape_cast %45 : vector<1x8x128xf32> to vector<8x128xf32>
      %cst_25 = arith.constant dense<0.000000e+00> : vector<256x128xf32>
      %47 = tpu.matmul %44, %46, %cst_25 {dimension_numbers = #tpu.dot_dimension_numbers<[1], [0], [0], [1], [0, 0, 1, 1], [], []>} : vector<256x8xf32>, vector<8x128xf32>, vector<256x128xf32> -> vector<256x128xf32>
      %48 = arith.addf %43, %47 : vector<256x128xf32>
      %49 = vector.extract_strided_slice %12 {offsets = [37, 0], sizes = [256, 8], strides = [1, 1]} : vector<296x8xf32> to vector<256x8xf32>
      %c7 = arith.constant 7 : index
      %c0_26 = arith.constant 0 : index
      %c0_27 = arith.constant 0 : index
      %50 = vector.load %arg3[%c7, %c0_26, %c0_27] : memref<9x8x128xf32, #tpu.memory_space<vmem>>, vector<1x8x128xf32>
      %51 = vector.shape_cast %50 : vector<1x8x128xf32> to vector<8x128xf32>
      %cst_28 = arith.constant dense<0.000000e+00> : vector<256x128xf32>
      %52 = tpu.matmul %49, %51, %cst_28 {dimension_numbers = #tpu.dot_dimension_numbers<[1], [0], [0], [1], [0, 0, 1, 1], [], []>} : vector<256x8xf32>, vector<8x128xf32>, vector<256x128xf32> -> vector<256x128xf32>
      %53 = arith.addf %48, %52 : vector<256x128xf32>
      %54 = vector.extract_strided_slice %12 {offsets = [38, 0], sizes = [256, 8], strides = [1, 1]} : vector<296x8xf32> to vector<256x8xf32>
      %c8 = arith.constant 8 : index
      %c0_29 = arith.constant 0 : index
      %c0_30 = arith.constant 0 : index
      %55 = vector.load %arg3[%c8, %c0_29, %c0_30] : memref<9x8x128xf32, #tpu.memory_space<vmem>>, vector<1x8x128xf32>
      %56 = vector.shape_cast %55 : vector<1x8x128xf32> to vector<8x128xf32>
      %cst_31 = arith.constant dense<0.000000e+00> : vector<256x128xf32>
      %57 = tpu.matmul %54, %56, %cst_31 {dimension_numbers = #tpu.dot_dimension_numbers<[1], [0], [0], [1], [0, 0, 1, 1], [], []>} : vector<256x8xf32>, vector<8x128xf32>, vector<256x128xf32> -> vector<256x128xf32>
      %58 = arith.addf %53, %57 : vector<256x128xf32>
      %c0_32 = arith.constant 0 : index
      %c0_33 = arith.constant 0 : index
      %59 = vector.load %arg6[%c0_32, %c0_33] : memref<256x1xf32, #tpu.memory_space<vmem>>, vector<256x1xf32>
      %60 = vector.broadcast %59 : vector<256x1xf32> to vector<256x128xf32>
      %61 = arith.mulf %58, %60 : vector<256x128xf32>
      %c0_34 = arith.constant 0 : index
      %c0_35 = arith.constant 0 : index
      %62 = vector.load %arg8[%c0_34, %c0_35] : memref<1x128xf32, #tpu.memory_space<vmem>>, vector<1x128xf32>
      %cst_36 = arith.constant dense<0.000000e+00> : vector<128xf32>
      %63 = vector.multi_reduction <add>, %61, %cst_36 [0] : vector<256x128xf32> to vector<128xf32>
      %64 = vector.shape_cast %63 : vector<128xf32> to vector<1x128xf32>
      %65 = arith.addf %62, %64 : vector<1x128xf32>
      %c0_37 = arith.constant 0 : index
      %c0_38 = arith.constant 0 : index
      %66 = vector.load %arg8[%c0_37, %c0_38] : memref<1x128xf32, #tpu.memory_space<vmem>>, vector<1x128xf32>
      tpu.vector_store %arg8[%c0_37, %c0_38], %65 {strides = array<i32>} : memref<1x128xf32, #tpu.memory_space<vmem>>, vector<1x128xf32>,
      %c0_39 = arith.constant 0 : index
      %c0_40 = arith.constant 0 : index
      %67 = vector.load %arg9[%c0_39, %c0_40] : memref<1x128xf32, #tpu.memory_space<vmem>>, vector<1x128xf32>
      %68 = arith.mulf %61, %58 : vector<256x128xf32>
      %cst_41 = arith.constant dense<0.000000e+00> : vector<128xf32>
      %69 = vector.multi_reduction <add>, %68, %cst_41 [0] : vector<256x128xf32> to vector<128xf32>
      %70 = vector.shape_cast %69 : vector<128xf32> to vector<1x128xf32>
      %71 = arith.addf %67, %70 : vector<1x128xf32>
      %c0_42 = arith.constant 0 : index
      %c0_43 = arith.constant 0 : index
      %72 = vector.load %arg9[%c0_42, %c0_43] : memref<1x128xf32, #tpu.memory_space<vmem>>, vector<1x128xf32>
      tpu.vector_store %arg9[%c0_42, %c0_43], %71 {strides = array<i32>} : memref<1x128xf32, #tpu.memory_space<vmem>>, vector<1x128xf32>,
      %c0_44 = arith.constant 0 : index
      %c0_45 = arith.constant 0 : index
      %73 = vector.load %arg7[%c0_44, %c0_45] : memref<256x128xf32, #tpu.memory_space<vmem>>, vector<256x128xf32>
      tpu.vector_store %arg7[%c0_44, %c0_45], %58 {strides = array<i32>} : memref<256x128xf32, #tpu.memory_space<vmem>>, vector<256x128xf32>,
    } else {
    }
    %c1_i32 = arith.constant 1 : i32
    %5 = arith.cmpi eq, %arg0, %c1_i32 : i32
    %6 = arith.extui %5 : i1 to i32
    %c0_i32_1 = arith.constant 0 : i32
    %7 = arith.cmpi ne, %6, %c0_i32_1 : i32
    scf.if %7 {
      %8 = arith.index_cast %1 : i32 to index
      %c0 = arith.constant 0 : index
      %9 = vector.load %arg2[%8, %c0] : memref<808x8xf32, #tpu.memory_space<vmem>>, vector<296x8xf32>
      %cst = arith.constant 0.000000e+00 : f32
      %10 = vector.broadcast %cst : f32 to vector<256x128xf32>
      %11 = vector.extract_strided_slice %9 {offsets = [0, 0], sizes = [256, 8], strides = [1, 1]} : vector<296x8xf32> to vector<256x8xf32>
      %c0_2 = arith.constant 0 : index
      %c0_3 = arith.constant 0 : index
      %c0_4 = arith.constant 0 : index
      %12 = vector.load %arg3[%c0_2, %c0_3, %c0_4] : memref<9x8x128xf32, #tpu.memory_space<vmem>>, vector<1x8x128xf32>
      %13 = vector.shape_cast %12 : vector<1x8x128xf32> to vector<8x128xf32>
      %cst_5 = arith.constant dense<0.000000e+00> : vector<256x128xf32>
      %14 = tpu.matmul %11, %13, %cst_5 {dimension_numbers = #tpu.dot_dimension_numbers<[1], [0], [0], [1], [0, 0, 1, 1], [], []>} : vector<256x8xf32>, vector<8x128xf32>, vector<256x128xf32> -> vector<256x128xf32>
      %15 = arith.addf %10, %14 : vector<256x128xf32>
      %16 = vector.extract_strided_slice %9 {offsets = [1, 0], sizes = [256, 8], strides = [1, 1]} : vector<296x8xf32> to vector<256x8xf32>
      %c1 = arith.constant 1 : index
      %c0_6 = arith.constant 0 : index
      %c0_7 = arith.constant 0 : index
      %17 = vector.load %arg3[%c1, %c0_6, %c0_7] : memref<9x8x128xf32, #tpu.memory_space<vmem>>, vector<1x8x128xf32>
      %18 = vector.shape_cast %17 : vector<1x8x128xf32> to vector<8x128xf32>
      %cst_8 = arith.constant dense<0.000000e+00> : vector<256x128xf32>
      %19 = tpu.matmul %16, %18, %cst_8 {dimension_numbers = #tpu.dot_dimension_numbers<[1], [0], [0], [1], [0, 0, 1, 1], [], []>} : vector<256x8xf32>, vector<8x128xf32>, vector<256x128xf32> -> vector<256x128xf32>
      %20 = arith.addf %15, %19 : vector<256x128xf32>
      %21 = vector.extract_strided_slice %9 {offsets = [2, 0], sizes = [256, 8], strides = [1, 1]} : vector<296x8xf32> to vector<256x8xf32>
      %c2 = arith.constant 2 : index
      %c0_9 = arith.constant 0 : index
      %c0_10 = arith.constant 0 : index
      %22 = vector.load %arg3[%c2, %c0_9, %c0_10] : memref<9x8x128xf32, #tpu.memory_space<vmem>>, vector<1x8x128xf32>
      %23 = vector.shape_cast %22 : vector<1x8x128xf32> to vector<8x128xf32>
      %cst_11 = arith.constant dense<0.000000e+00> : vector<256x128xf32>
      %24 = tpu.matmul %21, %23, %cst_11 {dimension_numbers = #tpu.dot_dimension_numbers<[1], [0], [0], [1], [0, 0, 1, 1], [], []>} : vector<256x8xf32>, vector<8x128xf32>, vector<256x128xf32> -> vector<256x128xf32>
      %25 = arith.addf %20, %24 : vector<256x128xf32>
      %26 = vector.extract_strided_slice %9 {offsets = [18, 0], sizes = [256, 8], strides = [1, 1]} : vector<296x8xf32> to vector<256x8xf32>
      %c3 = arith.constant 3 : index
      %c0_12 = arith.constant 0 : index
      %c0_13 = arith.constant 0 : index
      %27 = vector.load %arg3[%c3, %c0_12, %c0_13] : memref<9x8x128xf32, #tpu.memory_space<vmem>>, vector<1x8x128xf32>
      %28 = vector.shape_cast %27 : vector<1x8x128xf32> to vector<8x128xf32>
      %cst_14 = arith.constant dense<0.000000e+00> : vector<256x128xf32>
      %29 = tpu.matmul %26, %28, %cst_14 {dimension_numbers = #tpu.dot_dimension_numbers<[1], [0], [0], [1], [0, 0, 1, 1], [], []>} : vector<256x8xf32>, vector<8x128xf32>, vector<256x128xf32> -> vector<256x128xf32>
      %30 = arith.addf %25, %29 : vector<256x128xf32>
      %31 = vector.extract_strided_slice %9 {offsets = [19, 0], sizes = [256, 8], strides = [1, 1]} : vector<296x8xf32> to vector<256x8xf32>
      %c4 = arith.constant 4 : index
      %c0_15 = arith.constant 0 : index
      %c0_16 = arith.constant 0 : index
      %32 = vector.load %arg3[%c4, %c0_15, %c0_16] : memref<9x8x128xf32, #tpu.memory_space<vmem>>, vector<1x8x128xf32>
      %33 = vector.shape_cast %32 : vector<1x8x128xf32> to vector<8x128xf32>
      %cst_17 = arith.constant dense<0.000000e+00> : vector<256x128xf32>
      %34 = tpu.matmul %31, %33, %cst_17 {dimension_numbers = #tpu.dot_dimension_numbers<[1], [0], [0], [1], [0, 0, 1, 1], [], []>} : vector<256x8xf32>, vector<8x128xf32>, vector<256x128xf32> -> vector<256x128xf32>
      %35 = arith.addf %30, %34 : vector<256x128xf32>
      %36 = vector.extract_strided_slice %9 {offsets = [20, 0], sizes = [256, 8], strides = [1, 1]} : vector<296x8xf32> to vector<256x8xf32>
      %c5 = arith.constant 5 : index
      %c0_18 = arith.constant 0 : index
      %c0_19 = arith.constant 0 : index
      %37 = vector.load %arg3[%c5, %c0_18, %c0_19] : memref<9x8x128xf32, #tpu.memory_space<vmem>>, vector<1x8x128xf32>
      %38 = vector.shape_cast %37 : vector<1x8x128xf32> to vector<8x128xf32>
      %cst_20 = arith.constant dense<0.000000e+00> : vector<256x128xf32>
      %39 = tpu.matmul %36, %38, %cst_20 {dimension_numbers = #tpu.dot_dimension_numbers<[1], [0], [0], [1], [0, 0, 1, 1], [], []>} : vector<256x8xf32>, vector<8x128xf32>, vector<256x128xf32> -> vector<256x128xf32>
      %40 = arith.addf %35, %39 : vector<256x128xf32>
      %41 = vector.extract_strided_slice %9 {offsets = [36, 0], sizes = [256, 8], strides = [1, 1]} : vector<296x8xf32> to vector<256x8xf32>
      %c6 = arith.constant 6 : index
      %c0_21 = arith.constant 0 : index
      %c0_22 = arith.constant 0 : index
      %42 = vector.load %arg3[%c6, %c0_21, %c0_22] : memref<9x8x128xf32, #tpu.memory_space<vmem>>, vector<1x8x128xf32>
      %43 = vector.shape_cast %42 : vector<1x8x128xf32> to vector<8x128xf32>
      %cst_23 = arith.constant dense<0.000000e+00> : vector<256x128xf32>
      %44 = tpu.matmul %41, %43, %cst_23 {dimension_numbers = #tpu.dot_dimension_numbers<[1], [0], [0], [1], [0, 0, 1, 1], [], []>} : vector<256x8xf32>, vector<8x128xf32>, vector<256x128xf32> -> vector<256x128xf32>
      %45 = arith.addf %40, %44 : vector<256x128xf32>
      %46 = vector.extract_strided_slice %9 {offsets = [37, 0], sizes = [256, 8], strides = [1, 1]} : vector<296x8xf32> to vector<256x8xf32>
      %c7 = arith.constant 7 : index
      %c0_24 = arith.constant 0 : index
      %c0_25 = arith.constant 0 : index
      %47 = vector.load %arg3[%c7, %c0_24, %c0_25] : memref<9x8x128xf32, #tpu.memory_space<vmem>>, vector<1x8x128xf32>
      %48 = vector.shape_cast %47 : vector<1x8x128xf32> to vector<8x128xf32>
      %cst_26 = arith.constant dense<0.000000e+00> : vector<256x128xf32>
      %49 = tpu.matmul %46, %48, %cst_26 {dimension_numbers = #tpu.dot_dimension_numbers<[1], [0], [0], [1], [0, 0, 1, 1], [], []>} : vector<256x8xf32>, vector<8x128xf32>, vector<256x128xf32> -> vector<256x128xf32>
      %50 = arith.addf %45, %49 : vector<256x128xf32>
      %51 = vector.extract_strided_slice %9 {offsets = [38, 0], sizes = [256, 8], strides = [1, 1]} : vector<296x8xf32> to vector<256x8xf32>
      %c8 = arith.constant 8 : index
      %c0_27 = arith.constant 0 : index
      %c0_28 = arith.constant 0 : index
      %52 = vector.load %arg3[%c8, %c0_27, %c0_28] : memref<9x8x128xf32, #tpu.memory_space<vmem>>, vector<1x8x128xf32>
      %53 = vector.shape_cast %52 : vector<1x8x128xf32> to vector<8x128xf32>
      %cst_29 = arith.constant dense<0.000000e+00> : vector<256x128xf32>
      %54 = tpu.matmul %51, %53, %cst_29 {dimension_numbers = #tpu.dot_dimension_numbers<[1], [0], [0], [1], [0, 0, 1, 1], [], []>} : vector<256x8xf32>, vector<8x128xf32>, vector<256x128xf32> -> vector<256x128xf32>
      %55 = arith.addf %50, %54 : vector<256x128xf32>
      %c0_30 = arith.constant 0 : index
      %c0_31 = arith.constant 0 : index
      %56 = vector.load %arg8[%c0_30, %c0_31] : memref<1x128xf32, #tpu.memory_space<vmem>>, vector<1x128xf32>
      %cst_32 = arith.constant 0.001953125 : f32
      %57 = vector.broadcast %cst_32 : f32 to vector<1x128xf32>
      %58 = arith.mulf %56, %57 : vector<1x128xf32>
      %c0_33 = arith.constant 0 : index
      %c0_34 = arith.constant 0 : index
      %59 = vector.load %arg9[%c0_33, %c0_34] : memref<1x128xf32, #tpu.memory_space<vmem>>, vector<1x128xf32>
      %cst_35 = arith.constant 0.001953125 : f32
      %60 = vector.broadcast %cst_35 : f32 to vector<1x128xf32>
      %61 = arith.mulf %59, %60 : vector<1x128xf32>
      %62 = arith.mulf %58, %58 : vector<1x128xf32>
      %63 = arith.subf %61, %62 : vector<1x128xf32>
      %c0_36 = arith.constant 0 : index
      %c0_37 = arith.constant 0 : index
      %64 = vector.load %arg4[%c0_36, %c0_37] : memref<1x128xf32, #tpu.memory_space<vmem>>, vector<1x128xf32>
      %cst_38 = arith.constant 9.99999974E-6 : f32
      %65 = vector.broadcast %cst_38 : f32 to vector<1x128xf32>
      %66 = arith.addf %63, %65 : vector<1x128xf32>
      %67 = math.rsqrt %66 : vector<1x128xf32>
      %68 = arith.mulf %64, %67 : vector<1x128xf32>
      %c0_39 = arith.constant 0 : index
      %c0_40 = arith.constant 0 : index
      %69 = vector.load %arg5[%c0_39, %c0_40] : memref<1x128xf32, #tpu.memory_space<vmem>>, vector<1x128xf32>
      %70 = arith.mulf %58, %68 : vector<1x128xf32>
      %71 = arith.subf %69, %70 : vector<1x128xf32>
      %72 = vector.broadcast %68 : vector<1x128xf32> to vector<256x128xf32>
      %73 = arith.mulf %55, %72 : vector<256x128xf32>
      %74 = vector.broadcast %71 : vector<1x128xf32> to vector<256x128xf32>
      %75 = arith.addf %73, %74 : vector<256x128xf32>
      %cst_41 = arith.constant 0.000000e+00 : f32
      %76 = vector.broadcast %cst_41 : f32 to vector<256x128xf32>
      %77 = arith.maximumf %75, %76 : vector<256x128xf32>
      %c0_42 = arith.constant 0 : index
      %c0_43 = arith.constant 0 : index
      %78 = vector.load %arg7[%c0_42, %c0_43] : memref<256x128xf32, #tpu.memory_space<vmem>>, vector<256x128xf32>
      tpu.vector_store %arg7[%c0_42, %c0_43], %77 {strides = array<i32>} : memref<256x128xf32, #tpu.memory_space<vmem>>, vector<256x128xf32>,
    } else {
    }
    return
  }
  func.func @transform_0(%arg0: i32, %arg1: i32) -> (i32, i32) {
    %c0_i32 = arith.constant 0 : i32
    %c0_i32_0 = arith.constant 0 : i32
    %c0_i32_1 = arith.constant 0 : i32
    return %c0_i32, %c0_i32_0 : i32, i32
  }
  func.func @transform_1(%arg0: i32, %arg1: i32) -> (i32, i32, i32) {
    %c0_i32 = arith.constant 0 : i32
    %c0_i32_0 = arith.constant 0 : i32
    %c0_i32_1 = arith.constant 0 : i32
    %c0_i32_2 = arith.constant 0 : i32
    return %c0_i32, %c0_i32_0, %c0_i32_1 : i32, i32, i32
  }
  func.func @transform_2(%arg0: i32, %arg1: i32) -> (i32, i32) {
    %c0_i32 = arith.constant 0 : i32
    %c0_i32_0 = arith.constant 0 : i32
    %c0_i32_1 = arith.constant 0 : i32
    return %c0_i32, %c0_i32_0 : i32, i32
  }
  func.func @transform_3(%arg0: i32, %arg1: i32) -> (i32, i32) {
    %c0_i32 = arith.constant 0 : i32
    %c0_i32_0 = arith.constant 0 : i32
    %c0_i32_1 = arith.constant 0 : i32
    return %c0_i32, %c0_i32_0 : i32, i32
  }
  func.func @transform_4(%arg0: i32, %arg1: i32) -> (i32, i32) {
    %c0_i32 = arith.constant 0 : i32
    %c0_i32_0 = arith.constant 0 : i32
    return %arg1, %c0_i32 : i32, i32
  }
  func.func @transform_5(%arg0: i32, %arg1: i32) -> (i32, i32) {
    %c0_i32 = arith.constant 0 : i32
    %c0_i32_0 = arith.constant 0 : i32
    return %arg1, %c0_i32 : i32, i32
  }
}

</mosaic_0001>

<llo_original>
// kernel: tpu_custom_call.1
$region0: #{tpu_custom_call.1}
  #allocation0 [shape = 'u32[]', space=smem, size = 0x4, offset = 0x4, fixed_abs, tag = 'smem constant byte address 0x4 - core index']
  #allocation1 [shape = 'u32[144,128]{1,0:T(1,128)}', space=vmem, size = 0x12000, scoped, tag = 'internal scratch']
  #allocation2 [shape = 'f32[1,128]{1,0:T(1,128)}', space=vmem, size = 0x200, scoped, tag = 'scratch operand']
  #allocation3 [shape = 'f32[1,128]{1,0:T(1,128)}', space=vmem, size = 0x200, scoped, tag = 'scratch operand']
  %s0 = inlined_call_operand.vmem [shape: f32[808,8], index: 0, kind: input, shape index: {}]
  %s1 = inlined_call_operand.vmem [shape: f32[9,8,128], index: 1, kind: input, shape index: {}]
  %s2 = inlined_call_operand.vmem [shape: f32[1,128], index: 2, kind: input, shape index: {}]
  %s3 = inlined_call_operand.vmem [shape: f32[1,128], index: 3, kind: input, shape index: {}]
  %s4 = inlined_call_operand.vmem [shape: f32[768,1], index: 4, kind: input, shape index: {}]
  %s5 = inlined_call_operand.hbm [shape: f32[768,128], index: 5, kind: output, shape index: {}]
  %s6 = sld [smem:[#allocation0]]
  $region65: #{tpu_custom_call.1} parent=0
    _
  %s8 = ssub.s32 1, %s6
  %s9 = scalar_select 0, %s8, %s6
  $region1: #{tpu_custom_call.1} parent=0
    #allocation4 [shape = 'u8[262144]{0}', space=vmem, size = 0x40000, scoped, tag = 'output window, operand 0']
    #allocation5 [shape = 's32[2]{0}', space=sflag, size = 0x8, scoped, tag = 'scoped memory for tpu_custom_call.1']
    %10 = vsyncpa [#allocation5], 0
    %s11 = scalar_lea.sflag [#allocation5], 1
    %12 = vsyncpa %s11, 0
    loop: start=0, step=1, limit=8
    $region2: #{tpu_custom_call.1} parent=1 // loop_pre_header
      _
    $region3: #{tpu_custom_call.1} parent=1 // loop_header
      %s14 = sphi 0, %s18
      %p15 = scmp.ge.s32.totalorder %s14, 8
      %s21 = sphi 0, %s33
      %s22 = sphi 0, %s29
      %s23 = sphi 0, %s21
      %s24 = sphi 0, %s22
      %s25 = sphi 0, %s23
      %s26 = sphi 0, %s24
      %s34 = sphi 0, %s34
      %s36 = sphi 0, %s34
      %s37 = sphi 0, %s36
      %s51 = sphi 0, %s37
      %s55 = sphi 0, %s55
      %s57 = sphi 0, %s55
      %s58 = sphi 0, %s57
      %s72 = sphi 0, %s58
      %s76 = sphi 0, %s76
      %s78 = sphi 0, %s76
      %s79 = sphi 0, %s78
      %s93 = sphi 0, %s79
      %s97 = sphi 0, %s97
      %s99 = sphi 0, %s97
      %s100 = sphi 0, %s99
      %s114 = sphi 0, %s100
      %s120 = sphi 0, %s122
      %s123 = sphi 0, %s120
      %s124 = sphi 0, %s123
      %s140 = sphi 0, %s124
      %s146 = sphi 0, %s148
      %s149 = sphi 0, %s146
      %s150 = sphi 0, %s149
      %s166 = sphi 0, %s150
    $region4: #{tpu_custom_call.1} parent=1 // loop_header_branch
      %17 = sbr.rel (%p15) target = $region8
    $region5: #{tpu_custom_call.1} parent=1 // loop_body
      %s19 = ssub.s32 %s14, 1
      %s20 = ssub.s32 %s14, 2
      %s27 = sadd.s32 1, %s22
      %p28 = scmp.ge.s32.totalorder %s27, 3
      %s29 = scalar_select %p28, 0, %s27
      %s30 = sadd.s32 1, %s21
      %s31 = scalar_select %p28, %s30, %s21
      %p32 = scmp.ge.s32.totalorder %s31, 2
      %s33 = scalar_select %p32, 0, %s31
      %s35 = sadd.s32 %s34, 1
      %p38 = scmp.eq.s32.totalorder %s14, 5
      %p39 = scmp.ne.s32.totalorder %s34, %s36
      %p40 = scmp.eq.s32.totalorder %s14, 0
      %p41 = por %p39, %p40
      %p42 = scmp.ne.s32.totalorder %s34, %s36
      %p43 = scmp.eq.s32.totalorder %s19, 5
      %p44 = por %p42, %p43
      %p45 = scmp.ne.s32.totalorder %s36, %s37
      %p46 = scmp.eq.s32.totalorder %s19, 0
      %p47 = por %p45, %p46
      %p48 = scmp.ne.s32.totalorder %s36, %s37
      %p49 = scmp.eq.s32.totalorder %s20, 5
      %p50 = por %p48, %p49
      %p52 = scmp.ne.s32.totalorder %s37, %s51
      %p53 = scmp.eq.s32.totalorder %s20, 0
      %p54 = por %p52, %p53
      %s56 = sadd.s32 %s55, 1
      %p59 = scmp.eq.s32.totalorder %s14, 5
      %p60 = scmp.ne.s32.totalorder %s55, %s57
      %p61 = scmp.eq.s32.totalorder %s14, 0
      %p62 = por %p60, %p61
      %p63 = scmp.ne.s32.totalorder %s55, %s57
      %p64 = scmp.eq.s32.totalorder %s19, 5
      %p65 = por %p63, %p64
      %p66 = scmp.ne.s32.totalorder %s57, %s58
      %p67 = scmp.eq.s32.totalorder %s19, 0
      %p68 = por %p66, %p67
      %p69 = scmp.ne.s32.totalorder %s57, %s58
      %p70 = scmp.eq.s32.totalorder %s20, 5
      %p71 = por %p69, %p70
      %p73 = scmp.ne.s32.totalorder %s58, %s72
      %p74 = scmp.eq.s32.totalorder %s20, 0
      %p75 = por %p73, %p74
      %s77 = sadd.s32 %s76, 1
      %p80 = scmp.eq.s32.totalorder %s14, 5
      %p81 = scmp.ne.s32.totalorder %s76, %s78
      %p82 = scmp.eq.s32.totalorder %s14, 0
      %p83 = por %p81, %p82
      %p84 = scmp.ne.s32.totalorder %s76, %s78
      %p85 = scmp.eq.s32.totalorder %s19, 5
      %p86 = por %p84, %p85
      %p87 = scmp.ne.s32.totalorder %s78, %s79
      %p88 = scmp.eq.s32.totalorder %s19, 0
      %p89 = por %p87, %p88
      %p90 = scmp.ne.s32.totalorder %s78, %s79
      %p91 = scmp.eq.s32.totalorder %s20, 5
      %p92 = por %p90, %p91
      %p94 = scmp.ne.s32.totalorder %s79, %s93
      %p95 = scmp.eq.s32.totalorder %s20, 0
      %p96 = por %p94, %p95
      %s98 = sadd.s32 %s97, 1
      %p101 = scmp.eq.s32.totalorder %s14, 5
      %p102 = scmp.ne.s32.totalorder %s97, %s99
      %p103 = scmp.eq.s32.totalorder %s14, 0
      %p104 = por %p102, %p103
      %p105 = scmp.ne.s32.totalorder %s97, %s99
      %p106 = scmp.eq.s32.totalorder %s19, 5
      %p107 = por %p105, %p106
      %p108 = scmp.ne.s32.totalorder %s99, %s100
      %p109 = scmp.eq.s32.totalorder %s19, 0
      %p110 = por %p108, %p109
      %p111 = scmp.ne.s32.totalorder %s99, %s100
      %p112 = scmp.eq.s32.totalorder %s20, 5
      %p113 = por %p111, %p112
      %p115 = scmp.ne.s32.totalorder %s100, %s114
      %p116 = scmp.eq.s32.totalorder %s20, 0
      %p117 = por %p115, %p116
      %s118 = ssub.s32 %s22, %s29
      %p119 = scmp.eq.s32.totalorder %s118, 0
      %s121 = sadd.s32 %s120, 1
      %s122 = scalar_select %p119, %s120, %s121
      %p125 = pneg %p119
      %p126 = scmp.eq.s32.totalorder %s14, 5
      %p127 = por %p125, %p126
      %p128 = scmp.ne.s32.totalorder %s120, %s123
      %p129 = scmp.eq.s32.totalorder %s14, 0
      %p130 = por %p128, %p129
      %p131 = scmp.ne.s32.totalorder %s120, %s123
      %p132 = scmp.eq.s32.totalorder %s19, 5
      %p133 = por %p131, %p132
      %p134 = scmp.ne.s32.totalorder %s123, %s124
      %p135 = scmp.eq.s32.totalorder %s19, 0
      %p136 = por %p134, %p135
      %p137 = scmp.ne.s32.totalorder %s123, %s124
      %p138 = scmp.eq.s32.totalorder %s20, 5
      %p139 = por %p137, %p138
      %p141 = scmp.ne.s32.totalorder %s124, %s140
      %p142 = scmp.eq.s32.totalorder %s20, 0
      %p143 = por %p141, %p142
      %s144 = ssub.s32 %s22, %s29
      %p145 = scmp.eq.s32.totalorder %s144, 0
      %s147 = sadd.s32 %s146, 1
      %s148 = scalar_select %p145, %s146, %s147
      %p151 = pneg %p145
      %p152 = scmp.eq.s32.totalorder %s14, 5
      %p153 = por %p151, %p152
      %p154 = scmp.ne.s32.totalorder %s146, %s149
      %p155 = scmp.eq.s32.totalorder %s14, 0
      %p156 = por %p154, %p155
      %p157 = scmp.ne.s32.totalorder %s146, %s149
      %p158 = scmp.eq.s32.totalorder %s19, 5
      %p159 = por %p157, %p158
      %p160 = scmp.ne.s32.totalorder %s149, %s150
      %p161 = scmp.eq.s32.totalorder %s19, 0
      %p162 = por %p160, %p161
      %p163 = scmp.ne.s32.totalorder %s149, %s150
      %p164 = scmp.eq.s32.totalorder %s20, 5
      %p165 = por %p163, %p164
      %p167 = scmp.ne.s32.totalorder %s150, %s166
      %p168 = scmp.eq.s32.totalorder %s20, 0
      %p169 = por %p167, %p168
      %p170 = scmp.le.s32.totalorder 1, %s14
      %p171 = scmp.lt.s32.totalorder %s14, 7
      %p172 = pnand %p170, %p171
      %p173 = pneg %p172
      // Predicated region
      $region9: #{tpu_custom_call.1} parent=5 // pred_check
        _
      $region10: #{tpu_custom_call.1} parent=5 // pred_check_branch
        %175 = sbr.rel (%p172) target = $region12
      $region11: #{tpu_custom_call.1} parent=5 // pred_region
        %s176 = ssub.s32 %s14, 1
        // Predicated region
        $region13: #{tpu_custom_call.1} parent=11 // pred_check
          %p177 = pneg %p47
        $region14: #{tpu_custom_call.1} parent=11 // pred_check_branch
          %179 = sbr.rel (%p177) target = $region16
        $region15: #{tpu_custom_call.1} parent=11 // pred_region
          _
        $region16: #{tpu_custom_call.1} parent=11 // pred_fallthru
          _
        // Predicated region
        $region17: #{tpu_custom_call.1} parent=11 // pred_check
          %p180 = pneg %p68
        $region18: #{tpu_custom_call.1} parent=11 // pred_check_branch
          %182 = sbr.rel (%p180) target = $region20
        $region19: #{tpu_custom_call.1} parent=11 // pred_region
          _
        $region20: #{tpu_custom_call.1} parent=11 // pred_fallthru
          _
        // Predicated region
        $region21: #{tpu_custom_call.1} parent=11 // pred_check
          %p183 = pneg %p89
        $region22: #{tpu_custom_call.1} parent=11 // pred_check_branch
          %185 = sbr.rel (%p183) target = $region24
        $region23: #{tpu_custom_call.1} parent=11 // pred_region
          _
        $region24: #{tpu_custom_call.1} parent=11 // pred_fallthru
          _
        // Predicated region
        $region25: #{tpu_custom_call.1} parent=11 // pred_check
          %p186 = pneg %p110
        $region26: #{tpu_custom_call.1} parent=11 // pred_check_branch
          %188 = sbr.rel (%p186) target = $region28
        $region27: #{tpu_custom_call.1} parent=11 // pred_region
          _
        $region28: #{tpu_custom_call.1} parent=11 // pred_fallthru
          _
      $region12: #{tpu_custom_call.1} parent=5 // pred_fallthru
        _
      %p189 = scmp.lt.s32.totalorder %s14, 6
      // Predicated region
      $region29: #{tpu_custom_call.1} parent=5 // pred_check
        %p190 = pneg %p189
      $region30: #{tpu_custom_call.1} parent=5 // pred_check_branch
        %192 = sbr.rel (%p190) target = $region32
      $region31: #{tpu_custom_call.1} parent=5 // pred_region
        // Predicated region
        $region33: #{tpu_custom_call.1} parent=31 // pred_check
          %p193 = pneg %p130
        $region34: #{tpu_custom_call.1} parent=31 // pred_check_branch
          %195 = sbr.rel (%p193) target = $region36
        $region35: #{tpu_custom_call.1} parent=31 // pred_region
          %s196 = smul.u32 32, %s22
          %p197 = scmp.lt.s32.totalorder %s196, 95
          %s198 = scalar_select %p197, %s196, 95
          %s199 = smul.addr %s198, 8
          %s200 = scalar_lea.vmem %s4, %s199
          %s201 = smul.u32 32, %s22
        $region36: #{tpu_custom_call.1} parent=31 // pred_fallthru
          _
      $region32: #{tpu_custom_call.1} parent=5 // pred_fallthru
        _
      %p202 = scmp.le.s32.totalorder 1, %s14
      %p203 = scmp.lt.s32.totalorder %s14, 7
      %p204 = pnand %p202, %p203
      %p205 = pneg %p204
      // Predicated region
      $region37: #{tpu_custom_call.1} parent=5 // pred_check
        _
      $region38: #{tpu_custom_call.1} parent=5 // pred_check_branch
        %207 = sbr.rel (%p204) target = $region40
      $region39: #{tpu_custom_call.1} parent=5 // pred_region
        %s208 = ssub.s32 %s14, 1
        %p209 = pneg %p47
        %p210 = pneg %p44
        %p211 = pneg %p68
        %p212 = pneg %p65
        %p213 = pneg %p89
        %p214 = pneg %p86
        %p215 = pneg %p110
        %p216 = pneg %p107
        %s217 = smul.u32 32, %s24
        %p218 = scmp.lt.s32.totalorder %s217, 95
        %s219 = scalar_select %p218, %s217, 95
        %s220 = smul.addr %s219, 8
        %s221 = scalar_lea.vmem %s4, %s220
        %p222 = pneg %p136
        %p223 = pneg %p133
        %p224 = pneg %p162
        %p225 = pneg %p159
        %s226 = sand.u32 %s149, 1
        %s227 = scalar_lea.sflag [#allocation5], %s226
        %s228 = sand.u32 %s149, 1
        %s229 = smul.addr %s228, 256
        %s230 = scalar_lea.vmem [#allocation4], %s229
        %s231 = smul.u32 32, %s24
        %p232 = scmp.lt.s32.totalorder %s231, 95
        %s233 = scalar_select %p232, %s231, 95
        %s234 = smul.addr %s233, 8
        %s235 = scalar_lea.vmem %s4, %s234
        %s236 = smul.u32 32, %s24
        %s237 = smul.u32 32, %s24
        %s238 = smul.u32 %s24, 256
        %p239 = scmp.eq.s32.totalorder %s23, 0
        // Predicated region
        $region41: #{tpu_custom_call.1} parent=39 // pred_check
          %p240 = pneg %p239
        $region42: #{tpu_custom_call.1} parent=39 // pred_check_branch
          %242 = sbr.rel (%p240) target = $region44
        $region43: #{tpu_custom_call.1} parent=39 // pred_region
          %p243 = scmp.eq.s32.totalorder %s24, 0
          // Predicated region
          $region45: #{tpu_custom_call.1} parent=43 // pred_check
            %p244 = pneg %p243
          $region46: #{tpu_custom_call.1} parent=43 // pred_check_branch
            %246 = sbr.rel (%p244) target = $region48
          $region47: #{tpu_custom_call.1} parent=43 // pred_region
            %247 = vst [vmem:[#allocation2] sm:$0x1] 0.0
            %248 = vst [vmem:[#allocation3] sm:$0x1] 0.0
          $region48: #{tpu_custom_call.1} parent=43 // pred_fallthru
            _
          %s249 = scalar_lea.vmem %s0, %s238
          %v250 = vld [vmem:[%s249] sm:$0xff]
          %v251 = vld [vmem:[%s249 + $0x8] sm:$0xff]
          %v252 = vld [vmem:[%s249 + $0x10] sm:$0xff]
          %v253 = vld [vmem:[%s249 + $0x18] sm:$0xff]
          %v254 = vld [vmem:[%s249 + $0x20] sm:$0xff]
          %v255 = vld [vmem:[%s249 + $0x28] sm:$0xff]
          %v256 = vld [vmem:[%s249 + $0x30] sm:$0xff]
          %v257 = vld [vmem:[%s249 + $0x38] sm:$0xff]
          %v258 = vld [vmem:[%s249 + $0x40] sm:$0xff]
          %v259 = vld [vmem:[%s249 + $0x48] sm:$0xff]
          %v260 = vld [vmem:[%s249 + $0x50] sm:$0xff]
          %v261 = vld [vmem:[%s249 + $0x58] sm:$0xff]
          %v262 = vld [vmem:[%s249 + $0x60] sm:$0xff]
          %v263 = vld [vmem:[%s249 + $0x68] sm:$0xff]
          %v264 = vld [vmem:[%s249 + $0x70] sm:$0xff]
          %v265 = vld [vmem:[%s249 + $0x78] sm:$0xff]
          %v266 = vld [vmem:[%s249 + $0x80] sm:$0xff]
          %v267 = vld [vmem:[%s249 + $0x88] sm:$0xff]
          %v268 = vld [vmem:[%s249 + $0x90] sm:$0xff]
          %v269 = vld [vmem:[%s249 + $0x98] sm:$0xff]
          %v270 = vld [vmem:[%s249 + $0xa0] sm:$0xff]
          %v271 = vld [vmem:[%s249 + $0xa8] sm:$0xff]
          %v272 = vld [vmem:[%s249 + $0xb0] sm:$0xff]
          %v273 = vld [vmem:[%s249 + $0xb8] sm:$0xff]
          %v274 = vld [vmem:[%s249 + $0xc0] sm:$0xff]
          %v275 = vld [vmem:[%s249 + $0xc8] sm:$0xff]
          %v276 = vld [vmem:[%s249 + $0xd0] sm:$0xff]
          %v277 = vld [vmem:[%s249 + $0xd8] sm:$0xff]
          %v278 = vld [vmem:[%s249 + $0xe0] sm:$0xff]
          %v279 = vld [vmem:[%s249 + $0xe8] sm:$0xff]
          %v280 = vld [vmem:[%s249 + $0xf0] sm:$0xff]
          %v281 = vld [vmem:[%s249 + $0xf8] sm:$0xff]
          %v282 = vld [vmem:[%s249 + $0x100] sm:$0xff]
          %v283 = vld [vmem:[%s249 + $0x108] sm:$0xff]
          %v284 = vld [vmem:[%s249 + $0x110] sm:$0xff]
          %v285 = vld [vmem:[%s249 + $0x118] sm:$0xff]
          %v286 = vld [vmem:[%s249 + $0x120] sm:$0xff]
          %v287 = vld [vmem:[%s1] sm:$0xff]
          %s288 = scalar_lea.vmem %s1, 8
          %v289 = vld [vmem:[%s288] sm:$0xff]
          %vm323 = vcmask 1046528
          %v324 = vrot.slane %v250, 1
          %v325 = vrot.slane %v251, 1
          %v326 = vsel %vm323, %v324, %v325
          %v327 = vrot.slane %v252, 1
          %v328 = vsel %vm323, %v325, %v327
          %v329 = vrot.slane %v253, 1
          %v330 = vsel %vm323, %v327, %v329
          %v331 = vrot.slane %v254, 1
          %v332 = vsel %vm323, %v329, %v331
          %v333 = vrot.slane %v255, 1
          %v334 = vsel %vm323, %v331, %v333
          %v335 = vrot.slane %v256, 1
          %v336 = vsel %vm323, %v333, %v335
          %v337 = vrot.slane %v257, 1
          %v338 = vsel %vm323, %v335, %v337
          %v339 = vrot.slane %v258, 1
          %v340 = vsel %vm323, %v337, %v339
          %v341 = vrot.slane %v259, 1
          %v342 = vsel %vm323, %v339, %v341
          %v343 = vrot.slane %v260, 1
          %v344 = vsel %vm323, %v341, %v343
          %v345 = vrot.slane %v261, 1
          %v346 = vsel %vm323, %v343, %v345
          %v347 = vrot.slane %v262, 1
          %v348 = vsel %vm323, %v345, %v347
          %v349 = vrot.slane %v263, 1
          %v350 = vsel %vm323, %v347, %v349
          %v351 = vrot.slane %v264, 1
          %v352 = vsel %vm323, %v349, %v351
          %v353 = vrot.slane %v265, 1
          %v354 = vsel %vm323, %v351, %v353
          %v355 = vrot.slane %v266, 1
          %v356 = vsel %vm323, %v353, %v355
          %v357 = vrot.slane %v267, 1
          %v358 = vsel %vm323, %v355, %v357
          %v359 = vrot.slane %v268, 1
          %v360 = vsel %vm323, %v357, %v359
          %v361 = vrot.slane %v269, 1
          %v362 = vsel %vm323, %v359, %v361
          %v363 = vrot.slane %v270, 1
          %v364 = vsel %vm323, %v361, %v363
          %v365 = vrot.slane %v271, 1
          %v366 = vsel %vm323, %v363, %v365
          %v367 = vrot.slane %v272, 1
          %v368 = vsel %vm323, %v365, %v367
          %v369 = vrot.slane %v273, 1
          %v370 = vsel %vm323, %v367, %v369
          %v371 = vrot.slane %v274, 1
          %v372 = vsel %vm323, %v369, %v371
          %v373 = vrot.slane %v275, 1
          %v374 = vsel %vm323, %v371, %v373
          %v375 = vrot.slane %v276, 1
          %v376 = vsel %vm323, %v373, %v375
          %v377 = vrot.slane %v277, 1
          %v378 = vsel %vm323, %v375, %v377
          %v379 = vrot.slane %v278, 1
          %v380 = vsel %vm323, %v377, %v379
          %v381 = vrot.slane %v279, 1
          %v382 = vsel %vm323, %v379, %v381
          %v383 = vrot.slane %v280, 1
          %v384 = vsel %vm323, %v381, %v383
          %v385 = vrot.slane %v281, 1
          %v386 = vsel %vm323, %v383, %v385
          %v387 = vrot.slane %v282, 1
          %v388 = vsel %vm323, %v385, %v387
          %vm389 = vcmask 64512
          %v390 = vsel %vm389, %v326, 0
          %v392 = vsel %vm389, %v328, 0
          %v394 = vsel %vm389, %v330, 0
          %v396 = vsel %vm389, %v332, 0
          %v398 = vsel %vm389, %v334, 0
          %v400 = vsel %vm389, %v336, 0
          %v402 = vsel %vm389, %v338, 0
          %v404 = vsel %vm389, %v340, 0
          %v406 = vsel %vm389, %v342, 0
          %v408 = vsel %vm389, %v344, 0
          %v410 = vsel %vm389, %v346, 0
          %v412 = vsel %vm389, %v348, 0
          %v414 = vsel %vm389, %v350, 0
          %v416 = vsel %vm389, %v352, 0
          %v418 = vsel %vm389, %v354, 0
          %v420 = vsel %vm389, %v356, 0
          %v422 = vsel %vm389, %v358, 0
          %v424 = vsel %vm389, %v360, 0
          %v426 = vsel %vm389, %v362, 0
          %v428 = vsel %vm389, %v364, 0
          %v430 = vsel %vm389, %v366, 0
          %v432 = vsel %vm389, %v368, 0
          %v434 = vsel %vm389, %v370, 0
          %v436 = vsel %vm389, %v372, 0
          %v438 = vsel %vm389, %v374, 0
          %v440 = vsel %vm389, %v376, 0
          %v442 = vsel %vm389, %v378, 0
          %v444 = vsel %vm389, %v380, 0
          %v446 = vsel %vm389, %v382, 0
          %v448 = vsel %vm389, %v384, 0
          %v450 = vsel %vm389, %v386, 0
          %v452 = vsel %vm389, %v388, 0
          %454 = vmatprep.subr.mxu0 0.0
          %455 = vmatpush1.msra.mxu0 0.0
          %456 = vmatprep.subr.mxu0 0.0
          %457 = vmatpush1.msra.mxu0 0.0
          %458 = vmatprep.subr.mxu0 0.0
          %459 = vmatpush1.msra.mxu0 0.0
          %460 = vmatprep.subr.mxu0 0.0
          %461 = vmatpush1.msra.mxu0 0.0
          %462 = vmatprep.subr.mxu0 0.0
          %463 = vmatpush1.msra.mxu0 0.0
          %464 = vmatprep.subr.mxu0 0.0
          %465 = vmatpush1.msra.mxu0 0.0
          %466 = vmatprep.subr.mxu0 0.0
          %467 = vmatpush1.msra.mxu0 0.0
          %468 = vmatprep.subr.mxu0 0.0
          %469 = vmatpush1.msra.mxu0 0.0
          %470 = vmatprep.subr.mxu0 0.0
          %471 = vmatpush1.msra.mxu0 0.0
          %472 = vmatprep.subr.mxu0 0.0
          %473 = vmatpush1.msra.mxu0 0.0
          %474 = vmatprep.subr.mxu0 0.0
          %475 = vmatpush1.msra.mxu0 0.0
          %476 = vmatprep.subr.mxu0 0.0
          %477 = vmatpush1.msra.mxu0 0.0
          %478 = vmatprep.subr.mxu0 0.0
          %479 = vmatpush1.msra.mxu0 0.0
          %480 = vmatprep.subr.mxu0 0.0
          %481 = vmatpush1.msra.mxu0 0.0
          %482 = vmatprep.subr.mxu0 0.0
          %483 = vmatpush1.msra.mxu0 0.0
          %484 = vmatprep.subr.mxu0 0.0
          %485 = vmatpush1.msra.mxu0 %v289
          %486 = vmatprep.subr.mxu0 0.0
          %487 = vmatpush2.msra.mxu0 0.0
          %488 = vmatprep.subr.mxu0 0.0
          %489 = vmatpush2.msra.mxu0 0.0
          %490 = vmatprep.subr.mxu0 0.0
          %491 = vmatpush2.msra.mxu0 0.0
          %492 = vmatprep.subr.mxu0 0.0
          %493 = vmatpush2.msra.mxu0 0.0
          %494 = vmatprep.subr.mxu0 0.0
          %495 = vmatpush2.msra.mxu0 0.0
          %496 = vmatprep.subr.mxu0 0.0
          %497 = vmatpush2.msra.mxu0 0.0
          %498 = vmatprep.subr.mxu0 0.0
          %499 = vmatpush2.msra.mxu0 0.0
          %500 = vmatprep.subr.mxu0 0.0
          %501 = vmatpush2.msra.mxu0 0.0
          %502 = vmatprep.subr.mxu0 0.0
          %503 = vmatpush2.msra.mxu0 0.0
          %504 = vmatprep.subr.mxu0 0.0
          %505 = vmatpush2.msra.mxu0 0.0
          %506 = vmatprep.subr.mxu0 0.0
          %507 = vmatpush2.msra.mxu0 0.0
          %508 = vmatprep.subr.mxu0 0.0
          %509 = vmatpush2.msra.mxu0 0.0
          %510 = vmatprep.subr.mxu0 0.0
          %511 = vmatpush2.msra.mxu0 0.0
          %512 = vmatprep.subr.mxu0 0.0
          %513 = vmatpush2.msra.mxu0 0.0
          %514 = vmatprep.subr.mxu0 0.0
          %515 = vmatpush2.msra.mxu0 0.0
          %516 = vmatprep.subr.mxu0 0.0
          %517 = vmatpush2.msra.mxu0 0.0
          %518 = vmatprep.mubr.f32.mxu0 0.0
          %519 = vmatmul.mubr.f32.gmra.mxu0 %v390
          %v520 = vpop.f32.mrf.mxu0
          %v521 = vadd.f32 0.0, %v520
          %v522 = vpop.f32.mrf.mxu0
          %523 = vmatprep.mubr.f32.mxu0 0.0
          %524 = vmatmul.mubr.f32.gmra.mxu0 %v392
          %v525 = vpop.f32.mrf.mxu0
          %v526 = vadd.f32 0.0, %v525
          %v527 = vpop.f32.mrf.mxu0
          %528 = vmatprep.mubr.f32.mxu0 0.0
          %529 = vmatmul.mubr.f32.gmra.mxu0 %v394
          %v530 = vpop.f32.mrf.mxu0
          %v531 = vadd.f32 0.0, %v530
          %v532 = vpop.f32.mrf.mxu0
          %533 = vmatprep.mubr.f32.mxu0 0.0
          %534 = vmatmul.mubr.f32.gmra.mxu0 %v396
          %v535 = vpop.f32.mrf.mxu0
          %v536 = vadd.f32 0.0, %v535
          %v537 = vpop.f32.mrf.mxu0
          %538 = vmatprep.mubr.f32.mxu0 0.0
          %539 = vmatmul.mubr.f32.gmra.mxu0 %v398
          %v540 = vpop.f32.mrf.mxu0
          %v541 = vadd.f32 0.0, %v540
          %v542 = vpop.f32.mrf.mxu0
          %543 = vmatprep.mubr.f32.mxu0 0.0
          %544 = vmatmul.mubr.f32.gmra.mxu0 %v400
          %v545 = vpop.f32.mrf.mxu0
          %v546 = vadd.f32 0.0, %v545
          %v547 = vpop.f32.mrf.mxu0
          %548 = vmatprep.mubr.f32.mxu0 0.0
          %549 = vmatmul.mubr.f32.gmra.mxu0 %v402
          %v550 = vpop.f32.mrf.mxu0
          %v551 = vadd.f32 0.0, %v550
          %v552 = vpop.f32.mrf.mxu0
          %553 = vmatprep.mubr.f32.mxu0 0.0
          %554 = vmatmul.mubr.f32.gmra.mxu0 %v404
          %v555 = vpop.f32.mrf.mxu0
          %v556 = vadd.f32 0.0, %v555
          %v557 = vpop.f32.mrf.mxu0
          %558 = vmatprep.mubr.f32.mxu0 0.0
          %559 = vmatmul.mubr.f32.gmra.mxu0 %v406
          %v560 = vpop.f32.mrf.mxu0
          %v561 = vadd.f32 0.0, %v560
          %v562 = vpop.f32.mrf.mxu0
          %563 = vmatprep.mubr.f32.mxu0 0.0
          %564 = vmatmul.mubr.f32.gmra.mxu0 %v408
          %v565 = vpop.f32.mrf.mxu0
          %v566 = vadd.f32 0.0, %v565
          %v567 = vpop.f32.mrf.mxu0
          %568 = vmatprep.mubr.f32.mxu0 0.0
          %569 = vmatmul.mubr.f32.gmra.mxu0 %v410
          %v570 = vpop.f32.mrf.mxu0
          %v571 = vadd.f32 0.0, %v570
          %v572 = vpop.f32.mrf.mxu0
          %573 = vmatprep.mubr.f32.mxu0 0.0
          %574 = vmatmul.mubr.f32.gmra.mxu0 %v412
          %v575 = vpop.f32.mrf.mxu0
          %v576 = vadd.f32 0.0, %v575
          %v577 = vpop.f32.mrf.mxu0
          %578 = vmatprep.mubr.f32.mxu0 0.0
          %579 = vmatmul.mubr.f32.gmra.mxu0 %v414
          %v580 = vpop.f32.mrf.mxu0
          %v581 = vadd.f32 0.0, %v580
          %v582 = vpop.f32.mrf.mxu0
          %583 = vmatprep.mubr.f32.mxu0 0.0
          %584 = vmatmul.mubr.f32.gmra.mxu0 %v416
          %v585 = vpop.f32.mrf.mxu0
          %v586 = vadd.f32 0.0, %v585
          %v587 = vpop.f32.mrf.mxu0
          %588 = vmatprep.mubr.f32.mxu0 0.0
          %589 = vmatmul.mubr.f32.gmra.mxu0 %v418
          %v590 = vpop.f32.mrf.mxu0
          %v591 = vadd.f32 0.0, %v590
          %v592 = vpop.f32.mrf.mxu0
          %593 = vmatprep.mubr.f32.mxu0 0.0
          %594 = vmatmul.mubr.f32.gmra.mxu0 %v420
          %v595 = vpop.f32.mrf.mxu0
          %v596 = vadd.f32 0.0, %v595
          %v597 = vpop.f32.mrf.mxu0
          %598 = vmatprep.mubr.f32.mxu0 0.0
          %599 = vmatmul.mubr.f32.gmra.mxu0 %v422
          %v600 = vpop.f32.mrf.mxu0
          %v601 = vadd.f32 0.0, %v600
          %v602 = vpop.f32.mrf.mxu0
          %603 = vmatprep.mubr.f32.mxu0 0.0
          %604 = vmatmul.mubr.f32.gmra.mxu0 %v424
          %v605 = vpop.f32.mrf.mxu0
          %v606 = vadd.f32 0.0, %v605
          %v607 = vpop.f32.mrf.mxu0
          %608 = vmatprep.mubr.f32.mxu0 0.0
          %609 = vmatmul.mubr.f32.gmra.mxu0 %v426
          %v610 = vpop.f32.mrf.mxu0
          %v611 = vadd.f32 0.0, %v610
          %v612 = vpop.f32.mrf.mxu0
          %613 = vmatprep.mubr.f32.mxu0 0.0
          %614 = vmatmul.mubr.f32.gmra.mxu0 %v428
          %v615 = vpop.f32.mrf.mxu0
          %v616 = vadd.f32 0.0, %v615
          %v617 = vpop.f32.mrf.mxu0
          %618 = vmatprep.mubr.f32.mxu0 0.0
          %619 = vmatmul.mubr.f32.gmra.mxu0 %v430
          %v620 = vpop.f32.mrf.mxu0
          %v621 = vadd.f32 0.0, %v620
          %v622 = vpop.f32.mrf.mxu0
          %623 = vmatprep.mubr.f32.mxu0 0.0
          %624 = vmatmul.mubr.f32.gmra.mxu0 %v432
          %v625 = vpop.f32.mrf.mxu0
          %v626 = vadd.f32 0.0, %v625
          %v627 = vpop.f32.mrf.mxu0
          %628 = vmatprep.mubr.f32.mxu0 0.0
          %629 = vmatmul.mubr.f32.gmra.mxu0 %v434
          %v630 = vpop.f32.mrf.mxu0
          %v631 = vadd.f32 0.0, %v630
          %v632 = vpop.f32.mrf.mxu0
          %633 = vmatprep.mubr.f32.mxu0 0.0
          %634 = vmatmul.mubr.f32.gmra.mxu0 %v436
          %v635 = vpop.f32.mrf.mxu0
          %v636 = vadd.f32 0.0, %v635
          %v637 = vpop.f32.mrf.mxu0
          %638 = vmatprep.mubr.f32.mxu0 0.0
          %639 = vmatmul.mubr.f32.gmra.mxu0 %v438
          %v640 = vpop.f32.mrf.mxu0
          %v641 = vadd.f32 0.0, %v640
          %v642 = vpop.f32.mrf.mxu0
          %643 = vmatprep.mubr.f32.mxu0 0.0
          %644 = vmatmul.mubr.f32.gmra.mxu0 %v440
          %v645 = vpop.f32.mrf.mxu0
          %v646 = vadd.f32 0.0, %v645
          %v647 = vpop.f32.mrf.mxu0
          %648 = vmatprep.mubr.f32.mxu0 0.0
          %649 = vmatmul.mubr.f32.gmra.mxu0 %v442
          %v650 = vpop.f32.mrf.mxu0
          %v651 = vadd.f32 0.0, %v650
          %v652 = vpop.f32.mrf.mxu0
          %653 = vmatprep.mubr.f32.mxu0 0.0
          %654 = vmatmul.mubr.f32.gmra.mxu0 %v444
          %v655 = vpop.f32.mrf.mxu0
          %v656 = vadd.f32 0.0, %v655
          %v657 = vpop.f32.mrf.mxu0
          %658 = vmatprep.mubr.f32.mxu0 0.0
          %659 = vmatmul.mubr.f32.gmra.mxu0 %v446
          %v660 = vpop.f32.mrf.mxu0
          %v661 = vadd.f32 0.0, %v660
          %v662 = vpop.f32.mrf.mxu0
          %663 = vmatprep.mubr.f32.mxu0 0.0
          %664 = vmatmul.mubr.f32.gmra.mxu0 %v448
          %v665 = vpop.f32.mrf.mxu0
          %v666 = vadd.f32 0.0, %v665
          %v667 = vpop.f32.mrf.mxu0
          %668 = vmatprep.mubr.f32.mxu0 0.0
          %669 = vmatmul.mubr.f32.gmra.mxu0 %v450
          %v670 = vpop.f32.mrf.mxu0
          %v671 = vadd.f32 0.0, %v670
          %v672 = vpop.f32.mrf.mxu0
          %673 = vmatprep.mubr.f32.mxu0 0.0
          %674 = vmatmul.mubr.f32.gmra.mxu0 %v452
          %v675 = vpop.f32.mrf.mxu0
          %v676 = vadd.f32 0.0, %v675
          %v677 = vpop.f32.mrf.mxu0
          %678 = vdwg.mxu0
          %v679 = vsel %vm389, %v250, 0
          %v681 = vsel %vm389, %v251, 0
          %v683 = vsel %vm389, %v252, 0
          %v685 = vsel %vm389, %v253, 0
          %v687 = vsel %vm389, %v254, 0
          %v689 = vsel %vm389, %v255, 0
          %v691 = vsel %vm389, %v256, 0
          %v693 = vsel %vm389, %v257, 0
          %v695 = vsel %vm389, %v258, 0
          %v697 = vsel %vm389, %v259, 0
          %v699 = vsel %vm389, %v260, 0
          %v701 = vsel %vm389, %v261, 0
          %v703 = vsel %vm389, %v262, 0
          %v705 = vsel %vm389, %v263, 0
          %v707 = vsel %vm389, %v264, 0
          %v709 = vsel %vm389, %v265, 0
          %v711 = vsel %vm389, %v266, 0
          %v713 = vsel %vm389, %v267, 0
          %v715 = vsel %vm389, %v268, 0
          %v717 = vsel %vm389, %v269, 0
          %v719 = vsel %vm389, %v270, 0
          %v721 = vsel %vm389, %v271, 0
          %v723 = vsel %vm389, %v272, 0
          %v725 = vsel %vm389, %v273, 0
          %v727 = vsel %vm389, %v274, 0
          %v729 = vsel %vm389, %v275, 0
          %v731 = vsel %vm389, %v276, 0
          %v733 = vsel %vm389, %v277, 0
          %v735 = vsel %vm389, %v278, 0
          %v737 = vsel %vm389, %v279, 0
          %v739 = vsel %vm389, %v280, 0
          %v741 = vsel %vm389, %v281, 0
          %743 = vmatprep.subr.mxu0 0.0
          %744 = vmatpush1.msra.mxu0 0.0
          %745 = vmatprep.subr.mxu0 0.0
          %746 = vmatpush1.msra.mxu0 0.0
          %747 = vmatprep.subr.mxu0 0.0
          %748 = vmatpush1.msra.mxu0 0.0
          %749 = vmatprep.subr.mxu0 0.0
          %750 = vmatpush1.msra.mxu0 0.0
          %751 = vmatprep.subr.mxu0 0.0
          %752 = vmatpush1.msra.mxu0 0.0
          %753 = vmatprep.subr.mxu0 0.0
          %754 = vmatpush1.msra.mxu0 0.0
          %755 = vmatprep.subr.mxu0 0.0
          %756 = vmatpush1.msra.mxu0 0.0
          %757 = vmatprep.subr.mxu0 0.0
          %758 = vmatpush1.msra.mxu0 0.0
          %759 = vmatprep.subr.mxu0 0.0
          %760 = vmatpush1.msra.mxu0 0.0
          %761 = vmatprep.subr.mxu0 0.0
          %762 = vmatpush1.msra.mxu0 0.0
          %763 = vmatprep.subr.mxu0 0.0
          %764 = vmatpush1.msra.mxu0 0.0
          %765 = vmatprep.subr.mxu0 0.0
          %766 = vmatpush1.msra.mxu0 0.0
          %767 = vmatprep.subr.mxu0 0.0
          %768 = vmatpush1.msra.mxu0 0.0
          %769 = vmatprep.subr.mxu0 0.0
          %770 = vmatpush1.msra.mxu0 0.0
          %771 = vmatprep.subr.mxu0 0.0
          %772 = vmatpush1.msra.mxu0 0.0
          %773 = vmatprep.subr.mxu0 0.0
          %774 = vmatpush1.msra.mxu0 %v287
          %775 = vmatprep.subr.mxu0 0.0
          %776 = vmatpush2.msra.mxu0 0.0
          %777 = vmatprep.subr.mxu0 0.0
          %778 = vmatpush2.msra.mxu0 0.0
          %779 = vmatprep.subr.mxu0 0.0
          %780 = vmatpush2.msra.mxu0 0.0
          %781 = vmatprep.subr.mxu0 0.0
          %782 = vmatpush2.msra.mxu0 0.0
          %783 = vmatprep.subr.mxu0 0.0
          %784 = vmatpush2.msra.mxu0 0.0
          %785 = vmatprep.subr.mxu0 0.0
          %786 = vmatpush2.msra.mxu0 0.0
          %787 = vmatprep.subr.mxu0 0.0
          %788 = vmatpush2.msra.mxu0 0.0
          %789 = vmatprep.subr.mxu0 0.0
          %790 = vmatpush2.msra.mxu0 0.0
          %791 = vmatprep.subr.mxu0 0.0
          %792 = vmatpush2.msra.mxu0 0.0
          %793 = vmatprep.subr.mxu0 0.0
          %794 = vmatpush2.msra.mxu0 0.0
          %795 = vmatprep.subr.mxu0 0.0
          %796 = vmatpush2.msra.mxu0 0.0
          %797 = vmatprep.subr.mxu0 0.0
          %798 = vmatpush2.msra.mxu0 0.0
          %799 = vmatprep.subr.mxu0 0.0
          %800 = vmatpush2.msra.mxu0 0.0
          %801 = vmatprep.subr.mxu0 0.0
          %802 = vmatpush2.msra.mxu0 0.0
          %803 = vmatprep.subr.mxu0 0.0
          %804 = vmatpush2.msra.mxu0 0.0
          %805 = vmatprep.subr.mxu0 0.0
          %806 = vmatpush2.msra.mxu0 0.0
          %807 = vmatprep.mubr.f32.mxu0 0.0
          %808 = vmatmul.mubr.f32.gmra.mxu0 %v679
          %v809 = vpop.f32.mrf.mxu0
          %v810 = vadd.f32 %v521, %v809
          %v811 = vpop.f32.mrf.mxu0
          %812 = vmatprep.mubr.f32.mxu0 0.0
          %813 = vmatmul.mubr.f32.gmra.mxu0 %v681
          %v814 = vpop.f32.mrf.mxu0
          %v815 = vadd.f32 %v526, %v814
          %v816 = vpop.f32.mrf.mxu0
          %817 = vmatprep.mubr.f32.mxu0 0.0
          %818 = vmatmul.mubr.f32.gmra.mxu0 %v683
          %v819 = vpop.f32.mrf.mxu0
          %v820 = vadd.f32 %v531, %v819
          %v821 = vpop.f32.mrf.mxu0
          %822 = vmatprep.mubr.f32.mxu0 0.0
          %823 = vmatmul.mubr.f32.gmra.mxu0 %v685
          %v824 = vpop.f32.mrf.mxu0
          %v825 = vadd.f32 %v536, %v824
          %v826 = vpop.f32.mrf.mxu0
          %827 = vmatprep.mubr.f32.mxu0 0.0
          %828 = vmatmul.mubr.f32.gmra.mxu0 %v687
          %v829 = vpop.f32.mrf.mxu0
          %v830 = vadd.f32 %v541, %v829
          %v831 = vpop.f32.mrf.mxu0
          %832 = vmatprep.mubr.f32.mxu0 0.0
          %833 = vmatmul.mubr.f32.gmra.mxu0 %v689
          %v834 = vpop.f32.mrf.mxu0
          %v835 = vadd.f32 %v546, %v834
          %v836 = vpop.f32.mrf.mxu0
          %837 = vmatprep.mubr.f32.mxu0 0.0
          %838 = vmatmul.mubr.f32.gmra.mxu0 %v691
          %v839 = vpop.f32.mrf.mxu0
          %v840 = vadd.f32 %v551, %v839
          %v841 = vpop.f32.mrf.mxu0
          %842 = vmatprep.mubr.f32.mxu0 0.0
          %843 = vmatmul.mubr.f32.gmra.mxu0 %v693
          %v844 = vpop.f32.mrf.mxu0
          %v845 = vadd.f32 %v556, %v844
          %v846 = vpop.f32.mrf.mxu0
          %847 = vmatprep.mubr.f32.mxu0 0.0
          %848 = vmatmul.mubr.f32.gmra.mxu0 %v695
          %v849 = vpop.f32.mrf.mxu0
          %v850 = vadd.f32 %v561, %v849
          %v851 = vpop.f32.mrf.mxu0
          %852 = vmatprep.mubr.f32.mxu0 0.0
          %853 = vmatmul.mubr.f32.gmra.mxu0 %v697
          %v854 = vpop.f32.mrf.mxu0
          %v855 = vadd.f32 %v566, %v854
          %v856 = vpop.f32.mrf.mxu0
          %857 = vmatprep.mubr.f32.mxu0 0.0
          %858 = vmatmul.mubr.f32.gmra.mxu0 %v699
          %v859 = vpop.f32.mrf.mxu0
          %v860 = vadd.f32 %v571, %v859
          %v861 = vpop.f32.mrf.mxu0
          %862 = vmatprep.mubr.f32.mxu0 0.0
          %863 = vmatmul.mubr.f32.gmra.mxu0 %v701
          %v864 = vpop.f32.mrf.mxu0
          %v865 = vadd.f32 %v576, %v864
          %v866 = vpop.f32.mrf.mxu0
          %867 = vmatprep.mubr.f32.mxu0 0.0
          %868 = vmatmul.mubr.f32.gmra.mxu0 %v703
          %v869 = vpop.f32.mrf.mxu0
          %v870 = vadd.f32 %v581, %v869
          %v871 = vpop.f32.mrf.mxu0
          %872 = vmatprep.mubr.f32.mxu0 0.0
          %873 = vmatmul.mubr.f32.gmra.mxu0 %v705
          %v874 = vpop.f32.mrf.mxu0
          %v875 = vadd.f32 %v586, %v874
          %v876 = vpop.f32.mrf.mxu0
          %877 = vmatprep.mubr.f32.mxu0 0.0
          %878 = vmatmul.mubr.f32.gmra.mxu0 %v707
          %v879 = vpop.f32.mrf.mxu0
          %v880 = vadd.f32 %v591, %v879
          %v881 = vpop.f32.mrf.mxu0
          %882 = vmatprep.mubr.f32.mxu0 0.0
          %883 = vmatmul.mubr.f32.gmra.mxu0 %v709
          %v884 = vpop.f32.mrf.mxu0
          %v885 = vadd.f32 %v596, %v884
          %v886 = vpop.f32.mrf.mxu0
          %887 = vmatprep.mubr.f32.mxu0 0.0
          %888 = vmatmul.mubr.f32.gmra.mxu0 %v711
          %v889 = vpop.f32.mrf.mxu0
          %v890 = vadd.f32 %v601, %v889
          %v891 = vpop.f32.mrf.mxu0
          %892 = vmatprep.mubr.f32.mxu0 0.0
          %893 = vmatmul.mubr.f32.gmra.mxu0 %v713
          %v894 = vpop.f32.mrf.mxu0
          %v895 = vadd.f32 %v606, %v894
          %v896 = vpop.f32.mrf.mxu0
          %897 = vmatprep.mubr.f32.mxu0 0.0
          %898 = vmatmul.mubr.f32.gmra.mxu0 %v715
          %v899 = vpop.f32.mrf.mxu0
          %v900 = vadd.f32 %v611, %v899
          %v901 = vpop.f32.mrf.mxu0
          %902 = vmatprep.mubr.f32.mxu0 0.0
          %903 = vmatmul.mubr.f32.gmra.mxu0 %v717
          %v904 = vpop.f32.mrf.mxu0
          %v905 = vadd.f32 %v616, %v904
          %v906 = vpop.f32.mrf.mxu0
          %907 = vmatprep.mubr.f32.mxu0 0.0
          %908 = vmatmul.mubr.f32.gmra.mxu0 %v719
          %v909 = vpop.f32.mrf.mxu0
          %v910 = vadd.f32 %v621, %v909
          %v911 = vpop.f32.mrf.mxu0
          %912 = vmatprep.mubr.f32.mxu0 0.0
          %913 = vmatmul.mubr.f32.gmra.mxu0 %v721
          %v914 = vpop.f32.mrf.mxu0
          %v915 = vadd.f32 %v626, %v914
          %v916 = vpop.f32.mrf.mxu0
          %917 = vmatprep.mubr.f32.mxu0 0.0
          %918 = vmatmul.mubr.f32.gmra.mxu0 %v723
          %v919 = vpop.f32.mrf.mxu0
          %v920 = vadd.f32 %v631, %v919
          %v921 = vpop.f32.mrf.mxu0
          %922 = vmatprep.mubr.f32.mxu0 0.0
          %923 = vmatmul.mubr.f32.gmra.mxu0 %v725
          %v924 = vpop.f32.mrf.mxu0
          %v925 = vadd.f32 %v636, %v924
          %v926 = vpop.f32.mrf.mxu0
          %927 = vmatprep.mubr.f32.mxu0 0.0
          %928 = vmatmul.mubr.f32.gmra.mxu0 %v727
          %v929 = vpop.f32.mrf.mxu0
          %v930 = vadd.f32 %v641, %v929
          %v931 = vpop.f32.mrf.mxu0
          %932 = vmatprep.mubr.f32.mxu0 0.0
          %933 = vmatmul.mubr.f32.gmra.mxu0 %v729
          %v934 = vpop.f32.mrf.mxu0
          %v935 = vadd.f32 %v646, %v934
          %v936 = vpop.f32.mrf.mxu0
          %937 = vmatprep.mubr.f32.mxu0 0.0
          %938 = vmatmul.mubr.f32.gmra.mxu0 %v731
          %v939 = vpop.f32.mrf.mxu0
          %v940 = vadd.f32 %v651, %v939
          %v941 = vpop.f32.mrf.mxu0
          %942 = vmatprep.mubr.f32.mxu0 0.0
          %943 = vmatmul.mubr.f32.gmra.mxu0 %v733
          %v944 = vpop.f32.mrf.mxu0
          %v945 = vadd.f32 %v656, %v944
          %v946 = vpop.f32.mrf.mxu0
          %947 = vmatprep.mubr.f32.mxu0 0.0
          %948 = vmatmul.mubr.f32.gmra.mxu0 %v735
          %v949 = vpop.f32.mrf.mxu0
          %v950 = vadd.f32 %v661, %v949
          %v951 = vpop.f32.mrf.mxu0
          %952 = vmatprep.mubr.f32.mxu0 0.0
          %953 = vmatmul.mubr.f32.gmra.mxu0 %v737
          %v954 = vpop.f32.mrf.mxu0
          %v955 = vadd.f32 %v666, %v954
          %v956 = vpop.f32.mrf.mxu0
          %957 = vmatprep.mubr.f32.mxu0 0.0
          %958 = vmatmul.mubr.f32.gmra.mxu0 %v739
          %v959 = vpop.f32.mrf.mxu0
          %v960 = vadd.f32 %v671, %v959
          %v961 = vpop.f32.mrf.mxu0
          %962 = vmatprep.mubr.f32.mxu0 0.0
          %963 = vmatmul.mubr.f32.gmra.mxu0 %v741
          %v964 = vpop.f32.mrf.mxu0
          %v965 = vadd.f32 %v676, %v964
          %v966 = vpop.f32.mrf.mxu0
          %967 = vdwg.mxu0
          %s968 = scalar_lea.vmem %s1, 16
          %v969 = vld [vmem:[%s968] sm:$0xff]
          %vm970 = vcmask 1045504
          %v971 = vrot.slane %v250, 2
          %v972 = vrot.slane %v251, 2
          %v973 = vsel %vm970, %v971, %v972
          %v974 = vrot.slane %v252, 2
          %v975 = vsel %vm970, %v972, %v974
          %v976 = vrot.slane %v253, 2
          %v977 = vsel %vm970, %v974, %v976
          %v978 = vrot.slane %v254, 2
          %v979 = vsel %vm970, %v976, %v978
          %v980 = vrot.slane %v255, 2
          %v981 = vsel %vm970, %v978, %v980
          %v982 = vrot.slane %v256, 2
          %v983 = vsel %vm970, %v980, %v982
          %v984 = vrot.slane %v257, 2
          %v985 = vsel %vm970, %v982, %v984
          %v986 = vrot.slane %v258, 2
          %v987 = vsel %vm970, %v984, %v986
          %v988 = vrot.slane %v259, 2
          %v989 = vsel %vm970, %v986, %v988
          %v990 = vrot.slane %v260, 2
          %v991 = vsel %vm970, %v988, %v990
          %v992 = vrot.slane %v261, 2
          %v993 = vsel %vm970, %v990, %v992
          %v994 = vrot.slane %v262, 2
          %v995 = vsel %vm970, %v992, %v994
          %v996 = vrot.slane %v263, 2
          %v997 = vsel %vm970, %v994, %v996
          %v998 = vrot.slane %v264, 2
          %v999 = vsel %vm970, %v996, %v998
          %v1000 = vrot.slane %v265, 2
          %v1001 = vsel %vm970, %v998, %v1000
          %v1002 = vrot.slane %v266, 2
          %v1003 = vsel %vm970, %v1000, %v1002
          %v1004 = vrot.slane %v267, 2
          %v1005 = vsel %vm970, %v1002, %v1004
          %v1006 = vrot.slane %v268, 2
          %v1007 = vsel %vm970, %v1004, %v1006
          %v1008 = vrot.slane %v269, 2
          %v1009 = vsel %vm970, %v1006, %v1008
          %v1010 = vrot.slane %v270, 2
          %v1011 = vsel %vm970, %v1008, %v1010
          %v1012 = vrot.slane %v271, 2
          %v1013 = vsel %vm970, %v1010, %v1012
          %v1014 = vrot.slane %v272, 2
          %v1015 = vsel %vm970, %v1012, %v1014
          %v1016 = vrot.slane %v273, 2
          %v1017 = vsel %vm970, %v1014, %v1016
          %v1018 = vrot.slane %v274, 2
          %v1019 = vsel %vm970, %v1016, %v1018
          %v1020 = vrot.slane %v275, 2
          %v1021 = vsel %vm970, %v1018, %v1020
          %v1022 = vrot.slane %v276, 2
          %v1023 = vsel %vm970, %v1020, %v1022
          %v1024 = vrot.slane %v277, 2
          %v1025 = vsel %vm970, %v1022, %v1024
          %v1026 = vrot.slane %v278, 2
          %v1027 = vsel %vm970, %v1024, %v1026
          %v1028 = vrot.slane %v279, 2
          %v1029 = vsel %vm970, %v1026, %v1028
          %v1030 = vrot.slane %v280, 2
          %v1031 = vsel %vm970, %v1028, %v1030
          %v1032 = vrot.slane %v281, 2
          %v1033 = vsel %vm970, %v1030, %v1032
          %v1034 = vrot.slane %v282, 2
          %v1035 = vsel %vm970, %v1032, %v1034
          %v1036 = vsel %vm389, %v973, 0
          %v1038 = vsel %vm389, %v975, 0
          %v1040 = vsel %vm389, %v977, 0
          %v1042 = vsel %vm389, %v979, 0
          %v1044 = vsel %vm389, %v981, 0
          %v1046 = vsel %vm389, %v983, 0
          %v1048 = vsel %vm389, %v985, 0
          %v1050 = vsel %vm389, %v987, 0
          %v1052 = vsel %vm389, %v989, 0
          %v1054 = vsel %vm389, %v991, 0
          %v1056 = vsel %vm389, %v993, 0
          %v1058 = vsel %vm389, %v995, 0
          %v1060 = vsel %vm389, %v997, 0
          %v1062 = vsel %vm389, %v999, 0
          %v1064 = vsel %vm389, %v1001, 0
          %v1066 = vsel %vm389, %v1003, 0
          %v1068 = vsel %vm389, %v1005, 0
          %v1070 = vsel %vm389, %v1007, 0
          %v1072 = vsel %vm389, %v1009, 0
          %v1074 = vsel %vm389, %v1011, 0
          %v1076 = vsel %vm389, %v1013, 0
          %v1078 = vsel %vm389, %v1015, 0
          %v1080 = vsel %vm389, %v1017, 0
          %v1082 = vsel %vm389, %v1019, 0
          %v1084 = vsel %vm389, %v1021, 0
          %v1086 = vsel %vm389, %v1023, 0
          %v1088 = vsel %vm389, %v1025, 0
          %v1090 = vsel %vm389, %v1027, 0
          %v1092 = vsel %vm389, %v1029, 0
          %v1094 = vsel %vm389, %v1031, 0
          %v1096 = vsel %vm389, %v1033, 0
          %v1098 = vsel %vm389, %v1035, 0
          %1100 = vmatprep.subr.mxu0 0.0
          %1101 = vmatpush1.msra.mxu0 0.0
          %1102 = vmatprep.subr.mxu0 0.0
          %1103 = vmatpush1.msra.mxu0 0.0
          %1104 = vmatprep.subr.mxu0 0.0
          %1105 = vmatpush1.msra.mxu0 0.0
          %1106 = vmatprep.subr.mxu0 0.0
          %1107 = vmatpush1.msra.mxu0 0.0
          %1108 = vmatprep.subr.mxu0 0.0
          %1109 = vmatpush1.msra.mxu0 0.0
          %1110 = vmatprep.subr.mxu0 0.0
          %1111 = vmatpush1.msra.mxu0 0.0
          %1112 = vmatprep.subr.mxu0 0.0
          %1113 = vmatpush1.msra.mxu0 0.0
          %1114 = vmatprep.subr.mxu0 0.0
          %1115 = vmatpush1.msra.mxu0 0.0
          %1116 = vmatprep.subr.mxu0 0.0
          %1117 = vmatpush1.msra.mxu0 0.0
          %1118 = vmatprep.subr.mxu0 0.0
          %1119 = vmatpush1.msra.mxu0 0.0
          %1120 = vmatprep.subr.mxu0 0.0
          %1121 = vmatpush1.msra.mxu0 0.0
          %1122 = vmatprep.subr.mxu0 0.0
          %1123 = vmatpush1.msra.mxu0 0.0
          %1124 = vmatprep.subr.mxu0 0.0
          %1125 = vmatpush1.msra.mxu0 0.0
          %1126 = vmatprep.subr.mxu0 0.0
          %1127 = vmatpush1.msra.mxu0 0.0
          %1128 = vmatprep.subr.mxu0 0.0
          %1129 = vmatpush1.msra.mxu0 0.0
          %1130 = vmatprep.subr.mxu0 0.0
          %1131 = vmatpush1.msra.mxu0 %v969
          %1132 = vmatprep.subr.mxu0 0.0
          %1133 = vmatpush2.msra.mxu0 0.0
          %1134 = vmatprep.subr.mxu0 0.0
          %1135 = vmatpush2.msra.mxu0 0.0
          %1136 = vmatprep.subr.mxu0 0.0
          %1137 = vmatpush2.msra.mxu0 0.0
          %1138 = vmatprep.subr.mxu0 0.0
          %1139 = vmatpush2.msra.mxu0 0.0
          %1140 = vmatprep.subr.mxu0 0.0
          %1141 = vmatpush2.msra.mxu0 0.0
          %1142 = vmatprep.subr.mxu0 0.0
          %1143 = vmatpush2.msra.mxu0 0.0
          %1144 = vmatprep.subr.mxu0 0.0
          %1145 = vmatpush2.msra.mxu0 0.0
          %1146 = vmatprep.subr.mxu0 0.0
          %1147 = vmatpush2.msra.mxu0 0.0
          %1148 = vmatprep.subr.mxu0 0.0
          %1149 = vmatpush2.msra.mxu0 0.0
          %1150 = vmatprep.subr.mxu0 0.0
          %1151 = vmatpush2.msra.mxu0 0.0
          %1152 = vmatprep.subr.mxu0 0.0
          %1153 = vmatpush2.msra.mxu0 0.0
          %1154 = vmatprep.subr.mxu0 0.0
          %1155 = vmatpush2.msra.mxu0 0.0
          %1156 = vmatprep.subr.mxu0 0.0
          %1157 = vmatpush2.msra.mxu0 0.0
          %1158 = vmatprep.subr.mxu0 0.0
          %1159 = vmatpush2.msra.mxu0 0.0
          %1160 = vmatprep.subr.mxu0 0.0
          %1161 = vmatpush2.msra.mxu0 0.0
          %1162 = vmatprep.subr.mxu0 0.0
          %1163 = vmatpush2.msra.mxu0 0.0
          %1164 = vmatprep.mubr.f32.mxu0 0.0
          %1165 = vmatmul.mubr.f32.gmra.mxu0 %v1036
          %v1166 = vpop.f32.mrf.mxu0
          %v1167 = vadd.f32 0.0, %v1166
          %v1168 = vpop.f32.mrf.mxu0
          %1169 = vmatprep.mubr.f32.mxu0 0.0
          %1170 = vmatmul.mubr.f32.gmra.mxu0 %v1038
          %v1171 = vpop.f32.mrf.mxu0
          %v1172 = vadd.f32 0.0, %v1171
          %v1173 = vpop.f32.mrf.mxu0
          %1174 = vmatprep.mubr.f32.mxu0 0.0
          %1175 = vmatmul.mubr.f32.gmra.mxu0 %v1040
          %v1176 = vpop.f32.mrf.mxu0
          %v1177 = vadd.f32 0.0, %v1176
          %v1178 = vpop.f32.mrf.mxu0
          %1179 = vmatprep.mubr.f32.mxu0 0.0
          %1180 = vmatmul.mubr.f32.gmra.mxu0 %v1042
          %v1181 = vpop.f32.mrf.mxu0
          %v1182 = vadd.f32 0.0, %v1181
          %v1183 = vpop.f32.mrf.mxu0
          %1184 = vmatprep.mubr.f32.mxu0 0.0
          %1185 = vmatmul.mubr.f32.gmra.mxu0 %v1044
          %v1186 = vpop.f32.mrf.mxu0
          %v1187 = vadd.f32 0.0, %v1186
          %v1188 = vpop.f32.mrf.mxu0
          %1189 = vmatprep.mubr.f32.mxu0 0.0
          %1190 = vmatmul.mubr.f32.gmra.mxu0 %v1046
          %v1191 = vpop.f32.mrf.mxu0
          %v1192 = vadd.f32 0.0, %v1191
          %v1193 = vpop.f32.mrf.mxu0
          %1194 = vmatprep.mubr.f32.mxu0 0.0
          %1195 = vmatmul.mubr.f32.gmra.mxu0 %v1048
          %v1196 = vpop.f32.mrf.mxu0
          %v1197 = vadd.f32 0.0, %v1196
          %v1198 = vpop.f32.mrf.mxu0
          %1199 = vmatprep.mubr.f32.mxu0 0.0
          %1200 = vmatmul.mubr.f32.gmra.mxu0 %v1050
          %v1201 = vpop.f32.mrf.mxu0
          %v1202 = vadd.f32 0.0, %v1201
          %v1203 = vpop.f32.mrf.mxu0
          %1204 = vmatprep.mubr.f32.mxu0 0.0
          %1205 = vmatmul.mubr.f32.gmra.mxu0 %v1052
          %v1206 = vpop.f32.mrf.mxu0
          %v1207 = vadd.f32 0.0, %v1206
          %v1208 = vpop.f32.mrf.mxu0
          %1209 = vmatprep.mubr.f32.mxu0 0.0
          %1210 = vmatmul.mubr.f32.gmra.mxu0 %v1054
          %v1211 = vpop.f32.mrf.mxu0
          %v1212 = vadd.f32 0.0, %v1211
          %v1213 = vpop.f32.mrf.mxu0
          %1214 = vmatprep.mubr.f32.mxu0 0.0
          %1215 = vmatmul.mubr.f32.gmra.mxu0 %v1056
          %v1216 = vpop.f32.mrf.mxu0
          %v1217 = vadd.f32 0.0, %v1216
          %v1218 = vpop.f32.mrf.mxu0
          %1219 = vmatprep.mubr.f32.mxu0 0.0
          %1220 = vmatmul.mubr.f32.gmra.mxu0 %v1058
          %v1221 = vpop.f32.mrf.mxu0
          %v1222 = vadd.f32 0.0, %v1221
          %v1223 = vpop.f32.mrf.mxu0
          %1224 = vmatprep.mubr.f32.mxu0 0.0
          %1225 = vmatmul.mubr.f32.gmra.mxu0 %v1060
          %v1226 = vpop.f32.mrf.mxu0
          %v1227 = vadd.f32 0.0, %v1226
          %v1228 = vpop.f32.mrf.mxu0
          %1229 = vmatprep.mubr.f32.mxu0 0.0
          %1230 = vmatmul.mubr.f32.gmra.mxu0 %v1062
          %v1231 = vpop.f32.mrf.mxu0
          %v1232 = vadd.f32 0.0, %v1231
          %v1233 = vpop.f32.mrf.mxu0
          %1234 = vmatprep.mubr.f32.mxu0 0.0
          %1235 = vmatmul.mubr.f32.gmra.mxu0 %v1064
          %v1236 = vpop.f32.mrf.mxu0
          %v1237 = vadd.f32 0.0, %v1236
          %v1238 = vpop.f32.mrf.mxu0
          %1239 = vmatprep.mubr.f32.mxu0 0.0
          %1240 = vmatmul.mubr.f32.gmra.mxu0 %v1066
          %v1241 = vpop.f32.mrf.mxu0
          %v1242 = vadd.f32 0.0, %v1241
          %v1243 = vpop.f32.mrf.mxu0
          %1244 = vmatprep.mubr.f32.mxu0 0.0
          %1245 = vmatmul.mubr.f32.gmra.mxu0 %v1068
          %v1246 = vpop.f32.mrf.mxu0
          %v1247 = vadd.f32 0.0, %v1246
          %v1248 = vpop.f32.mrf.mxu0
          %1249 = vmatprep.mubr.f32.mxu0 0.0
          %1250 = vmatmul.mubr.f32.gmra.mxu0 %v1070
          %v1251 = vpop.f32.mrf.mxu0
          %v1252 = vadd.f32 0.0, %v1251
          %v1253 = vpop.f32.mrf.mxu0
          %1254 = vmatprep.mubr.f32.mxu0 0.0
          %1255 = vmatmul.mubr.f32.gmra.mxu0 %v1072
          %v1256 = vpop.f32.mrf.mxu0
          %v1257 = vadd.f32 0.0, %v1256
          %v1258 = vpop.f32.mrf.mxu0
          %1259 = vmatprep.mubr.f32.mxu0 0.0
          %1260 = vmatmul.mubr.f32.gmra.mxu0 %v1074
          %v1261 = vpop.f32.mrf.mxu0
          %v1262 = vadd.f32 0.0, %v1261
          %v1263 = vpop.f32.mrf.mxu0
          %1264 = vmatprep.mubr.f32.mxu0 0.0
          %1265 = vmatmul.mubr.f32.gmra.mxu0 %v1076
          %v1266 = vpop.f32.mrf.mxu0
          %v1267 = vadd.f32 0.0, %v1266
          %v1268 = vpop.f32.mrf.mxu0
          %1269 = vmatprep.mubr.f32.mxu0 0.0
          %1270 = vmatmul.mubr.f32.gmra.mxu0 %v1078
          %v1271 = vpop.f32.mrf.mxu0
          %v1272 = vadd.f32 0.0, %v1271
          %v1273 = vpop.f32.mrf.mxu0
          %1274 = vmatprep.mubr.f32.mxu0 0.0
          %1275 = vmatmul.mubr.f32.gmra.mxu0 %v1080
          %v1276 = vpop.f32.mrf.mxu0
          %v1277 = vadd.f32 0.0, %v1276
          %v1278 = vpop.f32.mrf.mxu0
          %1279 = vmatprep.mubr.f32.mxu0 0.0
          %1280 = vmatmul.mubr.f32.gmra.mxu0 %v1082
          %v1281 = vpop.f32.mrf.mxu0
          %v1282 = vadd.f32 0.0, %v1281
          %v1283 = vpop.f32.mrf.mxu0
          %1284 = vmatprep.mubr.f32.mxu0 0.0
          %1285 = vmatmul.mubr.f32.gmra.mxu0 %v1084
          %v1286 = vpop.f32.mrf.mxu0
          %v1287 = vadd.f32 0.0, %v1286
          %v1288 = vpop.f32.mrf.mxu0
          %1289 = vmatprep.mubr.f32.mxu0 0.0
          %1290 = vmatmul.mubr.f32.gmra.mxu0 %v1086
          %v1291 = vpop.f32.mrf.mxu0
          %v1292 = vadd.f32 0.0, %v1291
          %v1293 = vpop.f32.mrf.mxu0
          %1294 = vmatprep.mubr.f32.mxu0 0.0
          %1295 = vmatmul.mubr.f32.gmra.mxu0 %v1088
          %v1296 = vpop.f32.mrf.mxu0
          %v1297 = vadd.f32 0.0, %v1296
          %v1298 = vpop.f32.mrf.mxu0
          %1299 = vmatprep.mubr.f32.mxu0 0.0
          %1300 = vmatmul.mubr.f32.gmra.mxu0 %v1090
          %v1301 = vpop.f32.mrf.mxu0
          %v1302 = vadd.f32 0.0, %v1301
          %v1303 = vpop.f32.mrf.mxu0
          %1304 = vmatprep.mubr.f32.mxu0 0.0
          %1305 = vmatmul.mubr.f32.gmra.mxu0 %v1092
          %v1306 = vpop.f32.mrf.mxu0
          %v1307 = vadd.f32 0.0, %v1306
          %v1308 = vpop.f32.mrf.mxu0
          %1309 = vmatprep.mubr.f32.mxu0 0.0
          %1310 = vmatmul.mubr.f32.gmra.mxu0 %v1094
          %v1311 = vpop.f32.mrf.mxu0
          %v1312 = vadd.f32 0.0, %v1311
          %v1313 = vpop.f32.mrf.mxu0
          %1314 = vmatprep.mubr.f32.mxu0 0.0
          %1315 = vmatmul.mubr.f32.gmra.mxu0 %v1096
          %v1316 = vpop.f32.mrf.mxu0
          %v1317 = vadd.f32 0.0, %v1316
          %v1318 = vpop.f32.mrf.mxu0
          %1319 = vmatprep.mubr.f32.mxu0 0.0
          %1320 = vmatmul.mubr.f32.gmra.mxu0 %v1098
          %v1321 = vpop.f32.mrf.mxu0
          %v1322 = vadd.f32 0.0, %v1321
          %v1323 = vpop.f32.mrf.mxu0
          %1324 = vdwg.mxu0
          %v1325 = vadd.f32 %v810, %v1167
          %v1326 = vadd.f32 %v815, %v1172
          %v1327 = vadd.f32 %v820, %v1177
          %v1328 = vadd.f32 %v825, %v1182
          %v1329 = vadd.f32 %v830, %v1187
          %v1330 = vadd.f32 %v835, %v1192
          %v1331 = vadd.f32 %v840, %v1197
          %v1332 = vadd.f32 %v845, %v1202
          %v1333 = vadd.f32 %v850, %v1207
          %v1334 = vadd.f32 %v855, %v1212
          %v1335 = vadd.f32 %v860, %v1217
          %v1336 = vadd.f32 %v865, %v1222
          %v1337 = vadd.f32 %v870, %v1227
          %v1338 = vadd.f32 %v875, %v1232
          %v1339 = vadd.f32 %v880, %v1237
          %v1340 = vadd.f32 %v885, %v1242
          %v1341 = vadd.f32 %v890, %v1247
          %v1342 = vadd.f32 %v895, %v1252
          %v1343 = vadd.f32 %v900, %v1257
          %v1344 = vadd.f32 %v905, %v1262
          %v1345 = vadd.f32 %v910, %v1267
          %v1346 = vadd.f32 %v915, %v1272
          %v1347 = vadd.f32 %v920, %v1277
          %v1348 = vadd.f32 %v925, %v1282
          %v1349 = vadd.f32 %v930, %v1287
          %v1350 = vadd.f32 %v935, %v1292
          %v1351 = vadd.f32 %v940, %v1297
          %v1352 = vadd.f32 %v945, %v1302
          %v1353 = vadd.f32 %v950, %v1307
          %v1354 = vadd.f32 %v955, %v1312
          %v1355 = vadd.f32 %v960, %v1317
          %v1356 = vadd.f32 %v965, %v1322
          %s1357 = scalar_lea.vmem %s1, 24
          %v1358 = vld [vmem:[%s1357] sm:$0xff]
          %v1361 = vrot.slane %v283, 2
          %v1362 = vsel %vm970, %v1034, %v1361
          %v1363 = vrot.slane %v284, 2
          %v1364 = vsel %vm970, %v1361, %v1363
          %v1365 = vsel %vm389, %v1362, 0
          %v1367 = vsel %vm389, %v1364, 0
          %1369 = vmatprep.subr.mxu0 0.0
          %1370 = vmatpush1.msra.mxu0 0.0
          %1371 = vmatprep.subr.mxu0 0.0
          %1372 = vmatpush1.msra.mxu0 0.0
          %1373 = vmatprep.subr.mxu0 0.0
          %1374 = vmatpush1.msra.mxu0 0.0
          %1375 = vmatprep.subr.mxu0 0.0
          %1376 = vmatpush1.msra.mxu0 0.0
          %1377 = vmatprep.subr.mxu0 0.0
          %1378 = vmatpush1.msra.mxu0 0.0
          %1379 = vmatprep.subr.mxu0 0.0
          %1380 = vmatpush1.msra.mxu0 0.0
          %1381 = vmatprep.subr.mxu0 0.0
          %1382 = vmatpush1.msra.mxu0 0.0
          %1383 = vmatprep.subr.mxu0 0.0
          %1384 = vmatpush1.msra.mxu0 0.0
          %1385 = vmatprep.subr.mxu0 0.0
          %1386 = vmatpush1.msra.mxu0 0.0
          %1387 = vmatprep.subr.mxu0 0.0
          %1388 = vmatpush1.msra.mxu0 0.0
          %1389 = vmatprep.subr.mxu0 0.0
          %1390 = vmatpush1.msra.mxu0 0.0
          %1391 = vmatprep.subr.mxu0 0.0
          %1392 = vmatpush1.msra.mxu0 0.0
          %1393 = vmatprep.subr.mxu0 0.0
          %1394 = vmatpush1.msra.mxu0 0.0
          %1395 = vmatprep.subr.mxu0 0.0
          %1396 = vmatpush1.msra.mxu0 0.0
          %1397 = vmatprep.subr.mxu0 0.0
          %1398 = vmatpush1.msra.mxu0 0.0
          %1399 = vmatprep.subr.mxu0 0.0
          %1400 = vmatpush1.msra.mxu0 %v1358
          %1401 = vmatprep.subr.mxu0 0.0
          %1402 = vmatpush2.msra.mxu0 0.0
          %1403 = vmatprep.subr.mxu0 0.0
          %1404 = vmatpush2.msra.mxu0 0.0
          %1405 = vmatprep.subr.mxu0 0.0
          %1406 = vmatpush2.msra.mxu0 0.0
          %1407 = vmatprep.subr.mxu0 0.0
          %1408 = vmatpush2.msra.mxu0 0.0
          %1409 = vmatprep.subr.mxu0 0.0
          %1410 = vmatpush2.msra.mxu0 0.0
          %1411 = vmatprep.subr.mxu0 0.0
          %1412 = vmatpush2.msra.mxu0 0.0
          %1413 = vmatprep.subr.mxu0 0.0
          %1414 = vmatpush2.msra.mxu0 0.0
          %1415 = vmatprep.subr.mxu0 0.0
          %1416 = vmatpush2.msra.mxu0 0.0
          %1417 = vmatprep.subr.mxu0 0.0
          %1418 = vmatpush2.msra.mxu0 0.0
          %1419 = vmatprep.subr.mxu0 0.0
          %1420 = vmatpush2.msra.mxu0 0.0
          %1421 = vmatprep.subr.mxu0 0.0
          %1422 = vmatpush2.msra.mxu0 0.0
          %1423 = vmatprep.subr.mxu0 0.0
          %1424 = vmatpush2.msra.mxu0 0.0
          %1425 = vmatprep.subr.mxu0 0.0
          %1426 = vmatpush2.msra.mxu0 0.0
          %1427 = vmatprep.subr.mxu0 0.0
          %1428 = vmatpush2.msra.mxu0 0.0
          %1429 = vmatprep.subr.mxu0 0.0
          %1430 = vmatpush2.msra.mxu0 0.0
          %1431 = vmatprep.subr.mxu0 0.0
          %1432 = vmatpush2.msra.mxu0 0.0
          %1433 = vmatprep.mubr.f32.mxu0 0.0
          %1434 = vmatmul.mubr.f32.gmra.mxu0 %v1040
          %v1435 = vpop.f32.mrf.mxu0
          %v1436 = vadd.f32 0.0, %v1435
          %v1437 = vpop.f32.mrf.mxu0
          %1438 = vmatprep.mubr.f32.mxu0 0.0
          %1439 = vmatmul.mubr.f32.gmra.mxu0 %v1042
          %v1440 = vpop.f32.mrf.mxu0
          %v1441 = vadd.f32 0.0, %v1440
          %v1442 = vpop.f32.mrf.mxu0
          %1443 = vmatprep.mubr.f32.mxu0 0.0
          %1444 = vmatmul.mubr.f32.gmra.mxu0 %v1044
          %v1445 = vpop.f32.mrf.mxu0
          %v1446 = vadd.f32 0.0, %v1445
          %v1447 = vpop.f32.mrf.mxu0
          %1448 = vmatprep.mubr.f32.mxu0 0.0
          %1449 = vmatmul.mubr.f32.gmra.mxu0 %v1046
          %v1450 = vpop.f32.mrf.mxu0
          %v1451 = vadd.f32 0.0, %v1450
          %v1452 = vpop.f32.mrf.mxu0
          %1453 = vmatprep.mubr.f32.mxu0 0.0
          %1454 = vmatmul.mubr.f32.gmra.mxu0 %v1048
          %v1455 = vpop.f32.mrf.mxu0
          %v1456 = vadd.f32 0.0, %v1455
          %v1457 = vpop.f32.mrf.mxu0
          %1458 = vmatprep.mubr.f32.mxu0 0.0
          %1459 = vmatmul.mubr.f32.gmra.mxu0 %v1050
          %v1460 = vpop.f32.mrf.mxu0
          %v1461 = vadd.f32 0.0, %v1460
          %v1462 = vpop.f32.mrf.mxu0
          %1463 = vmatprep.mubr.f32.mxu0 0.0
          %1464 = vmatmul.mubr.f32.gmra.mxu0 %v1052
          %v1465 = vpop.f32.mrf.mxu0
          %v1466 = vadd.f32 0.0, %v1465
          %v1467 = vpop.f32.mrf.mxu0
          %1468 = vmatprep.mubr.f32.mxu0 0.0
          %1469 = vmatmul.mubr.f32.gmra.mxu0 %v1054
          %v1470 = vpop.f32.mrf.mxu0
          %v1471 = vadd.f32 0.0, %v1470
          %v1472 = vpop.f32.mrf.mxu0
          %1473 = vmatprep.mubr.f32.mxu0 0.0
          %1474 = vmatmul.mubr.f32.gmra.mxu0 %v1056
          %v1475 = vpop.f32.mrf.mxu0
          %v1476 = vadd.f32 0.0, %v1475
          %v1477 = vpop.f32.mrf.mxu0
          %1478 = vmatprep.mubr.f32.mxu0 0.0
          %1479 = vmatmul.mubr.f32.gmra.mxu0 %v1058
          %v1480 = vpop.f32.mrf.mxu0
          %v1481 = vadd.f32 0.0, %v1480
          %v1482 = vpop.f32.mrf.mxu0
          %1483 = vmatprep.mubr.f32.mxu0 0.0
          %1484 = vmatmul.mubr.f32.gmra.mxu0 %v1060
          %v1485 = vpop.f32.mrf.mxu0
          %v1486 = vadd.f32 0.0, %v1485
          %v1487 = vpop.f32.mrf.mxu0
          %1488 = vmatprep.mubr.f32.mxu0 0.0
          %1489 = vmatmul.mubr.f32.gmra.mxu0 %v1062
          %v1490 = vpop.f32.mrf.mxu0
          %v1491 = vadd.f32 0.0, %v1490
          %v1492 = vpop.f32.mrf.mxu0
          %1493 = vmatprep.mubr.f32.mxu0 0.0
          %1494 = vmatmul.mubr.f32.gmra.mxu0 %v1064
          %v1495 = vpop.f32.mrf.mxu0
          %v1496 = vadd.f32 0.0, %v1495
          %v1497 = vpop.f32.mrf.mxu0
          %1498 = vmatprep.mubr.f32.mxu0 0.0
          %1499 = vmatmul.mubr.f32.gmra.mxu0 %v1066
          %v1500 = vpop.f32.mrf.mxu0
          %v1501 = vadd.f32 0.0, %v1500
          %v1502 = vpop.f32.mrf.mxu0
          %1503 = vmatprep.mubr.f32.mxu0 0.0
          %1504 = vmatmul.mubr.f32.gmra.mxu0 %v1068
          %v1505 = vpop.f32.mrf.mxu0
          %v1506 = vadd.f32 0.0, %v1505
          %v1507 = vpop.f32.mrf.mxu0
          %1508 = vmatprep.mubr.f32.mxu0 0.0
          %1509 = vmatmul.mubr.f32.gmra.mxu0 %v1070
          %v1510 = vpop.f32.mrf.mxu0
          %v1511 = vadd.f32 0.0, %v1510
          %v1512 = vpop.f32.mrf.mxu0
          %1513 = vmatprep.mubr.f32.mxu0 0.0
          %1514 = vmatmul.mubr.f32.gmra.mxu0 %v1072
          %v1515 = vpop.f32.mrf.mxu0
          %v1516 = vadd.f32 0.0, %v1515
          %v1517 = vpop.f32.mrf.mxu0
          %1518 = vmatprep.mubr.f32.mxu0 0.0
          %1519 = vmatmul.mubr.f32.gmra.mxu0 %v1074
          %v1520 = vpop.f32.mrf.mxu0
          %v1521 = vadd.f32 0.0, %v1520
          %v1522 = vpop.f32.mrf.mxu0
          %1523 = vmatprep.mubr.f32.mxu0 0.0
          %1524 = vmatmul.mubr.f32.gmra.mxu0 %v1076
          %v1525 = vpop.f32.mrf.mxu0
          %v1526 = vadd.f32 0.0, %v1525
          %v1527 = vpop.f32.mrf.mxu0
          %1528 = vmatprep.mubr.f32.mxu0 0.0
          %1529 = vmatmul.mubr.f32.gmra.mxu0 %v1078
          %v1530 = vpop.f32.mrf.mxu0
          %v1531 = vadd.f32 0.0, %v1530
          %v1532 = vpop.f32.mrf.mxu0
          %1533 = vmatprep.mubr.f32.mxu0 0.0
          %1534 = vmatmul.mubr.f32.gmra.mxu0 %v1080
          %v1535 = vpop.f32.mrf.mxu0
          %v1536 = vadd.f32 0.0, %v1535
          %v1537 = vpop.f32.mrf.mxu0
          %1538 = vmatprep.mubr.f32.mxu0 0.0
          %1539 = vmatmul.mubr.f32.gmra.mxu0 %v1082
          %v1540 = vpop.f32.mrf.mxu0
          %v1541 = vadd.f32 0.0, %v1540
          %v1542 = vpop.f32.mrf.mxu0
          %1543 = vmatprep.mubr.f32.mxu0 0.0
          %1544 = vmatmul.mubr.f32.gmra.mxu0 %v1084
          %v1545 = vpop.f32.mrf.mxu0
          %v1546 = vadd.f32 0.0, %v1545
          %v1547 = vpop.f32.mrf.mxu0
          %1548 = vmatprep.mubr.f32.mxu0 0.0
          %1549 = vmatmul.mubr.f32.gmra.mxu0 %v1086
          %v1550 = vpop.f32.mrf.mxu0
          %v1551 = vadd.f32 0.0, %v1550
          %v1552 = vpop.f32.mrf.mxu0
          %1553 = vmatprep.mubr.f32.mxu0 0.0
          %1554 = vmatmul.mubr.f32.gmra.mxu0 %v1088
          %v1555 = vpop.f32.mrf.mxu0
          %v1556 = vadd.f32 0.0, %v1555
          %v1557 = vpop.f32.mrf.mxu0
          %1558 = vmatprep.mubr.f32.mxu0 0.0
          %1559 = vmatmul.mubr.f32.gmra.mxu0 %v1090
          %v1560 = vpop.f32.mrf.mxu0
          %v1561 = vadd.f32 0.0, %v1560
          %v1562 = vpop.f32.mrf.mxu0
          %1563 = vmatprep.mubr.f32.mxu0 0.0
          %1564 = vmatmul.mubr.f32.gmra.mxu0 %v1092
          %v1565 = vpop.f32.mrf.mxu0
          %v1566 = vadd.f32 0.0, %v1565
          %v1567 = vpop.f32.mrf.mxu0
          %1568 = vmatprep.mubr.f32.mxu0 0.0
          %1569 = vmatmul.mubr.f32.gmra.mxu0 %v1094
          %v1570 = vpop.f32.mrf.mxu0
          %v1571 = vadd.f32 0.0, %v1570
          %v1572 = vpop.f32.mrf.mxu0
          %1573 = vmatprep.mubr.f32.mxu0 0.0
          %1574 = vmatmul.mubr.f32.gmra.mxu0 %v1096
          %v1575 = vpop.f32.mrf.mxu0
          %v1576 = vadd.f32 0.0, %v1575
          %v1577 = vpop.f32.mrf.mxu0
          %1578 = vmatprep.mubr.f32.mxu0 0.0
          %1579 = vmatmul.mubr.f32.gmra.mxu0 %v1098
          %v1580 = vpop.f32.mrf.mxu0
          %v1581 = vadd.f32 0.0, %v1580
          %v1582 = vpop.f32.mrf.mxu0
          %1583 = vmatprep.mubr.f32.mxu0 0.0
          %1584 = vmatmul.mubr.f32.gmra.mxu0 %v1365
          %v1585 = vpop.f32.mrf.mxu0
          %v1586 = vadd.f32 0.0, %v1585
          %v1587 = vpop.f32.mrf.mxu0
          %1588 = vmatprep.mubr.f32.mxu0 0.0
          %1589 = vmatmul.mubr.f32.gmra.mxu0 %v1367
          %v1590 = vpop.f32.mrf.mxu0
          %v1591 = vadd.f32 0.0, %v1590
          %v1592 = vpop.f32.mrf.mxu0
          %1593 = vdwg.mxu0
          %v1594 = vadd.f32 %v1325, %v1436
          %v1595 = vadd.f32 %v1326, %v1441
          %v1596 = vadd.f32 %v1327, %v1446
          %v1597 = vadd.f32 %v1328, %v1451
          %v1598 = vadd.f32 %v1329, %v1456
          %v1599 = vadd.f32 %v1330, %v1461
          %v1600 = vadd.f32 %v1331, %v1466
          %v1601 = vadd.f32 %v1332, %v1471
          %v1602 = vadd.f32 %v1333, %v1476
          %v1603 = vadd.f32 %v1334, %v1481
          %v1604 = vadd.f32 %v1335, %v1486
          %v1605 = vadd.f32 %v1336, %v1491
          %v1606 = vadd.f32 %v1337, %v1496
          %v1607 = vadd.f32 %v1338, %v1501
          %v1608 = vadd.f32 %v1339, %v1506
          %v1609 = vadd.f32 %v1340, %v1511
          %v1610 = vadd.f32 %v1341, %v1516
          %v1611 = vadd.f32 %v1342, %v1521
          %v1612 = vadd.f32 %v1343, %v1526
          %v1613 = vadd.f32 %v1344, %v1531
          %v1614 = vadd.f32 %v1345, %v1536
          %v1615 = vadd.f32 %v1346, %v1541
          %v1616 = vadd.f32 %v1347, %v1546
          %v1617 = vadd.f32 %v1348, %v1551
          %v1618 = vadd.f32 %v1349, %v1556
          %v1619 = vadd.f32 %v1350, %v1561
          %v1620 = vadd.f32 %v1351, %v1566
          %v1621 = vadd.f32 %v1352, %v1571
          %v1622 = vadd.f32 %v1353, %v1576
          %v1623 = vadd.f32 %v1354, %v1581
          %v1624 = vadd.f32 %v1355, %v1586
          %v1625 = vadd.f32 %v1356, %v1591
          %s1626 = scalar_lea.vmem %s1, 32
          %v1627 = vld [vmem:[%s1626] sm:$0xff]
          %vm1628 = vcmask 1044480
          %v1629 = vrot.slane %v252, 3
          %v1630 = vrot.slane %v253, 3
          %v1631 = vsel %vm1628, %v1629, %v1630
          %v1632 = vrot.slane %v254, 3
          %v1633 = vsel %vm1628, %v1630, %v1632
          %v1634 = vrot.slane %v255, 3
          %v1635 = vsel %vm1628, %v1632, %v1634
          %v1636 = vrot.slane %v256, 3
          %v1637 = vsel %vm1628, %v1634, %v1636
          %v1638 = vrot.slane %v257, 3
          %v1639 = vsel %vm1628, %v1636, %v1638
          %v1640 = vrot.slane %v258, 3
          %v1641 = vsel %vm1628, %v1638, %v1640
          %v1642 = vrot.slane %v259, 3
          %v1643 = vsel %vm1628, %v1640, %v1642
          %v1644 = vrot.slane %v260, 3
          %v1645 = vsel %vm1628, %v1642, %v1644
          %v1646 = vrot.slane %v261, 3
          %v1647 = vsel %vm1628, %v1644, %v1646
          %v1648 = vrot.slane %v262, 3
          %v1649 = vsel %vm1628, %v1646, %v1648
          %v1650 = vrot.slane %v263, 3
          %v1651 = vsel %vm1628, %v1648, %v1650
          %v1652 = vrot.slane %v264, 3
          %v1653 = vsel %vm1628, %v1650, %v1652
          %v1654 = vrot.slane %v265, 3
          %v1655 = vsel %vm1628, %v1652, %v1654
          %v1656 = vrot.slane %v266, 3
          %v1657 = vsel %vm1628, %v1654, %v1656
          %v1658 = vrot.slane %v267, 3
          %v1659 = vsel %vm1628, %v1656, %v1658
          %v1660 = vrot.slane %v268, 3
          %v1661 = vsel %vm1628, %v1658, %v1660
          %v1662 = vrot.slane %v269, 3
          %v1663 = vsel %vm1628, %v1660, %v1662
          %v1664 = vrot.slane %v270, 3
          %v1665 = vsel %vm1628, %v1662, %v1664
          %v1666 = vrot.slane %v271, 3
          %v1667 = vsel %vm1628, %v1664, %v1666
          %v1668 = vrot.slane %v272, 3
          %v1669 = vsel %vm1628, %v1666, %v1668
          %v1670 = vrot.slane %v273, 3
          %v1671 = vsel %vm1628, %v1668, %v1670
          %v1672 = vrot.slane %v274, 3
          %v1673 = vsel %vm1628, %v1670, %v1672
          %v1674 = vrot.slane %v275, 3
          %v1675 = vsel %vm1628, %v1672, %v1674
          %v1676 = vrot.slane %v276, 3
          %v1677 = vsel %vm1628, %v1674, %v1676
          %v1678 = vrot.slane %v277, 3
          %v1679 = vsel %vm1628, %v1676, %v1678
          %v1680 = vrot.slane %v278, 3
          %v1681 = vsel %vm1628, %v1678, %v1680
          %v1682 = vrot.slane %v279, 3
          %v1683 = vsel %vm1628, %v1680, %v1682
          %v1684 = vrot.slane %v280, 3
          %v1685 = vsel %vm1628, %v1682, %v1684
          %v1686 = vrot.slane %v281, 3
          %v1687 = vsel %vm1628, %v1684, %v1686
          %v1688 = vrot.slane %v282, 3
          %v1689 = vsel %vm1628, %v1686, %v1688
          %v1690 = vrot.slane %v283, 3
          %v1691 = vsel %vm1628, %v1688, %v1690
          %v1692 = vrot.slane %v284, 3
          %v1693 = vsel %vm1628, %v1690, %v1692
          %v1694 = vsel %vm389, %v1631, 0
          %v1696 = vsel %vm389, %v1633, 0
          %v1698 = vsel %vm389, %v1635, 0
          %v1700 = vsel %vm389, %v1637, 0
          %v1702 = vsel %vm389, %v1639, 0
          %v1704 = vsel %vm389, %v1641, 0
          %v1706 = vsel %vm389, %v1643, 0
          %v1708 = vsel %vm389, %v1645, 0
          %v1710 = vsel %vm389, %v1647, 0
          %v1712 = vsel %vm389, %v1649, 0
          %v1714 = vsel %vm389, %v1651, 0
          %v1716 = vsel %vm389, %v1653, 0
          %v1718 = vsel %vm389, %v1655, 0
          %v1720 = vsel %vm389, %v1657, 0
          %v1722 = vsel %vm389, %v1659, 0
          %v1724 = vsel %vm389, %v1661, 0
          %v1726 = vsel %vm389, %v1663, 0
          %v1728 = vsel %vm389, %v1665, 0
          %v1730 = vsel %vm389, %v1667, 0
          %v1732 = vsel %vm389, %v1669, 0
          %v1734 = vsel %vm389, %v1671, 0
          %v1736 = vsel %vm389, %v1673, 0
          %v1738 = vsel %vm389, %v1675, 0
          %v1740 = vsel %vm389, %v1677, 0
          %v1742 = vsel %vm389, %v1679, 0
          %v1744 = vsel %vm389, %v1681, 0
          %v1746 = vsel %vm389, %v1683, 0
          %v1748 = vsel %vm389, %v1685, 0
          %v1750 = vsel %vm389, %v1687, 0
          %v1752 = vsel %vm389, %v1689, 0
          %v1754 = vsel %vm389, %v1691, 0
          %v1756 = vsel %vm389, %v1693, 0
          %1758 = vmatprep.subr.mxu0 0.0
          %1759 = vmatpush1.msra.mxu0 0.0
          %1760 = vmatprep.subr.mxu0 0.0
          %1761 = vmatpush1.msra.mxu0 0.0
          %1762 = vmatprep.subr.mxu0 0.0
          %1763 = vmatpush1.msra.mxu0 0.0
          %1764 = vmatprep.subr.mxu0 0.0
          %1765 = vmatpush1.msra.mxu0 0.0
          %1766 = vmatprep.subr.mxu0 0.0
          %1767 = vmatpush1.msra.mxu0 0.0
          %1768 = vmatprep.subr.mxu0 0.0
          %1769 = vmatpush1.msra.mxu0 0.0
          %1770 = vmatprep.subr.mxu0 0.0
          %1771 = vmatpush1.msra.mxu0 0.0
          %1772 = vmatprep.subr.mxu0 0.0
          %1773 = vmatpush1.msra.mxu0 0.0
          %1774 = vmatprep.subr.mxu0 0.0
          %1775 = vmatpush1.msra.mxu0 0.0
          %1776 = vmatprep.subr.mxu0 0.0
          %1777 = vmatpush1.msra.mxu0 0.0
          %1778 = vmatprep.subr.mxu0 0.0
          %1779 = vmatpush1.msra.mxu0 0.0
          %1780 = vmatprep.subr.mxu0 0.0
          %1781 = vmatpush1.msra.mxu0 0.0
          %1782 = vmatprep.subr.mxu0 0.0
          %1783 = vmatpush1.msra.mxu0 0.0
          %1784 = vmatprep.subr.mxu0 0.0
          %1785 = vmatpush1.msra.mxu0 0.0
          %1786 = vmatprep.subr.mxu0 0.0
          %1787 = vmatpush1.msra.mxu0 0.0
          %1788 = vmatprep.subr.mxu0 0.0
          %1789 = vmatpush1.msra.mxu0 %v1627
          %1790 = vmatprep.subr.mxu0 0.0
          %1791 = vmatpush2.msra.mxu0 0.0
          %1792 = vmatprep.subr.mxu0 0.0
          %1793 = vmatpush2.msra.mxu0 0.0
          %1794 = vmatprep.subr.mxu0 0.0
          %1795 = vmatpush2.msra.mxu0 0.0
          %1796 = vmatprep.subr.mxu0 0.0
          %1797 = vmatpush2.msra.mxu0 0.0
          %1798 = vmatprep.subr.mxu0 0.0
          %1799 = vmatpush2.msra.mxu0 0.0
          %1800 = vmatprep.subr.mxu0 0.0
          %1801 = vmatpush2.msra.mxu0 0.0
          %1802 = vmatprep.subr.mxu0 0.0
          %1803 = vmatpush2.msra.mxu0 0.0
          %1804 = vmatprep.subr.mxu0 0.0
          %1805 = vmatpush2.msra.mxu0 0.0
          %1806 = vmatprep.subr.mxu0 0.0
          %1807 = vmatpush2.msra.mxu0 0.0
          %1808 = vmatprep.subr.mxu0 0.0
          %1809 = vmatpush2.msra.mxu0 0.0
          %1810 = vmatprep.subr.mxu0 0.0
          %1811 = vmatpush2.msra.mxu0 0.0
          %1812 = vmatprep.subr.mxu0 0.0
          %1813 = vmatpush2.msra.mxu0 0.0
          %1814 = vmatprep.subr.mxu0 0.0
          %1815 = vmatpush2.msra.mxu0 0.0
          %1816 = vmatprep.subr.mxu0 0.0
          %1817 = vmatpush2.msra.mxu0 0.0
          %1818 = vmatprep.subr.mxu0 0.0
          %1819 = vmatpush2.msra.mxu0 0.0
          %1820 = vmatprep.subr.mxu0 0.0
          %1821 = vmatpush2.msra.mxu0 0.0
          %1822 = vmatprep.mubr.f32.mxu0 0.0
          %1823 = vmatmul.mubr.f32.gmra.mxu0 %v1694
          %v1824 = vpop.f32.mrf.mxu0
          %v1825 = vadd.f32 0.0, %v1824
          %v1826 = vpop.f32.mrf.mxu0
          %1827 = vmatprep.mubr.f32.mxu0 0.0
          %1828 = vmatmul.mubr.f32.gmra.mxu0 %v1696
          %v1829 = vpop.f32.mrf.mxu0
          %v1830 = vadd.f32 0.0, %v1829
          %v1831 = vpop.f32.mrf.mxu0
          %1832 = vmatprep.mubr.f32.mxu0 0.0
          %1833 = vmatmul.mubr.f32.gmra.mxu0 %v1698
          %v1834 = vpop.f32.mrf.mxu0
          %v1835 = vadd.f32 0.0, %v1834
          %v1836 = vpop.f32.mrf.mxu0
          %1837 = vmatprep.mubr.f32.mxu0 0.0
          %1838 = vmatmul.mubr.f32.gmra.mxu0 %v1700
          %v1839 = vpop.f32.mrf.mxu0
          %v1840 = vadd.f32 0.0, %v1839
          %v1841 = vpop.f32.mrf.mxu0
          %1842 = vmatprep.mubr.f32.mxu0 0.0
          %1843 = vmatmul.mubr.f32.gmra.mxu0 %v1702
          %v1844 = vpop.f32.mrf.mxu0
          %v1845 = vadd.f32 0.0, %v1844
          %v1846 = vpop.f32.mrf.mxu0
          %1847 = vmatprep.mubr.f32.mxu0 0.0
          %1848 = vmatmul.mubr.f32.gmra.mxu0 %v1704
          %v1849 = vpop.f32.mrf.mxu0
          %v1850 = vadd.f32 0.0, %v1849
          %v1851 = vpop.f32.mrf.mxu0
          %1852 = vmatprep.mubr.f32.mxu0 0.0
          %1853 = vmatmul.mubr.f32.gmra.mxu0 %v1706
          %v1854 = vpop.f32.mrf.mxu0
          %v1855 = vadd.f32 0.0, %v1854
          %v1856 = vpop.f32.mrf.mxu0
          %1857 = vmatprep.mubr.f32.mxu0 0.0
          %1858 = vmatmul.mubr.f32.gmra.mxu0 %v1708
          %v1859 = vpop.f32.mrf.mxu0
          %v1860 = vadd.f32 0.0, %v1859
          %v1861 = vpop.f32.mrf.mxu0
          %1862 = vmatprep.mubr.f32.mxu0 0.0
          %1863 = vmatmul.mubr.f32.gmra.mxu0 %v1710
          %v1864 = vpop.f32.mrf.mxu0
          %v1865 = vadd.f32 0.0, %v1864
          %v1866 = vpop.f32.mrf.mxu0
          %1867 = vmatprep.mubr.f32.mxu0 0.0
          %1868 = vmatmul.mubr.f32.gmra.mxu0 %v1712
          %v1869 = vpop.f32.mrf.mxu0
          %v1870 = vadd.f32 0.0, %v1869
          %v1871 = vpop.f32.mrf.mxu0
          %1872 = vmatprep.mubr.f32.mxu0 0.0
          %1873 = vmatmul.mubr.f32.gmra.mxu0 %v1714
          %v1874 = vpop.f32.mrf.mxu0
          %v1875 = vadd.f32 0.0, %v1874
          %v1876 = vpop.f32.mrf.mxu0
          %1877 = vmatprep.mubr.f32.mxu0 0.0
          %1878 = vmatmul.mubr.f32.gmra.mxu0 %v1716
          %v1879 = vpop.f32.mrf.mxu0
          %v1880 = vadd.f32 0.0, %v1879
          %v1881 = vpop.f32.mrf.mxu0
          %1882 = vmatprep.mubr.f32.mxu0 0.0
          %1883 = vmatmul.mubr.f32.gmra.mxu0 %v1718
          %v1884 = vpop.f32.mrf.mxu0
          %v1885 = vadd.f32 0.0, %v1884
          %v1886 = vpop.f32.mrf.mxu0
          %1887 = vmatprep.mubr.f32.mxu0 0.0
          %1888 = vmatmul.mubr.f32.gmra.mxu0 %v1720
          %v1889 = vpop.f32.mrf.mxu0
          %v1890 = vadd.f32 0.0, %v1889
          %v1891 = vpop.f32.mrf.mxu0
          %1892 = vmatprep.mubr.f32.mxu0 0.0
          %1893 = vmatmul.mubr.f32.gmra.mxu0 %v1722
          %v1894 = vpop.f32.mrf.mxu0
          %v1895 = vadd.f32 0.0, %v1894
          %v1896 = vpop.f32.mrf.mxu0
          %1897 = vmatprep.mubr.f32.mxu0 0.0
          %1898 = vmatmul.mubr.f32.gmra.mxu0 %v1724
          %v1899 = vpop.f32.mrf.mxu0
          %v1900 = vadd.f32 0.0, %v1899
          %v1901 = vpop.f32.mrf.mxu0
          %1902 = vmatprep.mubr.f32.mxu0 0.0
          %1903 = vmatmul.mubr.f32.gmra.mxu0 %v1726
          %v1904 = vpop.f32.mrf.mxu0
          %v1905 = vadd.f32 0.0, %v1904
          %v1906 = vpop.f32.mrf.mxu0
          %1907 = vmatprep.mubr.f32.mxu0 0.0
          %1908 = vmatmul.mubr.f32.gmra.mxu0 %v1728
          %v1909 = vpop.f32.mrf.mxu0
          %v1910 = vadd.f32 0.0, %v1909
          %v1911 = vpop.f32.mrf.mxu0
          %1912 = vmatprep.mubr.f32.mxu0 0.0
          %1913 = vmatmul.mubr.f32.gmra.mxu0 %v1730
          %v1914 = vpop.f32.mrf.mxu0
          %v1915 = vadd.f32 0.0, %v1914
          %v1916 = vpop.f32.mrf.mxu0
          %1917 = vmatprep.mubr.f32.mxu0 0.0
          %1918 = vmatmul.mubr.f32.gmra.mxu0 %v1732
          %v1919 = vpop.f32.mrf.mxu0
          %v1920 = vadd.f32 0.0, %v1919
          %v1921 = vpop.f32.mrf.mxu0
          %1922 = vmatprep.mubr.f32.mxu0 0.0
          %1923 = vmatmul.mubr.f32.gmra.mxu0 %v1734
          %v1924 = vpop.f32.mrf.mxu0
          %v1925 = vadd.f32 0.0, %v1924
          %v1926 = vpop.f32.mrf.mxu0
          %1927 = vmatprep.mubr.f32.mxu0 0.0
          %1928 = vmatmul.mubr.f32.gmra.mxu0 %v1736
          %v1929 = vpop.f32.mrf.mxu0
          %v1930 = vadd.f32 0.0, %v1929
          %v1931 = vpop.f32.mrf.mxu0
          %1932 = vmatprep.mubr.f32.mxu0 0.0
          %1933 = vmatmul.mubr.f32.gmra.mxu0 %v1738
          %v1934 = vpop.f32.mrf.mxu0
          %v1935 = vadd.f32 0.0, %v1934
          %v1936 = vpop.f32.mrf.mxu0
          %1937 = vmatprep.mubr.f32.mxu0 0.0
          %1938 = vmatmul.mubr.f32.gmra.mxu0 %v1740
          %v1939 = vpop.f32.mrf.mxu0
          %v1940 = vadd.f32 0.0, %v1939
          %v1941 = vpop.f32.mrf.mxu0
          %1942 = vmatprep.mubr.f32.mxu0 0.0
          %1943 = vmatmul.mubr.f32.gmra.mxu0 %v1742
          %v1944 = vpop.f32.mrf.mxu0
          %v1945 = vadd.f32 0.0, %v1944
          %v1946 = vpop.f32.mrf.mxu0
          %1947 = vmatprep.mubr.f32.mxu0 0.0
          %1948 = vmatmul.mubr.f32.gmra.mxu0 %v1744
          %v1949 = vpop.f32.mrf.mxu0
          %v1950 = vadd.f32 0.0, %v1949
          %v1951 = vpop.f32.mrf.mxu0
          %1952 = vmatprep.mubr.f32.mxu0 0.0
          %1953 = vmatmul.mubr.f32.gmra.mxu0 %v1746
          %v1954 = vpop.f32.mrf.mxu0
          %v1955 = vadd.f32 0.0, %v1954
          %v1956 = vpop.f32.mrf.mxu0
          %1957 = vmatprep.mubr.f32.mxu0 0.0
          %1958 = vmatmul.mubr.f32.gmra.mxu0 %v1748
          %v1959 = vpop.f32.mrf.mxu0
          %v1960 = vadd.f32 0.0, %v1959
          %v1961 = vpop.f32.mrf.mxu0
          %1962 = vmatprep.mubr.f32.mxu0 0.0
          %1963 = vmatmul.mubr.f32.gmra.mxu0 %v1750
          %v1964 = vpop.f32.mrf.mxu0
          %v1965 = vadd.f32 0.0, %v1964
          %v1966 = vpop.f32.mrf.mxu0
          %1967 = vmatprep.mubr.f32.mxu0 0.0
          %1968 = vmatmul.mubr.f32.gmra.mxu0 %v1752
          %v1969 = vpop.f32.mrf.mxu0
          %v1970 = vadd.f32 0.0, %v1969
          %v1971 = vpop.f32.mrf.mxu0
          %1972 = vmatprep.mubr.f32.mxu0 0.0
          %1973 = vmatmul.mubr.f32.gmra.mxu0 %v1754
          %v1974 = vpop.f32.mrf.mxu0
          %v1975 = vadd.f32 0.0, %v1974
          %v1976 = vpop.f32.mrf.mxu0
          %1977 = vmatprep.mubr.f32.mxu0 0.0
          %1978 = vmatmul.mubr.f32.gmra.mxu0 %v1756
          %v1979 = vpop.f32.mrf.mxu0
          %v1980 = vadd.f32 0.0, %v1979
          %v1981 = vpop.f32.mrf.mxu0
          %1982 = vdwg.mxu0
          %v1983 = vadd.f32 %v1594, %v1825
          %v1984 = vadd.f32 %v1595, %v1830
          %v1985 = vadd.f32 %v1596, %v1835
          %v1986 = vadd.f32 %v1597, %v1840
          %v1987 = vadd.f32 %v1598, %v1845
          %v1988 = vadd.f32 %v1599, %v1850
          %v1989 = vadd.f32 %v1600, %v1855
          %v1990 = vadd.f32 %v1601, %v1860
          %v1991 = vadd.f32 %v1602, %v1865
          %v1992 = vadd.f32 %v1603, %v1870
          %v1993 = vadd.f32 %v1604, %v1875
          %v1994 = vadd.f32 %v1605, %v1880
          %v1995 = vadd.f32 %v1606, %v1885
          %v1996 = vadd.f32 %v1607, %v1890
          %v1997 = vadd.f32 %v1608, %v1895
          %v1998 = vadd.f32 %v1609, %v1900
          %v1999 = vadd.f32 %v1610, %v1905
          %v2000 = vadd.f32 %v1611, %v1910
          %v2001 = vadd.f32 %v1612, %v1915
          %v2002 = vadd.f32 %v1613, %v1920
          %v2003 = vadd.f32 %v1614, %v1925
          %v2004 = vadd.f32 %v1615, %v1930
          %v2005 = vadd.f32 %v1616, %v1935
          %v2006 = vadd.f32 %v1617, %v1940
          %v2007 = vadd.f32 %v1618, %v1945
          %v2008 = vadd.f32 %v1619, %v1950
          %v2009 = vadd.f32 %v1620, %v1955
          %v2010 = vadd.f32 %v1621, %v1960
          %v2011 = vadd.f32 %v1622, %v1965
          %v2012 = vadd.f32 %v1623, %v1970
          %v2013 = vadd.f32 %v1624, %v1975
          %v2014 = vadd.f32 %v1625, %v1980
          %s2015 = scalar_lea.vmem %s1, 40
          %v2016 = vld [vmem:[%s2015] sm:$0xff]
          %vm2017 = vcmask 1043456
          %v2018 = vrot.slane %v252, 4
          %v2019 = vrot.slane %v253, 4
          %v2020 = vsel %vm2017, %v2018, %v2019
          %v2021 = vrot.slane %v254, 4
          %v2022 = vsel %vm2017, %v2019, %v2021
          %v2023 = vrot.slane %v255, 4
          %v2024 = vsel %vm2017, %v2021, %v2023
          %v2025 = vrot.slane %v256, 4
          %v2026 = vsel %vm2017, %v2023, %v2025
          %v2027 = vrot.slane %v257, 4
          %v2028 = vsel %vm2017, %v2025, %v2027
          %v2029 = vrot.slane %v258, 4
          %v2030 = vsel %vm2017, %v2027, %v2029
          %v2031 = vrot.slane %v259, 4
          %v2032 = vsel %vm2017, %v2029, %v2031
          %v2033 = vrot.slane %v260, 4
          %v2034 = vsel %vm2017, %v2031, %v2033
          %v2035 = vrot.slane %v261, 4
          %v2036 = vsel %vm2017, %v2033, %v2035
          %v2037 = vrot.slane %v262, 4
          %v2038 = vsel %vm2017, %v2035, %v2037
          %v2039 = vrot.slane %v263, 4
          %v2040 = vsel %vm2017, %v2037, %v2039
          %v2041 = vrot.slane %v264, 4
          %v2042 = vsel %vm2017, %v2039, %v2041
          %v2043 = vrot.slane %v265, 4
          %v2044 = vsel %vm2017, %v2041, %v2043
          %v2045 = vrot.slane %v266, 4
          %v2046 = vsel %vm2017, %v2043, %v2045
          %v2047 = vrot.slane %v267, 4
          %v2048 = vsel %vm2017, %v2045, %v2047
          %v2049 = vrot.slane %v268, 4
          %v2050 = vsel %vm2017, %v2047, %v2049
          %v2051 = vrot.slane %v269, 4
          %v2052 = vsel %vm2017, %v2049, %v2051
          %v2053 = vrot.slane %v270, 4
          %v2054 = vsel %vm2017, %v2051, %v2053
          %v2055 = vrot.slane %v271, 4
          %v2056 = vsel %vm2017, %v2053, %v2055
          %v2057 = vrot.slane %v272, 4
          %v2058 = vsel %vm2017, %v2055, %v2057
          %v2059 = vrot.slane %v273, 4
          %v2060 = vsel %vm2017, %v2057, %v2059
          %v2061 = vrot.slane %v274, 4
          %v2062 = vsel %vm2017, %v2059, %v2061
          %v2063 = vrot.slane %v275, 4
          %v2064 = vsel %vm2017, %v2061, %v2063
          %v2065 = vrot.slane %v276, 4
          %v2066 = vsel %vm2017, %v2063, %v2065
          %v2067 = vrot.slane %v277, 4
          %v2068 = vsel %vm2017, %v2065, %v2067
          %v2069 = vrot.slane %v278, 4
          %v2070 = vsel %vm2017, %v2067, %v2069
          %v2071 = vrot.slane %v279, 4
          %v2072 = vsel %vm2017, %v2069, %v2071
          %v2073 = vrot.slane %v280, 4
          %v2074 = vsel %vm2017, %v2071, %v2073
          %v2075 = vrot.slane %v281, 4
          %v2076 = vsel %vm2017, %v2073, %v2075
          %v2077 = vrot.slane %v282, 4
          %v2078 = vsel %vm2017, %v2075, %v2077
          %v2079 = vrot.slane %v283, 4
          %v2080 = vsel %vm2017, %v2077, %v2079
          %v2081 = vrot.slane %v284, 4
          %v2082 = vsel %vm2017, %v2079, %v2081
          %v2083 = vsel %vm389, %v2020, 0
          %v2085 = vsel %vm389, %v2022, 0
          %v2087 = vsel %vm389, %v2024, 0
          %v2089 = vsel %vm389, %v2026, 0
          %v2091 = vsel %vm389, %v2028, 0
          %v2093 = vsel %vm389, %v2030, 0
          %v2095 = vsel %vm389, %v2032, 0
          %v2097 = vsel %vm389, %v2034, 0
          %v2099 = vsel %vm389, %v2036, 0
          %v2101 = vsel %vm389, %v2038, 0
          %v2103 = vsel %vm389, %v2040, 0
          %v2105 = vsel %vm389, %v2042, 0
          %v2107 = vsel %vm389, %v2044, 0
          %v2109 = vsel %vm389, %v2046, 0
          %v2111 = vsel %vm389, %v2048, 0
          %v2113 = vsel %vm389, %v2050, 0
          %v2115 = vsel %vm389, %v2052, 0
          %v2117 = vsel %vm389, %v2054, 0
          %v2119 = vsel %vm389, %v2056, 0
          %v2121 = vsel %vm389, %v2058, 0
          %v2123 = vsel %vm389, %v2060, 0
          %v2125 = vsel %vm389, %v2062, 0
          %v2127 = vsel %vm389, %v2064, 0
          %v2129 = vsel %vm389, %v2066, 0
          %v2131 = vsel %vm389, %v2068, 0
          %v2133 = vsel %vm389, %v2070, 0
          %v2135 = vsel %vm389, %v2072, 0
          %v2137 = vsel %vm389, %v2074, 0
          %v2139 = vsel %vm389, %v2076, 0
          %v2141 = vsel %vm389, %v2078, 0
          %v2143 = vsel %vm389, %v2080, 0
          %v2145 = vsel %vm389, %v2082, 0
          %2147 = vmatprep.subr.mxu0 0.0
          %2148 = vmatpush1.msra.mxu0 0.0
          %2149 = vmatprep.subr.mxu0 0.0
          %2150 = vmatpush1.msra.mxu0 0.0
          %2151 = vmatprep.subr.mxu0 0.0
          %2152 = vmatpush1.msra.mxu0 0.0
          %2153 = vmatprep.subr.mxu0 0.0
          %2154 = vmatpush1.msra.mxu0 0.0
          %2155 = vmatprep.subr.mxu0 0.0
          %2156 = vmatpush1.msra.mxu0 0.0
          %2157 = vmatprep.subr.mxu0 0.0
          %2158 = vmatpush1.msra.mxu0 0.0
          %2159 = vmatprep.subr.mxu0 0.0
          %2160 = vmatpush1.msra.mxu0 0.0
          %2161 = vmatprep.subr.mxu0 0.0
          %2162 = vmatpush1.msra.mxu0 0.0
          %2163 = vmatprep.subr.mxu0 0.0
          %2164 = vmatpush1.msra.mxu0 0.0
          %2165 = vmatprep.subr.mxu0 0.0
          %2166 = vmatpush1.msra.mxu0 0.0
          %2167 = vmatprep.subr.mxu0 0.0
          %2168 = vmatpush1.msra.mxu0 0.0
          %2169 = vmatprep.subr.mxu0 0.0
          %2170 = vmatpush1.msra.mxu0 0.0
          %2171 = vmatprep.subr.mxu0 0.0
          %2172 = vmatpush1.msra.mxu0 0.0
          %2173 = vmatprep.subr.mxu0 0.0
          %2174 = vmatpush1.msra.mxu0 0.0
          %2175 = vmatprep.subr.mxu0 0.0
          %2176 = vmatpush1.msra.mxu0 0.0
          %2177 = vmatprep.subr.mxu0 0.0
          %2178 = vmatpush1.msra.mxu0 %v2016
          %2179 = vmatprep.subr.mxu0 0.0
          %2180 = vmatpush2.msra.mxu0 0.0
          %2181 = vmatprep.subr.mxu0 0.0
          %2182 = vmatpush2.msra.mxu0 0.0
          %2183 = vmatprep.subr.mxu0 0.0
          %2184 = vmatpush2.msra.mxu0 0.0
          %2185 = vmatprep.subr.mxu0 0.0
          %2186 = vmatpush2.msra.mxu0 0.0
          %2187 = vmatprep.subr.mxu0 0.0
          %2188 = vmatpush2.msra.mxu0 0.0
          %2189 = vmatprep.subr.mxu0 0.0
          %2190 = vmatpush2.msra.mxu0 0.0
          %2191 = vmatprep.subr.mxu0 0.0
          %2192 = vmatpush2.msra.mxu0 0.0
          %2193 = vmatprep.subr.mxu0 0.0
          %2194 = vmatpush2.msra.mxu0 0.0
          %2195 = vmatprep.subr.mxu0 0.0
          %2196 = vmatpush2.msra.mxu0 0.0
          %2197 = vmatprep.subr.mxu0 0.0
          %2198 = vmatpush2.msra.mxu0 0.0
          %2199 = vmatprep.subr.mxu0 0.0
          %2200 = vmatpush2.msra.mxu0 0.0
          %2201 = vmatprep.subr.mxu0 0.0
          %2202 = vmatpush2.msra.mxu0 0.0
          %2203 = vmatprep.subr.mxu0 0.0
          %2204 = vmatpush2.msra.mxu0 0.0
          %2205 = vmatprep.subr.mxu0 0.0
          %2206 = vmatpush2.msra.mxu0 0.0
          %2207 = vmatprep.subr.mxu0 0.0
          %2208 = vmatpush2.msra.mxu0 0.0
          %2209 = vmatprep.subr.mxu0 0.0
          %2210 = vmatpush2.msra.mxu0 0.0
          %2211 = vmatprep.mubr.f32.mxu0 0.0
          %2212 = vmatmul.mubr.f32.gmra.mxu0 %v2083
          %v2213 = vpop.f32.mrf.mxu0
          %v2214 = vadd.f32 0.0, %v2213
          %v2215 = vpop.f32.mrf.mxu0
          %2216 = vmatprep.mubr.f32.mxu0 0.0
          %2217 = vmatmul.mubr.f32.gmra.mxu0 %v2085
          %v2218 = vpop.f32.mrf.mxu0
          %v2219 = vadd.f32 0.0, %v2218
          %v2220 = vpop.f32.mrf.mxu0
          %2221 = vmatprep.mubr.f32.mxu0 0.0
          %2222 = vmatmul.mubr.f32.gmra.mxu0 %v2087
          %v2223 = vpop.f32.mrf.mxu0
          %v2224 = vadd.f32 0.0, %v2223
          %v2225 = vpop.f32.mrf.mxu0
          %2226 = vmatprep.mubr.f32.mxu0 0.0
          %2227 = vmatmul.mubr.f32.gmra.mxu0 %v2089
          %v2228 = vpop.f32.mrf.mxu0
          %v2229 = vadd.f32 0.0, %v2228
          %v2230 = vpop.f32.mrf.mxu0
          %2231 = vmatprep.mubr.f32.mxu0 0.0
          %2232 = vmatmul.mubr.f32.gmra.mxu0 %v2091
          %v2233 = vpop.f32.mrf.mxu0
          %v2234 = vadd.f32 0.0, %v2233
          %v2235 = vpop.f32.mrf.mxu0
          %2236 = vmatprep.mubr.f32.mxu0 0.0
          %2237 = vmatmul.mubr.f32.gmra.mxu0 %v2093
          %v2238 = vpop.f32.mrf.mxu0
          %v2239 = vadd.f32 0.0, %v2238
          %v2240 = vpop.f32.mrf.mxu0
          %2241 = vmatprep.mubr.f32.mxu0 0.0
          %2242 = vmatmul.mubr.f32.gmra.mxu0 %v2095
          %v2243 = vpop.f32.mrf.mxu0
          %v2244 = vadd.f32 0.0, %v2243
          %v2245 = vpop.f32.mrf.mxu0
          %2246 = vmatprep.mubr.f32.mxu0 0.0
          %2247 = vmatmul.mubr.f32.gmra.mxu0 %v2097
          %v2248 = vpop.f32.mrf.mxu0
          %v2249 = vadd.f32 0.0, %v2248
          %v2250 = vpop.f32.mrf.mxu0
          %2251 = vmatprep.mubr.f32.mxu0 0.0
          %2252 = vmatmul.mubr.f32.gmra.mxu0 %v2099
          %v2253 = vpop.f32.mrf.mxu0
          %v2254 = vadd.f32 0.0, %v2253
          %v2255 = vpop.f32.mrf.mxu0
          %2256 = vmatprep.mubr.f32.mxu0 0.0
          %2257 = vmatmul.mubr.f32.gmra.mxu0 %v2101
          %v2258 = vpop.f32.mrf.mxu0
          %v2259 = vadd.f32 0.0, %v2258
          %v2260 = vpop.f32.mrf.mxu0
          %2261 = vmatprep.mubr.f32.mxu0 0.0
          %2262 = vmatmul.mubr.f32.gmra.mxu0 %v2103
          %v2263 = vpop.f32.mrf.mxu0
          %v2264 = vadd.f32 0.0, %v2263
          %v2265 = vpop.f32.mrf.mxu0
          %2266 = vmatprep.mubr.f32.mxu0 0.0
          %2267 = vmatmul.mubr.f32.gmra.mxu0 %v2105
          %v2268 = vpop.f32.mrf.mxu0
          %v2269 = vadd.f32 0.0, %v2268
          %v2270 = vpop.f32.mrf.mxu0
          %2271 = vmatprep.mubr.f32.mxu0 0.0
          %2272 = vmatmul.mubr.f32.gmra.mxu0 %v2107
          %v2273 = vpop.f32.mrf.mxu0
          %v2274 = vadd.f32 0.0, %v2273
          %v2275 = vpop.f32.mrf.mxu0
          %2276 = vmatprep.mubr.f32.mxu0 0.0
          %2277 = vmatmul.mubr.f32.gmra.mxu0 %v2109
          %v2278 = vpop.f32.mrf.mxu0
          %v2279 = vadd.f32 0.0, %v2278
          %v2280 = vpop.f32.mrf.mxu0
          %2281 = vmatprep.mubr.f32.mxu0 0.0
          %2282 = vmatmul.mubr.f32.gmra.mxu0 %v2111
          %v2283 = vpop.f32.mrf.mxu0
          %v2284 = vadd.f32 0.0, %v2283
          %v2285 = vpop.f32.mrf.mxu0
          %2286 = vmatprep.mubr.f32.mxu0 0.0
          %2287 = vmatmul.mubr.f32.gmra.mxu0 %v2113
          %v2288 = vpop.f32.mrf.mxu0
          %v2289 = vadd.f32 0.0, %v2288
          %v2290 = vpop.f32.mrf.mxu0
          %2291 = vmatprep.mubr.f32.mxu0 0.0
          %2292 = vmatmul.mubr.f32.gmra.mxu0 %v2115
          %v2293 = vpop.f32.mrf.mxu0
          %v2294 = vadd.f32 0.0, %v2293
          %v2295 = vpop.f32.mrf.mxu0
          %2296 = vmatprep.mubr.f32.mxu0 0.0
          %2297 = vmatmul.mubr.f32.gmra.mxu0 %v2117
          %v2298 = vpop.f32.mrf.mxu0
          %v2299 = vadd.f32 0.0, %v2298
          %v2300 = vpop.f32.mrf.mxu0
          %2301 = vmatprep.mubr.f32.mxu0 0.0
          %2302 = vmatmul.mubr.f32.gmra.mxu0 %v2119
          %v2303 = vpop.f32.mrf.mxu0
          %v2304 = vadd.f32 0.0, %v2303
          %v2305 = vpop.f32.mrf.mxu0
          %2306 = vmatprep.mubr.f32.mxu0 0.0
          %2307 = vmatmul.mubr.f32.gmra.mxu0 %v2121
          %v2308 = vpop.f32.mrf.mxu0
          %v2309 = vadd.f32 0.0, %v2308
          %v2310 = vpop.f32.mrf.mxu0
          %2311 = vmatprep.mubr.f32.mxu0 0.0
          %2312 = vmatmul.mubr.f32.gmra.mxu0 %v2123
          %v2313 = vpop.f32.mrf.mxu0
          %v2314 = vadd.f32 0.0, %v2313
          %v2315 = vpop.f32.mrf.mxu0
          %2316 = vmatprep.mubr.f32.mxu0 0.0
          %2317 = vmatmul.mubr.f32.gmra.mxu0 %v2125
          %v2318 = vpop.f32.mrf.mxu0
          %v2319 = vadd.f32 0.0, %v2318
          %v2320 = vpop.f32.mrf.mxu0
          %2321 = vmatprep.mubr.f32.mxu0 0.0
          %2322 = vmatmul.mubr.f32.gmra.mxu0 %v2127
          %v2323 = vpop.f32.mrf.mxu0
          %v2324 = vadd.f32 0.0, %v2323
          %v2325 = vpop.f32.mrf.mxu0
          %2326 = vmatprep.mubr.f32.mxu0 0.0
          %2327 = vmatmul.mubr.f32.gmra.mxu0 %v2129
          %v2328 = vpop.f32.mrf.mxu0
          %v2329 = vadd.f32 0.0, %v2328
          %v2330 = vpop.f32.mrf.mxu0
          %2331 = vmatprep.mubr.f32.mxu0 0.0
          %2332 = vmatmul.mubr.f32.gmra.mxu0 %v2131
          %v2333 = vpop.f32.mrf.mxu0
          %v2334 = vadd.f32 0.0, %v2333
          %v2335 = vpop.f32.mrf.mxu0
          %2336 = vmatprep.mubr.f32.mxu0 0.0
          %2337 = vmatmul.mubr.f32.gmra.mxu0 %v2133
          %v2338 = vpop.f32.mrf.mxu0
          %v2339 = vadd.f32 0.0, %v2338
          %v2340 = vpop.f32.mrf.mxu0
          %2341 = vmatprep.mubr.f32.mxu0 0.0
          %2342 = vmatmul.mubr.f32.gmra.mxu0 %v2135
          %v2343 = vpop.f32.mrf.mxu0
          %v2344 = vadd.f32 0.0, %v2343
          %v2345 = vpop.f32.mrf.mxu0
          %2346 = vmatprep.mubr.f32.mxu0 0.0
          %2347 = vmatmul.mubr.f32.gmra.mxu0 %v2137
          %v2348 = vpop.f32.mrf.mxu0
          %v2349 = vadd.f32 0.0, %v2348
          %v2350 = vpop.f32.mrf.mxu0
          %2351 = vmatprep.mubr.f32.mxu0 0.0
          %2352 = vmatmul.mubr.f32.gmra.mxu0 %v2139
          %v2353 = vpop.f32.mrf.mxu0
          %v2354 = vadd.f32 0.0, %v2353
          %v2355 = vpop.f32.mrf.mxu0
          %2356 = vmatprep.mubr.f32.mxu0 0.0
          %2357 = vmatmul.mubr.f32.gmra.mxu0 %v2141
          %v2358 = vpop.f32.mrf.mxu0
          %v2359 = vadd.f32 0.0, %v2358
          %v2360 = vpop.f32.mrf.mxu0
          %2361 = vmatprep.mubr.f32.mxu0 0.0
          %2362 = vmatmul.mubr.f32.gmra.mxu0 %v2143
          %v2363 = vpop.f32.mrf.mxu0
          %v2364 = vadd.f32 0.0, %v2363
          %v2365 = vpop.f32.mrf.mxu0
          %2366 = vmatprep.mubr.f32.mxu0 0.0
          %2367 = vmatmul.mubr.f32.gmra.mxu0 %v2145
          %v2368 = vpop.f32.mrf.mxu0
          %v2369 = vadd.f32 0.0, %v2368
          %v2370 = vpop.f32.mrf.mxu0
          %2371 = vdwg.mxu0
          %v2372 = vadd.f32 %v1983, %v2214
          %v2373 = vadd.f32 %v1984, %v2219
          %v2374 = vadd.f32 %v1985, %v2224
          %v2375 = vadd.f32 %v1986, %v2229
          %v2376 = vadd.f32 %v1987, %v2234
          %v2377 = vadd.f32 %v1988, %v2239
          %v2378 = vadd.f32 %v1989, %v2244
          %v2379 = vadd.f32 %v1990, %v2249
          %v2380 = vadd.f32 %v1991, %v2254
          %v2381 = vadd.f32 %v1992, %v2259
          %v2382 = vadd.f32 %v1993, %v2264
          %v2383 = vadd.f32 %v1994, %v2269
          %v2384 = vadd.f32 %v1995, %v2274
          %v2385 = vadd.f32 %v1996, %v2279
          %v2386 = vadd.f32 %v1997, %v2284
          %v2387 = vadd.f32 %v1998, %v2289
          %v2388 = vadd.f32 %v1999, %v2294
          %v2389 = vadd.f32 %v2000, %v2299
          %v2390 = vadd.f32 %v2001, %v2304
          %v2391 = vadd.f32 %v2002, %v2309
          %v2392 = vadd.f32 %v2003, %v2314
          %v2393 = vadd.f32 %v2004, %v2319
          %v2394 = vadd.f32 %v2005, %v2324
          %v2395 = vadd.f32 %v2006, %v2329
          %v2396 = vadd.f32 %v2007, %v2334
          %v2397 = vadd.f32 %v2008, %v2339
          %v2398 = vadd.f32 %v2009, %v2344
          %v2399 = vadd.f32 %v2010, %v2349
          %v2400 = vadd.f32 %v2011, %v2354
          %v2401 = vadd.f32 %v2012, %v2359
          %v2402 = vadd.f32 %v2013, %v2364
          %v2403 = vadd.f32 %v2014, %v2369
          %s2404 = scalar_lea.vmem %s1, 48
          %v2405 = vld [vmem:[%s2404] sm:$0xff]
          %v2408 = vrot.slane %v285, 4
          %v2409 = vsel %vm2017, %v2081, %v2408
          %v2410 = vrot.slane %v286, 4
          %v2411 = vsel %vm2017, %v2408, %v2410
          %v2412 = vsel %vm389, %v2409, 0
          %v2414 = vsel %vm389, %v2411, 0
          %2416 = vmatprep.subr.mxu0 0.0
          %2417 = vmatpush1.msra.mxu0 0.0
          %2418 = vmatprep.subr.mxu0 0.0
          %2419 = vmatpush1.msra.mxu0 0.0
          %2420 = vmatprep.subr.mxu0 0.0
          %2421 = vmatpush1.msra.mxu0 0.0
          %2422 = vmatprep.subr.mxu0 0.0
          %2423 = vmatpush1.msra.mxu0 0.0
          %2424 = vmatprep.subr.mxu0 0.0
          %2425 = vmatpush1.msra.mxu0 0.0
          %2426 = vmatprep.subr.mxu0 0.0
          %2427 = vmatpush1.msra.mxu0 0.0
          %2428 = vmatprep.subr.mxu0 0.0
          %2429 = vmatpush1.msra.mxu0 0.0
          %2430 = vmatprep.subr.mxu0 0.0
          %2431 = vmatpush1.msra.mxu0 0.0
          %2432 = vmatprep.subr.mxu0 0.0
          %2433 = vmatpush1.msra.mxu0 0.0
          %2434 = vmatprep.subr.mxu0 0.0
          %2435 = vmatpush1.msra.mxu0 0.0
          %2436 = vmatprep.subr.mxu0 0.0
          %2437 = vmatpush1.msra.mxu0 0.0
          %2438 = vmatprep.subr.mxu0 0.0
          %2439 = vmatpush1.msra.mxu0 0.0
          %2440 = vmatprep.subr.mxu0 0.0
          %2441 = vmatpush1.msra.mxu0 0.0
          %2442 = vmatprep.subr.mxu0 0.0
          %2443 = vmatpush1.msra.mxu0 0.0
          %2444 = vmatprep.subr.mxu0 0.0
          %2445 = vmatpush1.msra.mxu0 0.0
          %2446 = vmatprep.subr.mxu0 0.0
          %2447 = vmatpush1.msra.mxu0 %v2405
          %2448 = vmatprep.subr.mxu0 0.0
          %2449 = vmatpush2.msra.mxu0 0.0
          %2450 = vmatprep.subr.mxu0 0.0
          %2451 = vmatpush2.msra.mxu0 0.0
          %2452 = vmatprep.subr.mxu0 0.0
          %2453 = vmatpush2.msra.mxu0 0.0
          %2454 = vmatprep.subr.mxu0 0.0
          %2455 = vmatpush2.msra.mxu0 0.0
          %2456 = vmatprep.subr.mxu0 0.0
          %2457 = vmatpush2.msra.mxu0 0.0
          %2458 = vmatprep.subr.mxu0 0.0
          %2459 = vmatpush2.msra.mxu0 0.0
          %2460 = vmatprep.subr.mxu0 0.0
          %2461 = vmatpush2.msra.mxu0 0.0
          %2462 = vmatprep.subr.mxu0 0.0
          %2463 = vmatpush2.msra.mxu0 0.0
          %2464 = vmatprep.subr.mxu0 0.0
          %2465 = vmatpush2.msra.mxu0 0.0
          %2466 = vmatprep.subr.mxu0 0.0
          %2467 = vmatpush2.msra.mxu0 0.0
          %2468 = vmatprep.subr.mxu0 0.0
          %2469 = vmatpush2.msra.mxu0 0.0
          %2470 = vmatprep.subr.mxu0 0.0
          %2471 = vmatpush2.msra.mxu0 0.0
          %2472 = vmatprep.subr.mxu0 0.0
          %2473 = vmatpush2.msra.mxu0 0.0
          %2474 = vmatprep.subr.mxu0 0.0
          %2475 = vmatpush2.msra.mxu0 0.0
          %2476 = vmatprep.subr.mxu0 0.0
          %2477 = vmatpush2.msra.mxu0 0.0
          %2478 = vmatprep.subr.mxu0 0.0
          %2479 = vmatpush2.msra.mxu0 0.0
          %2480 = vmatprep.mubr.f32.mxu0 0.0
          %2481 = vmatmul.mubr.f32.gmra.mxu0 %v2087
          %v2482 = vpop.f32.mrf.mxu0
          %v2483 = vadd.f32 0.0, %v2482
          %v2484 = vpop.f32.mrf.mxu0
          %2485 = vmatprep.mubr.f32.mxu0 0.0
          %2486 = vmatmul.mubr.f32.gmra.mxu0 %v2089
          %v2487 = vpop.f32.mrf.mxu0
          %v2488 = vadd.f32 0.0, %v2487
          %v2489 = vpop.f32.mrf.mxu0
          %2490 = vmatprep.mubr.f32.mxu0 0.0
          %2491 = vmatmul.mubr.f32.gmra.mxu0 %v2091
          %v2492 = vpop.f32.mrf.mxu0
          %v2493 = vadd.f32 0.0, %v2492
          %v2494 = vpop.f32.mrf.mxu0
          %2495 = vmatprep.mubr.f32.mxu0 0.0
          %2496 = vmatmul.mubr.f32.gmra.mxu0 %v2093
          %v2497 = vpop.f32.mrf.mxu0
          %v2498 = vadd.f32 0.0, %v2497
          %v2499 = vpop.f32.mrf.mxu0
          %2500 = vmatprep.mubr.f32.mxu0 0.0
          %2501 = vmatmul.mubr.f32.gmra.mxu0 %v2095
          %v2502 = vpop.f32.mrf.mxu0
          %v2503 = vadd.f32 0.0, %v2502
          %v2504 = vpop.f32.mrf.mxu0
          %2505 = vmatprep.mubr.f32.mxu0 0.0
          %2506 = vmatmul.mubr.f32.gmra.mxu0 %v2097
          %v2507 = vpop.f32.mrf.mxu0
          %v2508 = vadd.f32 0.0, %v2507
          %v2509 = vpop.f32.mrf.mxu0
          %2510 = vmatprep.mubr.f32.mxu0 0.0
          %2511 = vmatmul.mubr.f32.gmra.mxu0 %v2099
          %v2512 = vpop.f32.mrf.mxu0
          %v2513 = vadd.f32 0.0, %v2512
          %v2514 = vpop.f32.mrf.mxu0
          %2515 = vmatprep.mubr.f32.mxu0 0.0
          %2516 = vmatmul.mubr.f32.gmra.mxu0 %v2101
          %v2517 = vpop.f32.mrf.mxu0
          %v2518 = vadd.f32 0.0, %v2517
          %v2519 = vpop.f32.mrf.mxu0
          %2520 = vmatprep.mubr.f32.mxu0 0.0
          %2521 = vmatmul.mubr.f32.gmra.mxu0 %v2103
          %v2522 = vpop.f32.mrf.mxu0
          %v2523 = vadd.f32 0.0, %v2522
          %v2524 = vpop.f32.mrf.mxu0
          %2525 = vmatprep.mubr.f32.mxu0 0.0
          %2526 = vmatmul.mubr.f32.gmra.mxu0 %v2105
          %v2527 = vpop.f32.mrf.mxu0
          %v2528 = vadd.f32 0.0, %v2527
          %v2529 = vpop.f32.mrf.mxu0
          %2530 = vmatprep.mubr.f32.mxu0 0.0
          %2531 = vmatmul.mubr.f32.gmra.mxu0 %v2107
          %v2532 = vpop.f32.mrf.mxu0
          %v2533 = vadd.f32 0.0, %v2532
          %v2534 = vpop.f32.mrf.mxu0
          %2535 = vmatprep.mubr.f32.mxu0 0.0
          %2536 = vmatmul.mubr.f32.gmra.mxu0 %v2109
          %v2537 = vpop.f32.mrf.mxu0
          %v2538 = vadd.f32 0.0, %v2537
          %v2539 = vpop.f32.mrf.mxu0
          %2540 = vmatprep.mubr.f32.mxu0 0.0
          %2541 = vmatmul.mubr.f32.gmra.mxu0 %v2111
          %v2542 = vpop.f32.mrf.mxu0
          %v2543 = vadd.f32 0.0, %v2542
          %v2544 = vpop.f32.mrf.mxu0
          %2545 = vmatprep.mubr.f32.mxu0 0.0
          %2546 = vmatmul.mubr.f32.gmra.mxu0 %v2113
          %v2547 = vpop.f32.mrf.mxu0
          %v2548 = vadd.f32 0.0, %v2547
          %v2549 = vpop.f32.mrf.mxu0
          %2550 = vmatprep.mubr.f32.mxu0 0.0
          %2551 = vmatmul.mubr.f32.gmra.mxu0 %v2115
          %v2552 = vpop.f32.mrf.mxu0
          %v2553 = vadd.f32 0.0, %v2552
          %v2554 = vpop.f32.mrf.mxu0
          %2555 = vmatprep.mubr.f32.mxu0 0.0
          %2556 = vmatmul.mubr.f32.gmra.mxu0 %v2117
          %v2557 = vpop.f32.mrf.mxu0
          %v2558 = vadd.f32 0.0, %v2557
          %v2559 = vpop.f32.mrf.mxu0
          %2560 = vmatprep.mubr.f32.mxu0 0.0
          %2561 = vmatmul.mubr.f32.gmra.mxu0 %v2119
          %v2562 = vpop.f32.mrf.mxu0
          %v2563 = vadd.f32 0.0, %v2562
          %v2564 = vpop.f32.mrf.mxu0
          %2565 = vmatprep.mubr.f32.mxu0 0.0
          %2566 = vmatmul.mubr.f32.gmra.mxu0 %v2121
          %v2567 = vpop.f32.mrf.mxu0
          %v2568 = vadd.f32 0.0, %v2567
          %v2569 = vpop.f32.mrf.mxu0
          %2570 = vmatprep.mubr.f32.mxu0 0.0
          %2571 = vmatmul.mubr.f32.gmra.mxu0 %v2123
          %v2572 = vpop.f32.mrf.mxu0
          %v2573 = vadd.f32 0.0, %v2572
          %v2574 = vpop.f32.mrf.mxu0
          %2575 = vmatprep.mubr.f32.mxu0 0.0
          %2576 = vmatmul.mubr.f32.gmra.mxu0 %v2125
          %v2577 = vpop.f32.mrf.mxu0
          %v2578 = vadd.f32 0.0, %v2577
          %v2579 = vpop.f32.mrf.mxu0
          %2580 = vmatprep.mubr.f32.mxu0 0.0
          %2581 = vmatmul.mubr.f32.gmra.mxu0 %v2127
          %v2582 = vpop.f32.mrf.mxu0
          %v2583 = vadd.f32 0.0, %v2582
          %v2584 = vpop.f32.mrf.mxu0
          %2585 = vmatprep.mubr.f32.mxu0 0.0
          %2586 = vmatmul.mubr.f32.gmra.mxu0 %v2129
          %v2587 = vpop.f32.mrf.mxu0
          %v2588 = vadd.f32 0.0, %v2587
          %v2589 = vpop.f32.mrf.mxu0
          %2590 = vmatprep.mubr.f32.mxu0 0.0
          %2591 = vmatmul.mubr.f32.gmra.mxu0 %v2131
          %v2592 = vpop.f32.mrf.mxu0
          %v2593 = vadd.f32 0.0, %v2592
          %v2594 = vpop.f32.mrf.mxu0
          %2595 = vmatprep.mubr.f32.mxu0 0.0
          %2596 = vmatmul.mubr.f32.gmra.mxu0 %v2133
          %v2597 = vpop.f32.mrf.mxu0
          %v2598 = vadd.f32 0.0, %v2597
          %v2599 = vpop.f32.mrf.mxu0
          %2600 = vmatprep.mubr.f32.mxu0 0.0
          %2601 = vmatmul.mubr.f32.gmra.mxu0 %v2135
          %v2602 = vpop.f32.mrf.mxu0
          %v2603 = vadd.f32 0.0, %v2602
          %v2604 = vpop.f32.mrf.mxu0
          %2605 = vmatprep.mubr.f32.mxu0 0.0
          %2606 = vmatmul.mubr.f32.gmra.mxu0 %v2137
          %v2607 = vpop.f32.mrf.mxu0
          %v2608 = vadd.f32 0.0, %v2607
          %v2609 = vpop.f32.mrf.mxu0
          %2610 = vmatprep.mubr.f32.mxu0 0.0
          %2611 = vmatmul.mubr.f32.gmra.mxu0 %v2139
          %v2612 = vpop.f32.mrf.mxu0
          %v2613 = vadd.f32 0.0, %v2612
          %v2614 = vpop.f32.mrf.mxu0
          %2615 = vmatprep.mubr.f32.mxu0 0.0
          %2616 = vmatmul.mubr.f32.gmra.mxu0 %v2141
          %v2617 = vpop.f32.mrf.mxu0
          %v2618 = vadd.f32 0.0, %v2617
          %v2619 = vpop.f32.mrf.mxu0
          %2620 = vmatprep.mubr.f32.mxu0 0.0
          %2621 = vmatmul.mubr.f32.gmra.mxu0 %v2143
          %v2622 = vpop.f32.mrf.mxu0
          %v2623 = vadd.f32 0.0, %v2622
          %v2624 = vpop.f32.mrf.mxu0
          %2625 = vmatprep.mubr.f32.mxu0 0.0
          %2626 = vmatmul.mubr.f32.gmra.mxu0 %v2145
          %v2627 = vpop.f32.mrf.mxu0
          %v2628 = vadd.f32 0.0, %v2627
          %v2629 = vpop.f32.mrf.mxu0
          %2630 = vmatprep.mubr.f32.mxu0 0.0
          %2631 = vmatmul.mubr.f32.gmra.mxu0 %v2412
          %v2632 = vpop.f32.mrf.mxu0
          %v2633 = vadd.f32 0.0, %v2632
          %v2634 = vpop.f32.mrf.mxu0
          %2635 = vmatprep.mubr.f32.mxu0 0.0
          %2636 = vmatmul.mubr.f32.gmra.mxu0 %v2414
          %v2637 = vpop.f32.mrf.mxu0
          %v2638 = vadd.f32 0.0, %v2637
          %v2639 = vpop.f32.mrf.mxu0
          %2640 = vdwg.mxu0
          %v2641 = vadd.f32 %v2372, %v2483
          %v2642 = vadd.f32 %v2373, %v2488
          %v2643 = vadd.f32 %v2374, %v2493
          %v2644 = vadd.f32 %v2375, %v2498
          %v2645 = vadd.f32 %v2376, %v2503
          %v2646 = vadd.f32 %v2377, %v2508
          %v2647 = vadd.f32 %v2378, %v2513
          %v2648 = vadd.f32 %v2379, %v2518
          %v2649 = vadd.f32 %v2380, %v2523
          %v2650 = vadd.f32 %v2381, %v2528
          %v2651 = vadd.f32 %v2382, %v2533
          %v2652 = vadd.f32 %v2383, %v2538
          %v2653 = vadd.f32 %v2384, %v2543
          %v2654 = vadd.f32 %v2385, %v2548
          %v2655 = vadd.f32 %v2386, %v2553
          %v2656 = vadd.f32 %v2387, %v2558
          %v2657 = vadd.f32 %v2388, %v2563
          %v2658 = vadd.f32 %v2389, %v2568
          %v2659 = vadd.f32 %v2390, %v2573
          %v2660 = vadd.f32 %v2391, %v2578
          %v2661 = vadd.f32 %v2392, %v2583
          %v2662 = vadd.f32 %v2393, %v2588
          %v2663 = vadd.f32 %v2394, %v2593
          %v2664 = vadd.f32 %v2395, %v2598
          %v2665 = vadd.f32 %v2396, %v2603
          %v2666 = vadd.f32 %v2397, %v2608
          %v2667 = vadd.f32 %v2398, %v2613
          %v2668 = vadd.f32 %v2399, %v2618
          %v2669 = vadd.f32 %v2400, %v2623
          %v2670 = vadd.f32 %v2401, %v2628
          %v2671 = vadd.f32 %v2402, %v2633
          %v2672 = vadd.f32 %v2403, %v2638
          %s2673 = scalar_lea.vmem %s1, 56
          %v2674 = vld [vmem:[%s2673] sm:$0xff]
          %vm2675 = vcmask 1042432
          %v2676 = vrot.slane %v254, 5
          %v2677 = vrot.slane %v255, 5
          %v2678 = vsel %vm2675, %v2676, %v2677
          %v2679 = vrot.slane %v256, 5
          %v2680 = vsel %vm2675, %v2677, %v2679
          %v2681 = vrot.slane %v257, 5
          %v2682 = vsel %vm2675, %v2679, %v2681
          %v2683 = vrot.slane %v258, 5
          %v2684 = vsel %vm2675, %v2681, %v2683
          %v2685 = vrot.slane %v259, 5
          %v2686 = vsel %vm2675, %v2683, %v2685
          %v2687 = vrot.slane %v260, 5
          %v2688 = vsel %vm2675, %v2685, %v2687
          %v2689 = vrot.slane %v261, 5
          %v2690 = vsel %vm2675, %v2687, %v2689
          %v2691 = vrot.slane %v262, 5
          %v2692 = vsel %vm2675, %v2689, %v2691
          %v2693 = vrot.slane %v263, 5
          %v2694 = vsel %vm2675, %v2691, %v2693
          %v2695 = vrot.slane %v264, 5
          %v2696 = vsel %vm2675, %v2693, %v2695
          %v2697 = vrot.slane %v265, 5
          %v2698 = vsel %vm2675, %v2695, %v2697
          %v2699 = vrot.slane %v266, 5
          %v2700 = vsel %vm2675, %v2697, %v2699
          %v2701 = vrot.slane %v267, 5
          %v2702 = vsel %vm2675, %v2699, %v2701
          %v2703 = vrot.slane %v268, 5
          %v2704 = vsel %vm2675, %v2701, %v2703
          %v2705 = vrot.slane %v269, 5
          %v2706 = vsel %vm2675, %v2703, %v2705
          %v2707 = vrot.slane %v270, 5
          %v2708 = vsel %vm2675, %v2705, %v2707
          %v2709 = vrot.slane %v271, 5
          %v2710 = vsel %vm2675, %v2707, %v2709
          %v2711 = vrot.slane %v272, 5
          %v2712 = vsel %vm2675, %v2709, %v2711
          %v2713 = vrot.slane %v273, 5
          %v2714 = vsel %vm2675, %v2711, %v2713
          %v2715 = vrot.slane %v274, 5
          %v2716 = vsel %vm2675, %v2713, %v2715
          %v2717 = vrot.slane %v275, 5
          %v2718 = vsel %vm2675, %v2715, %v2717
          %v2719 = vrot.slane %v276, 5
          %v2720 = vsel %vm2675, %v2717, %v2719
          %v2721 = vrot.slane %v277, 5
          %v2722 = vsel %vm2675, %v2719, %v2721
          %v2723 = vrot.slane %v278, 5
          %v2724 = vsel %vm2675, %v2721, %v2723
          %v2725 = vrot.slane %v279, 5
          %v2726 = vsel %vm2675, %v2723, %v2725
          %v2727 = vrot.slane %v280, 5
          %v2728 = vsel %vm2675, %v2725, %v2727
          %v2729 = vrot.slane %v281, 5
          %v2730 = vsel %vm2675, %v2727, %v2729
          %v2731 = vrot.slane %v282, 5
          %v2732 = vsel %vm2675, %v2729, %v2731
          %v2733 = vrot.slane %v283, 5
          %v2734 = vsel %vm2675, %v2731, %v2733
          %v2735 = vrot.slane %v284, 5
          %v2736 = vsel %vm2675, %v2733, %v2735
          %v2737 = vrot.slane %v285, 5
          %v2738 = vsel %vm2675, %v2735, %v2737
          %v2739 = vrot.slane %v286, 5
          %v2740 = vsel %vm2675, %v2737, %v2739
          %v2741 = vsel %vm389, %v2678, 0
          %v2743 = vsel %vm389, %v2680, 0
          %v2745 = vsel %vm389, %v2682, 0
          %v2747 = vsel %vm389, %v2684, 0
          %v2749 = vsel %vm389, %v2686, 0
          %v2751 = vsel %vm389, %v2688, 0
          %v2753 = vsel %vm389, %v2690, 0
          %v2755 = vsel %vm389, %v2692, 0
          %v2757 = vsel %vm389, %v2694, 0
          %v2759 = vsel %vm389, %v2696, 0
          %v2761 = vsel %vm389, %v2698, 0
          %v2763 = vsel %vm389, %v2700, 0
          %v2765 = vsel %vm389, %v2702, 0
          %v2767 = vsel %vm389, %v2704, 0
          %v2769 = vsel %vm389, %v2706, 0
          %v2771 = vsel %vm389, %v2708, 0
          %v2773 = vsel %vm389, %v2710, 0
          %v2775 = vsel %vm389, %v2712, 0
          %v2777 = vsel %vm389, %v2714, 0
          %v2779 = vsel %vm389, %v2716, 0
          %v2781 = vsel %vm389, %v2718, 0
          %v2783 = vsel %vm389, %v2720, 0
          %v2785 = vsel %vm389, %v2722, 0
          %v2787 = vsel %vm389, %v2724, 0
          %v2789 = vsel %vm389, %v2726, 0
          %v2791 = vsel %vm389, %v2728, 0
          %v2793 = vsel %vm389, %v2730, 0
          %v2795 = vsel %vm389, %v2732, 0
          %v2797 = vsel %vm389, %v2734, 0
          %v2799 = vsel %vm389, %v2736, 0
          %v2801 = vsel %vm389, %v2738, 0
          %v2803 = vsel %vm389, %v2740, 0
          %2805 = vmatprep.subr.mxu0 0.0
          %2806 = vmatpush1.msra.mxu0 0.0
          %2807 = vmatprep.subr.mxu0 0.0
          %2808 = vmatpush1.msra.mxu0 0.0
          %2809 = vmatprep.subr.mxu0 0.0
          %2810 = vmatpush1.msra.mxu0 0.0
          %2811 = vmatprep.subr.mxu0 0.0
          %2812 = vmatpush1.msra.mxu0 0.0
          %2813 = vmatprep.subr.mxu0 0.0
          %2814 = vmatpush1.msra.mxu0 0.0
          %2815 = vmatprep.subr.mxu0 0.0
          %2816 = vmatpush1.msra.mxu0 0.0
          %2817 = vmatprep.subr.mxu0 0.0
          %2818 = vmatpush1.msra.mxu0 0.0
          %2819 = vmatprep.subr.mxu0 0.0
          %2820 = vmatpush1.msra.mxu0 0.0
          %2821 = vmatprep.subr.mxu0 0.0
          %2822 = vmatpush1.msra.mxu0 0.0
          %2823 = vmatprep.subr.mxu0 0.0
          %2824 = vmatpush1.msra.mxu0 0.0
          %2825 = vmatprep.subr.mxu0 0.0
          %2826 = vmatpush1.msra.mxu0 0.0
          %2827 = vmatprep.subr.mxu0 0.0
          %2828 = vmatpush1.msra.mxu0 0.0
          %2829 = vmatprep.subr.mxu0 0.0
          %2830 = vmatpush1.msra.mxu0 0.0
          %2831 = vmatprep.subr.mxu0 0.0
          %2832 = vmatpush1.msra.mxu0 0.0
          %2833 = vmatprep.subr.mxu0 0.0
          %2834 = vmatpush1.msra.mxu0 0.0
          %2835 = vmatprep.subr.mxu0 0.0
          %2836 = vmatpush1.msra.mxu0 %v2674
          %2837 = vmatprep.subr.mxu0 0.0
          %2838 = vmatpush2.msra.mxu0 0.0
          %2839 = vmatprep.subr.mxu0 0.0
          %2840 = vmatpush2.msra.mxu0 0.0
          %2841 = vmatprep.subr.mxu0 0.0
          %2842 = vmatpush2.msra.mxu0 0.0
          %2843 = vmatprep.subr.mxu0 0.0
          %2844 = vmatpush2.msra.mxu0 0.0
          %2845 = vmatprep.subr.mxu0 0.0
          %2846 = vmatpush2.msra.mxu0 0.0
          %2847 = vmatprep.subr.mxu0 0.0
          %2848 = vmatpush2.msra.mxu0 0.0
          %2849 = vmatprep.subr.mxu0 0.0
          %2850 = vmatpush2.msra.mxu0 0.0
          %2851 = vmatprep.subr.mxu0 0.0
          %2852 = vmatpush2.msra.mxu0 0.0
          %2853 = vmatprep.subr.mxu0 0.0
          %2854 = vmatpush2.msra.mxu0 0.0
          %2855 = vmatprep.subr.mxu0 0.0
          %2856 = vmatpush2.msra.mxu0 0.0
          %2857 = vmatprep.subr.mxu0 0.0
          %2858 = vmatpush2.msra.mxu0 0.0
          %2859 = vmatprep.subr.mxu0 0.0
          %2860 = vmatpush2.msra.mxu0 0.0
          %2861 = vmatprep.subr.mxu0 0.0
          %2862 = vmatpush2.msra.mxu0 0.0
          %2863 = vmatprep.subr.mxu0 0.0
          %2864 = vmatpush2.msra.mxu0 0.0
          %2865 = vmatprep.subr.mxu0 0.0
          %2866 = vmatpush2.msra.mxu0 0.0
          %2867 = vmatprep.subr.mxu0 0.0
          %2868 = vmatpush2.msra.mxu0 0.0
          %2869 = vmatprep.mubr.f32.mxu0 0.0
          %2870 = vmatmul.mubr.f32.gmra.mxu0 %v2741
          %v2871 = vpop.f32.mrf.mxu0
          %v2872 = vadd.f32 0.0, %v2871
          %v2873 = vpop.f32.mrf.mxu0
          %2874 = vmatprep.mubr.f32.mxu0 0.0
          %2875 = vmatmul.mubr.f32.gmra.mxu0 %v2743
          %v2876 = vpop.f32.mrf.mxu0
          %v2877 = vadd.f32 0.0, %v2876
          %v2878 = vpop.f32.mrf.mxu0
          %2879 = vmatprep.mubr.f32.mxu0 0.0
          %2880 = vmatmul.mubr.f32.gmra.mxu0 %v2745
          %v2881 = vpop.f32.mrf.mxu0
          %v2882 = vadd.f32 0.0, %v2881
          %v2883 = vpop.f32.mrf.mxu0
          %2884 = vmatprep.mubr.f32.mxu0 0.0
          %2885 = vmatmul.mubr.f32.gmra.mxu0 %v2747
          %v2886 = vpop.f32.mrf.mxu0
          %v2887 = vadd.f32 0.0, %v2886
          %v2888 = vpop.f32.mrf.mxu0
          %2889 = vmatprep.mubr.f32.mxu0 0.0
          %2890 = vmatmul.mubr.f32.gmra.mxu0 %v2749
          %v2891 = vpop.f32.mrf.mxu0
          %v2892 = vadd.f32 0.0, %v2891
          %v2893 = vpop.f32.mrf.mxu0
          %2894 = vmatprep.mubr.f32.mxu0 0.0
          %2895 = vmatmul.mubr.f32.gmra.mxu0 %v2751
          %v2896 = vpop.f32.mrf.mxu0
          %v2897 = vadd.f32 0.0, %v2896
          %v2898 = vpop.f32.mrf.mxu0
          %2899 = vmatprep.mubr.f32.mxu0 0.0
          %2900 = vmatmul.mubr.f32.gmra.mxu0 %v2753
          %v2901 = vpop.f32.mrf.mxu0
          %v2902 = vadd.f32 0.0, %v2901
          %v2903 = vpop.f32.mrf.mxu0
          %2904 = vmatprep.mubr.f32.mxu0 0.0
          %2905 = vmatmul.mubr.f32.gmra.mxu0 %v2755
          %v2906 = vpop.f32.mrf.mxu0
          %v2907 = vadd.f32 0.0, %v2906
          %v2908 = vpop.f32.mrf.mxu0
          %2909 = vmatprep.mubr.f32.mxu0 0.0
          %2910 = vmatmul.mubr.f32.gmra.mxu0 %v2757
          %v2911 = vpop.f32.mrf.mxu0
          %v2912 = vadd.f32 0.0, %v2911
          %v2913 = vpop.f32.mrf.mxu0
          %2914 = vmatprep.mubr.f32.mxu0 0.0
          %2915 = vmatmul.mubr.f32.gmra.mxu0 %v2759
          %v2916 = vpop.f32.mrf.mxu0
          %v2917 = vadd.f32 0.0, %v2916
          %v2918 = vpop.f32.mrf.mxu0
          %2919 = vmatprep.mubr.f32.mxu0 0.0
          %2920 = vmatmul.mubr.f32.gmra.mxu0 %v2761
          %v2921 = vpop.f32.mrf.mxu0
          %v2922 = vadd.f32 0.0, %v2921
          %v2923 = vpop.f32.mrf.mxu0
          %2924 = vmatprep.mubr.f32.mxu0 0.0
          %2925 = vmatmul.mubr.f32.gmra.mxu0 %v2763
          %v2926 = vpop.f32.mrf.mxu0
          %v2927 = vadd.f32 0.0, %v2926
          %v2928 = vpop.f32.mrf.mxu0
          %2929 = vmatprep.mubr.f32.mxu0 0.0
          %2930 = vmatmul.mubr.f32.gmra.mxu0 %v2765
          %v2931 = vpop.f32.mrf.mxu0
          %v2932 = vadd.f32 0.0, %v2931
          %v2933 = vpop.f32.mrf.mxu0
          %2934 = vmatprep.mubr.f32.mxu0 0.0
          %2935 = vmatmul.mubr.f32.gmra.mxu0 %v2767
          %v2936 = vpop.f32.mrf.mxu0
          %v2937 = vadd.f32 0.0, %v2936
          %v2938 = vpop.f32.mrf.mxu0
          %2939 = vmatprep.mubr.f32.mxu0 0.0
          %2940 = vmatmul.mubr.f32.gmra.mxu0 %v2769
          %v2941 = vpop.f32.mrf.mxu0
          %v2942 = vadd.f32 0.0, %v2941
          %v2943 = vpop.f32.mrf.mxu0
          %2944 = vmatprep.mubr.f32.mxu0 0.0
          %2945 = vmatmul.mubr.f32.gmra.mxu0 %v2771
          %v2946 = vpop.f32.mrf.mxu0
          %v2947 = vadd.f32 0.0, %v2946
          %v2948 = vpop.f32.mrf.mxu0
          %2949 = vmatprep.mubr.f32.mxu0 0.0
          %2950 = vmatmul.mubr.f32.gmra.mxu0 %v2773
          %v2951 = vpop.f32.mrf.mxu0
          %v2952 = vadd.f32 0.0, %v2951
          %v2953 = vpop.f32.mrf.mxu0
          %2954 = vmatprep.mubr.f32.mxu0 0.0
          %2955 = vmatmul.mubr.f32.gmra.mxu0 %v2775
          %v2956 = vpop.f32.mrf.mxu0
          %v2957 = vadd.f32 0.0, %v2956
          %v2958 = vpop.f32.mrf.mxu0
          %2959 = vmatprep.mubr.f32.mxu0 0.0
          %2960 = vmatmul.mubr.f32.gmra.mxu0 %v2777
          %v2961 = vpop.f32.mrf.mxu0
          %v2962 = vadd.f32 0.0, %v2961
          %v2963 = vpop.f32.mrf.mxu0
          %2964 = vmatprep.mubr.f32.mxu0 0.0
          %2965 = vmatmul.mubr.f32.gmra.mxu0 %v2779
          %v2966 = vpop.f32.mrf.mxu0
          %v2967 = vadd.f32 0.0, %v2966
          %v2968 = vpop.f32.mrf.mxu0
          %2969 = vmatprep.mubr.f32.mxu0 0.0
          %2970 = vmatmul.mubr.f32.gmra.mxu0 %v2781
          %v2971 = vpop.f32.mrf.mxu0
          %v2972 = vadd.f32 0.0, %v2971
          %v2973 = vpop.f32.mrf.mxu0
          %2974 = vmatprep.mubr.f32.mxu0 0.0
          %2975 = vmatmul.mubr.f32.gmra.mxu0 %v2783
          %v2976 = vpop.f32.mrf.mxu0
          %v2977 = vadd.f32 0.0, %v2976
          %v2978 = vpop.f32.mrf.mxu0
          %2979 = vmatprep.mubr.f32.mxu0 0.0
          %2980 = vmatmul.mubr.f32.gmra.mxu0 %v2785
          %v2981 = vpop.f32.mrf.mxu0
          %v2982 = vadd.f32 0.0, %v2981
          %v2983 = vpop.f32.mrf.mxu0
          %2984 = vmatprep.mubr.f32.mxu0 0.0
          %2985 = vmatmul.mubr.f32.gmra.mxu0 %v2787
          %v2986 = vpop.f32.mrf.mxu0
          %v2987 = vadd.f32 0.0, %v2986
          %v2988 = vpop.f32.mrf.mxu0
          %2989 = vmatprep.mubr.f32.mxu0 0.0
          %2990 = vmatmul.mubr.f32.gmra.mxu0 %v2789
          %v2991 = vpop.f32.mrf.mxu0
          %v2992 = vadd.f32 0.0, %v2991
          %v2993 = vpop.f32.mrf.mxu0
          %2994 = vmatprep.mubr.f32.mxu0 0.0
          %2995 = vmatmul.mubr.f32.gmra.mxu0 %v2791
          %v2996 = vpop.f32.mrf.mxu0
          %v2997 = vadd.f32 0.0, %v2996
          %v2998 = vpop.f32.mrf.mxu0
          %2999 = vmatprep.mubr.f32.mxu0 0.0
          %3000 = vmatmul.mubr.f32.gmra.mxu0 %v2793
          %v3001 = vpop.f32.mrf.mxu0
          %v3002 = vadd.f32 0.0, %v3001
          %v3003 = vpop.f32.mrf.mxu0
          %3004 = vmatprep.mubr.f32.mxu0 0.0
          %3005 = vmatmul.mubr.f32.gmra.mxu0 %v2795
          %v3006 = vpop.f32.mrf.mxu0
          %v3007 = vadd.f32 0.0, %v3006
          %v3008 = vpop.f32.mrf.mxu0
          %3009 = vmatprep.mubr.f32.mxu0 0.0
          %3010 = vmatmul.mubr.f32.gmra.mxu0 %v2797
          %v3011 = vpop.f32.mrf.mxu0
          %v3012 = vadd.f32 0.0, %v3011
          %v3013 = vpop.f32.mrf.mxu0
          %3014 = vmatprep.mubr.f32.mxu0 0.0
          %3015 = vmatmul.mubr.f32.gmra.mxu0 %v2799
          %v3016 = vpop.f32.mrf.mxu0
          %v3017 = vadd.f32 0.0, %v3016
          %v3018 = vpop.f32.mrf.mxu0
          %3019 = vmatprep.mubr.f32.mxu0 0.0
          %3020 = vmatmul.mubr.f32.gmra.mxu0 %v2801
          %v3021 = vpop.f32.mrf.mxu0
          %v3022 = vadd.f32 0.0, %v3021
          %v3023 = vpop.f32.mrf.mxu0
          %3024 = vmatprep.mubr.f32.mxu0 0.0
          %3025 = vmatmul.mubr.f32.gmra.mxu0 %v2803
          %v3026 = vpop.f32.mrf.mxu0
          %v3027 = vadd.f32 0.0, %v3026
          %v3028 = vpop.f32.mrf.mxu0
          %3029 = vdwg.mxu0
          %v3030 = vadd.f32 %v2641, %v2872
          %v3031 = vadd.f32 %v2642, %v2877
          %v3032 = vadd.f32 %v2643, %v2882
          %v3033 = vadd.f32 %v2644, %v2887
          %v3034 = vadd.f32 %v2645, %v2892
          %v3035 = vadd.f32 %v2646, %v2897
          %v3036 = vadd.f32 %v2647, %v2902
          %v3037 = vadd.f32 %v2648, %v2907
          %v3038 = vadd.f32 %v2649, %v2912
          %v3039 = vadd.f32 %v2650, %v2917
          %v3040 = vadd.f32 %v2651, %v2922
          %v3041 = vadd.f32 %v2652, %v2927
          %v3042 = vadd.f32 %v2653, %v2932
          %v3043 = vadd.f32 %v2654, %v2937
          %v3044 = vadd.f32 %v2655, %v2942
          %v3045 = vadd.f32 %v2656, %v2947
          %v3046 = vadd.f32 %v2657, %v2952
          %v3047 = vadd.f32 %v2658, %v2957
          %v3048 = vadd.f32 %v2659, %v2962
          %v3049 = vadd.f32 %v2660, %v2967
          %v3050 = vadd.f32 %v2661, %v2972
          %v3051 = vadd.f32 %v2662, %v2977
          %v3052 = vadd.f32 %v2663, %v2982
          %v3053 = vadd.f32 %v2664, %v2987
          %v3054 = vadd.f32 %v2665, %v2992
          %v3055 = vadd.f32 %v2666, %v2997
          %v3056 = vadd.f32 %v2667, %v3002
          %v3057 = vadd.f32 %v2668, %v3007
          %v3058 = vadd.f32 %v2669, %v3012
          %v3059 = vadd.f32 %v2670, %v3017
          %v3060 = vadd.f32 %v2671, %v3022
          %v3061 = vadd.f32 %v2672, %v3027
          %s3062 = scalar_lea.vmem %s1, 64
          %v3063 = vld [vmem:[%s3062] sm:$0xff]
          %vm3064 = vcmask 1041408
          %v3065 = vrot.slane %v254, 6
          %v3066 = vrot.slane %v255, 6
          %v3067 = vsel %vm3064, %v3065, %v3066
          %v3068 = vrot.slane %v256, 6
          %v3069 = vsel %vm3064, %v3066, %v3068
          %v3070 = vrot.slane %v257, 6
          %v3071 = vsel %vm3064, %v3068, %v3070
          %v3072 = vrot.slane %v258, 6
          %v3073 = vsel %vm3064, %v3070, %v3072
          %v3074 = vrot.slane %v259, 6
          %v3075 = vsel %vm3064, %v3072, %v3074
          %v3076 = vrot.slane %v260, 6
          %v3077 = vsel %vm3064, %v3074, %v3076
          %v3078 = vrot.slane %v261, 6
          %v3079 = vsel %vm3064, %v3076, %v3078
          %v3080 = vrot.slane %v262, 6
          %v3081 = vsel %vm3064, %v3078, %v3080
          %v3082 = vrot.slane %v263, 6
          %v3083 = vsel %vm3064, %v3080, %v3082
          %v3084 = vrot.slane %v264, 6
          %v3085 = vsel %vm3064, %v3082, %v3084
          %v3086 = vrot.slane %v265, 6
          %v3087 = vsel %vm3064, %v3084, %v3086
          %v3088 = vrot.slane %v266, 6
          %v3089 = vsel %vm3064, %v3086, %v3088
          %v3090 = vrot.slane %v267, 6
          %v3091 = vsel %vm3064, %v3088, %v3090
          %v3092 = vrot.slane %v268, 6
          %v3093 = vsel %vm3064, %v3090, %v3092
          %v3094 = vrot.slane %v269, 6
          %v3095 = vsel %vm3064, %v3092, %v3094
          %v3096 = vrot.slane %v270, 6
          %v3097 = vsel %vm3064, %v3094, %v3096
          %v3098 = vrot.slane %v271, 6
          %v3099 = vsel %vm3064, %v3096, %v3098
          %v3100 = vrot.slane %v272, 6
          %v3101 = vsel %vm3064, %v3098, %v3100
          %v3102 = vrot.slane %v273, 6
          %v3103 = vsel %vm3064, %v3100, %v3102
          %v3104 = vrot.slane %v274, 6
          %v3105 = vsel %vm3064, %v3102, %v3104
          %v3106 = vrot.slane %v275, 6
          %v3107 = vsel %vm3064, %v3104, %v3106
          %v3108 = vrot.slane %v276, 6
          %v3109 = vsel %vm3064, %v3106, %v3108
          %v3110 = vrot.slane %v277, 6
          %v3111 = vsel %vm3064, %v3108, %v3110
          %v3112 = vrot.slane %v278, 6
          %v3113 = vsel %vm3064, %v3110, %v3112
          %v3114 = vrot.slane %v279, 6
          %v3115 = vsel %vm3064, %v3112, %v3114
          %v3116 = vrot.slane %v280, 6
          %v3117 = vsel %vm3064, %v3114, %v3116
          %v3118 = vrot.slane %v281, 6
          %v3119 = vsel %vm3064, %v3116, %v3118
          %v3120 = vrot.slane %v282, 6
          %v3121 = vsel %vm3064, %v3118, %v3120
          %v3122 = vrot.slane %v283, 6
          %v3123 = vsel %vm3064, %v3120, %v3122
          %v3124 = vrot.slane %v284, 6
          %v3125 = vsel %vm3064, %v3122, %v3124
          %v3126 = vrot.slane %v285, 6
          %v3127 = vsel %vm3064, %v3124, %v3126
          %v3128 = vrot.slane %v286, 6
          %v3129 = vsel %vm3064, %v3126, %v3128
          %v3130 = vsel %vm389, %v3067, 0
          %v3132 = vsel %vm389, %v3069, 0
          %v3134 = vsel %vm389, %v3071, 0
          %v3136 = vsel %vm389, %v3073, 0
          %v3138 = vsel %vm389, %v3075, 0
          %v3140 = vsel %vm389, %v3077, 0
          %v3142 = vsel %vm389, %v3079, 0
          %v3144 = vsel %vm389, %v3081, 0
          %v3146 = vsel %vm389, %v3083, 0
          %v3148 = vsel %vm389, %v3085, 0
          %v3150 = vsel %vm389, %v3087, 0
          %v3152 = vsel %vm389, %v3089, 0
          %v3154 = vsel %vm389, %v3091, 0
          %v3156 = vsel %vm389, %v3093, 0
          %v3158 = vsel %vm389, %v3095, 0
          %v3160 = vsel %vm389, %v3097, 0
          %v3162 = vsel %vm389, %v3099, 0
          %v3164 = vsel %vm389, %v3101, 0
          %v3166 = vsel %vm389, %v3103, 0
          %v3168 = vsel %vm389, %v3105, 0
          %v3170 = vsel %vm389, %v3107, 0
          %v3172 = vsel %vm389, %v3109, 0
          %v3174 = vsel %vm389, %v3111, 0
          %v3176 = vsel %vm389, %v3113, 0
          %v3178 = vsel %vm389, %v3115, 0
          %v3180 = vsel %vm389, %v3117, 0
          %v3182 = vsel %vm389, %v3119, 0
          %v3184 = vsel %vm389, %v3121, 0
          %v3186 = vsel %vm389, %v3123, 0
          %v3188 = vsel %vm389, %v3125, 0
          %v3190 = vsel %vm389, %v3127, 0
          %v3192 = vsel %vm389, %v3129, 0
          %3194 = vmatprep.subr.mxu0 0.0
          %3195 = vmatpush1.msra.mxu0 0.0
          %3196 = vmatprep.subr.mxu0 0.0
          %3197 = vmatpush1.msra.mxu0 0.0
          %3198 = vmatprep.subr.mxu0 0.0
          %3199 = vmatpush1.msra.mxu0 0.0
          %3200 = vmatprep.subr.mxu0 0.0
          %3201 = vmatpush1.msra.mxu0 0.0
          %3202 = vmatprep.subr.mxu0 0.0
          %3203 = vmatpush1.msra.mxu0 0.0
          %3204 = vmatprep.subr.mxu0 0.0
          %3205 = vmatpush1.msra.mxu0 0.0
          %3206 = vmatprep.subr.mxu0 0.0
          %3207 = vmatpush1.msra.mxu0 0.0
          %3208 = vmatprep.subr.mxu0 0.0
          %3209 = vmatpush1.msra.mxu0 0.0
          %3210 = vmatprep.subr.mxu0 0.0
          %3211 = vmatpush1.msra.mxu0 0.0
          %3212 = vmatprep.subr.mxu0 0.0
          %3213 = vmatpush1.msra.mxu0 0.0
          %3214 = vmatprep.subr.mxu0 0.0
          %3215 = vmatpush1.msra.mxu0 0.0
          %3216 = vmatprep.subr.mxu0 0.0
          %3217 = vmatpush1.msra.mxu0 0.0
          %3218 = vmatprep.subr.mxu0 0.0
          %3219 = vmatpush1.msra.mxu0 0.0
          %3220 = vmatprep.subr.mxu0 0.0
          %3221 = vmatpush1.msra.mxu0 0.0
          %3222 = vmatprep.subr.mxu0 0.0
          %3223 = vmatpush1.msra.mxu0 0.0
          %3224 = vmatprep.subr.mxu0 0.0
          %3225 = vmatpush1.msra.mxu0 %v3063
          %3226 = vmatprep.subr.mxu0 0.0
          %3227 = vmatpush2.msra.mxu0 0.0
          %3228 = vmatprep.subr.mxu0 0.0
          %3229 = vmatpush2.msra.mxu0 0.0
          %3230 = vmatprep.subr.mxu0 0.0
          %3231 = vmatpush2.msra.mxu0 0.0
          %3232 = vmatprep.subr.mxu0 0.0
          %3233 = vmatpush2.msra.mxu0 0.0
          %3234 = vmatprep.subr.mxu0 0.0
          %3235 = vmatpush2.msra.mxu0 0.0
          %3236 = vmatprep.subr.mxu0 0.0
          %3237 = vmatpush2.msra.mxu0 0.0
          %3238 = vmatprep.subr.mxu0 0.0
          %3239 = vmatpush2.msra.mxu0 0.0
          %3240 = vmatprep.subr.mxu0 0.0
          %3241 = vmatpush2.msra.mxu0 0.0
          %3242 = vmatprep.subr.mxu0 0.0
          %3243 = vmatpush2.msra.mxu0 0.0
          %3244 = vmatprep.subr.mxu0 0.0
          %3245 = vmatpush2.msra.mxu0 0.0
          %3246 = vmatprep.subr.mxu0 0.0
          %3247 = vmatpush2.msra.mxu0 0.0
          %3248 = vmatprep.subr.mxu0 0.0
          %3249 = vmatpush2.msra.mxu0 0.0
          %3250 = vmatprep.subr.mxu0 0.0
          %3251 = vmatpush2.msra.mxu0 0.0
          %3252 = vmatprep.subr.mxu0 0.0
          %3253 = vmatpush2.msra.mxu0 0.0
          %3254 = vmatprep.subr.mxu0 0.0
          %3255 = vmatpush2.msra.mxu0 0.0
          %3256 = vmatprep.subr.mxu0 0.0
          %3257 = vmatpush2.msra.mxu0 0.0
          %3258 = vmatprep.mubr.f32.mxu0 0.0
          %3259 = vmatmul.mubr.f32.gmra.mxu0 %v3130
          %v3260 = vpop.f32.mrf.mxu0
          %v3261 = vadd.f32 0.0, %v3260
          %v3262 = vpop.f32.mrf.mxu0
          %3263 = vmatprep.mubr.f32.mxu0 0.0
          %3264 = vmatmul.mubr.f32.gmra.mxu0 %v3132
          %v3265 = vpop.f32.mrf.mxu0
          %v3266 = vadd.f32 0.0, %v3265
          %v3267 = vpop.f32.mrf.mxu0
          %3268 = vmatprep.mubr.f32.mxu0 0.0
          %3269 = vmatmul.mubr.f32.gmra.mxu0 %v3134
          %v3270 = vpop.f32.mrf.mxu0
          %v3271 = vadd.f32 0.0, %v3270
          %v3272 = vpop.f32.mrf.mxu0
          %3273 = vmatprep.mubr.f32.mxu0 0.0
          %3274 = vmatmul.mubr.f32.gmra.mxu0 %v3136
          %v3275 = vpop.f32.mrf.mxu0
          %v3276 = vadd.f32 0.0, %v3275
          %v3277 = vpop.f32.mrf.mxu0
          %3278 = vmatprep.mubr.f32.mxu0 0.0
          %3279 = vmatmul.mubr.f32.gmra.mxu0 %v3138
          %v3280 = vpop.f32.mrf.mxu0
          %v3281 = vadd.f32 0.0, %v3280
          %v3282 = vpop.f32.mrf.mxu0
          %3283 = vmatprep.mubr.f32.mxu0 0.0
          %3284 = vmatmul.mubr.f32.gmra.mxu0 %v3140
          %v3285 = vpop.f32.mrf.mxu0
          %v3286 = vadd.f32 0.0, %v3285
          %v3287 = vpop.f32.mrf.mxu0
          %3288 = vmatprep.mubr.f32.mxu0 0.0
          %3289 = vmatmul.mubr.f32.gmra.mxu0 %v3142
          %v3290 = vpop.f32.mrf.mxu0
          %v3291 = vadd.f32 0.0, %v3290
          %v3292 = vpop.f32.mrf.mxu0
          %3293 = vmatprep.mubr.f32.mxu0 0.0
          %3294 = vmatmul.mubr.f32.gmra.mxu0 %v3144
          %v3295 = vpop.f32.mrf.mxu0
          %v3296 = vadd.f32 0.0, %v3295
          %v3297 = vpop.f32.mrf.mxu0
          %3298 = vmatprep.mubr.f32.mxu0 0.0
          %3299 = vmatmul.mubr.f32.gmra.mxu0 %v3146
          %v3300 = vpop.f32.mrf.mxu0
          %v3301 = vadd.f32 0.0, %v3300
          %v3302 = vpop.f32.mrf.mxu0
          %3303 = vmatprep.mubr.f32.mxu0 0.0
          %3304 = vmatmul.mubr.f32.gmra.mxu0 %v3148
          %v3305 = vpop.f32.mrf.mxu0
          %v3306 = vadd.f32 0.0, %v3305
          %v3307 = vpop.f32.mrf.mxu0
          %3308 = vmatprep.mubr.f32.mxu0 0.0
          %3309 = vmatmul.mubr.f32.gmra.mxu0 %v3150
          %v3310 = vpop.f32.mrf.mxu0
          %v3311 = vadd.f32 0.0, %v3310
          %v3312 = vpop.f32.mrf.mxu0
          %3313 = vmatprep.mubr.f32.mxu0 0.0
          %3314 = vmatmul.mubr.f32.gmra.mxu0 %v3152
          %v3315 = vpop.f32.mrf.mxu0
          %v3316 = vadd.f32 0.0, %v3315
          %v3317 = vpop.f32.mrf.mxu0
          %3318 = vmatprep.mubr.f32.mxu0 0.0
          %3319 = vmatmul.mubr.f32.gmra.mxu0 %v3154
          %v3320 = vpop.f32.mrf.mxu0
          %v3321 = vadd.f32 0.0, %v3320
          %v3322 = vpop.f32.mrf.mxu0
          %3323 = vmatprep.mubr.f32.mxu0 0.0
          %3324 = vmatmul.mubr.f32.gmra.mxu0 %v3156
          %v3325 = vpop.f32.mrf.mxu0
          %v3326 = vadd.f32 0.0, %v3325
          %v3327 = vpop.f32.mrf.mxu0
          %3328 = vmatprep.mubr.f32.mxu0 0.0
          %3329 = vmatmul.mubr.f32.gmra.mxu0 %v3158
          %v3330 = vpop.f32.mrf.mxu0
          %v3331 = vadd.f32 0.0, %v3330
          %v3332 = vpop.f32.mrf.mxu0
          %3333 = vmatprep.mubr.f32.mxu0 0.0
          %3334 = vmatmul.mubr.f32.gmra.mxu0 %v3160
          %v3335 = vpop.f32.mrf.mxu0
          %v3336 = vadd.f32 0.0, %v3335
          %v3337 = vpop.f32.mrf.mxu0
          %3338 = vmatprep.mubr.f32.mxu0 0.0
          %3339 = vmatmul.mubr.f32.gmra.mxu0 %v3162
          %v3340 = vpop.f32.mrf.mxu0
          %v3341 = vadd.f32 0.0, %v3340
          %v3342 = vpop.f32.mrf.mxu0
          %3343 = vmatprep.mubr.f32.mxu0 0.0
          %3344 = vmatmul.mubr.f32.gmra.mxu0 %v3164
          %v3345 = vpop.f32.mrf.mxu0
          %v3346 = vadd.f32 0.0, %v3345
          %v3347 = vpop.f32.mrf.mxu0
          %3348 = vmatprep.mubr.f32.mxu0 0.0
          %3349 = vmatmul.mubr.f32.gmra.mxu0 %v3166
          %v3350 = vpop.f32.mrf.mxu0
          %v3351 = vadd.f32 0.0, %v3350
          %v3352 = vpop.f32.mrf.mxu0
          %3353 = vmatprep.mubr.f32.mxu0 0.0
          %3354 = vmatmul.mubr.f32.gmra.mxu0 %v3168
          %v3355 = vpop.f32.mrf.mxu0
          %v3356 = vadd.f32 0.0, %v3355
          %v3357 = vpop.f32.mrf.mxu0
          %3358 = vmatprep.mubr.f32.mxu0 0.0
          %3359 = vmatmul.mubr.f32.gmra.mxu0 %v3170
          %v3360 = vpop.f32.mrf.mxu0
          %v3361 = vadd.f32 0.0, %v3360
          %v3362 = vpop.f32.mrf.mxu0
          %3363 = vmatprep.mubr.f32.mxu0 0.0
          %3364 = vmatmul.mubr.f32.gmra.mxu0 %v3172
          %v3365 = vpop.f32.mrf.mxu0
          %v3366 = vadd.f32 0.0, %v3365
          %v3367 = vpop.f32.mrf.mxu0
          %3368 = vmatprep.mubr.f32.mxu0 0.0
          %3369 = vmatmul.mubr.f32.gmra.mxu0 %v3174
          %v3370 = vpop.f32.mrf.mxu0
          %v3371 = vadd.f32 0.0, %v3370
          %v3372 = vpop.f32.mrf.mxu0
          %3373 = vmatprep.mubr.f32.mxu0 0.0
          %3374 = vmatmul.mubr.f32.gmra.mxu0 %v3176
          %v3375 = vpop.f32.mrf.mxu0
          %v3376 = vadd.f32 0.0, %v3375
          %v3377 = vpop.f32.mrf.mxu0
          %3378 = vmatprep.mubr.f32.mxu0 0.0
          %3379 = vmatmul.mubr.f32.gmra.mxu0 %v3178
          %v3380 = vpop.f32.mrf.mxu0
          %v3381 = vadd.f32 0.0, %v3380
          %v3382 = vpop.f32.mrf.mxu0
          %3383 = vmatprep.mubr.f32.mxu0 0.0
          %3384 = vmatmul.mubr.f32.gmra.mxu0 %v3180
          %v3385 = vpop.f32.mrf.mxu0
          %v3386 = vadd.f32 0.0, %v3385
          %v3387 = vpop.f32.mrf.mxu0
          %3388 = vmatprep.mubr.f32.mxu0 0.0
          %3389 = vmatmul.mubr.f32.gmra.mxu0 %v3182
          %v3390 = vpop.f32.mrf.mxu0
          %v3391 = vadd.f32 0.0, %v3390
          %v3392 = vpop.f32.mrf.mxu0
          %3393 = vmatprep.mubr.f32.mxu0 0.0
          %3394 = vmatmul.mubr.f32.gmra.mxu0 %v3184
          %v3395 = vpop.f32.mrf.mxu0
          %v3396 = vadd.f32 0.0, %v3395
          %v3397 = vpop.f32.mrf.mxu0
          %3398 = vmatprep.mubr.f32.mxu0 0.0
          %3399 = vmatmul.mubr.f32.gmra.mxu0 %v3186
          %v3400 = vpop.f32.mrf.mxu0
          %v3401 = vadd.f32 0.0, %v3400
          %v3402 = vpop.f32.mrf.mxu0
          %3403 = vmatprep.mubr.f32.mxu0 0.0
          %3404 = vmatmul.mubr.f32.gmra.mxu0 %v3188
          %v3405 = vpop.f32.mrf.mxu0
          %v3406 = vadd.f32 0.0, %v3405
          %v3407 = vpop.f32.mrf.mxu0
          %3408 = vmatprep.mubr.f32.mxu0 0.0
          %3409 = vmatmul.mubr.f32.gmra.mxu0 %v3190
          %v3410 = vpop.f32.mrf.mxu0
          %v3411 = vadd.f32 0.0, %v3410
          %v3412 = vpop.f32.mrf.mxu0
          %3413 = vmatprep.mubr.f32.mxu0 0.0
          %3414 = vmatmul.mubr.f32.gmra.mxu0 %v3192
          %v3415 = vpop.f32.mrf.mxu0
          %v3416 = vadd.f32 0.0, %v3415
          %v3417 = vpop.f32.mrf.mxu0
          %3418 = vdwg.mxu0
          %v3419 = vadd.f32 %v3030, %v3261
          %v3420 = vadd.f32 %v3031, %v3266
          %v3421 = vadd.f32 %v3032, %v3271
          %v3422 = vadd.f32 %v3033, %v3276
          %v3423 = vadd.f32 %v3034, %v3281
          %v3424 = vadd.f32 %v3035, %v3286
          %v3425 = vadd.f32 %v3036, %v3291
          %v3426 = vadd.f32 %v3037, %v3296
          %v3427 = vadd.f32 %v3038, %v3301
          %v3428 = vadd.f32 %v3039, %v3306
          %v3429 = vadd.f32 %v3040, %v3311
          %v3430 = vadd.f32 %v3041, %v3316
          %v3431 = vadd.f32 %v3042, %v3321
          %v3432 = vadd.f32 %v3043, %v3326
          %v3433 = vadd.f32 %v3044, %v3331
          %v3434 = vadd.f32 %v3045, %v3336
          %v3435 = vadd.f32 %v3046, %v3341
          %v3436 = vadd.f32 %v3047, %v3346
          %v3437 = vadd.f32 %v3048, %v3351
          %v3438 = vadd.f32 %v3049, %v3356
          %v3439 = vadd.f32 %v3050, %v3361
          %v3440 = vadd.f32 %v3051, %v3366
          %v3441 = vadd.f32 %v3052, %v3371
          %v3442 = vadd.f32 %v3053, %v3376
          %v3443 = vadd.f32 %v3054, %v3381
          %v3444 = vadd.f32 %v3055, %v3386
          %v3445 = vadd.f32 %v3056, %v3391
          %v3446 = vadd.f32 %v3057, %v3396
          %v3447 = vadd.f32 %v3058, %v3401
          %v3448 = vadd.f32 %v3059, %v3406
          %v3449 = vadd.f32 %v3060, %v3411
          %v3450 = vadd.f32 %v3061, %v3416
          %v3451 = vld [vmem:[%s235] sm:$0xff]
          %v3452 = vld [vmem:[%s235 + $0x8] sm:$0xff]
          %v3453 = vld [vmem:[%s235 + $0x10] sm:$0xff]
          %v3454 = vld [vmem:[%s235 + $0x18] sm:$0xff]
          %v3455 = vld [vmem:[%s235 + $0x20] sm:$0xff]
          %v3456 = vld [vmem:[%s235 + $0x28] sm:$0xff]
          %v3457 = vld [vmem:[%s235 + $0x30] sm:$0xff]
          %v3458 = vld [vmem:[%s235 + $0x38] sm:$0xff]
          %v3459 = vld [vmem:[%s235 + $0x40] sm:$0xff]
          %v3460 = vld [vmem:[%s235 + $0x48] sm:$0xff]
          %v3461 = vld [vmem:[%s235 + $0x50] sm:$0xff]
          %v3462 = vld [vmem:[%s235 + $0x58] sm:$0xff]
          %v3463 = vld [vmem:[%s235 + $0x60] sm:$0xff]
          %v3464 = vld [vmem:[%s235 + $0x68] sm:$0xff]
          %v3465 = vld [vmem:[%s235 + $0x70] sm:$0xff]
          %v3466 = vld [vmem:[%s235 + $0x78] sm:$0xff]
          %v3467 = vld [vmem:[%s235 + $0x80] sm:$0xff]
          %v3468 = vld [vmem:[%s235 + $0x88] sm:$0xff]
          %v3469 = vld [vmem:[%s235 + $0x90] sm:$0xff]
          %v3470 = vld [vmem:[%s235 + $0x98] sm:$0xff]
          %v3471 = vld [vmem:[%s235 + $0xa0] sm:$0xff]
          %v3472 = vld [vmem:[%s235 + $0xa8] sm:$0xff]
          %v3473 = vld [vmem:[%s235 + $0xb0] sm:$0xff]
          %v3474 = vld [vmem:[%s235 + $0xb8] sm:$0xff]
          %v3475 = vld [vmem:[%s235 + $0xc0] sm:$0xff]
          %v3476 = vld [vmem:[%s235 + $0xc8] sm:$0xff]
          %v3477 = vld [vmem:[%s235 + $0xd0] sm:$0xff]
          %v3478 = vld [vmem:[%s235 + $0xd8] sm:$0xff]
          %v3479 = vld [vmem:[%s235 + $0xe0] sm:$0xff]
          %v3480 = vld [vmem:[%s235 + $0xe8] sm:$0xff]
          %v3481 = vld [vmem:[%s235 + $0xf0] sm:$0xff]
          %v3482 = vld [vmem:[%s235 + $0xf8] sm:$0xff]
          %3484 = vset.pattern.permute.xlu0 0
          %3485 = vperm.xlu0 %3484, %v3451
          %v3486 = vpop.permute.xlu0 %3485
          %3489 = vset.pattern.permute.xlu0 0
          %3490 = vperm.xlu0 %3489, %v3452
          %v3491 = vpop.permute.xlu0 %3490
          %3494 = vset.pattern.permute.xlu0 0
          %3495 = vperm.xlu0 %3494, %v3453
          %v3496 = vpop.permute.xlu0 %3495
          %3499 = vset.pattern.permute.xlu0 0
          %3500 = vperm.xlu0 %3499, %v3454
          %v3501 = vpop.permute.xlu0 %3500
          %3504 = vset.pattern.permute.xlu0 0
          %3505 = vperm.xlu0 %3504, %v3455
          %v3506 = vpop.permute.xlu0 %3505
          %3509 = vset.pattern.permute.xlu0 0
          %3510 = vperm.xlu0 %3509, %v3456
          %v3511 = vpop.permute.xlu0 %3510
          %3514 = vset.pattern.permute.xlu0 0
          %3515 = vperm.xlu0 %3514, %v3457
          %v3516 = vpop.permute.xlu0 %3515
          %3519 = vset.pattern.permute.xlu0 0
          %3520 = vperm.xlu0 %3519, %v3458
          %v3521 = vpop.permute.xlu0 %3520
          %3524 = vset.pattern.permute.xlu0 0
          %3525 = vperm.xlu0 %3524, %v3459
          %v3526 = vpop.permute.xlu0 %3525
          %3529 = vset.pattern.permute.xlu0 0
          %3530 = vperm.xlu0 %3529, %v3460
          %v3531 = vpop.permute.xlu0 %3530
          %3534 = vset.pattern.permute.xlu0 0
          %3535 = vperm.xlu0 %3534, %v3461
          %v3536 = vpop.permute.xlu0 %3535
          %3539 = vset.pattern.permute.xlu0 0
          %3540 = vperm.xlu0 %3539, %v3462
          %v3541 = vpop.permute.xlu0 %3540
          %3544 = vset.pattern.permute.xlu0 0
          %3545 = vperm.xlu0 %3544, %v3463
          %v3546 = vpop.permute.xlu0 %3545
          %3549 = vset.pattern.permute.xlu0 0
          %3550 = vperm.xlu0 %3549, %v3464
          %v3551 = vpop.permute.xlu0 %3550
          %3554 = vset.pattern.permute.xlu0 0
          %3555 = vperm.xlu0 %3554, %v3465
          %v3556 = vpop.permute.xlu0 %3555
          %3559 = vset.pattern.permute.xlu0 0
          %3560 = vperm.xlu0 %3559, %v3466
          %v3561 = vpop.permute.xlu0 %3560
          %3564 = vset.pattern.permute.xlu0 0
          %3565 = vperm.xlu0 %3564, %v3467
          %v3566 = vpop.permute.xlu0 %3565
          %3569 = vset.pattern.permute.xlu0 0
          %3570 = vperm.xlu0 %3569, %v3468
          %v3571 = vpop.permute.xlu0 %3570
          %3574 = vset.pattern.permute.xlu0 0
          %3575 = vperm.xlu0 %3574, %v3469
          %v3576 = vpop.permute.xlu0 %3575
          %3579 = vset.pattern.permute.xlu0 0
          %3580 = vperm.xlu0 %3579, %v3470
          %v3581 = vpop.permute.xlu0 %3580
          %3584 = vset.pattern.permute.xlu0 0
          %3585 = vperm.xlu0 %3584, %v3471
          %v3586 = vpop.permute.xlu0 %3585
          %3589 = vset.pattern.permute.xlu0 0
          %3590 = vperm.xlu0 %3589, %v3472
          %v3591 = vpop.permute.xlu0 %3590
          %3594 = vset.pattern.permute.xlu0 0
          %3595 = vperm.xlu0 %3594, %v3473
          %v3596 = vpop.permute.xlu0 %3595
          %3599 = vset.pattern.permute.xlu0 0
          %3600 = vperm.xlu0 %3599, %v3474
          %v3601 = vpop.permute.xlu0 %3600
          %3604 = vset.pattern.permute.xlu0 0
          %3605 = vperm.xlu0 %3604, %v3475
          %v3606 = vpop.permute.xlu0 %3605
          %3609 = vset.pattern.permute.xlu0 0
          %3610 = vperm.xlu0 %3609, %v3476
          %v3611 = vpop.permute.xlu0 %3610
          %3614 = vset.pattern.permute.xlu0 0
          %3615 = vperm.xlu0 %3614, %v3477
          %v3616 = vpop.permute.xlu0 %3615
          %3619 = vset.pattern.permute.xlu0 0
          %3620 = vperm.xlu0 %3619, %v3478
          %v3621 = vpop.permute.xlu0 %3620
          %3624 = vset.pattern.permute.xlu0 0
          %3625 = vperm.xlu0 %3624, %v3479
          %v3626 = vpop.permute.xlu0 %3625
          %3629 = vset.pattern.permute.xlu0 0
          %3630 = vperm.xlu0 %3629, %v3480
          %v3631 = vpop.permute.xlu0 %3630
          %3634 = vset.pattern.permute.xlu0 0
          %3635 = vperm.xlu0 %3634, %v3481
          %v3636 = vpop.permute.xlu0 %3635
          %3639 = vset.pattern.permute.xlu0 0
          %3640 = vperm.xlu0 %3639, %v3482
          %v3641 = vpop.permute.xlu0 %3640
          %v3643 = vmul.f32 %v3419, %v3486
          %v3644 = vmul.f32 %v3420, %v3491
          %v3645 = vmul.f32 %v3421, %v3496
          %v3646 = vmul.f32 %v3422, %v3501
          %v3647 = vmul.f32 %v3423, %v3506
          %v3648 = vmul.f32 %v3424, %v3511
          %v3649 = vmul.f32 %v3425, %v3516
          %v3650 = vmul.f32 %v3426, %v3521
          %v3651 = vmul.f32 %v3427, %v3526
          %v3652 = vmul.f32 %v3428, %v3531
          %v3653 = vmul.f32 %v3429, %v3536
          %v3654 = vmul.f32 %v3430, %v3541
          %v3655 = vmul.f32 %v3431, %v3546
          %v3656 = vmul.f32 %v3432, %v3551
          %v3657 = vmul.f32 %v3433, %v3556
          %v3658 = vmul.f32 %v3434, %v3561
          %v3659 = vmul.f32 %v3435, %v3566
          %v3660 = vmul.f32 %v3436, %v3571
          %v3661 = vmul.f32 %v3437, %v3576
          %v3662 = vmul.f32 %v3438, %v3581
          %v3663 = vmul.f32 %v3439, %v3586
          %v3664 = vmul.f32 %v3440, %v3591
          %v3665 = vmul.f32 %v3441, %v3596
          %v3666 = vmul.f32 %v3442, %v3601
          %v3667 = vmul.f32 %v3443, %v3606
          %v3668 = vmul.f32 %v3444, %v3611
          %v3669 = vmul.f32 %v3445, %v3616
          %v3670 = vmul.f32 %v3446, %v3621
          %v3671 = vmul.f32 %v3447, %v3626
          %v3672 = vmul.f32 %v3448, %v3631
          %v3673 = vmul.f32 %v3449, %v3636
          %v3674 = vmul.f32 %v3450, %v3641
          %v3675 = vld [vmem:[#allocation2] sm:$0x1]
          %v3676 = vadd.f32 %v3643, %v3644
          %v3677 = vadd.f32 %v3676, %v3645
          %v3678 = vadd.f32 %v3677, %v3646
          %v3679 = vadd.f32 %v3678, %v3647
          %v3680 = vadd.f32 %v3679, %v3648
          %v3681 = vadd.f32 %v3680, %v3649
          %v3682 = vadd.f32 %v3681, %v3650
          %v3683 = vadd.f32 %v3682, %v3651
          %v3684 = vadd.f32 %v3683, %v3652
          %v3685 = vadd.f32 %v3684, %v3653
          %v3686 = vadd.f32 %v3685, %v3654
          %v3687 = vadd.f32 %v3686, %v3655
          %v3688 = vadd.f32 %v3687, %v3656
          %v3689 = vadd.f32 %v3688, %v3657
          %v3690 = vadd.f32 %v3689, %v3658
          %v3691 = vadd.f32 %v3690, %v3659
          %v3692 = vadd.f32 %v3691, %v3660
          %v3693 = vadd.f32 %v3692, %v3661
          %v3694 = vadd.f32 %v3693, %v3662
          %v3695 = vadd.f32 %v3694, %v3663
          %v3696 = vadd.f32 %v3695, %v3664
          %v3697 = vadd.f32 %v3696, %v3665
          %v3698 = vadd.f32 %v3697, %v3666
          %v3699 = vadd.f32 %v3698, %v3667
          %v3700 = vadd.f32 %v3699, %v3668
          %v3701 = vadd.f32 %v3700, %v3669
          %v3702 = vadd.f32 %v3701, %v3670
          %v3703 = vadd.f32 %v3702, %v3671
          %v3704 = vadd.f32 %v3703, %v3672
          %v3705 = vadd.f32 %v3704, %v3673
          %v3706 = vadd.f32 %v3705, %v3674
          %v3707 = vrot.slane %v3706, 4
          %v3708 = vadd.f32 %v3706, %v3707
          %v3709 = vrot.slane %v3708, 2
          %v3710 = vadd.f32 %v3708, %v3709
          %v3711 = vrot.slane %v3710, 1
          %v3712 = vadd.f32 %v3710, %v3711
          %v3713 = vadd.f32 %v3675, %v3712
          %3714 = vst [vmem:[#allocation2] sm:$0x1] %v3713
          %v3715 = vld [vmem:[#allocation3] sm:$0x1]
          %v3716 = vmul.f32 %v3643, %v3419
          %v3717 = vmul.f32 %v3644, %v3420
          %v3718 = vmul.f32 %v3645, %v3421
          %v3719 = vmul.f32 %v3646, %v3422
          %v3720 = vmul.f32 %v3647, %v3423
          %v3721 = vmul.f32 %v3648, %v3424
          %v3722 = vmul.f32 %v3649, %v3425
          %v3723 = vmul.f32 %v3650, %v3426
          %v3724 = vmul.f32 %v3651, %v3427
          %v3725 = vmul.f32 %v3652, %v3428
          %v3726 = vmul.f32 %v3653, %v3429
          %v3727 = vmul.f32 %v3654, %v3430
          %v3728 = vmul.f32 %v3655, %v3431
          %v3729 = vmul.f32 %v3656, %v3432
          %v3730 = vmul.f32 %v3657, %v3433
          %v3731 = vmul.f32 %v3658, %v3434
          %v3732 = vmul.f32 %v3659, %v3435
          %v3733 = vmul.f32 %v3660, %v3436
          %v3734 = vmul.f32 %v3661, %v3437
          %v3735 = vmul.f32 %v3662, %v3438
          %v3736 = vmul.f32 %v3663, %v3439
          %v3737 = vmul.f32 %v3664, %v3440
          %v3738 = vmul.f32 %v3665, %v3441
          %v3739 = vmul.f32 %v3666, %v3442
          %v3740 = vmul.f32 %v3667, %v3443
          %v3741 = vmul.f32 %v3668, %v3444
          %v3742 = vmul.f32 %v3669, %v3445
          %v3743 = vmul.f32 %v3670, %v3446
          %v3744 = vmul.f32 %v3671, %v3447
          %v3745 = vmul.f32 %v3672, %v3448
          %v3746 = vmul.f32 %v3673, %v3449
          %v3747 = vmul.f32 %v3674, %v3450
          %v3748 = vadd.f32 %v3716, %v3717
          %v3749 = vadd.f32 %v3748, %v3718
          %v3750 = vadd.f32 %v3749, %v3719
          %v3751 = vadd.f32 %v3750, %v3720
          %v3752 = vadd.f32 %v3751, %v3721
          %v3753 = vadd.f32 %v3752, %v3722
          %v3754 = vadd.f32 %v3753, %v3723
          %v3755 = vadd.f32 %v3754, %v3724
          %v3756 = vadd.f32 %v3755, %v3725
          %v3757 = vadd.f32 %v3756, %v3726
          %v3758 = vadd.f32 %v3757, %v3727
          %v3759 = vadd.f32 %v3758, %v3728
          %v3760 = vadd.f32 %v3759, %v3729
          %v3761 = vadd.f32 %v3760, %v3730
          %v3762 = vadd.f32 %v3761, %v3731
          %v3763 = vadd.f32 %v3762, %v3732
          %v3764 = vadd.f32 %v3763, %v3733
          %v3765 = vadd.f32 %v3764, %v3734
          %v3766 = vadd.f32 %v3765, %v3735
          %v3767 = vadd.f32 %v3766, %v3736
          %v3768 = vadd.f32 %v3767, %v3737
          %v3769 = vadd.f32 %v3768, %v3738
          %v3770 = vadd.f32 %v3769, %v3739
          %v3771 = vadd.f32 %v3770, %v3740
          %v3772 = vadd.f32 %v3771, %v3741
          %v3773 = vadd.f32 %v3772, %v3742
          %v3774 = vadd.f32 %v3773, %v3743
          %v3775 = vadd.f32 %v3774, %v3744
          %v3776 = vadd.f32 %v3775, %v3745
          %v3777 = vadd.f32 %v3776, %v3746
          %v3778 = vadd.f32 %v3777, %v3747
          %v3779 = vrot.slane %v3778, 4
          %v3780 = vadd.f32 %v3778, %v3779
          %v3781 = vrot.slane %v3780, 2
          %v3782 = vadd.f32 %v3780, %v3781
          %v3783 = vrot.slane %v3782, 1
          %v3784 = vadd.f32 %v3782, %v3783
          %v3785 = vadd.f32 %v3715, %v3784
          %3786 = vst [vmem:[#allocation3] sm:$0x1] %v3785
          %3787 = vst [vmem:[%s230] sm:$0xff] %v3419
          %3788 = vst [vmem:[%s230 + $0x8] sm:$0xff] %v3420
          %3789 = vst [vmem:[%s230 + $0x10] sm:$0xff] %v3421
          %3790 = vst [vmem:[%s230 + $0x18] sm:$0xff] %v3422
          %3791 = vst [vmem:[%s230 + $0x20] sm:$0xff] %v3423
          %3792 = vst [vmem:[%s230 + $0x28] sm:$0xff] %v3424
          %3793 = vst [vmem:[%s230 + $0x30] sm:$0xff] %v3425
          %3794 = vst [vmem:[%s230 + $0x38] sm:$0xff] %v3426
          %3795 = vst [vmem:[%s230 + $0x40] sm:$0xff] %v3427
          %3796 = vst [vmem:[%s230 + $0x48] sm:$0xff] %v3428
          %3797 = vst [vmem:[%s230 + $0x50] sm:$0xff] %v3429
          %3798 = vst [vmem:[%s230 + $0x58] sm:$0xff] %v3430
          %3799 = vst [vmem:[%s230 + $0x60] sm:$0xff] %v3431
          %3800 = vst [vmem:[%s230 + $0x68] sm:$0xff] %v3432
          %3801 = vst [vmem:[%s230 + $0x70] sm:$0xff] %v3433
          %3802 = vst [vmem:[%s230 + $0x78] sm:$0xff] %v3434
          %3803 = vst [vmem:[%s230 + $0x80] sm:$0xff] %v3435
          %3804 = vst [vmem:[%s230 + $0x88] sm:$0xff] %v3436
          %3805 = vst [vmem:[%s230 + $0x90] sm:$0xff] %v3437
          %3806 = vst [vmem:[%s230 + $0x98] sm:$0xff] %v3438
          %3807 = vst [vmem:[%s230 + $0xa0] sm:$0xff] %v3439
          %3808 = vst [vmem:[%s230 + $0xa8] sm:$0xff] %v3440
          %3809 = vst [vmem:[%s230 + $0xb0] sm:$0xff] %v3441
          %3810 = vst [vmem:[%s230 + $0xb8] sm:$0xff] %v3442
          %3811 = vst [vmem:[%s230 + $0xc0] sm:$0xff] %v3443
          %3812 = vst [vmem:[%s230 + $0xc8] sm:$0xff] %v3444
          %3813 = vst [vmem:[%s230 + $0xd0] sm:$0xff] %v3445
          %3814 = vst [vmem:[%s230 + $0xd8] sm:$0xff] %v3446
          %3815 = vst [vmem:[%s230 + $0xe0] sm:$0xff] %v3447
          %3816 = vst [vmem:[%s230 + $0xe8] sm:$0xff] %v3448
          %3817 = vst [vmem:[%s230 + $0xf0] sm:$0xff] %v3449
          %3818 = vst [vmem:[%s230 + $0xf8] sm:$0xff] %v3450
        $region44: #{tpu_custom_call.1} parent=39 // pred_fallthru
          _
        %p3819 = scmp.eq.s32.totalorder %s23, 1
        // Predicated region
        $region49: #{tpu_custom_call.1} parent=39 // pred_check
          %p3820 = pneg %p3819
        $region50: #{tpu_custom_call.1} parent=39 // pred_check_branch
          %3822 = sbr.rel (%p3820) target = $region52
        $region51: #{tpu_custom_call.1} parent=39 // pred_region
          %s3823 = scalar_lea.vmem %s0, %s238
          %v3824 = vld [vmem:[%s3823] sm:$0xff]
          %v3825 = vld [vmem:[%s3823 + $0x8] sm:$0xff]
          %v3826 = vld [vmem:[%s3823 + $0x10] sm:$0xff]
          %v3827 = vld [vmem:[%s3823 + $0x18] sm:$0xff]
          %v3828 = vld [vmem:[%s3823 + $0x20] sm:$0xff]
          %v3829 = vld [vmem:[%s3823 + $0x28] sm:$0xff]
          %v3830 = vld [vmem:[%s3823 + $0x30] sm:$0xff]
          %v3831 = vld [vmem:[%s3823 + $0x38] sm:$0xff]
          %v3832 = vld [vmem:[%s3823 + $0x40] sm:$0xff]
          %v3833 = vld [vmem:[%s3823 + $0x48] sm:$0xff]
          %v3834 = vld [vmem:[%s3823 + $0x50] sm:$0xff]
          %v3835 = vld [vmem:[%s3823 + $0x58] sm:$0xff]
          %v3836 = vld [vmem:[%s3823 + $0x60] sm:$0xff]
          %v3837 = vld [vmem:[%s3823 + $0x68] sm:$0xff]
          %v3838 = vld [vmem:[%s3823 + $0x70] sm:$0xff]
          %v3839 = vld [vmem:[%s3823 + $0x78] sm:$0xff]
          %v3840 = vld [vmem:[%s3823 + $0x80] sm:$0xff]
          %v3841 = vld [vmem:[%s3823 + $0x88] sm:$0xff]
          %v3842 = vld [vmem:[%s3823 + $0x90] sm:$0xff]
          %v3843 = vld [vmem:[%s3823 + $0x98] sm:$0xff]
          %v3844 = vld [vmem:[%s3823 + $0xa0] sm:$0xff]
          %v3845 = vld [vmem:[%s3823 + $0xa8] sm:$0xff]
          %v3846 = vld [vmem:[%s3823 + $0xb0] sm:$0xff]
          %v3847 = vld [vmem:[%s3823 + $0xb8] sm:$0xff]
          %v3848 = vld [vmem:[%s3823 + $0xc0] sm:$0xff]
          %v3849 = vld [vmem:[%s3823 + $0xc8] sm:$0xff]
          %v3850 = vld [vmem:[%s3823 + $0xd0] sm:$0xff]
          %v3851 = vld [vmem:[%s3823 + $0xd8] sm:$0xff]
          %v3852 = vld [vmem:[%s3823 + $0xe0] sm:$0xff]
          %v3853 = vld [vmem:[%s3823 + $0xe8] sm:$0xff]
          %v3854 = vld [vmem:[%s3823 + $0xf0] sm:$0xff]
          %v3855 = vld [vmem:[%s3823 + $0xf8] sm:$0xff]
          %v3856 = vld [vmem:[%s3823 + $0x100] sm:$0xff]
          %v3857 = vld [vmem:[%s3823 + $0x108] sm:$0xff]
          %v3858 = vld [vmem:[%s3823 + $0x110] sm:$0xff]
          %v3859 = vld [vmem:[%s3823 + $0x118] sm:$0xff]
          %v3860 = vld [vmem:[%s3823 + $0x120] sm:$0xff]
          %v3861 = vld [vmem:[%s1] sm:$0xff]
          %s3862 = scalar_lea.vmem %s1, 8
          %v3863 = vld [vmem:[%s3862] sm:$0xff]
          %vm3897 = vcmask 1046528
          %v3898 = vrot.slane %v3824, 1
          %v3899 = vrot.slane %v3825, 1
          %v3900 = vsel %vm3897, %v3898, %v3899
          %v3901 = vrot.slane %v3826, 1
          %v3902 = vsel %vm3897, %v3899, %v3901
          %v3903 = vrot.slane %v3827, 1
          %v3904 = vsel %vm3897, %v3901, %v3903
          %v3905 = vrot.slane %v3828, 1
          %v3906 = vsel %vm3897, %v3903, %v3905
          %v3907 = vrot.slane %v3829, 1
          %v3908 = vsel %vm3897, %v3905, %v3907
          %v3909 = vrot.slane %v3830, 1
          %v3910 = vsel %vm3897, %v3907, %v3909
          %v3911 = vrot.slane %v3831, 1
          %v3912 = vsel %vm3897, %v3909, %v3911
          %v3913 = vrot.slane %v3832, 1
          %v3914 = vsel %vm3897, %v3911, %v3913
          %v3915 = vrot.slane %v3833, 1
          %v3916 = vsel %vm3897, %v3913, %v3915
          %v3917 = vrot.slane %v3834, 1
          %v3918 = vsel %vm3897, %v3915, %v3917
          %v3919 = vrot.slane %v3835, 1
          %v3920 = vsel %vm3897, %v3917, %v3919
          %v3921 = vrot.slane %v3836, 1
          %v3922 = vsel %vm3897, %v3919, %v3921
          %v3923 = vrot.slane %v3837, 1
          %v3924 = vsel %vm3897, %v3921, %v3923
          %v3925 = vrot.slane %v3838, 1
          %v3926 = vsel %vm3897, %v3923, %v3925
          %v3927 = vrot.slane %v3839, 1
          %v3928 = vsel %vm3897, %v3925, %v3927
          %v3929 = vrot.slane %v3840, 1
          %v3930 = vsel %vm3897, %v3927, %v3929
          %v3931 = vrot.slane %v3841, 1
          %v3932 = vsel %vm3897, %v3929, %v3931
          %v3933 = vrot.slane %v3842, 1
          %v3934 = vsel %vm3897, %v3931, %v3933
          %v3935 = vrot.slane %v3843, 1
          %v3936 = vsel %vm3897, %v3933, %v3935
          %v3937 = vrot.slane %v3844, 1
          %v3938 = vsel %vm3897, %v3935, %v3937
          %v3939 = vrot.slane %v3845, 1
          %v3940 = vsel %vm3897, %v3937, %v3939
          %v3941 = vrot.slane %v3846, 1
          %v3942 = vsel %vm3897, %v3939, %v3941
          %v3943 = vrot.slane %v3847, 1
          %v3944 = vsel %vm3897, %v3941, %v3943
          %v3945 = vrot.slane %v3848, 1
          %v3946 = vsel %vm3897, %v3943, %v3945
          %v3947 = vrot.slane %v3849, 1
          %v3948 = vsel %vm3897, %v3945, %v3947
          %v3949 = vrot.slane %v3850, 1
          %v3950 = vsel %vm3897, %v3947, %v3949
          %v3951 = vrot.slane %v3851, 1
          %v3952 = vsel %vm3897, %v3949, %v3951
          %v3953 = vrot.slane %v3852, 1
          %v3954 = vsel %vm3897, %v3951, %v3953
          %v3955 = vrot.slane %v3853, 1
          %v3956 = vsel %vm3897, %v3953, %v3955
          %v3957 = vrot.slane %v3854, 1
          %v3958 = vsel %vm3897, %v3955, %v3957
          %v3959 = vrot.slane %v3855, 1
          %v3960 = vsel %vm3897, %v3957, %v3959
          %v3961 = vrot.slane %v3856, 1
          %v3962 = vsel %vm3897, %v3959, %v3961
          %vm3963 = vcmask 64512
          %v3964 = vsel %vm3963, %v3900, 0
          %v3966 = vsel %vm3963, %v3902, 0
          %v3968 = vsel %vm3963, %v3904, 0
          %v3970 = vsel %vm3963, %v3906, 0
          %v3972 = vsel %vm3963, %v3908, 0
          %v3974 = vsel %vm3963, %v3910, 0
          %v3976 = vsel %vm3963, %v3912, 0
          %v3978 = vsel %vm3963, %v3914, 0
          %v3980 = vsel %vm3963, %v3916, 0
          %v3982 = vsel %vm3963, %v3918, 0
          %v3984 = vsel %vm3963, %v3920, 0
          %v3986 = vsel %vm3963, %v3922, 0
          %v3988 = vsel %vm3963, %v3924, 0
          %v3990 = vsel %vm3963, %v3926, 0
          %v3992 = vsel %vm3963, %v3928, 0
          %v3994 = vsel %vm3963, %v3930, 0
          %v3996 = vsel %vm3963, %v3932, 0
          %v3998 = vsel %vm3963, %v3934, 0
          %v4000 = vsel %vm3963, %v3936, 0
          %v4002 = vsel %vm3963, %v3938, 0
          %v4004 = vsel %vm3963, %v3940, 0
          %v4006 = vsel %vm3963, %v3942, 0
          %v4008 = vsel %vm3963, %v3944, 0
          %v4010 = vsel %vm3963, %v3946, 0
          %v4012 = vsel %vm3963, %v3948, 0
          %v4014 = vsel %vm3963, %v3950, 0
          %v4016 = vsel %vm3963, %v3952, 0
          %v4018 = vsel %vm3963, %v3954, 0
          %v4020 = vsel %vm3963, %v3956, 0
          %v4022 = vsel %vm3963, %v3958, 0
          %v4024 = vsel %vm3963, %v3960, 0
          %v4026 = vsel %vm3963, %v3962, 0
          %4028 = vmatprep.subr.mxu0 0.0
          %4029 = vmatpush1.msra.mxu0 0.0
          %4030 = vmatprep.subr.mxu0 0.0
          %4031 = vmatpush1.msra.mxu0 0.0
          %4032 = vmatprep.subr.mxu0 0.0
          %4033 = vmatpush1.msra.mxu0 0.0
          %4034 = vmatprep.subr.mxu0 0.0
          %4035 = vmatpush1.msra.mxu0 0.0
          %4036 = vmatprep.subr.mxu0 0.0
          %4037 = vmatpush1.msra.mxu0 0.0
          %4038 = vmatprep.subr.mxu0 0.0
          %4039 = vmatpush1.msra.mxu0 0.0
          %4040 = vmatprep.subr.mxu0 0.0
          %4041 = vmatpush1.msra.mxu0 0.0
          %4042 = vmatprep.subr.mxu0 0.0
          %4043 = vmatpush1.msra.mxu0 0.0
          %4044 = vmatprep.subr.mxu0 0.0
          %4045 = vmatpush1.msra.mxu0 0.0
          %4046 = vmatprep.subr.mxu0 0.0
          %4047 = vmatpush1.msra.mxu0 0.0
          %4048 = vmatprep.subr.mxu0 0.0
          %4049 = vmatpush1.msra.mxu0 0.0
          %4050 = vmatprep.subr.mxu0 0.0
          %4051 = vmatpush1.msra.mxu0 0.0
          %4052 = vmatprep.subr.mxu0 0.0
          %4053 = vmatpush1.msra.mxu0 0.0
          %4054 = vmatprep.subr.mxu0 0.0
          %4055 = vmatpush1.msra.mxu0 0.0
          %4056 = vmatprep.subr.mxu0 0.0
          %4057 = vmatpush1.msra.mxu0 0.0
          %4058 = vmatprep.subr.mxu0 0.0
          %4059 = vmatpush1.msra.mxu0 %v3863
          %4060 = vmatprep.subr.mxu0 0.0
          %4061 = vmatpush2.msra.mxu0 0.0
          %4062 = vmatprep.subr.mxu0 0.0
          %4063 = vmatpush2.msra.mxu0 0.0
          %4064 = vmatprep.subr.mxu0 0.0
          %4065 = vmatpush2.msra.mxu0 0.0
          %4066 = vmatprep.subr.mxu0 0.0
          %4067 = vmatpush2.msra.mxu0 0.0
          %4068 = vmatprep.subr.mxu0 0.0
          %4069 = vmatpush2.msra.mxu0 0.0
          %4070 = vmatprep.subr.mxu0 0.0
          %4071 = vmatpush2.msra.mxu0 0.0
          %4072 = vmatprep.subr.mxu0 0.0
          %4073 = vmatpush2.msra.mxu0 0.0
          %4074 = vmatprep.subr.mxu0 0.0
          %4075 = vmatpush2.msra.mxu0 0.0
          %4076 = vmatprep.subr.mxu0 0.0
          %4077 = vmatpush2.msra.mxu0 0.0
          %4078 = vmatprep.subr.mxu0 0.0
          %4079 = vmatpush2.msra.mxu0 0.0
          %4080 = vmatprep.subr.mxu0 0.0
          %4081 = vmatpush2.msra.mxu0 0.0
          %4082 = vmatprep.subr.mxu0 0.0
          %4083 = vmatpush2.msra.mxu0 0.0
          %4084 = vmatprep.subr.mxu0 0.0
          %4085 = vmatpush2.msra.mxu0 0.0
          %4086 = vmatprep.subr.mxu0 0.0
          %4087 = vmatpush2.msra.mxu0 0.0
          %4088 = vmatprep.subr.mxu0 0.0
          %4089 = vmatpush2.msra.mxu0 0.0
          %4090 = vmatprep.subr.mxu0 0.0
          %4091 = vmatpush2.msra.mxu0 0.0
          %4092 = vmatprep.mubr.f32.mxu0 0.0
          %4093 = vmatmul.mubr.f32.gmra.mxu0 %v3964
          %v4094 = vpop.f32.mrf.mxu0
          %v4095 = vadd.f32 0.0, %v4094
          %v4096 = vpop.f32.mrf.mxu0
          %4097 = vmatprep.mubr.f32.mxu0 0.0
          %4098 = vmatmul.mubr.f32.gmra.mxu0 %v3966
          %v4099 = vpop.f32.mrf.mxu0
          %v4100 = vadd.f32 0.0, %v4099
          %v4101 = vpop.f32.mrf.mxu0
          %4102 = vmatprep.mubr.f32.mxu0 0.0
          %4103 = vmatmul.mubr.f32.gmra.mxu0 %v3968
          %v4104 = vpop.f32.mrf.mxu0
          %v4105 = vadd.f32 0.0, %v4104
          %v4106 = vpop.f32.mrf.mxu0
          %4107 = vmatprep.mubr.f32.mxu0 0.0
          %4108 = vmatmul.mubr.f32.gmra.mxu0 %v3970
          %v4109 = vpop.f32.mrf.mxu0
          %v4110 = vadd.f32 0.0, %v4109
          %v4111 = vpop.f32.mrf.mxu0
          %4112 = vmatprep.mubr.f32.mxu0 0.0
          %4113 = vmatmul.mubr.f32.gmra.mxu0 %v3972
          %v4114 = vpop.f32.mrf.mxu0
          %v4115 = vadd.f32 0.0, %v4114
          %v4116 = vpop.f32.mrf.mxu0
          %4117 = vmatprep.mubr.f32.mxu0 0.0
          %4118 = vmatmul.mubr.f32.gmra.mxu0 %v3974
          %v4119 = vpop.f32.mrf.mxu0
          %v4120 = vadd.f32 0.0, %v4119
          %v4121 = vpop.f32.mrf.mxu0
          %4122 = vmatprep.mubr.f32.mxu0 0.0
          %4123 = vmatmul.mubr.f32.gmra.mxu0 %v3976
          %v4124 = vpop.f32.mrf.mxu0
          %v4125 = vadd.f32 0.0, %v4124
          %v4126 = vpop.f32.mrf.mxu0
          %4127 = vmatprep.mubr.f32.mxu0 0.0
          %4128 = vmatmul.mubr.f32.gmra.mxu0 %v3978
          %v4129 = vpop.f32.mrf.mxu0
          %v4130 = vadd.f32 0.0, %v4129
          %v4131 = vpop.f32.mrf.mxu0
          %4132 = vmatprep.mubr.f32.mxu0 0.0
          %4133 = vmatmul.mubr.f32.gmra.mxu0 %v3980
          %v4134 = vpop.f32.mrf.mxu0
          %v4135 = vadd.f32 0.0, %v4134
          %v4136 = vpop.f32.mrf.mxu0
          %4137 = vmatprep.mubr.f32.mxu0 0.0
          %4138 = vmatmul.mubr.f32.gmra.mxu0 %v3982
          %v4139 = vpop.f32.mrf.mxu0
          %v4140 = vadd.f32 0.0, %v4139
          %v4141 = vpop.f32.mrf.mxu0
          %4142 = vmatprep.mubr.f32.mxu0 0.0
          %4143 = vmatmul.mubr.f32.gmra.mxu0 %v3984
          %v4144 = vpop.f32.mrf.mxu0
          %v4145 = vadd.f32 0.0, %v4144
          %v4146 = vpop.f32.mrf.mxu0
          %4147 = vmatprep.mubr.f32.mxu0 0.0
          %4148 = vmatmul.mubr.f32.gmra.mxu0 %v3986
          %v4149 = vpop.f32.mrf.mxu0
          %v4150 = vadd.f32 0.0, %v4149
          %v4151 = vpop.f32.mrf.mxu0
          %4152 = vmatprep.mubr.f32.mxu0 0.0
          %4153 = vmatmul.mubr.f32.gmra.mxu0 %v3988
          %v4154 = vpop.f32.mrf.mxu0
          %v4155 = vadd.f32 0.0, %v4154
          %v4156 = vpop.f32.mrf.mxu0
          %4157 = vmatprep.mubr.f32.mxu0 0.0
          %4158 = vmatmul.mubr.f32.gmra.mxu0 %v3990
          %v4159 = vpop.f32.mrf.mxu0
          %v4160 = vadd.f32 0.0, %v4159
          %v4161 = vpop.f32.mrf.mxu0
          %4162 = vmatprep.mubr.f32.mxu0 0.0
          %4163 = vmatmul.mubr.f32.gmra.mxu0 %v3992
          %v4164 = vpop.f32.mrf.mxu0
          %v4165 = vadd.f32 0.0, %v4164
          %v4166 = vpop.f32.mrf.mxu0
          %4167 = vmatprep.mubr.f32.mxu0 0.0
          %4168 = vmatmul.mubr.f32.gmra.mxu0 %v3994
          %v4169 = vpop.f32.mrf.mxu0
          %v4170 = vadd.f32 0.0, %v4169
          %v4171 = vpop.f32.mrf.mxu0
          %4172 = vmatprep.mubr.f32.mxu0 0.0
          %4173 = vmatmul.mubr.f32.gmra.mxu0 %v3996
          %v4174 = vpop.f32.mrf.mxu0
          %v4175 = vadd.f32 0.0, %v4174
          %v4176 = vpop.f32.mrf.mxu0
          %4177 = vmatprep.mubr.f32.mxu0 0.0
          %4178 = vmatmul.mubr.f32.gmra.mxu0 %v3998
          %v4179 = vpop.f32.mrf.mxu0
          %v4180 = vadd.f32 0.0, %v4179
          %v4181 = vpop.f32.mrf.mxu0
          %4182 = vmatprep.mubr.f32.mxu0 0.0
          %4183 = vmatmul.mubr.f32.gmra.mxu0 %v4000
          %v4184 = vpop.f32.mrf.mxu0
          %v4185 = vadd.f32 0.0, %v4184
          %v4186 = vpop.f32.mrf.mxu0
          %4187 = vmatprep.mubr.f32.mxu0 0.0
          %4188 = vmatmul.mubr.f32.gmra.mxu0 %v4002
          %v4189 = vpop.f32.mrf.mxu0
          %v4190 = vadd.f32 0.0, %v4189
          %v4191 = vpop.f32.mrf.mxu0
          %4192 = vmatprep.mubr.f32.mxu0 0.0
          %4193 = vmatmul.mubr.f32.gmra.mxu0 %v4004
          %v4194 = vpop.f32.mrf.mxu0
          %v4195 = vadd.f32 0.0, %v4194
          %v4196 = vpop.f32.mrf.mxu0
          %4197 = vmatprep.mubr.f32.mxu0 0.0
          %4198 = vmatmul.mubr.f32.gmra.mxu0 %v4006
          %v4199 = vpop.f32.mrf.mxu0
          %v4200 = vadd.f32 0.0, %v4199
          %v4201 = vpop.f32.mrf.mxu0
          %4202 = vmatprep.mubr.f32.mxu0 0.0
          %4203 = vmatmul.mubr.f32.gmra.mxu0 %v4008
          %v4204 = vpop.f32.mrf.mxu0
          %v4205 = vadd.f32 0.0, %v4204
          %v4206 = vpop.f32.mrf.mxu0
          %4207 = vmatprep.mubr.f32.mxu0 0.0
          %4208 = vmatmul.mubr.f32.gmra.mxu0 %v4010
          %v4209 = vpop.f32.mrf.mxu0
          %v4210 = vadd.f32 0.0, %v4209
          %v4211 = vpop.f32.mrf.mxu0
          %4212 = vmatprep.mubr.f32.mxu0 0.0
          %4213 = vmatmul.mubr.f32.gmra.mxu0 %v4012
          %v4214 = vpop.f32.mrf.mxu0
          %v4215 = vadd.f32 0.0, %v4214
          %v4216 = vpop.f32.mrf.mxu0
          %4217 = vmatprep.mubr.f32.mxu0 0.0
          %4218 = vmatmul.mubr.f32.gmra.mxu0 %v4014
          %v4219 = vpop.f32.mrf.mxu0
          %v4220 = vadd.f32 0.0, %v4219
          %v4221 = vpop.f32.mrf.mxu0
          %4222 = vmatprep.mubr.f32.mxu0 0.0
          %4223 = vmatmul.mubr.f32.gmra.mxu0 %v4016
          %v4224 = vpop.f32.mrf.mxu0
          %v4225 = vadd.f32 0.0, %v4224
          %v4226 = vpop.f32.mrf.mxu0
          %4227 = vmatprep.mubr.f32.mxu0 0.0
          %4228 = vmatmul.mubr.f32.gmra.mxu0 %v4018
          %v4229 = vpop.f32.mrf.mxu0
          %v4230 = vadd.f32 0.0, %v4229
          %v4231 = vpop.f32.mrf.mxu0
          %4232 = vmatprep.mubr.f32.mxu0 0.0
          %4233 = vmatmul.mubr.f32.gmra.mxu0 %v4020
          %v4234 = vpop.f32.mrf.mxu0
          %v4235 = vadd.f32 0.0, %v4234
          %v4236 = vpop.f32.mrf.mxu0
          %4237 = vmatprep.mubr.f32.mxu0 0.0
          %4238 = vmatmul.mubr.f32.gmra.mxu0 %v4022
          %v4239 = vpop.f32.mrf.mxu0
          %v4240 = vadd.f32 0.0, %v4239
          %v4241 = vpop.f32.mrf.mxu0
          %4242 = vmatprep.mubr.f32.mxu0 0.0
          %4243 = vmatmul.mubr.f32.gmra.mxu0 %v4024
          %v4244 = vpop.f32.mrf.mxu0
          %v4245 = vadd.f32 0.0, %v4244
          %v4246 = vpop.f32.mrf.mxu0
          %4247 = vmatprep.mubr.f32.mxu0 0.0
          %4248 = vmatmul.mubr.f32.gmra.mxu0 %v4026
          %v4249 = vpop.f32.mrf.mxu0
          %v4250 = vadd.f32 0.0, %v4249
          %v4251 = vpop.f32.mrf.mxu0
          %4252 = vdwg.mxu0
          %v4253 = vsel %vm3963, %v3824, 0
          %v4255 = vsel %vm3963, %v3825, 0
          %v4257 = vsel %vm3963, %v3826, 0
          %v4259 = vsel %vm3963, %v3827, 0
          %v4261 = vsel %vm3963, %v3828, 0
          %v4263 = vsel %vm3963, %v3829, 0
          %v4265 = vsel %vm3963, %v3830, 0
          %v4267 = vsel %vm3963, %v3831, 0
          %v4269 = vsel %vm3963, %v3832, 0
          %v4271 = vsel %vm3963, %v3833, 0
          %v4273 = vsel %vm3963, %v3834, 0
          %v4275 = vsel %vm3963, %v3835, 0
          %v4277 = vsel %vm3963, %v3836, 0
          %v4279 = vsel %vm3963, %v3837, 0
          %v4281 = vsel %vm3963, %v3838, 0
          %v4283 = vsel %vm3963, %v3839, 0
          %v4285 = vsel %vm3963, %v3840, 0
          %v4287 = vsel %vm3963, %v3841, 0
          %v4289 = vsel %vm3963, %v3842, 0
          %v4291 = vsel %vm3963, %v3843, 0
          %v4293 = vsel %vm3963, %v3844, 0
          %v4295 = vsel %vm3963, %v3845, 0
          %v4297 = vsel %vm3963, %v3846, 0
          %v4299 = vsel %vm3963, %v3847, 0
          %v4301 = vsel %vm3963, %v3848, 0
          %v4303 = vsel %vm3963, %v3849, 0
          %v4305 = vsel %vm3963, %v3850, 0
          %v4307 = vsel %vm3963, %v3851, 0
          %v4309 = vsel %vm3963, %v3852, 0
          %v4311 = vsel %vm3963, %v3853, 0
          %v4313 = vsel %vm3963, %v3854, 0
          %v4315 = vsel %vm3963, %v3855, 0
          %4317 = vmatprep.subr.mxu0 0.0
          %4318 = vmatpush1.msra.mxu0 0.0
          %4319 = vmatprep.subr.mxu0 0.0
          %4320 = vmatpush1.msra.mxu0 0.0
          %4321 = vmatprep.subr.mxu0 0.0
          %4322 = vmatpush1.msra.mxu0 0.0
          %4323 = vmatprep.subr.mxu0 0.0
          %4324 = vmatpush1.msra.mxu0 0.0
          %4325 = vmatprep.subr.mxu0 0.0
          %4326 = vmatpush1.msra.mxu0 0.0
          %4327 = vmatprep.subr.mxu0 0.0
          %4328 = vmatpush1.msra.mxu0 0.0
          %4329 = vmatprep.subr.mxu0 0.0
          %4330 = vmatpush1.msra.mxu0 0.0
          %4331 = vmatprep.subr.mxu0 0.0
          %4332 = vmatpush1.msra.mxu0 0.0
          %4333 = vmatprep.subr.mxu0 0.0
          %4334 = vmatpush1.msra.mxu0 0.0
          %4335 = vmatprep.subr.mxu0 0.0
          %4336 = vmatpush1.msra.mxu0 0.0
          %4337 = vmatprep.subr.mxu0 0.0
          %4338 = vmatpush1.msra.mxu0 0.0
          %4339 = vmatprep.subr.mxu0 0.0
          %4340 = vmatpush1.msra.mxu0 0.0
          %4341 = vmatprep.subr.mxu0 0.0
          %4342 = vmatpush1.msra.mxu0 0.0
          %4343 = vmatprep.subr.mxu0 0.0
          %4344 = vmatpush1.msra.mxu0 0.0
          %4345 = vmatprep.subr.mxu0 0.0
          %4346 = vmatpush1.msra.mxu0 0.0
          %4347 = vmatprep.subr.mxu0 0.0
          %4348 = vmatpush1.msra.mxu0 %v3861
          %4349 = vmatprep.subr.mxu0 0.0
          %4350 = vmatpush2.msra.mxu0 0.0
          %4351 = vmatprep.subr.mxu0 0.0
          %4352 = vmatpush2.msra.mxu0 0.0
          %4353 = vmatprep.subr.mxu0 0.0
          %4354 = vmatpush2.msra.mxu0 0.0
          %4355 = vmatprep.subr.mxu0 0.0
          %4356 = vmatpush2.msra.mxu0 0.0
          %4357 = vmatprep.subr.mxu0 0.0
          %4358 = vmatpush2.msra.mxu0 0.0
          %4359 = vmatprep.subr.mxu0 0.0
          %4360 = vmatpush2.msra.mxu0 0.0
          %4361 = vmatprep.subr.mxu0 0.0
          %4362 = vmatpush2.msra.mxu0 0.0
          %4363 = vmatprep.subr.mxu0 0.0
          %4364 = vmatpush2.msra.mxu0 0.0
          %4365 = vmatprep.subr.mxu0 0.0
          %4366 = vmatpush2.msra.mxu0 0.0
          %4367 = vmatprep.subr.mxu0 0.0
          %4368 = vmatpush2.msra.mxu0 0.0
          %4369 = vmatprep.subr.mxu0 0.0
          %4370 = vmatpush2.msra.mxu0 0.0
          %4371 = vmatprep.subr.mxu0 0.0
          %4372 = vmatpush2.msra.mxu0 0.0
          %4373 = vmatprep.subr.mxu0 0.0
          %4374 = vmatpush2.msra.mxu0 0.0
          %4375 = vmatprep.subr.mxu0 0.0
          %4376 = vmatpush2.msra.mxu0 0.0
          %4377 = vmatprep.subr.mxu0 0.0
          %4378 = vmatpush2.msra.mxu0 0.0
          %4379 = vmatprep.subr.mxu0 0.0
          %4380 = vmatpush2.msra.mxu0 0.0
          %4381 = vmatprep.mubr.f32.mxu0 0.0
          %4382 = vmatmul.mubr.f32.gmra.mxu0 %v4253
          %v4383 = vpop.f32.mrf.mxu0
          %v4384 = vadd.f32 %v4095, %v4383
          %v4385 = vpop.f32.mrf.mxu0
          %4386 = vmatprep.mubr.f32.mxu0 0.0
          %4387 = vmatmul.mubr.f32.gmra.mxu0 %v4255
          %v4388 = vpop.f32.mrf.mxu0
          %v4389 = vadd.f32 %v4100, %v4388
          %v4390 = vpop.f32.mrf.mxu0
          %4391 = vmatprep.mubr.f32.mxu0 0.0
          %4392 = vmatmul.mubr.f32.gmra.mxu0 %v4257
          %v4393 = vpop.f32.mrf.mxu0
          %v4394 = vadd.f32 %v4105, %v4393
          %v4395 = vpop.f32.mrf.mxu0
          %4396 = vmatprep.mubr.f32.mxu0 0.0
          %4397 = vmatmul.mubr.f32.gmra.mxu0 %v4259
          %v4398 = vpop.f32.mrf.mxu0
          %v4399 = vadd.f32 %v4110, %v4398
          %v4400 = vpop.f32.mrf.mxu0
          %4401 = vmatprep.mubr.f32.mxu0 0.0
          %4402 = vmatmul.mubr.f32.gmra.mxu0 %v4261
          %v4403 = vpop.f32.mrf.mxu0
          %v4404 = vadd.f32 %v4115, %v4403
          %v4405 = vpop.f32.mrf.mxu0
          %4406 = vmatprep.mubr.f32.mxu0 0.0
          %4407 = vmatmul.mubr.f32.gmra.mxu0 %v4263
          %v4408 = vpop.f32.mrf.mxu0
          %v4409 = vadd.f32 %v4120, %v4408
          %v4410 = vpop.f32.mrf.mxu0
          %4411 = vmatprep.mubr.f32.mxu0 0.0
          %4412 = vmatmul.mubr.f32.gmra.mxu0 %v4265
          %v4413 = vpop.f32.mrf.mxu0
          %v4414 = vadd.f32 %v4125, %v4413
          %v4415 = vpop.f32.mrf.mxu0
          %4416 = vmatprep.mubr.f32.mxu0 0.0
          %4417 = vmatmul.mubr.f32.gmra.mxu0 %v4267
          %v4418 = vpop.f32.mrf.mxu0
          %v4419 = vadd.f32 %v4130, %v4418
          %v4420 = vpop.f32.mrf.mxu0
          %4421 = vmatprep.mubr.f32.mxu0 0.0
          %4422 = vmatmul.mubr.f32.gmra.mxu0 %v4269
          %v4423 = vpop.f32.mrf.mxu0
          %v4424 = vadd.f32 %v4135, %v4423
          %v4425 = vpop.f32.mrf.mxu0
          %4426 = vmatprep.mubr.f32.mxu0 0.0
          %4427 = vmatmul.mubr.f32.gmra.mxu0 %v4271
          %v4428 = vpop.f32.mrf.mxu0
          %v4429 = vadd.f32 %v4140, %v4428
          %v4430 = vpop.f32.mrf.mxu0
          %4431 = vmatprep.mubr.f32.mxu0 0.0
          %4432 = vmatmul.mubr.f32.gmra.mxu0 %v4273
          %v4433 = vpop.f32.mrf.mxu0
          %v4434 = vadd.f32 %v4145, %v4433
          %v4435 = vpop.f32.mrf.mxu0
          %4436 = vmatprep.mubr.f32.mxu0 0.0
          %4437 = vmatmul.mubr.f32.gmra.mxu0 %v4275
          %v4438 = vpop.f32.mrf.mxu0
          %v4439 = vadd.f32 %v4150, %v4438
          %v4440 = vpop.f32.mrf.mxu0
          %4441 = vmatprep.mubr.f32.mxu0 0.0
          %4442 = vmatmul.mubr.f32.gmra.mxu0 %v4277
          %v4443 = vpop.f32.mrf.mxu0
          %v4444 = vadd.f32 %v4155, %v4443
          %v4445 = vpop.f32.mrf.mxu0
          %4446 = vmatprep.mubr.f32.mxu0 0.0
          %4447 = vmatmul.mubr.f32.gmra.mxu0 %v4279
          %v4448 = vpop.f32.mrf.mxu0
          %v4449 = vadd.f32 %v4160, %v4448
          %v4450 = vpop.f32.mrf.mxu0
          %4451 = vmatprep.mubr.f32.mxu0 0.0
          %4452 = vmatmul.mubr.f32.gmra.mxu0 %v4281
          %v4453 = vpop.f32.mrf.mxu0
          %v4454 = vadd.f32 %v4165, %v4453
          %v4455 = vpop.f32.mrf.mxu0
          %4456 = vmatprep.mubr.f32.mxu0 0.0
          %4457 = vmatmul.mubr.f32.gmra.mxu0 %v4283
          %v4458 = vpop.f32.mrf.mxu0
          %v4459 = vadd.f32 %v4170, %v4458
          %v4460 = vpop.f32.mrf.mxu0
          %4461 = vmatprep.mubr.f32.mxu0 0.0
          %4462 = vmatmul.mubr.f32.gmra.mxu0 %v4285
          %v4463 = vpop.f32.mrf.mxu0
          %v4464 = vadd.f32 %v4175, %v4463
          %v4465 = vpop.f32.mrf.mxu0
          %4466 = vmatprep.mubr.f32.mxu0 0.0
          %4467 = vmatmul.mubr.f32.gmra.mxu0 %v4287
          %v4468 = vpop.f32.mrf.mxu0
          %v4469 = vadd.f32 %v4180, %v4468
          %v4470 = vpop.f32.mrf.mxu0
          %4471 = vmatprep.mubr.f32.mxu0 0.0
          %4472 = vmatmul.mubr.f32.gmra.mxu0 %v4289
          %v4473 = vpop.f32.mrf.mxu0
          %v4474 = vadd.f32 %v4185, %v4473
          %v4475 = vpop.f32.mrf.mxu0
          %4476 = vmatprep.mubr.f32.mxu0 0.0
          %4477 = vmatmul.mubr.f32.gmra.mxu0 %v4291
          %v4478 = vpop.f32.mrf.mxu0
          %v4479 = vadd.f32 %v4190, %v4478
          %v4480 = vpop.f32.mrf.mxu0
          %4481 = vmatprep.mubr.f32.mxu0 0.0
          %4482 = vmatmul.mubr.f32.gmra.mxu0 %v4293
          %v4483 = vpop.f32.mrf.mxu0
          %v4484 = vadd.f32 %v4195, %v4483
          %v4485 = vpop.f32.mrf.mxu0
          %4486 = vmatprep.mubr.f32.mxu0 0.0
          %4487 = vmatmul.mubr.f32.gmra.mxu0 %v4295
          %v4488 = vpop.f32.mrf.mxu0
          %v4489 = vadd.f32 %v4200, %v4488
          %v4490 = vpop.f32.mrf.mxu0
          %4491 = vmatprep.mubr.f32.mxu0 0.0
          %4492 = vmatmul.mubr.f32.gmra.mxu0 %v4297
          %v4493 = vpop.f32.mrf.mxu0
          %v4494 = vadd.f32 %v4205, %v4493
          %v4495 = vpop.f32.mrf.mxu0
          %4496 = vmatprep.mubr.f32.mxu0 0.0
          %4497 = vmatmul.mubr.f32.gmra.mxu0 %v4299
          %v4498 = vpop.f32.mrf.mxu0
          %v4499 = vadd.f32 %v4210, %v4498
          %v4500 = vpop.f32.mrf.mxu0
          %4501 = vmatprep.mubr.f32.mxu0 0.0
          %4502 = vmatmul.mubr.f32.gmra.mxu0 %v4301
          %v4503 = vpop.f32.mrf.mxu0
          %v4504 = vadd.f32 %v4215, %v4503
          %v4505 = vpop.f32.mrf.mxu0
          %4506 = vmatprep.mubr.f32.mxu0 0.0
          %4507 = vmatmul.mubr.f32.gmra.mxu0 %v4303
          %v4508 = vpop.f32.mrf.mxu0
          %v4509 = vadd.f32 %v4220, %v4508
          %v4510 = vpop.f32.mrf.mxu0
          %4511 = vmatprep.mubr.f32.mxu0 0.0
          %4512 = vmatmul.mubr.f32.gmra.mxu0 %v4305
          %v4513 = vpop.f32.mrf.mxu0
          %v4514 = vadd.f32 %v4225, %v4513
          %v4515 = vpop.f32.mrf.mxu0
          %4516 = vmatprep.mubr.f32.mxu0 0.0
          %4517 = vmatmul.mubr.f32.gmra.mxu0 %v4307
          %v4518 = vpop.f32.mrf.mxu0
          %v4519 = vadd.f32 %v4230, %v4518
          %v4520 = vpop.f32.mrf.mxu0
          %4521 = vmatprep.mubr.f32.mxu0 0.0
          %4522 = vmatmul.mubr.f32.gmra.mxu0 %v4309
          %v4523 = vpop.f32.mrf.mxu0
          %v4524 = vadd.f32 %v4235, %v4523
          %v4525 = vpop.f32.mrf.mxu0
          %4526 = vmatprep.mubr.f32.mxu0 0.0
          %4527 = vmatmul.mubr.f32.gmra.mxu0 %v4311
          %v4528 = vpop.f32.mrf.mxu0
          %v4529 = vadd.f32 %v4240, %v4528
          %v4530 = vpop.f32.mrf.mxu0
          %4531 = vmatprep.mubr.f32.mxu0 0.0
          %4532 = vmatmul.mubr.f32.gmra.mxu0 %v4313
          %v4533 = vpop.f32.mrf.mxu0
          %v4534 = vadd.f32 %v4245, %v4533
          %v4535 = vpop.f32.mrf.mxu0
          %4536 = vmatprep.mubr.f32.mxu0 0.0
          %4537 = vmatmul.mubr.f32.gmra.mxu0 %v4315
          %v4538 = vpop.f32.mrf.mxu0
          %v4539 = vadd.f32 %v4250, %v4538
          %v4540 = vpop.f32.mrf.mxu0
          %4541 = vdwg.mxu0
          %s4542 = scalar_lea.vmem %s1, 16
          %v4543 = vld [vmem:[%s4542] sm:$0xff]
          %vm4544 = vcmask 1045504
          %v4545 = vrot.slane %v3824, 2
          %v4546 = vrot.slane %v3825, 2
          %v4547 = vsel %vm4544, %v4545, %v4546
          %v4548 = vrot.slane %v3826, 2
          %v4549 = vsel %vm4544, %v4546, %v4548
          %v4550 = vrot.slane %v3827, 2
          %v4551 = vsel %vm4544, %v4548, %v4550
          %v4552 = vrot.slane %v3828, 2
          %v4553 = vsel %vm4544, %v4550, %v4552
          %v4554 = vrot.slane %v3829, 2
          %v4555 = vsel %vm4544, %v4552, %v4554
          %v4556 = vrot.slane %v3830, 2
          %v4557 = vsel %vm4544, %v4554, %v4556
          %v4558 = vrot.slane %v3831, 2
          %v4559 = vsel %vm4544, %v4556, %v4558
          %v4560 = vrot.slane %v3832, 2
          %v4561 = vsel %vm4544, %v4558, %v4560
          %v4562 = vrot.slane %v3833, 2
          %v4563 = vsel %vm4544, %v4560, %v4562
          %v4564 = vrot.slane %v3834, 2
          %v4565 = vsel %vm4544, %v4562, %v4564
          %v4566 = vrot.slane %v3835, 2
          %v4567 = vsel %vm4544, %v4564, %v4566
          %v4568 = vrot.slane %v3836, 2
          %v4569 = vsel %vm4544, %v4566, %v4568
          %v4570 = vrot.slane %v3837, 2
          %v4571 = vsel %vm4544, %v4568, %v4570
          %v4572 = vrot.slane %v3838, 2
          %v4573 = vsel %vm4544, %v4570, %v4572
          %v4574 = vrot.slane %v3839, 2
          %v4575 = vsel %vm4544, %v4572, %v4574
          %v4576 = vrot.slane %v3840, 2
          %v4577 = vsel %vm4544, %v4574, %v4576
          %v4578 = vrot.slane %v3841, 2
          %v4579 = vsel %vm4544, %v4576, %v4578
          %v4580 = vrot.slane %v3842, 2
          %v4581 = vsel %vm4544, %v4578, %v4580
          %v4582 = vrot.slane %v3843, 2
          %v4583 = vsel %vm4544, %v4580, %v4582
          %v4584 = vrot.slane %v3844, 2
          %v4585 = vsel %vm4544, %v4582, %v4584
          %v4586 = vrot.slane %v3845, 2
          %v4587 = vsel %vm4544, %v4584, %v4586
          %v4588 = vrot.slane %v3846, 2
          %v4589 = vsel %vm4544, %v4586, %v4588
          %v4590 = vrot.slane %v3847, 2
          %v4591 = vsel %vm4544, %v4588, %v4590
          %v4592 = vrot.slane %v3848, 2
          %v4593 = vsel %vm4544, %v4590, %v4592
          %v4594 = vrot.slane %v3849, 2
          %v4595 = vsel %vm4544, %v4592, %v4594
          %v4596 = vrot.slane %v3850, 2
          %v4597 = vsel %vm4544, %v4594, %v4596
          %v4598 = vrot.slane %v3851, 2
          %v4599 = vsel %vm4544, %v4596, %v4598
          %v4600 = vrot.slane %v3852, 2
          %v4601 = vsel %vm4544, %v4598, %v4600
          %v4602 = vrot.slane %v3853, 2
          %v4603 = vsel %vm4544, %v4600, %v4602
          %v4604 = vrot.slane %v3854, 2
          %v4605 = vsel %vm4544, %v4602, %v4604
          %v4606 = vrot.slane %v3855, 2
          %v4607 = vsel %vm4544, %v4604, %v4606
          %v4608 = vrot.slane %v3856, 2
          %v4609 = vsel %vm4544, %v4606, %v4608
          %v4610 = vsel %vm3963, %v4547, 0
          %v4612 = vsel %vm3963, %v4549, 0
          %v4614 = vsel %vm3963, %v4551, 0
          %v4616 = vsel %vm3963, %v4553, 0
          %v4618 = vsel %vm3963, %v4555, 0
          %v4620 = vsel %vm3963, %v4557, 0
          %v4622 = vsel %vm3963, %v4559, 0
          %v4624 = vsel %vm3963, %v4561, 0
          %v4626 = vsel %vm3963, %v4563, 0
          %v4628 = vsel %vm3963, %v4565, 0
          %v4630 = vsel %vm3963, %v4567, 0
          %v4632 = vsel %vm3963, %v4569, 0
          %v4634 = vsel %vm3963, %v4571, 0
          %v4636 = vsel %vm3963, %v4573, 0
          %v4638 = vsel %vm3963, %v4575, 0
          %v4640 = vsel %vm3963, %v4577, 0
          %v4642 = vsel %vm3963, %v4579, 0
          %v4644 = vsel %vm3963, %v4581, 0
          %v4646 = vsel %vm3963, %v4583, 0
          %v4648 = vsel %vm3963, %v4585, 0
          %v4650 = vsel %vm3963, %v4587, 0
          %v4652 = vsel %vm3963, %v4589, 0
          %v4654 = vsel %vm3963, %v4591, 0
          %v4656 = vsel %vm3963, %v4593, 0
          %v4658 = vsel %vm3963, %v4595, 0
          %v4660 = vsel %vm3963, %v4597, 0
          %v4662 = vsel %vm3963, %v4599, 0
          %v4664 = vsel %vm3963, %v4601, 0
          %v4666 = vsel %vm3963, %v4603, 0
          %v4668 = vsel %vm3963, %v4605, 0
          %v4670 = vsel %vm3963, %v4607, 0
          %v4672 = vsel %vm3963, %v4609, 0
          %4674 = vmatprep.subr.mxu0 0.0
          %4675 = vmatpush1.msra.mxu0 0.0
          %4676 = vmatprep.subr.mxu0 0.0
          %4677 = vmatpush1.msra.mxu0 0.0
          %4678 = vmatprep.subr.mxu0 0.0
          %4679 = vmatpush1.msra.mxu0 0.0
          %4680 = vmatprep.subr.mxu0 0.0
          %4681 = vmatpush1.msra.mxu0 0.0
          %4682 = vmatprep.subr.mxu0 0.0
          %4683 = vmatpush1.msra.mxu0 0.0
          %4684 = vmatprep.subr.mxu0 0.0
          %4685 = vmatpush1.msra.mxu0 0.0
          %4686 = vmatprep.subr.mxu0 0.0
          %4687 = vmatpush1.msra.mxu0 0.0
          %4688 = vmatprep.subr.mxu0 0.0
          %4689 = vmatpush1.msra.mxu0 0.0
          %4690 = vmatprep.subr.mxu0 0.0
          %4691 = vmatpush1.msra.mxu0 0.0
          %4692 = vmatprep.subr.mxu0 0.0
          %4693 = vmatpush1.msra.mxu0 0.0
          %4694 = vmatprep.subr.mxu0 0.0
          %4695 = vmatpush1.msra.mxu0 0.0
          %4696 = vmatprep.subr.mxu0 0.0
          %4697 = vmatpush1.msra.mxu0 0.0
          %4698 = vmatprep.subr.mxu0 0.0
          %4699 = vmatpush1.msra.mxu0 0.0
          %4700 = vmatprep.subr.mxu0 0.0
          %4701 = vmatpush1.msra.mxu0 0.0
          %4702 = vmatprep.subr.mxu0 0.0
          %4703 = vmatpush1.msra.mxu0 0.0
          %4704 = vmatprep.subr.mxu0 0.0
          %4705 = vmatpush1.msra.mxu0 %v4543
          %4706 = vmatprep.subr.mxu0 0.0
          %4707 = vmatpush2.msra.mxu0 0.0
          %4708 = vmatprep.subr.mxu0 0.0
          %4709 = vmatpush2.msra.mxu0 0.0
          %4710 = vmatprep.subr.mxu0 0.0
          %4711 = vmatpush2.msra.mxu0 0.0
          %4712 = vmatprep.subr.mxu0 0.0
          %4713 = vmatpush2.msra.mxu0 0.0
          %4714 = vmatprep.subr.mxu0 0.0
          %4715 = vmatpush2.msra.mxu0 0.0
          %4716 = vmatprep.subr.mxu0 0.0
          %4717 = vmatpush2.msra.mxu0 0.0
          %4718 = vmatprep.subr.mxu0 0.0
          %4719 = vmatpush2.msra.mxu0 0.0
          %4720 = vmatprep.subr.mxu0 0.0
          %4721 = vmatpush2.msra.mxu0 0.0
          %4722 = vmatprep.subr.mxu0 0.0
          %4723 = vmatpush2.msra.mxu0 0.0
          %4724 = vmatprep.subr.mxu0 0.0
          %4725 = vmatpush2.msra.mxu0 0.0
          %4726 = vmatprep.subr.mxu0 0.0
          %4727 = vmatpush2.msra.mxu0 0.0
          %4728 = vmatprep.subr.mxu0 0.0
          %4729 = vmatpush2.msra.mxu0 0.0
          %4730 = vmatprep.subr.mxu0 0.0
          %4731 = vmatpush2.msra.mxu0 0.0
          %4732 = vmatprep.subr.mxu0 0.0
          %4733 = vmatpush2.msra.mxu0 0.0
          %4734 = vmatprep.subr.mxu0 0.0
          %4735 = vmatpush2.msra.mxu0 0.0
          %4736 = vmatprep.subr.mxu0 0.0
          %4737 = vmatpush2.msra.mxu0 0.0
          %4738 = vmatprep.mubr.f32.mxu0 0.0
          %4739 = vmatmul.mubr.f32.gmra.mxu0 %v4610
          %v4740 = vpop.f32.mrf.mxu0
          %v4741 = vadd.f32 0.0, %v4740
          %v4742 = vpop.f32.mrf.mxu0
          %4743 = vmatprep.mubr.f32.mxu0 0.0
          %4744 = vmatmul.mubr.f32.gmra.mxu0 %v4612
          %v4745 = vpop.f32.mrf.mxu0
          %v4746 = vadd.f32 0.0, %v4745
          %v4747 = vpop.f32.mrf.mxu0
          %4748 = vmatprep.mubr.f32.mxu0 0.0
          %4749 = vmatmul.mubr.f32.gmra.mxu0 %v4614
          %v4750 = vpop.f32.mrf.mxu0
          %v4751 = vadd.f32 0.0, %v4750
          %v4752 = vpop.f32.mrf.mxu0
          %4753 = vmatprep.mubr.f32.mxu0 0.0
          %4754 = vmatmul.mubr.f32.gmra.mxu0 %v4616
          %v4755 = vpop.f32.mrf.mxu0
          %v4756 = vadd.f32 0.0, %v4755
          %v4757 = vpop.f32.mrf.mxu0
          %4758 = vmatprep.mubr.f32.mxu0 0.0
          %4759 = vmatmul.mubr.f32.gmra.mxu0 %v4618
          %v4760 = vpop.f32.mrf.mxu0
          %v4761 = vadd.f32 0.0, %v4760
          %v4762 = vpop.f32.mrf.mxu0
          %4763 = vmatprep.mubr.f32.mxu0 0.0
          %4764 = vmatmul.mubr.f32.gmra.mxu0 %v4620
          %v4765 = vpop.f32.mrf.mxu0
          %v4766 = vadd.f32 0.0, %v4765
          %v4767 = vpop.f32.mrf.mxu0
          %4768 = vmatprep.mubr.f32.mxu0 0.0
          %4769 = vmatmul.mubr.f32.gmra.mxu0 %v4622
          %v4770 = vpop.f32.mrf.mxu0
          %v4771 = vadd.f32 0.0, %v4770
          %v4772 = vpop.f32.mrf.mxu0
          %4773 = vmatprep.mubr.f32.mxu0 0.0
          %4774 = vmatmul.mubr.f32.gmra.mxu0 %v4624
          %v4775 = vpop.f32.mrf.mxu0
          %v4776 = vadd.f32 0.0, %v4775
          %v4777 = vpop.f32.mrf.mxu0
          %4778 = vmatprep.mubr.f32.mxu0 0.0
          %4779 = vmatmul.mubr.f32.gmra.mxu0 %v4626
          %v4780 = vpop.f32.mrf.mxu0
          %v4781 = vadd.f32 0.0, %v4780
          %v4782 = vpop.f32.mrf.mxu0
          %4783 = vmatprep.mubr.f32.mxu0 0.0
          %4784 = vmatmul.mubr.f32.gmra.mxu0 %v4628
          %v4785 = vpop.f32.mrf.mxu0
          %v4786 = vadd.f32 0.0, %v4785
          %v4787 = vpop.f32.mrf.mxu0
          %4788 = vmatprep.mubr.f32.mxu0 0.0
          %4789 = vmatmul.mubr.f32.gmra.mxu0 %v4630
          %v4790 = vpop.f32.mrf.mxu0
          %v4791 = vadd.f32 0.0, %v4790
          %v4792 = vpop.f32.mrf.mxu0
          %4793 = vmatprep.mubr.f32.mxu0 0.0
          %4794 = vmatmul.mubr.f32.gmra.mxu0 %v4632
          %v4795 = vpop.f32.mrf.mxu0
          %v4796 = vadd.f32 0.0, %v4795
          %v4797 = vpop.f32.mrf.mxu0
          %4798 = vmatprep.mubr.f32.mxu0 0.0
          %4799 = vmatmul.mubr.f32.gmra.mxu0 %v4634
          %v4800 = vpop.f32.mrf.mxu0
          %v4801 = vadd.f32 0.0, %v4800
          %v4802 = vpop.f32.mrf.mxu0
          %4803 = vmatprep.mubr.f32.mxu0 0.0
          %4804 = vmatmul.mubr.f32.gmra.mxu0 %v4636
          %v4805 = vpop.f32.mrf.mxu0
          %v4806 = vadd.f32 0.0, %v4805
          %v4807 = vpop.f32.mrf.mxu0
          %4808 = vmatprep.mubr.f32.mxu0 0.0
          %4809 = vmatmul.mubr.f32.gmra.mxu0 %v4638
          %v4810 = vpop.f32.mrf.mxu0
          %v4811 = vadd.f32 0.0, %v4810
          %v4812 = vpop.f32.mrf.mxu0
          %4813 = vmatprep.mubr.f32.mxu0 0.0
          %4814 = vmatmul.mubr.f32.gmra.mxu0 %v4640
          %v4815 = vpop.f32.mrf.mxu0
          %v4816 = vadd.f32 0.0, %v4815
          %v4817 = vpop.f32.mrf.mxu0
          %4818 = vmatprep.mubr.f32.mxu0 0.0
          %4819 = vmatmul.mubr.f32.gmra.mxu0 %v4642
          %v4820 = vpop.f32.mrf.mxu0
          %v4821 = vadd.f32 0.0, %v4820
          %v4822 = vpop.f32.mrf.mxu0
          %4823 = vmatprep.mubr.f32.mxu0 0.0
          %4824 = vmatmul.mubr.f32.gmra.mxu0 %v4644
          %v4825 = vpop.f32.mrf.mxu0
          %v4826 = vadd.f32 0.0, %v4825
          %v4827 = vpop.f32.mrf.mxu0
          %4828 = vmatprep.mubr.f32.mxu0 0.0
          %4829 = vmatmul.mubr.f32.gmra.mxu0 %v4646
          %v4830 = vpop.f32.mrf.mxu0
          %v4831 = vadd.f32 0.0, %v4830
          %v4832 = vpop.f32.mrf.mxu0
          %4833 = vmatprep.mubr.f32.mxu0 0.0
          %4834 = vmatmul.mubr.f32.gmra.mxu0 %v4648
          %v4835 = vpop.f32.mrf.mxu0
          %v4836 = vadd.f32 0.0, %v4835
          %v4837 = vpop.f32.mrf.mxu0
          %4838 = vmatprep.mubr.f32.mxu0 0.0
          %4839 = vmatmul.mubr.f32.gmra.mxu0 %v4650
          %v4840 = vpop.f32.mrf.mxu0
          %v4841 = vadd.f32 0.0, %v4840
          %v4842 = vpop.f32.mrf.mxu0
          %4843 = vmatprep.mubr.f32.mxu0 0.0
          %4844 = vmatmul.mubr.f32.gmra.mxu0 %v4652
          %v4845 = vpop.f32.mrf.mxu0
          %v4846 = vadd.f32 0.0, %v4845
          %v4847 = vpop.f32.mrf.mxu0
          %4848 = vmatprep.mubr.f32.mxu0 0.0
          %4849 = vmatmul.mubr.f32.gmra.mxu0 %v4654
          %v4850 = vpop.f32.mrf.mxu0
          %v4851 = vadd.f32 0.0, %v4850
          %v4852 = vpop.f32.mrf.mxu0
          %4853 = vmatprep.mubr.f32.mxu0 0.0
          %4854 = vmatmul.mubr.f32.gmra.mxu0 %v4656
          %v4855 = vpop.f32.mrf.mxu0
          %v4856 = vadd.f32 0.0, %v4855
          %v4857 = vpop.f32.mrf.mxu0
          %4858 = vmatprep.mubr.f32.mxu0 0.0
          %4859 = vmatmul.mubr.f32.gmra.mxu0 %v4658
          %v4860 = vpop.f32.mrf.mxu0
          %v4861 = vadd.f32 0.0, %v4860
          %v4862 = vpop.f32.mrf.mxu0
          %4863 = vmatprep.mubr.f32.mxu0 0.0
          %4864 = vmatmul.mubr.f32.gmra.mxu0 %v4660
          %v4865 = vpop.f32.mrf.mxu0
          %v4866 = vadd.f32 0.0, %v4865
          %v4867 = vpop.f32.mrf.mxu0
          %4868 = vmatprep.mubr.f32.mxu0 0.0
          %4869 = vmatmul.mubr.f32.gmra.mxu0 %v4662
          %v4870 = vpop.f32.mrf.mxu0
          %v4871 = vadd.f32 0.0, %v4870
          %v4872 = vpop.f32.mrf.mxu0
          %4873 = vmatprep.mubr.f32.mxu0 0.0
          %4874 = vmatmul.mubr.f32.gmra.mxu0 %v4664
          %v4875 = vpop.f32.mrf.mxu0
          %v4876 = vadd.f32 0.0, %v4875
          %v4877 = vpop.f32.mrf.mxu0
          %4878 = vmatprep.mubr.f32.mxu0 0.0
          %4879 = vmatmul.mubr.f32.gmra.mxu0 %v4666
          %v4880 = vpop.f32.mrf.mxu0
          %v4881 = vadd.f32 0.0, %v4880
          %v4882 = vpop.f32.mrf.mxu0
          %4883 = vmatprep.mubr.f32.mxu0 0.0
          %4884 = vmatmul.mubr.f32.gmra.mxu0 %v4668
          %v4885 = vpop.f32.mrf.mxu0
          %v4886 = vadd.f32 0.0, %v4885
          %v4887 = vpop.f32.mrf.mxu0
          %4888 = vmatprep.mubr.f32.mxu0 0.0
          %4889 = vmatmul.mubr.f32.gmra.mxu0 %v4670
          %v4890 = vpop.f32.mrf.mxu0
          %v4891 = vadd.f32 0.0, %v4890
          %v4892 = vpop.f32.mrf.mxu0
          %4893 = vmatprep.mubr.f32.mxu0 0.0
          %4894 = vmatmul.mubr.f32.gmra.mxu0 %v4672
          %v4895 = vpop.f32.mrf.mxu0
          %v4896 = vadd.f32 0.0, %v4895
          %v4897 = vpop.f32.mrf.mxu0
          %4898 = vdwg.mxu0
          %v4899 = vadd.f32 %v4384, %v4741
          %v4900 = vadd.f32 %v4389, %v4746
          %v4901 = vadd.f32 %v4394, %v4751
          %v4902 = vadd.f32 %v4399, %v4756
          %v4903 = vadd.f32 %v4404, %v4761
          %v4904 = vadd.f32 %v4409, %v4766
          %v4905 = vadd.f32 %v4414, %v4771
          %v4906 = vadd.f32 %v4419, %v4776
          %v4907 = vadd.f32 %v4424, %v4781
          %v4908 = vadd.f32 %v4429, %v4786
          %v4909 = vadd.f32 %v4434, %v4791
          %v4910 = vadd.f32 %v4439, %v4796
          %v4911 = vadd.f32 %v4444, %v4801
          %v4912 = vadd.f32 %v4449, %v4806
          %v4913 = vadd.f32 %v4454, %v4811
          %v4914 = vadd.f32 %v4459, %v4816
          %v4915 = vadd.f32 %v4464, %v4821
          %v4916 = vadd.f32 %v4469, %v4826
          %v4917 = vadd.f32 %v4474, %v4831
          %v4918 = vadd.f32 %v4479, %v4836
          %v4919 = vadd.f32 %v4484, %v4841
          %v4920 = vadd.f32 %v4489, %v4846
          %v4921 = vadd.f32 %v4494, %v4851
          %v4922 = vadd.f32 %v4499, %v4856
          %v4923 = vadd.f32 %v4504, %v4861
          %v4924 = vadd.f32 %v4509, %v4866
          %v4925 = vadd.f32 %v4514, %v4871
          %v4926 = vadd.f32 %v4519, %v4876
          %v4927 = vadd.f32 %v4524, %v4881
          %v4928 = vadd.f32 %v4529, %v4886
          %v4929 = vadd.f32 %v4534, %v4891
          %v4930 = vadd.f32 %v4539, %v4896
          %s4931 = scalar_lea.vmem %s1, 24
          %v4932 = vld [vmem:[%s4931] sm:$0xff]
          %v4935 = vrot.slane %v3857, 2
          %v4936 = vsel %vm4544, %v4608, %v4935
          %v4937 = vrot.slane %v3858, 2
          %v4938 = vsel %vm4544, %v4935, %v4937
          %v4939 = vsel %vm3963, %v4936, 0
          %v4941 = vsel %vm3963, %v4938, 0
          %4943 = vmatprep.subr.mxu0 0.0
          %4944 = vmatpush1.msra.mxu0 0.0
          %4945 = vmatprep.subr.mxu0 0.0
          %4946 = vmatpush1.msra.mxu0 0.0
          %4947 = vmatprep.subr.mxu0 0.0
          %4948 = vmatpush1.msra.mxu0 0.0
          %4949 = vmatprep.subr.mxu0 0.0
          %4950 = vmatpush1.msra.mxu0 0.0
          %4951 = vmatprep.subr.mxu0 0.0
          %4952 = vmatpush1.msra.mxu0 0.0
          %4953 = vmatprep.subr.mxu0 0.0
          %4954 = vmatpush1.msra.mxu0 0.0
          %4955 = vmatprep.subr.mxu0 0.0
          %4956 = vmatpush1.msra.mxu0 0.0
          %4957 = vmatprep.subr.mxu0 0.0
          %4958 = vmatpush1.msra.mxu0 0.0
          %4959 = vmatprep.subr.mxu0 0.0
          %4960 = vmatpush1.msra.mxu0 0.0
          %4961 = vmatprep.subr.mxu0 0.0
          %4962 = vmatpush1.msra.mxu0 0.0
          %4963 = vmatprep.subr.mxu0 0.0
          %4964 = vmatpush1.msra.mxu0 0.0
          %4965 = vmatprep.subr.mxu0 0.0
          %4966 = vmatpush1.msra.mxu0 0.0
          %4967 = vmatprep.subr.mxu0 0.0
          %4968 = vmatpush1.msra.mxu0 0.0
          %4969 = vmatprep.subr.mxu0 0.0
          %4970 = vmatpush1.msra.mxu0 0.0
          %4971 = vmatprep.subr.mxu0 0.0
          %4972 = vmatpush1.msra.mxu0 0.0
          %4973 = vmatprep.subr.mxu0 0.0
          %4974 = vmatpush1.msra.mxu0 %v4932
          %4975 = vmatprep.subr.mxu0 0.0
          %4976 = vmatpush2.msra.mxu0 0.0
          %4977 = vmatprep.subr.mxu0 0.0
          %4978 = vmatpush2.msra.mxu0 0.0
          %4979 = vmatprep.subr.mxu0 0.0
          %4980 = vmatpush2.msra.mxu0 0.0
          %4981 = vmatprep.subr.mxu0 0.0
          %4982 = vmatpush2.msra.mxu0 0.0
          %4983 = vmatprep.subr.mxu0 0.0
          %4984 = vmatpush2.msra.mxu0 0.0
          %4985 = vmatprep.subr.mxu0 0.0
          %4986 = vmatpush2.msra.mxu0 0.0
          %4987 = vmatprep.subr.mxu0 0.0
          %4988 = vmatpush2.msra.mxu0 0.0
          %4989 = vmatprep.subr.mxu0 0.0
          %4990 = vmatpush2.msra.mxu0 0.0
          %4991 = vmatprep.subr.mxu0 0.0
          %4992 = vmatpush2.msra.mxu0 0.0
          %4993 = vmatprep.subr.mxu0 0.0
          %4994 = vmatpush2.msra.mxu0 0.0
          %4995 = vmatprep.subr.mxu0 0.0
          %4996 = vmatpush2.msra.mxu0 0.0
          %4997 = vmatprep.subr.mxu0 0.0
          %4998 = vmatpush2.msra.mxu0 0.0
          %4999 = vmatprep.subr.mxu0 0.0
          %5000 = vmatpush2.msra.mxu0 0.0
          %5001 = vmatprep.subr.mxu0 0.0
          %5002 = vmatpush2.msra.mxu0 0.0
          %5003 = vmatprep.subr.mxu0 0.0
          %5004 = vmatpush2.msra.mxu0 0.0
          %5005 = vmatprep.subr.mxu0 0.0
          %5006 = vmatpush2.msra.mxu0 0.0
          %5007 = vmatprep.mubr.f32.mxu0 0.0
          %5008 = vmatmul.mubr.f32.gmra.mxu0 %v4614
          %v5009 = vpop.f32.mrf.mxu0
          %v5010 = vadd.f32 0.0, %v5009
          %v5011 = vpop.f32.mrf.mxu0
          %5012 = vmatprep.mubr.f32.mxu0 0.0
          %5013 = vmatmul.mubr.f32.gmra.mxu0 %v4616
          %v5014 = vpop.f32.mrf.mxu0
          %v5015 = vadd.f32 0.0, %v5014
          %v5016 = vpop.f32.mrf.mxu0
          %5017 = vmatprep.mubr.f32.mxu0 0.0
          %5018 = vmatmul.mubr.f32.gmra.mxu0 %v4618
          %v5019 = vpop.f32.mrf.mxu0
          %v5020 = vadd.f32 0.0, %v5019
          %v5021 = vpop.f32.mrf.mxu0
          %5022 = vmatprep.mubr.f32.mxu0 0.0
          %5023 = vmatmul.mubr.f32.gmra.mxu0 %v4620
          %v5024 = vpop.f32.mrf.mxu0
          %v5025 = vadd.f32 0.0, %v5024
          %v5026 = vpop.f32.mrf.mxu0
          %5027 = vmatprep.mubr.f32.mxu0 0.0
          %5028 = vmatmul.mubr.f32.gmra.mxu0 %v4622
          %v5029 = vpop.f32.mrf.mxu0
          %v5030 = vadd.f32 0.0, %v5029
          %v5031 = vpop.f32.mrf.mxu0
          %5032 = vmatprep.mubr.f32.mxu0 0.0
          %5033 = vmatmul.mubr.f32.gmra.mxu0 %v4624
          %v5034 = vpop.f32.mrf.mxu0
          %v5035 = vadd.f32 0.0, %v5034
          %v5036 = vpop.f32.mrf.mxu0
          %5037 = vmatprep.mubr.f32.mxu0 0.0
          %5038 = vmatmul.mubr.f32.gmra.mxu0 %v4626
          %v5039 = vpop.f32.mrf.mxu0
          %v5040 = vadd.f32 0.0, %v5039
          %v5041 = vpop.f32.mrf.mxu0
          %5042 = vmatprep.mubr.f32.mxu0 0.0
          %5043 = vmatmul.mubr.f32.gmra.mxu0 %v4628
          %v5044 = vpop.f32.mrf.mxu0
          %v5045 = vadd.f32 0.0, %v5044
          %v5046 = vpop.f32.mrf.mxu0
          %5047 = vmatprep.mubr.f32.mxu0 0.0
          %5048 = vmatmul.mubr.f32.gmra.mxu0 %v4630
          %v5049 = vpop.f32.mrf.mxu0
          %v5050 = vadd.f32 0.0, %v5049
          %v5051 = vpop.f32.mrf.mxu0
          %5052 = vmatprep.mubr.f32.mxu0 0.0
          %5053 = vmatmul.mubr.f32.gmra.mxu0 %v4632
          %v5054 = vpop.f32.mrf.mxu0
          %v5055 = vadd.f32 0.0, %v5054
          %v5056 = vpop.f32.mrf.mxu0
          %5057 = vmatprep.mubr.f32.mxu0 0.0
          %5058 = vmatmul.mubr.f32.gmra.mxu0 %v4634
          %v5059 = vpop.f32.mrf.mxu0
          %v5060 = vadd.f32 0.0, %v5059
          %v5061 = vpop.f32.mrf.mxu0
          %5062 = vmatprep.mubr.f32.mxu0 0.0
          %5063 = vmatmul.mubr.f32.gmra.mxu0 %v4636
          %v5064 = vpop.f32.mrf.mxu0
          %v5065 = vadd.f32 0.0, %v5064
          %v5066 = vpop.f32.mrf.mxu0
          %5067 = vmatprep.mubr.f32.mxu0 0.0
          %5068 = vmatmul.mubr.f32.gmra.mxu0 %v4638
          %v5069 = vpop.f32.mrf.mxu0
          %v5070 = vadd.f32 0.0, %v5069
          %v5071 = vpop.f32.mrf.mxu0
          %5072 = vmatprep.mubr.f32.mxu0 0.0
          %5073 = vmatmul.mubr.f32.gmra.mxu0 %v4640
          %v5074 = vpop.f32.mrf.mxu0
          %v5075 = vadd.f32 0.0, %v5074
          %v5076 = vpop.f32.mrf.mxu0
          %5077 = vmatprep.mubr.f32.mxu0 0.0
          %5078 = vmatmul.mubr.f32.gmra.mxu0 %v4642
          %v5079 = vpop.f32.mrf.mxu0
          %v5080 = vadd.f32 0.0, %v5079
          %v5081 = vpop.f32.mrf.mxu0
          %5082 = vmatprep.mubr.f32.mxu0 0.0
          %5083 = vmatmul.mubr.f32.gmra.mxu0 %v4644
          %v5084 = vpop.f32.mrf.mxu0
          %v5085 = vadd.f32 0.0, %v5084
          %v5086 = vpop.f32.mrf.mxu0
          %5087 = vmatprep.mubr.f32.mxu0 0.0
          %5088 = vmatmul.mubr.f32.gmra.mxu0 %v4646
          %v5089 = vpop.f32.mrf.mxu0
          %v5090 = vadd.f32 0.0, %v5089
          %v5091 = vpop.f32.mrf.mxu0
          %5092 = vmatprep.mubr.f32.mxu0 0.0
          %5093 = vmatmul.mubr.f32.gmra.mxu0 %v4648
          %v5094 = vpop.f32.mrf.mxu0
          %v5095 = vadd.f32 0.0, %v5094
          %v5096 = vpop.f32.mrf.mxu0
          %5097 = vmatprep.mubr.f32.mxu0 0.0
          %5098 = vmatmul.mubr.f32.gmra.mxu0 %v4650
          %v5099 = vpop.f32.mrf.mxu0
          %v5100 = vadd.f32 0.0, %v5099
          %v5101 = vpop.f32.mrf.mxu0
          %5102 = vmatprep.mubr.f32.mxu0 0.0
          %5103 = vmatmul.mubr.f32.gmra.mxu0 %v4652
          %v5104 = vpop.f32.mrf.mxu0
          %v5105 = vadd.f32 0.0, %v5104
          %v5106 = vpop.f32.mrf.mxu0
          %5107 = vmatprep.mubr.f32.mxu0 0.0
          %5108 = vmatmul.mubr.f32.gmra.mxu0 %v4654
          %v5109 = vpop.f32.mrf.mxu0
          %v5110 = vadd.f32 0.0, %v5109
          %v5111 = vpop.f32.mrf.mxu0
          %5112 = vmatprep.mubr.f32.mxu0 0.0
          %5113 = vmatmul.mubr.f32.gmra.mxu0 %v4656
          %v5114 = vpop.f32.mrf.mxu0
          %v5115 = vadd.f32 0.0, %v5114
          %v5116 = vpop.f32.mrf.mxu0
          %5117 = vmatprep.mubr.f32.mxu0 0.0
          %5118 = vmatmul.mubr.f32.gmra.mxu0 %v4658
          %v5119 = vpop.f32.mrf.mxu0
          %v5120 = vadd.f32 0.0, %v5119
          %v5121 = vpop.f32.mrf.mxu0
          %5122 = vmatprep.mubr.f32.mxu0 0.0
          %5123 = vmatmul.mubr.f32.gmra.mxu0 %v4660
          %v5124 = vpop.f32.mrf.mxu0
          %v5125 = vadd.f32 0.0, %v5124
          %v5126 = vpop.f32.mrf.mxu0
          %5127 = vmatprep.mubr.f32.mxu0 0.0
          %5128 = vmatmul.mubr.f32.gmra.mxu0 %v4662
          %v5129 = vpop.f32.mrf.mxu0
          %v5130 = vadd.f32 0.0, %v5129
          %v5131 = vpop.f32.mrf.mxu0
          %5132 = vmatprep.mubr.f32.mxu0 0.0
          %5133 = vmatmul.mubr.f32.gmra.mxu0 %v4664
          %v5134 = vpop.f32.mrf.mxu0
          %v5135 = vadd.f32 0.0, %v5134
          %v5136 = vpop.f32.mrf.mxu0
          %5137 = vmatprep.mubr.f32.mxu0 0.0
          %5138 = vmatmul.mubr.f32.gmra.mxu0 %v4666
          %v5139 = vpop.f32.mrf.mxu0
          %v5140 = vadd.f32 0.0, %v5139
          %v5141 = vpop.f32.mrf.mxu0
          %5142 = vmatprep.mubr.f32.mxu0 0.0
          %5143 = vmatmul.mubr.f32.gmra.mxu0 %v4668
          %v5144 = vpop.f32.mrf.mxu0
          %v5145 = vadd.f32 0.0, %v5144
          %v5146 = vpop.f32.mrf.mxu0
          %5147 = vmatprep.mubr.f32.mxu0 0.0
          %5148 = vmatmul.mubr.f32.gmra.mxu0 %v4670
          %v5149 = vpop.f32.mrf.mxu0
          %v5150 = vadd.f32 0.0, %v5149
          %v5151 = vpop.f32.mrf.mxu0
          %5152 = vmatprep.mubr.f32.mxu0 0.0
          %5153 = vmatmul.mubr.f32.gmra.mxu0 %v4672
          %v5154 = vpop.f32.mrf.mxu0
          %v5155 = vadd.f32 0.0, %v5154
          %v5156 = vpop.f32.mrf.mxu0
          %5157 = vmatprep.mubr.f32.mxu0 0.0
          %5158 = vmatmul.mubr.f32.gmra.mxu0 %v4939
          %v5159 = vpop.f32.mrf.mxu0
          %v5160 = vadd.f32 0.0, %v5159
          %v5161 = vpop.f32.mrf.mxu0
          %5162 = vmatprep.mubr.f32.mxu0 0.0
          %5163 = vmatmul.mubr.f32.gmra.mxu0 %v4941
          %v5164 = vpop.f32.mrf.mxu0
          %v5165 = vadd.f32 0.0, %v5164
          %v5166 = vpop.f32.mrf.mxu0
          %5167 = vdwg.mxu0
          %v5168 = vadd.f32 %v4899, %v5010
          %v5169 = vadd.f32 %v4900, %v5015
          %v5170 = vadd.f32 %v4901, %v5020
          %v5171 = vadd.f32 %v4902, %v5025
          %v5172 = vadd.f32 %v4903, %v5030
          %v5173 = vadd.f32 %v4904, %v5035
          %v5174 = vadd.f32 %v4905, %v5040
          %v5175 = vadd.f32 %v4906, %v5045
          %v5176 = vadd.f32 %v4907, %v5050
          %v5177 = vadd.f32 %v4908, %v5055
          %v5178 = vadd.f32 %v4909, %v5060
          %v5179 = vadd.f32 %v4910, %v5065
          %v5180 = vadd.f32 %v4911, %v5070
          %v5181 = vadd.f32 %v4912, %v5075
          %v5182 = vadd.f32 %v4913, %v5080
          %v5183 = vadd.f32 %v4914, %v5085
          %v5184 = vadd.f32 %v4915, %v5090
          %v5185 = vadd.f32 %v4916, %v5095
          %v5186 = vadd.f32 %v4917, %v5100
          %v5187 = vadd.f32 %v4918, %v5105
          %v5188 = vadd.f32 %v4919, %v5110
          %v5189 = vadd.f32 %v4920, %v5115
          %v5190 = vadd.f32 %v4921, %v5120
          %v5191 = vadd.f32 %v4922, %v5125
          %v5192 = vadd.f32 %v4923, %v5130
          %v5193 = vadd.f32 %v4924, %v5135
          %v5194 = vadd.f32 %v4925, %v5140
          %v5195 = vadd.f32 %v4926, %v5145
          %v5196 = vadd.f32 %v4927, %v5150
          %v5197 = vadd.f32 %v4928, %v5155
          %v5198 = vadd.f32 %v4929, %v5160
          %v5199 = vadd.f32 %v4930, %v5165
          %s5200 = scalar_lea.vmem %s1, 32
          %v5201 = vld [vmem:[%s5200] sm:$0xff]
          %vm5202 = vcmask 1044480
          %v5203 = vrot.slane %v3826, 3
          %v5204 = vrot.slane %v3827, 3
          %v5205 = vsel %vm5202, %v5203, %v5204
          %v5206 = vrot.slane %v3828, 3
          %v5207 = vsel %vm5202, %v5204, %v5206
          %v5208 = vrot.slane %v3829, 3
          %v5209 = vsel %vm5202, %v5206, %v5208
          %v5210 = vrot.slane %v3830, 3
          %v5211 = vsel %vm5202, %v5208, %v5210
          %v5212 = vrot.slane %v3831, 3
          %v5213 = vsel %vm5202, %v5210, %v5212
          %v5214 = vrot.slane %v3832, 3
          %v5215 = vsel %vm5202, %v5212, %v5214
          %v5216 = vrot.slane %v3833, 3
          %v5217 = vsel %vm5202, %v5214, %v5216
          %v5218 = vrot.slane %v3834, 3
          %v5219 = vsel %vm5202, %v5216, %v5218
          %v5220 = vrot.slane %v3835, 3
          %v5221 = vsel %vm5202, %v5218, %v5220
          %v5222 = vrot.slane %v3836, 3
          %v5223 = vsel %vm5202, %v5220, %v5222
          %v5224 = vrot.slane %v3837, 3
          %v5225 = vsel %vm5202, %v5222, %v5224
          %v5226 = vrot.slane %v3838, 3
          %v5227 = vsel %vm5202, %v5224, %v5226
          %v5228 = vrot.slane %v3839, 3
          %v5229 = vsel %vm5202, %v5226, %v5228
          %v5230 = vrot.slane %v3840, 3
          %v5231 = vsel %vm5202, %v5228, %v5230
          %v5232 = vrot.slane %v3841, 3
          %v5233 = vsel %vm5202, %v5230, %v5232
          %v5234 = vrot.slane %v3842, 3
          %v5235 = vsel %vm5202, %v5232, %v5234
          %v5236 = vrot.slane %v3843, 3
          %v5237 = vsel %vm5202, %v5234, %v5236
          %v5238 = vrot.slane %v3844, 3
          %v5239 = vsel %vm5202, %v5236, %v5238
          %v5240 = vrot.slane %v3845, 3
          %v5241 = vsel %vm5202, %v5238, %v5240
          %v5242 = vrot.slane %v3846, 3
          %v5243 = vsel %vm5202, %v5240, %v5242
          %v5244 = vrot.slane %v3847, 3
          %v5245 = vsel %vm5202, %v5242, %v5244
          %v5246 = vrot.slane %v3848, 3
          %v5247 = vsel %vm5202, %v5244, %v5246
          %v5248 = vrot.slane %v3849, 3
          %v5249 = vsel %vm5202, %v5246, %v5248
          %v5250 = vrot.slane %v3850, 3
          %v5251 = vsel %vm5202, %v5248, %v5250
          %v5252 = vrot.slane %v3851, 3
          %v5253 = vsel %vm5202, %v5250, %v5252
          %v5254 = vrot.slane %v3852, 3
          %v5255 = vsel %vm5202, %v5252, %v5254
          %v5256 = vrot.slane %v3853, 3
          %v5257 = vsel %vm5202, %v5254, %v5256
          %v5258 = vrot.slane %v3854, 3
          %v5259 = vsel %vm5202, %v5256, %v5258
          %v5260 = vrot.slane %v3855, 3
          %v5261 = vsel %vm5202, %v5258, %v5260
          %v5262 = vrot.slane %v3856, 3
          %v5263 = vsel %vm5202, %v5260, %v5262
          %v5264 = vrot.slane %v3857, 3
          %v5265 = vsel %vm5202, %v5262, %v5264
          %v5266 = vrot.slane %v3858, 3
          %v5267 = vsel %vm5202, %v5264, %v5266
          %v5268 = vsel %vm3963, %v5205, 0
          %v5270 = vsel %vm3963, %v5207, 0
          %v5272 = vsel %vm3963, %v5209, 0
          %v5274 = vsel %vm3963, %v5211, 0
          %v5276 = vsel %vm3963, %v5213, 0
          %v5278 = vsel %vm3963, %v5215, 0
          %v5280 = vsel %vm3963, %v5217, 0
          %v5282 = vsel %vm3963, %v5219, 0
          %v5284 = vsel %vm3963, %v5221, 0
          %v5286 = vsel %vm3963, %v5223, 0
          %v5288 = vsel %vm3963, %v5225, 0
          %v5290 = vsel %vm3963, %v5227, 0
          %v5292 = vsel %vm3963, %v5229, 0
          %v5294 = vsel %vm3963, %v5231, 0
          %v5296 = vsel %vm3963, %v5233, 0
          %v5298 = vsel %vm3963, %v5235, 0
          %v5300 = vsel %vm3963, %v5237, 0
          %v5302 = vsel %vm3963, %v5239, 0
          %v5304 = vsel %vm3963, %v5241, 0
          %v5306 = vsel %vm3963, %v5243, 0
          %v5308 = vsel %vm3963, %v5245, 0
          %v5310 = vsel %vm3963, %v5247, 0
          %v5312 = vsel %vm3963, %v5249, 0
          %v5314 = vsel %vm3963, %v5251, 0
          %v5316 = vsel %vm3963, %v5253, 0
          %v5318 = vsel %vm3963, %v5255, 0
          %v5320 = vsel %vm3963, %v5257, 0
          %v5322 = vsel %vm3963, %v5259, 0
          %v5324 = vsel %vm3963, %v5261, 0
          %v5326 = vsel %vm3963, %v5263, 0
          %v5328 = vsel %vm3963, %v5265, 0
          %v5330 = vsel %vm3963, %v5267, 0
          %5332 = vmatprep.subr.mxu0 0.0
          %5333 = vmatpush1.msra.mxu0 0.0
          %5334 = vmatprep.subr.mxu0 0.0
          %5335 = vmatpush1.msra.mxu0 0.0
          %5336 = vmatprep.subr.mxu0 0.0
          %5337 = vmatpush1.msra.mxu0 0.0
          %5338 = vmatprep.subr.mxu0 0.0
          %5339 = vmatpush1.msra.mxu0 0.0
          %5340 = vmatprep.subr.mxu0 0.0
          %5341 = vmatpush1.msra.mxu0 0.0
          %5342 = vmatprep.subr.mxu0 0.0
          %5343 = vmatpush1.msra.mxu0 0.0
          %5344 = vmatprep.subr.mxu0 0.0
          %5345 = vmatpush1.msra.mxu0 0.0
          %5346 = vmatprep.subr.mxu0 0.0
          %5347 = vmatpush1.msra.mxu0 0.0
          %5348 = vmatprep.subr.mxu0 0.0
          %5349 = vmatpush1.msra.mxu0 0.0
          %5350 = vmatprep.subr.mxu0 0.0
          %5351 = vmatpush1.msra.mxu0 0.0
          %5352 = vmatprep.subr.mxu0 0.0
          %5353 = vmatpush1.msra.mxu0 0.0
          %5354 = vmatprep.subr.mxu0 0.0
          %5355 = vmatpush1.msra.mxu0 0.0
          %5356 = vmatprep.subr.mxu0 0.0
          %5357 = vmatpush1.msra.mxu0 0.0
          %5358 = vmatprep.subr.mxu0 0.0
          %5359 = vmatpush1.msra.mxu0 0.0
          %5360 = vmatprep.subr.mxu0 0.0
          %5361 = vmatpush1.msra.mxu0 0.0
          %5362 = vmatprep.subr.mxu0 0.0
          %5363 = vmatpush1.msra.mxu0 %v5201
          %5364 = vmatprep.subr.mxu0 0.0
          %5365 = vmatpush2.msra.mxu0 0.0
          %5366 = vmatprep.subr.mxu0 0.0
          %5367 = vmatpush2.msra.mxu0 0.0
          %5368 = vmatprep.subr.mxu0 0.0
          %5369 = vmatpush2.msra.mxu0 0.0
          %5370 = vmatprep.subr.mxu0 0.0
          %5371 = vmatpush2.msra.mxu0 0.0
          %5372 = vmatprep.subr.mxu0 0.0
          %5373 = vmatpush2.msra.mxu0 0.0
          %5374 = vmatprep.subr.mxu0 0.0
          %5375 = vmatpush2.msra.mxu0 0.0
          %5376 = vmatprep.subr.mxu0 0.0
          %5377 = vmatpush2.msra.mxu0 0.0
          %5378 = vmatprep.subr.mxu0 0.0
          %5379 = vmatpush2.msra.mxu0 0.0
          %5380 = vmatprep.subr.mxu0 0.0
          %5381 = vmatpush2.msra.mxu0 0.0
          %5382 = vmatprep.subr.mxu0 0.0
          %5383 = vmatpush2.msra.mxu0 0.0
          %5384 = vmatprep.subr.mxu0 0.0
          %5385 = vmatpush2.msra.mxu0 0.0
          %5386 = vmatprep.subr.mxu0 0.0
          %5387 = vmatpush2.msra.mxu0 0.0
          %5388 = vmatprep.subr.mxu0 0.0
          %5389 = vmatpush2.msra.mxu0 0.0
          %5390 = vmatprep.subr.mxu0 0.0
          %5391 = vmatpush2.msra.mxu0 0.0
          %5392 = vmatprep.subr.mxu0 0.0
          %5393 = vmatpush2.msra.mxu0 0.0
          %5394 = vmatprep.subr.mxu0 0.0
          %5395 = vmatpush2.msra.mxu0 0.0
          %5396 = vmatprep.mubr.f32.mxu0 0.0
          %5397 = vmatmul.mubr.f32.gmra.mxu0 %v5268
          %v5398 = vpop.f32.mrf.mxu0
          %v5399 = vadd.f32 0.0, %v5398
          %v5400 = vpop.f32.mrf.mxu0
          %5401 = vmatprep.mubr.f32.mxu0 0.0
          %5402 = vmatmul.mubr.f32.gmra.mxu0 %v5270
          %v5403 = vpop.f32.mrf.mxu0
          %v5404 = vadd.f32 0.0, %v5403
          %v5405 = vpop.f32.mrf.mxu0
          %5406 = vmatprep.mubr.f32.mxu0 0.0
          %5407 = vmatmul.mubr.f32.gmra.mxu0 %v5272
          %v5408 = vpop.f32.mrf.mxu0
          %v5409 = vadd.f32 0.0, %v5408
          %v5410 = vpop.f32.mrf.mxu0
          %5411 = vmatprep.mubr.f32.mxu0 0.0
          %5412 = vmatmul.mubr.f32.gmra.mxu0 %v5274
          %v5413 = vpop.f32.mrf.mxu0
          %v5414 = vadd.f32 0.0, %v5413
          %v5415 = vpop.f32.mrf.mxu0
          %5416 = vmatprep.mubr.f32.mxu0 0.0
          %5417 = vmatmul.mubr.f32.gmra.mxu0 %v5276
          %v5418 = vpop.f32.mrf.mxu0
          %v5419 = vadd.f32 0.0, %v5418
          %v5420 = vpop.f32.mrf.mxu0
          %5421 = vmatprep.mubr.f32.mxu0 0.0
          %5422 = vmatmul.mubr.f32.gmra.mxu0 %v5278
          %v5423 = vpop.f32.mrf.mxu0
          %v5424 = vadd.f32 0.0, %v5423
          %v5425 = vpop.f32.mrf.mxu0
          %5426 = vmatprep.mubr.f32.mxu0 0.0
          %5427 = vmatmul.mubr.f32.gmra.mxu0 %v5280
          %v5428 = vpop.f32.mrf.mxu0
          %v5429 = vadd.f32 0.0, %v5428
          %v5430 = vpop.f32.mrf.mxu0
          %5431 = vmatprep.mubr.f32.mxu0 0.0
          %5432 = vmatmul.mubr.f32.gmra.mxu0 %v5282
          %v5433 = vpop.f32.mrf.mxu0
          %v5434 = vadd.f32 0.0, %v5433
          %v5435 = vpop.f32.mrf.mxu0
          %5436 = vmatprep.mubr.f32.mxu0 0.0
          %5437 = vmatmul.mubr.f32.gmra.mxu0 %v5284
          %v5438 = vpop.f32.mrf.mxu0
          %v5439 = vadd.f32 0.0, %v5438
          %v5440 = vpop.f32.mrf.mxu0
          %5441 = vmatprep.mubr.f32.mxu0 0.0
          %5442 = vmatmul.mubr.f32.gmra.mxu0 %v5286
          %v5443 = vpop.f32.mrf.mxu0
          %v5444 = vadd.f32 0.0, %v5443
          %v5445 = vpop.f32.mrf.mxu0
          %5446 = vmatprep.mubr.f32.mxu0 0.0
          %5447 = vmatmul.mubr.f32.gmra.mxu0 %v5288
          %v5448 = vpop.f32.mrf.mxu0
          %v5449 = vadd.f32 0.0, %v5448
          %v5450 = vpop.f32.mrf.mxu0
          %5451 = vmatprep.mubr.f32.mxu0 0.0
          %5452 = vmatmul.mubr.f32.gmra.mxu0 %v5290
          %v5453 = vpop.f32.mrf.mxu0
          %v5454 = vadd.f32 0.0, %v5453
          %v5455 = vpop.f32.mrf.mxu0
          %5456 = vmatprep.mubr.f32.mxu0 0.0
          %5457 = vmatmul.mubr.f32.gmra.mxu0 %v5292
          %v5458 = vpop.f32.mrf.mxu0
          %v5459 = vadd.f32 0.0, %v5458
          %v5460 = vpop.f32.mrf.mxu0
          %5461 = vmatprep.mubr.f32.mxu0 0.0
          %5462 = vmatmul.mubr.f32.gmra.mxu0 %v5294
          %v5463 = vpop.f32.mrf.mxu0
          %v5464 = vadd.f32 0.0, %v5463
          %v5465 = vpop.f32.mrf.mxu0
          %5466 = vmatprep.mubr.f32.mxu0 0.0
          %5467 = vmatmul.mubr.f32.gmra.mxu0 %v5296
          %v5468 = vpop.f32.mrf.mxu0
          %v5469 = vadd.f32 0.0, %v5468
          %v5470 = vpop.f32.mrf.mxu0
          %5471 = vmatprep.mubr.f32.mxu0 0.0
          %5472 = vmatmul.mubr.f32.gmra.mxu0 %v5298
          %v5473 = vpop.f32.mrf.mxu0
          %v5474 = vadd.f32 0.0, %v5473
          %v5475 = vpop.f32.mrf.mxu0
          %5476 = vmatprep.mubr.f32.mxu0 0.0
          %5477 = vmatmul.mubr.f32.gmra.mxu0 %v5300
          %v5478 = vpop.f32.mrf.mxu0
          %v5479 = vadd.f32 0.0, %v5478
          %v5480 = vpop.f32.mrf.mxu0
          %5481 = vmatprep.mubr.f32.mxu0 0.0
          %5482 = vmatmul.mubr.f32.gmra.mxu0 %v5302
          %v5483 = vpop.f32.mrf.mxu0
          %v5484 = vadd.f32 0.0, %v5483
          %v5485 = vpop.f32.mrf.mxu0
          %5486 = vmatprep.mubr.f32.mxu0 0.0
          %5487 = vmatmul.mubr.f32.gmra.mxu0 %v5304
          %v5488 = vpop.f32.mrf.mxu0
          %v5489 = vadd.f32 0.0, %v5488
          %v5490 = vpop.f32.mrf.mxu0
          %5491 = vmatprep.mubr.f32.mxu0 0.0
          %5492 = vmatmul.mubr.f32.gmra.mxu0 %v5306
          %v5493 = vpop.f32.mrf.mxu0
          %v5494 = vadd.f32 0.0, %v5493
          %v5495 = vpop.f32.mrf.mxu0
          %5496 = vmatprep.mubr.f32.mxu0 0.0
          %5497 = vmatmul.mubr.f32.gmra.mxu0 %v5308
          %v5498 = vpop.f32.mrf.mxu0
          %v5499 = vadd.f32 0.0, %v5498
          %v5500 = vpop.f32.mrf.mxu0
          %5501 = vmatprep.mubr.f32.mxu0 0.0
          %5502 = vmatmul.mubr.f32.gmra.mxu0 %v5310
          %v5503 = vpop.f32.mrf.mxu0
          %v5504 = vadd.f32 0.0, %v5503
          %v5505 = vpop.f32.mrf.mxu0
          %5506 = vmatprep.mubr.f32.mxu0 0.0
          %5507 = vmatmul.mubr.f32.gmra.mxu0 %v5312
          %v5508 = vpop.f32.mrf.mxu0
          %v5509 = vadd.f32 0.0, %v5508
          %v5510 = vpop.f32.mrf.mxu0
          %5511 = vmatprep.mubr.f32.mxu0 0.0
          %5512 = vmatmul.mubr.f32.gmra.mxu0 %v5314
          %v5513 = vpop.f32.mrf.mxu0
          %v5514 = vadd.f32 0.0, %v5513
          %v5515 = vpop.f32.mrf.mxu0
          %5516 = vmatprep.mubr.f32.mxu0 0.0
          %5517 = vmatmul.mubr.f32.gmra.mxu0 %v5316
          %v5518 = vpop.f32.mrf.mxu0
          %v5519 = vadd.f32 0.0, %v5518
          %v5520 = vpop.f32.mrf.mxu0
          %5521 = vmatprep.mubr.f32.mxu0 0.0
          %5522 = vmatmul.mubr.f32.gmra.mxu0 %v5318
          %v5523 = vpop.f32.mrf.mxu0
          %v5524 = vadd.f32 0.0, %v5523
          %v5525 = vpop.f32.mrf.mxu0
          %5526 = vmatprep.mubr.f32.mxu0 0.0
          %5527 = vmatmul.mubr.f32.gmra.mxu0 %v5320
          %v5528 = vpop.f32.mrf.mxu0
          %v5529 = vadd.f32 0.0, %v5528
          %v5530 = vpop.f32.mrf.mxu0
          %5531 = vmatprep.mubr.f32.mxu0 0.0
          %5532 = vmatmul.mubr.f32.gmra.mxu0 %v5322
          %v5533 = vpop.f32.mrf.mxu0
          %v5534 = vadd.f32 0.0, %v5533
          %v5535 = vpop.f32.mrf.mxu0
          %5536 = vmatprep.mubr.f32.mxu0 0.0
          %5537 = vmatmul.mubr.f32.gmra.mxu0 %v5324
          %v5538 = vpop.f32.mrf.mxu0
          %v5539 = vadd.f32 0.0, %v5538
          %v5540 = vpop.f32.mrf.mxu0
          %5541 = vmatprep.mubr.f32.mxu0 0.0
          %5542 = vmatmul.mubr.f32.gmra.mxu0 %v5326
          %v5543 = vpop.f32.mrf.mxu0
          %v5544 = vadd.f32 0.0, %v5543
          %v5545 = vpop.f32.mrf.mxu0
          %5546 = vmatprep.mubr.f32.mxu0 0.0
          %5547 = vmatmul.mubr.f32.gmra.mxu0 %v5328
          %v5548 = vpop.f32.mrf.mxu0
          %v5549 = vadd.f32 0.0, %v5548
          %v5550 = vpop.f32.mrf.mxu0
          %5551 = vmatprep.mubr.f32.mxu0 0.0
          %5552 = vmatmul.mubr.f32.gmra.mxu0 %v5330
          %v5553 = vpop.f32.mrf.mxu0
          %v5554 = vadd.f32 0.0, %v5553
          %v5555 = vpop.f32.mrf.mxu0
          %5556 = vdwg.mxu0
          %v5557 = vadd.f32 %v5168, %v5399
          %v5558 = vadd.f32 %v5169, %v5404
          %v5559 = vadd.f32 %v5170, %v5409
          %v5560 = vadd.f32 %v5171, %v5414
          %v5561 = vadd.f32 %v5172, %v5419
          %v5562 = vadd.f32 %v5173, %v5424
          %v5563 = vadd.f32 %v5174, %v5429
          %v5564 = vadd.f32 %v5175, %v5434
          %v5565 = vadd.f32 %v5176, %v5439
          %v5566 = vadd.f32 %v5177, %v5444
          %v5567 = vadd.f32 %v5178, %v5449
          %v5568 = vadd.f32 %v5179, %v5454
          %v5569 = vadd.f32 %v5180, %v5459
          %v5570 = vadd.f32 %v5181, %v5464
          %v5571 = vadd.f32 %v5182, %v5469
          %v5572 = vadd.f32 %v5183, %v5474
          %v5573 = vadd.f32 %v5184, %v5479
          %v5574 = vadd.f32 %v5185, %v5484
          %v5575 = vadd.f32 %v5186, %v5489
          %v5576 = vadd.f32 %v5187, %v5494
          %v5577 = vadd.f32 %v5188, %v5499
          %v5578 = vadd.f32 %v5189, %v5504
          %v5579 = vadd.f32 %v5190, %v5509
          %v5580 = vadd.f32 %v5191, %v5514
          %v5581 = vadd.f32 %v5192, %v5519
          %v5582 = vadd.f32 %v5193, %v5524
          %v5583 = vadd.f32 %v5194, %v5529
          %v5584 = vadd.f32 %v5195, %v5534
          %v5585 = vadd.f32 %v5196, %v5539
          %v5586 = vadd.f32 %v5197, %v5544
          %v5587 = vadd.f32 %v5198, %v5549
          %v5588 = vadd.f32 %v5199, %v5554
          %s5589 = scalar_lea.vmem %s1, 40
          %v5590 = vld [vmem:[%s5589] sm:$0xff]
          %vm5591 = vcmask 1043456
          %v5592 = vrot.slane %v3826, 4
          %v5593 = vrot.slane %v3827, 4
          %v5594 = vsel %vm5591, %v5592, %v5593
          %v5595 = vrot.slane %v3828, 4
          %v5596 = vsel %vm5591, %v5593, %v5595
          %v5597 = vrot.slane %v3829, 4
          %v5598 = vsel %vm5591, %v5595, %v5597
          %v5599 = vrot.slane %v3830, 4
          %v5600 = vsel %vm5591, %v5597, %v5599
          %v5601 = vrot.slane %v3831, 4
          %v5602 = vsel %vm5591, %v5599, %v5601
          %v5603 = vrot.slane %v3832, 4
          %v5604 = vsel %vm5591, %v5601, %v5603
          %v5605 = vrot.slane %v3833, 4
          %v5606 = vsel %vm5591, %v5603, %v5605
          %v5607 = vrot.slane %v3834, 4
          %v5608 = vsel %vm5591, %v5605, %v5607
          %v5609 = vrot.slane %v3835, 4
          %v5610 = vsel %vm5591, %v5607, %v5609
          %v5611 = vrot.slane %v3836, 4
          %v5612 = vsel %vm5591, %v5609, %v5611
          %v5613 = vrot.slane %v3837, 4
          %v5614 = vsel %vm5591, %v5611, %v5613
          %v5615 = vrot.slane %v3838, 4
          %v5616 = vsel %vm5591, %v5613, %v5615
          %v5617 = vrot.slane %v3839, 4
          %v5618 = vsel %vm5591, %v5615, %v5617
          %v5619 = vrot.slane %v3840, 4
          %v5620 = vsel %vm5591, %v5617, %v5619
          %v5621 = vrot.slane %v3841, 4
          %v5622 = vsel %vm5591, %v5619, %v5621
          %v5623 = vrot.slane %v3842, 4
          %v5624 = vsel %vm5591, %v5621, %v5623
          %v5625 = vrot.slane %v3843, 4
          %v5626 = vsel %vm5591, %v5623, %v5625
          %v5627 = vrot.slane %v3844, 4
          %v5628 = vsel %vm5591, %v5625, %v5627
          %v5629 = vrot.slane %v3845, 4
          %v5630 = vsel %vm5591, %v5627, %v5629
          %v5631 = vrot.slane %v3846, 4
          %v5632 = vsel %vm5591, %v5629, %v5631
          %v5633 = vrot.slane %v3847, 4
          %v5634 = vsel %vm5591, %v5631, %v5633
          %v5635 = vrot.slane %v3848, 4
          %v5636 = vsel %vm5591, %v5633, %v5635
          %v5637 = vrot.slane %v3849, 4
          %v5638 = vsel %vm5591, %v5635, %v5637
          %v5639 = vrot.slane %v3850, 4
          %v5640 = vsel %vm5591, %v5637, %v5639
          %v5641 = vrot.slane %v3851, 4
          %v5642 = vsel %vm5591, %v5639, %v5641
          %v5643 = vrot.slane %v3852, 4
          %v5644 = vsel %vm5591, %v5641, %v5643
          %v5645 = vrot.slane %v3853, 4
          %v5646 = vsel %vm5591, %v5643, %v5645
          %v5647 = vrot.slane %v3854, 4
          %v5648 = vsel %vm5591, %v5645, %v5647
          %v5649 = vrot.slane %v3855, 4
          %v5650 = vsel %vm5591, %v5647, %v5649
          %v5651 = vrot.slane %v3856, 4
          %v5652 = vsel %vm5591, %v5649, %v5651
          %v5653 = vrot.slane %v3857, 4
          %v5654 = vsel %vm5591, %v5651, %v5653
          %v5655 = vrot.slane %v3858, 4
          %v5656 = vsel %vm5591, %v5653, %v5655
          %v5657 = vsel %vm3963, %v5594, 0
          %v5659 = vsel %vm3963, %v5596, 0
          %v5661 = vsel %vm3963, %v5598, 0
          %v5663 = vsel %vm3963, %v5600, 0
          %v5665 = vsel %vm3963, %v5602, 0
          %v5667 = vsel %vm3963, %v5604, 0
          %v5669 = vsel %vm3963, %v5606, 0
          %v5671 = vsel %vm3963, %v5608, 0
          %v5673 = vsel %vm3963, %v5610, 0
          %v5675 = vsel %vm3963, %v5612, 0
          %v5677 = vsel %vm3963, %v5614, 0
          %v5679 = vsel %vm3963, %v5616, 0
          %v5681 = vsel %vm3963, %v5618, 0
          %v5683 = vsel %vm3963, %v5620, 0
          %v5685 = vsel %vm3963, %v5622, 0
          %v5687 = vsel %vm3963, %v5624, 0
          %v5689 = vsel %vm3963, %v5626, 0
          %v5691 = vsel %vm3963, %v5628, 0
          %v5693 = vsel %vm3963, %v5630, 0
          %v5695 = vsel %vm3963, %v5632, 0
          %v5697 = vsel %vm3963, %v5634, 0
          %v5699 = vsel %vm3963, %v5636, 0
          %v5701 = vsel %vm3963, %v5638, 0
          %v5703 = vsel %vm3963, %v5640, 0
          %v5705 = vsel %vm3963, %v5642, 0
          %v5707 = vsel %vm3963, %v5644, 0
          %v5709 = vsel %vm3963, %v5646, 0
          %v5711 = vsel %vm3963, %v5648, 0
          %v5713 = vsel %vm3963, %v5650, 0
          %v5715 = vsel %vm3963, %v5652, 0
          %v5717 = vsel %vm3963, %v5654, 0
          %v5719 = vsel %vm3963, %v5656, 0
          %5721 = vmatprep.subr.mxu0 0.0
          %5722 = vmatpush1.msra.mxu0 0.0
          %5723 = vmatprep.subr.mxu0 0.0
          %5724 = vmatpush1.msra.mxu0 0.0
          %5725 = vmatprep.subr.mxu0 0.0
          %5726 = vmatpush1.msra.mxu0 0.0
          %5727 = vmatprep.subr.mxu0 0.0
          %5728 = vmatpush1.msra.mxu0 0.0
          %5729 = vmatprep.subr.mxu0 0.0
          %5730 = vmatpush1.msra.mxu0 0.0
          %5731 = vmatprep.subr.mxu0 0.0
          %5732 = vmatpush1.msra.mxu0 0.0
          %5733 = vmatprep.subr.mxu0 0.0
          %5734 = vmatpush1.msra.mxu0 0.0
          %5735 = vmatprep.subr.mxu0 0.0
          %5736 = vmatpush1.msra.mxu0 0.0
          %5737 = vmatprep.subr.mxu0 0.0
          %5738 = vmatpush1.msra.mxu0 0.0
          %5739 = vmatprep.subr.mxu0 0.0
          %5740 = vmatpush1.msra.mxu0 0.0
          %5741 = vmatprep.subr.mxu0 0.0
          %5742 = vmatpush1.msra.mxu0 0.0
          %5743 = vmatprep.subr.mxu0 0.0
          %5744 = vmatpush1.msra.mxu0 0.0
          %5745 = vmatprep.subr.mxu0 0.0
          %5746 = vmatpush1.msra.mxu0 0.0
          %5747 = vmatprep.subr.mxu0 0.0
          %5748 = vmatpush1.msra.mxu0 0.0
          %5749 = vmatprep.subr.mxu0 0.0
          %5750 = vmatpush1.msra.mxu0 0.0
          %5751 = vmatprep.subr.mxu0 0.0
          %5752 = vmatpush1.msra.mxu0 %v5590
          %5753 = vmatprep.subr.mxu0 0.0
          %5754 = vmatpush2.msra.mxu0 0.0
          %5755 = vmatprep.subr.mxu0 0.0
          %5756 = vmatpush2.msra.mxu0 0.0
          %5757 = vmatprep.subr.mxu0 0.0
          %5758 = vmatpush2.msra.mxu0 0.0
          %5759 = vmatprep.subr.mxu0 0.0
          %5760 = vmatpush2.msra.mxu0 0.0
          %5761 = vmatprep.subr.mxu0 0.0
          %5762 = vmatpush2.msra.mxu0 0.0
          %5763 = vmatprep.subr.mxu0 0.0
          %5764 = vmatpush2.msra.mxu0 0.0
          %5765 = vmatprep.subr.mxu0 0.0
          %5766 = vmatpush2.msra.mxu0 0.0
          %5767 = vmatprep.subr.mxu0 0.0
          %5768 = vmatpush2.msra.mxu0 0.0
          %5769 = vmatprep.subr.mxu0 0.0
          %5770 = vmatpush2.msra.mxu0 0.0
          %5771 = vmatprep.subr.mxu0 0.0
          %5772 = vmatpush2.msra.mxu0 0.0
          %5773 = vmatprep.subr.mxu0 0.0
          %5774 = vmatpush2.msra.mxu0 0.0
          %5775 = vmatprep.subr.mxu0 0.0
          %5776 = vmatpush2.msra.mxu0 0.0
          %5777 = vmatprep.subr.mxu0 0.0
          %5778 = vmatpush2.msra.mxu0 0.0
          %5779 = vmatprep.subr.mxu0 0.0
          %5780 = vmatpush2.msra.mxu0 0.0
          %5781 = vmatprep.subr.mxu0 0.0
          %5782 = vmatpush2.msra.mxu0 0.0
          %5783 = vmatprep.subr.mxu0 0.0
          %5784 = vmatpush2.msra.mxu0 0.0
          %5785 = vmatprep.mubr.f32.mxu0 0.0
          %5786 = vmatmul.mubr.f32.gmra.mxu0 %v5657
          %v5787 = vpop.f32.mrf.mxu0
          %v5788 = vadd.f32 0.0, %v5787
          %v5789 = vpop.f32.mrf.mxu0
          %5790 = vmatprep.mubr.f32.mxu0 0.0
          %5791 = vmatmul.mubr.f32.gmra.mxu0 %v5659
          %v5792 = vpop.f32.mrf.mxu0
          %v5793 = vadd.f32 0.0, %v5792
          %v5794 = vpop.f32.mrf.mxu0
          %5795 = vmatprep.mubr.f32.mxu0 0.0
          %5796 = vmatmul.mubr.f32.gmra.mxu0 %v5661
          %v5797 = vpop.f32.mrf.mxu0
          %v5798 = vadd.f32 0.0, %v5797
          %v5799 = vpop.f32.mrf.mxu0
          %5800 = vmatprep.mubr.f32.mxu0 0.0
          %5801 = vmatmul.mubr.f32.gmra.mxu0 %v5663
          %v5802 = vpop.f32.mrf.mxu0
          %v5803 = vadd.f32 0.0, %v5802
          %v5804 = vpop.f32.mrf.mxu0
          %5805 = vmatprep.mubr.f32.mxu0 0.0
          %5806 = vmatmul.mubr.f32.gmra.mxu0 %v5665
          %v5807 = vpop.f32.mrf.mxu0
          %v5808 = vadd.f32 0.0, %v5807
          %v5809 = vpop.f32.mrf.mxu0
          %5810 = vmatprep.mubr.f32.mxu0 0.0
          %5811 = vmatmul.mubr.f32.gmra.mxu0 %v5667
          %v5812 = vpop.f32.mrf.mxu0
          %v5813 = vadd.f32 0.0, %v5812
          %v5814 = vpop.f32.mrf.mxu0
          %5815 = vmatprep.mubr.f32.mxu0 0.0
          %5816 = vmatmul.mubr.f32.gmra.mxu0 %v5669
          %v5817 = vpop.f32.mrf.mxu0
          %v5818 = vadd.f32 0.0, %v5817
          %v5819 = vpop.f32.mrf.mxu0
          %5820 = vmatprep.mubr.f32.mxu0 0.0
          %5821 = vmatmul.mubr.f32.gmra.mxu0 %v5671
          %v5822 = vpop.f32.mrf.mxu0
          %v5823 = vadd.f32 0.0, %v5822
          %v5824 = vpop.f32.mrf.mxu0
          %5825 = vmatprep.mubr.f32.mxu0 0.0
          %5826 = vmatmul.mubr.f32.gmra.mxu0 %v5673
          %v5827 = vpop.f32.mrf.mxu0
          %v5828 = vadd.f32 0.0, %v5827
          %v5829 = vpop.f32.mrf.mxu0
          %5830 = vmatprep.mubr.f32.mxu0 0.0
          %5831 = vmatmul.mubr.f32.gmra.mxu0 %v5675
          %v5832 = vpop.f32.mrf.mxu0
          %v5833 = vadd.f32 0.0, %v5832
          %v5834 = vpop.f32.mrf.mxu0
          %5835 = vmatprep.mubr.f32.mxu0 0.0
          %5836 = vmatmul.mubr.f32.gmra.mxu0 %v5677
          %v5837 = vpop.f32.mrf.mxu0
          %v5838 = vadd.f32 0.0, %v5837
          %v5839 = vpop.f32.mrf.mxu0
          %5840 = vmatprep.mubr.f32.mxu0 0.0
          %5841 = vmatmul.mubr.f32.gmra.mxu0 %v5679
          %v5842 = vpop.f32.mrf.mxu0
          %v5843 = vadd.f32 0.0, %v5842
          %v5844 = vpop.f32.mrf.mxu0
          %5845 = vmatprep.mubr.f32.mxu0 0.0
          %5846 = vmatmul.mubr.f32.gmra.mxu0 %v5681
          %v5847 = vpop.f32.mrf.mxu0
          %v5848 = vadd.f32 0.0, %v5847
          %v5849 = vpop.f32.mrf.mxu0
          %5850 = vmatprep.mubr.f32.mxu0 0.0
          %5851 = vmatmul.mubr.f32.gmra.mxu0 %v5683
          %v5852 = vpop.f32.mrf.mxu0
          %v5853 = vadd.f32 0.0, %v5852
          %v5854 = vpop.f32.mrf.mxu0
          %5855 = vmatprep.mubr.f32.mxu0 0.0
          %5856 = vmatmul.mubr.f32.gmra.mxu0 %v5685
          %v5857 = vpop.f32.mrf.mxu0
          %v5858 = vadd.f32 0.0, %v5857
          %v5859 = vpop.f32.mrf.mxu0
          %5860 = vmatprep.mubr.f32.mxu0 0.0
          %5861 = vmatmul.mubr.f32.gmra.mxu0 %v5687
          %v5862 = vpop.f32.mrf.mxu0
          %v5863 = vadd.f32 0.0, %v5862
          %v5864 = vpop.f32.mrf.mxu0
          %5865 = vmatprep.mubr.f32.mxu0 0.0
          %5866 = vmatmul.mubr.f32.gmra.mxu0 %v5689
          %v5867 = vpop.f32.mrf.mxu0
          %v5868 = vadd.f32 0.0, %v5867
          %v5869 = vpop.f32.mrf.mxu0
          %5870 = vmatprep.mubr.f32.mxu0 0.0
          %5871 = vmatmul.mubr.f32.gmra.mxu0 %v5691
          %v5872 = vpop.f32.mrf.mxu0
          %v5873 = vadd.f32 0.0, %v5872
          %v5874 = vpop.f32.mrf.mxu0
          %5875 = vmatprep.mubr.f32.mxu0 0.0
          %5876 = vmatmul.mubr.f32.gmra.mxu0 %v5693
          %v5877 = vpop.f32.mrf.mxu0
          %v5878 = vadd.f32 0.0, %v5877
          %v5879 = vpop.f32.mrf.mxu0
          %5880 = vmatprep.mubr.f32.mxu0 0.0
          %5881 = vmatmul.mubr.f32.gmra.mxu0 %v5695
          %v5882 = vpop.f32.mrf.mxu0
          %v5883 = vadd.f32 0.0, %v5882
          %v5884 = vpop.f32.mrf.mxu0
          %5885 = vmatprep.mubr.f32.mxu0 0.0
          %5886 = vmatmul.mubr.f32.gmra.mxu0 %v5697
          %v5887 = vpop.f32.mrf.mxu0
          %v5888 = vadd.f32 0.0, %v5887
          %v5889 = vpop.f32.mrf.mxu0
          %5890 = vmatprep.mubr.f32.mxu0 0.0
          %5891 = vmatmul.mubr.f32.gmra.mxu0 %v5699
          %v5892 = vpop.f32.mrf.mxu0
          %v5893 = vadd.f32 0.0, %v5892
          %v5894 = vpop.f32.mrf.mxu0
          %5895 = vmatprep.mubr.f32.mxu0 0.0
          %5896 = vmatmul.mubr.f32.gmra.mxu0 %v5701
          %v5897 = vpop.f32.mrf.mxu0
          %v5898 = vadd.f32 0.0, %v5897
          %v5899 = vpop.f32.mrf.mxu0
          %5900 = vmatprep.mubr.f32.mxu0 0.0
          %5901 = vmatmul.mubr.f32.gmra.mxu0 %v5703
          %v5902 = vpop.f32.mrf.mxu0
          %v5903 = vadd.f32 0.0, %v5902
          %v5904 = vpop.f32.mrf.mxu0
          %5905 = vmatprep.mubr.f32.mxu0 0.0
          %5906 = vmatmul.mubr.f32.gmra.mxu0 %v5705
          %v5907 = vpop.f32.mrf.mxu0
          %v5908 = vadd.f32 0.0, %v5907
          %v5909 = vpop.f32.mrf.mxu0
          %5910 = vmatprep.mubr.f32.mxu0 0.0
          %5911 = vmatmul.mubr.f32.gmra.mxu0 %v5707
          %v5912 = vpop.f32.mrf.mxu0
          %v5913 = vadd.f32 0.0, %v5912
          %v5914 = vpop.f32.mrf.mxu0
          %5915 = vmatprep.mubr.f32.mxu0 0.0
          %5916 = vmatmul.mubr.f32.gmra.mxu0 %v5709
          %v5917 = vpop.f32.mrf.mxu0
          %v5918 = vadd.f32 0.0, %v5917
          %v5919 = vpop.f32.mrf.mxu0
          %5920 = vmatprep.mubr.f32.mxu0 0.0
          %5921 = vmatmul.mubr.f32.gmra.mxu0 %v5711
          %v5922 = vpop.f32.mrf.mxu0
          %v5923 = vadd.f32 0.0, %v5922
          %v5924 = vpop.f32.mrf.mxu0
          %5925 = vmatprep.mubr.f32.mxu0 0.0
          %5926 = vmatmul.mubr.f32.gmra.mxu0 %v5713
          %v5927 = vpop.f32.mrf.mxu0
          %v5928 = vadd.f32 0.0, %v5927
          %v5929 = vpop.f32.mrf.mxu0
          %5930 = vmatprep.mubr.f32.mxu0 0.0
          %5931 = vmatmul.mubr.f32.gmra.mxu0 %v5715
          %v5932 = vpop.f32.mrf.mxu0
          %v5933 = vadd.f32 0.0, %v5932
          %v5934 = vpop.f32.mrf.mxu0
          %5935 = vmatprep.mubr.f32.mxu0 0.0
          %5936 = vmatmul.mubr.f32.gmra.mxu0 %v5717
          %v5937 = vpop.f32.mrf.mxu0
          %v5938 = vadd.f32 0.0, %v5937
          %v5939 = vpop.f32.mrf.mxu0
          %5940 = vmatprep.mubr.f32.mxu0 0.0
          %5941 = vmatmul.mubr.f32.gmra.mxu0 %v5719
          %v5942 = vpop.f32.mrf.mxu0
          %v5943 = vadd.f32 0.0, %v5942
          %v5944 = vpop.f32.mrf.mxu0
          %5945 = vdwg.mxu0
          %v5946 = vadd.f32 %v5557, %v5788
          %v5947 = vadd.f32 %v5558, %v5793
          %v5948 = vadd.f32 %v5559, %v5798
          %v5949 = vadd.f32 %v5560, %v5803
          %v5950 = vadd.f32 %v5561, %v5808
          %v5951 = vadd.f32 %v5562, %v5813
          %v5952 = vadd.f32 %v5563, %v5818
          %v5953 = vadd.f32 %v5564, %v5823
          %v5954 = vadd.f32 %v5565, %v5828
          %v5955 = vadd.f32 %v5566, %v5833
          %v5956 = vadd.f32 %v5567, %v5838
          %v5957 = vadd.f32 %v5568, %v5843
          %v5958 = vadd.f32 %v5569, %v5848
          %v5959 = vadd.f32 %v5570, %v5853
          %v5960 = vadd.f32 %v5571, %v5858
          %v5961 = vadd.f32 %v5572, %v5863
          %v5962 = vadd.f32 %v5573, %v5868
          %v5963 = vadd.f32 %v5574, %v5873
          %v5964 = vadd.f32 %v5575, %v5878
          %v5965 = vadd.f32 %v5576, %v5883
          %v5966 = vadd.f32 %v5577, %v5888
          %v5967 = vadd.f32 %v5578, %v5893
          %v5968 = vadd.f32 %v5579, %v5898
          %v5969 = vadd.f32 %v5580, %v5903
          %v5970 = vadd.f32 %v5581, %v5908
          %v5971 = vadd.f32 %v5582, %v5913
          %v5972 = vadd.f32 %v5583, %v5918
          %v5973 = vadd.f32 %v5584, %v5923
          %v5974 = vadd.f32 %v5585, %v5928
          %v5975 = vadd.f32 %v5586, %v5933
          %v5976 = vadd.f32 %v5587, %v5938
          %v5977 = vadd.f32 %v5588, %v5943
          %s5978 = scalar_lea.vmem %s1, 48
          %v5979 = vld [vmem:[%s5978] sm:$0xff]
          %v5982 = vrot.slane %v3859, 4
          %v5983 = vsel %vm5591, %v5655, %v5982
          %v5984 = vrot.slane %v3860, 4
          %v5985 = vsel %vm5591, %v5982, %v5984
          %v5986 = vsel %vm3963, %v5983, 0
          %v5988 = vsel %vm3963, %v5985, 0
          %5990 = vmatprep.subr.mxu0 0.0
          %5991 = vmatpush1.msra.mxu0 0.0
          %5992 = vmatprep.subr.mxu0 0.0
          %5993 = vmatpush1.msra.mxu0 0.0
          %5994 = vmatprep.subr.mxu0 0.0
          %5995 = vmatpush1.msra.mxu0 0.0
          %5996 = vmatprep.subr.mxu0 0.0
          %5997 = vmatpush1.msra.mxu0 0.0
          %5998 = vmatprep.subr.mxu0 0.0
          %5999 = vmatpush1.msra.mxu0 0.0
          %6000 = vmatprep.subr.mxu0 0.0
          %6001 = vmatpush1.msra.mxu0 0.0
          %6002 = vmatprep.subr.mxu0 0.0
          %6003 = vmatpush1.msra.mxu0 0.0
          %6004 = vmatprep.subr.mxu0 0.0
          %6005 = vmatpush1.msra.mxu0 0.0
          %6006 = vmatprep.subr.mxu0 0.0
          %6007 = vmatpush1.msra.mxu0 0.0
          %6008 = vmatprep.subr.mxu0 0.0
          %6009 = vmatpush1.msra.mxu0 0.0
          %6010 = vmatprep.subr.mxu0 0.0
          %6011 = vmatpush1.msra.mxu0 0.0
          %6012 = vmatprep.subr.mxu0 0.0
          %6013 = vmatpush1.msra.mxu0 0.0
          %6014 = vmatprep.subr.mxu0 0.0
          %6015 = vmatpush1.msra.mxu0 0.0
          %6016 = vmatprep.subr.mxu0 0.0
          %6017 = vmatpush1.msra.mxu0 0.0
          %6018 = vmatprep.subr.mxu0 0.0
          %6019 = vmatpush1.msra.mxu0 0.0
          %6020 = vmatprep.subr.mxu0 0.0
          %6021 = vmatpush1.msra.mxu0 %v5979
          %6022 = vmatprep.subr.mxu0 0.0
          %6023 = vmatpush2.msra.mxu0 0.0
          %6024 = vmatprep.subr.mxu0 0.0
          %6025 = vmatpush2.msra.mxu0 0.0
          %6026 = vmatprep.subr.mxu0 0.0
          %6027 = vmatpush2.msra.mxu0 0.0
          %6028 = vmatprep.subr.mxu0 0.0
          %6029 = vmatpush2.msra.mxu0 0.0
          %6030 = vmatprep.subr.mxu0 0.0
          %6031 = vmatpush2.msra.mxu0 0.0
          %6032 = vmatprep.subr.mxu0 0.0
          %6033 = vmatpush2.msra.mxu0 0.0
          %6034 = vmatprep.subr.mxu0 0.0
          %6035 = vmatpush2.msra.mxu0 0.0
          %6036 = vmatprep.subr.mxu0 0.0
          %6037 = vmatpush2.msra.mxu0 0.0
          %6038 = vmatprep.subr.mxu0 0.0
          %6039 = vmatpush2.msra.mxu0 0.0
          %6040 = vmatprep.subr.mxu0 0.0
          %6041 = vmatpush2.msra.mxu0 0.0
          %6042 = vmatprep.subr.mxu0 0.0
          %6043 = vmatpush2.msra.mxu0 0.0
          %6044 = vmatprep.subr.mxu0 0.0
          %6045 = vmatpush2.msra.mxu0 0.0
          %6046 = vmatprep.subr.mxu0 0.0
          %6047 = vmatpush2.msra.mxu0 0.0
          %6048 = vmatprep.subr.mxu0 0.0
          %6049 = vmatpush2.msra.mxu0 0.0
          %6050 = vmatprep.subr.mxu0 0.0
          %6051 = vmatpush2.msra.mxu0 0.0
          %6052 = vmatprep.subr.mxu0 0.0
          %6053 = vmatpush2.msra.mxu0 0.0
          %6054 = vmatprep.mubr.f32.mxu0 0.0
          %6055 = vmatmul.mubr.f32.gmra.mxu0 %v5661
          %v6056 = vpop.f32.mrf.mxu0
          %v6057 = vadd.f32 0.0, %v6056
          %v6058 = vpop.f32.mrf.mxu0
          %6059 = vmatprep.mubr.f32.mxu0 0.0
          %6060 = vmatmul.mubr.f32.gmra.mxu0 %v5663
          %v6061 = vpop.f32.mrf.mxu0
          %v6062 = vadd.f32 0.0, %v6061
          %v6063 = vpop.f32.mrf.mxu0
          %6064 = vmatprep.mubr.f32.mxu0 0.0
          %6065 = vmatmul.mubr.f32.gmra.mxu0 %v5665
          %v6066 = vpop.f32.mrf.mxu0
          %v6067 = vadd.f32 0.0, %v6066
          %v6068 = vpop.f32.mrf.mxu0
          %6069 = vmatprep.mubr.f32.mxu0 0.0
          %6070 = vmatmul.mubr.f32.gmra.mxu0 %v5667
          %v6071 = vpop.f32.mrf.mxu0
          %v6072 = vadd.f32 0.0, %v6071
          %v6073 = vpop.f32.mrf.mxu0
          %6074 = vmatprep.mubr.f32.mxu0 0.0
          %6075 = vmatmul.mubr.f32.gmra.mxu0 %v5669
          %v6076 = vpop.f32.mrf.mxu0
          %v6077 = vadd.f32 0.0, %v6076
          %v6078 = vpop.f32.mrf.mxu0
          %6079 = vmatprep.mubr.f32.mxu0 0.0
          %6080 = vmatmul.mubr.f32.gmra.mxu0 %v5671
          %v6081 = vpop.f32.mrf.mxu0
          %v6082 = vadd.f32 0.0, %v6081
          %v6083 = vpop.f32.mrf.mxu0
          %6084 = vmatprep.mubr.f32.mxu0 0.0
          %6085 = vmatmul.mubr.f32.gmra.mxu0 %v5673
          %v6086 = vpop.f32.mrf.mxu0
          %v6087 = vadd.f32 0.0, %v6086
          %v6088 = vpop.f32.mrf.mxu0
          %6089 = vmatprep.mubr.f32.mxu0 0.0
          %6090 = vmatmul.mubr.f32.gmra.mxu0 %v5675
          %v6091 = vpop.f32.mrf.mxu0
          %v6092 = vadd.f32 0.0, %v6091
          %v6093 = vpop.f32.mrf.mxu0
          %6094 = vmatprep.mubr.f32.mxu0 0.0
          %6095 = vmatmul.mubr.f32.gmra.mxu0 %v5677
          %v6096 = vpop.f32.mrf.mxu0
          %v6097 = vadd.f32 0.0, %v6096
          %v6098 = vpop.f32.mrf.mxu0
          %6099 = vmatprep.mubr.f32.mxu0 0.0
          %6100 = vmatmul.mubr.f32.gmra.mxu0 %v5679
          %v6101 = vpop.f32.mrf.mxu0
          %v6102 = vadd.f32 0.0, %v6101
          %v6103 = vpop.f32.mrf.mxu0
          %6104 = vmatprep.mubr.f32.mxu0 0.0
          %6105 = vmatmul.mubr.f32.gmra.mxu0 %v5681
          %v6106 = vpop.f32.mrf.mxu0
          %v6107 = vadd.f32 0.0, %v6106
          %v6108 = vpop.f32.mrf.mxu0
          %6109 = vmatprep.mubr.f32.mxu0 0.0
          %6110 = vmatmul.mubr.f32.gmra.mxu0 %v5683
          %v6111 = vpop.f32.mrf.mxu0
          %v6112 = vadd.f32 0.0, %v6111
          %v6113 = vpop.f32.mrf.mxu0
          %6114 = vmatprep.mubr.f32.mxu0 0.0
          %6115 = vmatmul.mubr.f32.gmra.mxu0 %v5685
          %v6116 = vpop.f32.mrf.mxu0
          %v6117 = vadd.f32 0.0, %v6116
          %v6118 = vpop.f32.mrf.mxu0
          %6119 = vmatprep.mubr.f32.mxu0 0.0
          %6120 = vmatmul.mubr.f32.gmra.mxu0 %v5687
          %v6121 = vpop.f32.mrf.mxu0
          %v6122 = vadd.f32 0.0, %v6121
          %v6123 = vpop.f32.mrf.mxu0
          %6124 = vmatprep.mubr.f32.mxu0 0.0
          %6125 = vmatmul.mubr.f32.gmra.mxu0 %v5689
          %v6126 = vpop.f32.mrf.mxu0
          %v6127 = vadd.f32 0.0, %v6126
          %v6128 = vpop.f32.mrf.mxu0
          %6129 = vmatprep.mubr.f32.mxu0 0.0
          %6130 = vmatmul.mubr.f32.gmra.mxu0 %v5691
          %v6131 = vpop.f32.mrf.mxu0
          %v6132 = vadd.f32 0.0, %v6131
          %v6133 = vpop.f32.mrf.mxu0
          %6134 = vmatprep.mubr.f32.mxu0 0.0
          %6135 = vmatmul.mubr.f32.gmra.mxu0 %v5693
          %v6136 = vpop.f32.mrf.mxu0
          %v6137 = vadd.f32 0.0, %v6136
          %v6138 = vpop.f32.mrf.mxu0
          %6139 = vmatprep.mubr.f32.mxu0 0.0
          %6140 = vmatmul.mubr.f32.gmra.mxu0 %v5695
          %v6141 = vpop.f32.mrf.mxu0
          %v6142 = vadd.f32 0.0, %v6141
          %v6143 = vpop.f32.mrf.mxu0
          %6144 = vmatprep.mubr.f32.mxu0 0.0
          %6145 = vmatmul.mubr.f32.gmra.mxu0 %v5697
          %v6146 = vpop.f32.mrf.mxu0
          %v6147 = vadd.f32 0.0, %v6146
          %v6148 = vpop.f32.mrf.mxu0
          %6149 = vmatprep.mubr.f32.mxu0 0.0
          %6150 = vmatmul.mubr.f32.gmra.mxu0 %v5699
          %v6151 = vpop.f32.mrf.mxu0
          %v6152 = vadd.f32 0.0, %v6151
          %v6153 = vpop.f32.mrf.mxu0
          %6154 = vmatprep.mubr.f32.mxu0 0.0
          %6155 = vmatmul.mubr.f32.gmra.mxu0 %v5701
          %v6156 = vpop.f32.mrf.mxu0
          %v6157 = vadd.f32 0.0, %v6156
          %v6158 = vpop.f32.mrf.mxu0
          %6159 = vmatprep.mubr.f32.mxu0 0.0
          %6160 = vmatmul.mubr.f32.gmra.mxu0 %v5703
          %v6161 = vpop.f32.mrf.mxu0
          %v6162 = vadd.f32 0.0, %v6161
          %v6163 = vpop.f32.mrf.mxu0
          %6164 = vmatprep.mubr.f32.mxu0 0.0
          %6165 = vmatmul.mubr.f32.gmra.mxu0 %v5705
          %v6166 = vpop.f32.mrf.mxu0
          %v6167 = vadd.f32 0.0, %v6166
          %v6168 = vpop.f32.mrf.mxu0
          %6169 = vmatprep.mubr.f32.mxu0 0.0
          %6170 = vmatmul.mubr.f32.gmra.mxu0 %v5707
          %v6171 = vpop.f32.mrf.mxu0
          %v6172 = vadd.f32 0.0, %v6171
          %v6173 = vpop.f32.mrf.mxu0
          %6174 = vmatprep.mubr.f32.mxu0 0.0
          %6175 = vmatmul.mubr.f32.gmra.mxu0 %v5709
          %v6176 = vpop.f32.mrf.mxu0
          %v6177 = vadd.f32 0.0, %v6176
          %v6178 = vpop.f32.mrf.mxu0
          %6179 = vmatprep.mubr.f32.mxu0 0.0
          %6180 = vmatmul.mubr.f32.gmra.mxu0 %v5711
          %v6181 = vpop.f32.mrf.mxu0
          %v6182 = vadd.f32 0.0, %v6181
          %v6183 = vpop.f32.mrf.mxu0
          %6184 = vmatprep.mubr.f32.mxu0 0.0
          %6185 = vmatmul.mubr.f32.gmra.mxu0 %v5713
          %v6186 = vpop.f32.mrf.mxu0
          %v6187 = vadd.f32 0.0, %v6186
          %v6188 = vpop.f32.mrf.mxu0
          %6189 = vmatprep.mubr.f32.mxu0 0.0
          %6190 = vmatmul.mubr.f32.gmra.mxu0 %v5715
          %v6191 = vpop.f32.mrf.mxu0
          %v6192 = vadd.f32 0.0, %v6191
          %v6193 = vpop.f32.mrf.mxu0
          %6194 = vmatprep.mubr.f32.mxu0 0.0
          %6195 = vmatmul.mubr.f32.gmra.mxu0 %v5717
          %v6196 = vpop.f32.mrf.mxu0
          %v6197 = vadd.f32 0.0, %v6196
          %v6198 = vpop.f32.mrf.mxu0
          %6199 = vmatprep.mubr.f32.mxu0 0.0
          %6200 = vmatmul.mubr.f32.gmra.mxu0 %v5719
          %v6201 = vpop.f32.mrf.mxu0
          %v6202 = vadd.f32 0.0, %v6201
          %v6203 = vpop.f32.mrf.mxu0
          %6204 = vmatprep.mubr.f32.mxu0 0.0
          %6205 = vmatmul.mubr.f32.gmra.mxu0 %v5986
          %v6206 = vpop.f32.mrf.mxu0
          %v6207 = vadd.f32 0.0, %v6206
          %v6208 = vpop.f32.mrf.mxu0
          %6209 = vmatprep.mubr.f32.mxu0 0.0
          %6210 = vmatmul.mubr.f32.gmra.mxu0 %v5988
          %v6211 = vpop.f32.mrf.mxu0
          %v6212 = vadd.f32 0.0, %v6211
          %v6213 = vpop.f32.mrf.mxu0
          %6214 = vdwg.mxu0
          %v6215 = vadd.f32 %v5946, %v6057
          %v6216 = vadd.f32 %v5947, %v6062
          %v6217 = vadd.f32 %v5948, %v6067
          %v6218 = vadd.f32 %v5949, %v6072
          %v6219 = vadd.f32 %v5950, %v6077
          %v6220 = vadd.f32 %v5951, %v6082
          %v6221 = vadd.f32 %v5952, %v6087
          %v6222 = vadd.f32 %v5953, %v6092
          %v6223 = vadd.f32 %v5954, %v6097
          %v6224 = vadd.f32 %v5955, %v6102
          %v6225 = vadd.f32 %v5956, %v6107
          %v6226 = vadd.f32 %v5957, %v6112
          %v6227 = vadd.f32 %v5958, %v6117
          %v6228 = vadd.f32 %v5959, %v6122
          %v6229 = vadd.f32 %v5960, %v6127
          %v6230 = vadd.f32 %v5961, %v6132
          %v6231 = vadd.f32 %v5962, %v6137
          %v6232 = vadd.f32 %v5963, %v6142
          %v6233 = vadd.f32 %v5964, %v6147
          %v6234 = vadd.f32 %v5965, %v6152
          %v6235 = vadd.f32 %v5966, %v6157
          %v6236 = vadd.f32 %v5967, %v6162
          %v6237 = vadd.f32 %v5968, %v6167
          %v6238 = vadd.f32 %v5969, %v6172
          %v6239 = vadd.f32 %v5970, %v6177
          %v6240 = vadd.f32 %v5971, %v6182
          %v6241 = vadd.f32 %v5972, %v6187
          %v6242 = vadd.f32 %v5973, %v6192
          %v6243 = vadd.f32 %v5974, %v6197
          %v6244 = vadd.f32 %v5975, %v6202
          %v6245 = vadd.f32 %v5976, %v6207
          %v6246 = vadd.f32 %v5977, %v6212
          %s6247 = scalar_lea.vmem %s1, 56
          %v6248 = vld [vmem:[%s6247] sm:$0xff]
          %vm6249 = vcmask 1042432
          %v6250 = vrot.slane %v3828, 5
          %v6251 = vrot.slane %v3829, 5
          %v6252 = vsel %vm6249, %v6250, %v6251
          %v6253 = vrot.slane %v3830, 5
          %v6254 = vsel %vm6249, %v6251, %v6253
          %v6255 = vrot.slane %v3831, 5
          %v6256 = vsel %vm6249, %v6253, %v6255
          %v6257 = vrot.slane %v3832, 5
          %v6258 = vsel %vm6249, %v6255, %v6257
          %v6259 = vrot.slane %v3833, 5
          %v6260 = vsel %vm6249, %v6257, %v6259
          %v6261 = vrot.slane %v3834, 5
          %v6262 = vsel %vm6249, %v6259, %v6261
          %v6263 = vrot.slane %v3835, 5
          %v6264 = vsel %vm6249, %v6261, %v6263
          %v6265 = vrot.slane %v3836, 5
          %v6266 = vsel %vm6249, %v6263, %v6265
          %v6267 = vrot.slane %v3837, 5
          %v6268 = vsel %vm6249, %v6265, %v6267
          %v6269 = vrot.slane %v3838, 5
          %v6270 = vsel %vm6249, %v6267, %v6269
          %v6271 = vrot.slane %v3839, 5
          %v6272 = vsel %vm6249, %v6269, %v6271
          %v6273 = vrot.slane %v3840, 5
          %v6274 = vsel %vm6249, %v6271, %v6273
          %v6275 = vrot.slane %v3841, 5
          %v6276 = vsel %vm6249, %v6273, %v6275
          %v6277 = vrot.slane %v3842, 5
          %v6278 = vsel %vm6249, %v6275, %v6277
          %v6279 = vrot.slane %v3843, 5
          %v6280 = vsel %vm6249, %v6277, %v6279
          %v6281 = vrot.slane %v3844, 5
          %v6282 = vsel %vm6249, %v6279, %v6281
          %v6283 = vrot.slane %v3845, 5
          %v6284 = vsel %vm6249, %v6281, %v6283
          %v6285 = vrot.slane %v3846, 5
          %v6286 = vsel %vm6249, %v6283, %v6285
          %v6287 = vrot.slane %v3847, 5
          %v6288 = vsel %vm6249, %v6285, %v6287
          %v6289 = vrot.slane %v3848, 5
          %v6290 = vsel %vm6249, %v6287, %v6289
          %v6291 = vrot.slane %v3849, 5
          %v6292 = vsel %vm6249, %v6289, %v6291
          %v6293 = vrot.slane %v3850, 5
          %v6294 = vsel %vm6249, %v6291, %v6293
          %v6295 = vrot.slane %v3851, 5
          %v6296 = vsel %vm6249, %v6293, %v6295
          %v6297 = vrot.slane %v3852, 5
          %v6298 = vsel %vm6249, %v6295, %v6297
          %v6299 = vrot.slane %v3853, 5
          %v6300 = vsel %vm6249, %v6297, %v6299
          %v6301 = vrot.slane %v3854, 5
          %v6302 = vsel %vm6249, %v6299, %v6301
          %v6303 = vrot.slane %v3855, 5
          %v6304 = vsel %vm6249, %v6301, %v6303
          %v6305 = vrot.slane %v3856, 5
          %v6306 = vsel %vm6249, %v6303, %v6305
          %v6307 = vrot.slane %v3857, 5
          %v6308 = vsel %vm6249, %v6305, %v6307
          %v6309 = vrot.slane %v3858, 5
          %v6310 = vsel %vm6249, %v6307, %v6309
          %v6311 = vrot.slane %v3859, 5
          %v6312 = vsel %vm6249, %v6309, %v6311
          %v6313 = vrot.slane %v3860, 5
          %v6314 = vsel %vm6249, %v6311, %v6313
          %v6315 = vsel %vm3963, %v6252, 0
          %v6317 = vsel %vm3963, %v6254, 0
          %v6319 = vsel %vm3963, %v6256, 0
          %v6321 = vsel %vm3963, %v6258, 0
          %v6323 = vsel %vm3963, %v6260, 0
          %v6325 = vsel %vm3963, %v6262, 0
          %v6327 = vsel %vm3963, %v6264, 0
          %v6329 = vsel %vm3963, %v6266, 0
          %v6331 = vsel %vm3963, %v6268, 0
          %v6333 = vsel %vm3963, %v6270, 0
          %v6335 = vsel %vm3963, %v6272, 0
          %v6337 = vsel %vm3963, %v6274, 0
          %v6339 = vsel %vm3963, %v6276, 0
          %v6341 = vsel %vm3963, %v6278, 0
          %v6343 = vsel %vm3963, %v6280, 0
          %v6345 = vsel %vm3963, %v6282, 0
          %v6347 = vsel %vm3963, %v6284, 0
          %v6349 = vsel %vm3963, %v6286, 0
          %v6351 = vsel %vm3963, %v6288, 0
          %v6353 = vsel %vm3963, %v6290, 0
          %v6355 = vsel %vm3963, %v6292, 0
          %v6357 = vsel %vm3963, %v6294, 0
          %v6359 = vsel %vm3963, %v6296, 0
          %v6361 = vsel %vm3963, %v6298, 0
          %v6363 = vsel %vm3963, %v6300, 0
          %v6365 = vsel %vm3963, %v6302, 0
          %v6367 = vsel %vm3963, %v6304, 0
          %v6369 = vsel %vm3963, %v6306, 0
          %v6371 = vsel %vm3963, %v6308, 0
          %v6373 = vsel %vm3963, %v6310, 0
          %v6375 = vsel %vm3963, %v6312, 0
          %v6377 = vsel %vm3963, %v6314, 0
          %6379 = vmatprep.subr.mxu0 0.0
          %6380 = vmatpush1.msra.mxu0 0.0
          %6381 = vmatprep.subr.mxu0 0.0
          %6382 = vmatpush1.msra.mxu0 0.0
          %6383 = vmatprep.subr.mxu0 0.0
          %6384 = vmatpush1.msra.mxu0 0.0
          %6385 = vmatprep.subr.mxu0 0.0
          %6386 = vmatpush1.msra.mxu0 0.0
          %6387 = vmatprep.subr.mxu0 0.0
          %6388 = vmatpush1.msra.mxu0 0.0
          %6389 = vmatprep.subr.mxu0 0.0
          %6390 = vmatpush1.msra.mxu0 0.0
          %6391 = vmatprep.subr.mxu0 0.0
          %6392 = vmatpush1.msra.mxu0 0.0
          %6393 = vmatprep.subr.mxu0 0.0
          %6394 = vmatpush1.msra.mxu0 0.0
          %6395 = vmatprep.subr.mxu0 0.0
          %6396 = vmatpush1.msra.mxu0 0.0
          %6397 = vmatprep.subr.mxu0 0.0
          %6398 = vmatpush1.msra.mxu0 0.0
          %6399 = vmatprep.subr.mxu0 0.0
          %6400 = vmatpush1.msra.mxu0 0.0
          %6401 = vmatprep.subr.mxu0 0.0
          %6402 = vmatpush1.msra.mxu0 0.0
          %6403 = vmatprep.subr.mxu0 0.0
          %6404 = vmatpush1.msra.mxu0 0.0
          %6405 = vmatprep.subr.mxu0 0.0
          %6406 = vmatpush1.msra.mxu0 0.0
          %6407 = vmatprep.subr.mxu0 0.0
          %6408 = vmatpush1.msra.mxu0 0.0
          %6409 = vmatprep.subr.mxu0 0.0
          %6410 = vmatpush1.msra.mxu0 %v6248
          %6411 = vmatprep.subr.mxu0 0.0
          %6412 = vmatpush2.msra.mxu0 0.0
          %6413 = vmatprep.subr.mxu0 0.0
          %6414 = vmatpush2.msra.mxu0 0.0
          %6415 = vmatprep.subr.mxu0 0.0
          %6416 = vmatpush2.msra.mxu0 0.0
          %6417 = vmatprep.subr.mxu0 0.0
          %6418 = vmatpush2.msra.mxu0 0.0
          %6419 = vmatprep.subr.mxu0 0.0
          %6420 = vmatpush2.msra.mxu0 0.0
          %6421 = vmatprep.subr.mxu0 0.0
          %6422 = vmatpush2.msra.mxu0 0.0
          %6423 = vmatprep.subr.mxu0 0.0
          %6424 = vmatpush2.msra.mxu0 0.0
          %6425 = vmatprep.subr.mxu0 0.0
          %6426 = vmatpush2.msra.mxu0 0.0
          %6427 = vmatprep.subr.mxu0 0.0
          %6428 = vmatpush2.msra.mxu0 0.0
          %6429 = vmatprep.subr.mxu0 0.0
          %6430 = vmatpush2.msra.mxu0 0.0
          %6431 = vmatprep.subr.mxu0 0.0
          %6432 = vmatpush2.msra.mxu0 0.0
          %6433 = vmatprep.subr.mxu0 0.0
          %6434 = vmatpush2.msra.mxu0 0.0
          %6435 = vmatprep.subr.mxu0 0.0
          %6436 = vmatpush2.msra.mxu0 0.0
          %6437 = vmatprep.subr.mxu0 0.0
          %6438 = vmatpush2.msra.mxu0 0.0
          %6439 = vmatprep.subr.mxu0 0.0
          %6440 = vmatpush2.msra.mxu0 0.0
          %6441 = vmatprep.subr.mxu0 0.0
          %6442 = vmatpush2.msra.mxu0 0.0
          %6443 = vmatprep.mubr.f32.mxu0 0.0
          %6444 = vmatmul.mubr.f32.gmra.mxu0 %v6315
          %v6445 = vpop.f32.mrf.mxu0
          %v6446 = vadd.f32 0.0, %v6445
          %v6447 = vpop.f32.mrf.mxu0
          %6448 = vmatprep.mubr.f32.mxu0 0.0
          %6449 = vmatmul.mubr.f32.gmra.mxu0 %v6317
          %v6450 = vpop.f32.mrf.mxu0
          %v6451 = vadd.f32 0.0, %v6450
          %v6452 = vpop.f32.mrf.mxu0
          %6453 = vmatprep.mubr.f32.mxu0 0.0
          %6454 = vmatmul.mubr.f32.gmra.mxu0 %v6319
          %v6455 = vpop.f32.mrf.mxu0
          %v6456 = vadd.f32 0.0, %v6455
          %v6457 = vpop.f32.mrf.mxu0
          %6458 = vmatprep.mubr.f32.mxu0 0.0
          %6459 = vmatmul.mubr.f32.gmra.mxu0 %v6321
          %v6460 = vpop.f32.mrf.mxu0
          %v6461 = vadd.f32 0.0, %v6460
          %v6462 = vpop.f32.mrf.mxu0
          %6463 = vmatprep.mubr.f32.mxu0 0.0
          %6464 = vmatmul.mubr.f32.gmra.mxu0 %v6323
          %v6465 = vpop.f32.mrf.mxu0
          %v6466 = vadd.f32 0.0, %v6465
          %v6467 = vpop.f32.mrf.mxu0
          %6468 = vmatprep.mubr.f32.mxu0 0.0
          %6469 = vmatmul.mubr.f32.gmra.mxu0 %v6325
          %v6470 = vpop.f32.mrf.mxu0
          %v6471 = vadd.f32 0.0, %v6470
          %v6472 = vpop.f32.mrf.mxu0
          %6473 = vmatprep.mubr.f32.mxu0 0.0
          %6474 = vmatmul.mubr.f32.gmra.mxu0 %v6327
          %v6475 = vpop.f32.mrf.mxu0
          %v6476 = vadd.f32 0.0, %v6475
          %v6477 = vpop.f32.mrf.mxu0
          %6478 = vmatprep.mubr.f32.mxu0 0.0
          %6479 = vmatmul.mubr.f32.gmra.mxu0 %v6329
          %v6480 = vpop.f32.mrf.mxu0
          %v6481 = vadd.f32 0.0, %v6480
          %v6482 = vpop.f32.mrf.mxu0
          %6483 = vmatprep.mubr.f32.mxu0 0.0
          %6484 = vmatmul.mubr.f32.gmra.mxu0 %v6331
          %v6485 = vpop.f32.mrf.mxu0
          %v6486 = vadd.f32 0.0, %v6485
          %v6487 = vpop.f32.mrf.mxu0
          %6488 = vmatprep.mubr.f32.mxu0 0.0
          %6489 = vmatmul.mubr.f32.gmra.mxu0 %v6333
          %v6490 = vpop.f32.mrf.mxu0
          %v6491 = vadd.f32 0.0, %v6490
          %v6492 = vpop.f32.mrf.mxu0
          %6493 = vmatprep.mubr.f32.mxu0 0.0
          %6494 = vmatmul.mubr.f32.gmra.mxu0 %v6335
          %v6495 = vpop.f32.mrf.mxu0
          %v6496 = vadd.f32 0.0, %v6495
          %v6497 = vpop.f32.mrf.mxu0
          %6498 = vmatprep.mubr.f32.mxu0 0.0
          %6499 = vmatmul.mubr.f32.gmra.mxu0 %v6337
          %v6500 = vpop.f32.mrf.mxu0
          %v6501 = vadd.f32 0.0, %v6500
          %v6502 = vpop.f32.mrf.mxu0
          %6503 = vmatprep.mubr.f32.mxu0 0.0
          %6504 = vmatmul.mubr.f32.gmra.mxu0 %v6339
          %v6505 = vpop.f32.mrf.mxu0
          %v6506 = vadd.f32 0.0, %v6505
          %v6507 = vpop.f32.mrf.mxu0
          %6508 = vmatprep.mubr.f32.mxu0 0.0
          %6509 = vmatmul.mubr.f32.gmra.mxu0 %v6341
          %v6510 = vpop.f32.mrf.mxu0
          %v6511 = vadd.f32 0.0, %v6510
          %v6512 = vpop.f32.mrf.mxu0
          %6513 = vmatprep.mubr.f32.mxu0 0.0
          %6514 = vmatmul.mubr.f32.gmra.mxu0 %v6343
          %v6515 = vpop.f32.mrf.mxu0
          %v6516 = vadd.f32 0.0, %v6515
          %v6517 = vpop.f32.mrf.mxu0
          %6518 = vmatprep.mubr.f32.mxu0 0.0
          %6519 = vmatmul.mubr.f32.gmra.mxu0 %v6345
          %v6520 = vpop.f32.mrf.mxu0
          %v6521 = vadd.f32 0.0, %v6520
          %v6522 = vpop.f32.mrf.mxu0
          %6523 = vmatprep.mubr.f32.mxu0 0.0
          %6524 = vmatmul.mubr.f32.gmra.mxu0 %v6347
          %v6525 = vpop.f32.mrf.mxu0
          %v6526 = vadd.f32 0.0, %v6525
          %v6527 = vpop.f32.mrf.mxu0
          %6528 = vmatprep.mubr.f32.mxu0 0.0
          %6529 = vmatmul.mubr.f32.gmra.mxu0 %v6349
          %v6530 = vpop.f32.mrf.mxu0
          %v6531 = vadd.f32 0.0, %v6530
          %v6532 = vpop.f32.mrf.mxu0
          %6533 = vmatprep.mubr.f32.mxu0 0.0
          %6534 = vmatmul.mubr.f32.gmra.mxu0 %v6351
          %v6535 = vpop.f32.mrf.mxu0
          %v6536 = vadd.f32 0.0, %v6535
          %v6537 = vpop.f32.mrf.mxu0
          %6538 = vmatprep.mubr.f32.mxu0 0.0
          %6539 = vmatmul.mubr.f32.gmra.mxu0 %v6353
          %v6540 = vpop.f32.mrf.mxu0
          %v6541 = vadd.f32 0.0, %v6540
          %v6542 = vpop.f32.mrf.mxu0
          %6543 = vmatprep.mubr.f32.mxu0 0.0
          %6544 = vmatmul.mubr.f32.gmra.mxu0 %v6355
          %v6545 = vpop.f32.mrf.mxu0
          %v6546 = vadd.f32 0.0, %v6545
          %v6547 = vpop.f32.mrf.mxu0
          %6548 = vmatprep.mubr.f32.mxu0 0.0
          %6549 = vmatmul.mubr.f32.gmra.mxu0 %v6357
          %v6550 = vpop.f32.mrf.mxu0
          %v6551 = vadd.f32 0.0, %v6550
          %v6552 = vpop.f32.mrf.mxu0
          %6553 = vmatprep.mubr.f32.mxu0 0.0
          %6554 = vmatmul.mubr.f32.gmra.mxu0 %v6359
          %v6555 = vpop.f32.mrf.mxu0
          %v6556 = vadd.f32 0.0, %v6555
          %v6557 = vpop.f32.mrf.mxu0
          %6558 = vmatprep.mubr.f32.mxu0 0.0
          %6559 = vmatmul.mubr.f32.gmra.mxu0 %v6361
          %v6560 = vpop.f32.mrf.mxu0
          %v6561 = vadd.f32 0.0, %v6560
          %v6562 = vpop.f32.mrf.mxu0
          %6563 = vmatprep.mubr.f32.mxu0 0.0
          %6564 = vmatmul.mubr.f32.gmra.mxu0 %v6363
          %v6565 = vpop.f32.mrf.mxu0
          %v6566 = vadd.f32 0.0, %v6565
          %v6567 = vpop.f32.mrf.mxu0
          %6568 = vmatprep.mubr.f32.mxu0 0.0
          %6569 = vmatmul.mubr.f32.gmra.mxu0 %v6365
          %v6570 = vpop.f32.mrf.mxu0
          %v6571 = vadd.f32 0.0, %v6570
          %v6572 = vpop.f32.mrf.mxu0
          %6573 = vmatprep.mubr.f32.mxu0 0.0
          %6574 = vmatmul.mubr.f32.gmra.mxu0 %v6367
          %v6575 = vpop.f32.mrf.mxu0
          %v6576 = vadd.f32 0.0, %v6575
          %v6577 = vpop.f32.mrf.mxu0
          %6578 = vmatprep.mubr.f32.mxu0 0.0
          %6579 = vmatmul.mubr.f32.gmra.mxu0 %v6369
          %v6580 = vpop.f32.mrf.mxu0
          %v6581 = vadd.f32 0.0, %v6580
          %v6582 = vpop.f32.mrf.mxu0
          %6583 = vmatprep.mubr.f32.mxu0 0.0
          %6584 = vmatmul.mubr.f32.gmra.mxu0 %v6371
          %v6585 = vpop.f32.mrf.mxu0
          %v6586 = vadd.f32 0.0, %v6585
          %v6587 = vpop.f32.mrf.mxu0
          %6588 = vmatprep.mubr.f32.mxu0 0.0
          %6589 = vmatmul.mubr.f32.gmra.mxu0 %v6373
          %v6590 = vpop.f32.mrf.mxu0
          %v6591 = vadd.f32 0.0, %v6590
          %v6592 = vpop.f32.mrf.mxu0
          %6593 = vmatprep.mubr.f32.mxu0 0.0
          %6594 = vmatmul.mubr.f32.gmra.mxu0 %v6375
          %v6595 = vpop.f32.mrf.mxu0
          %v6596 = vadd.f32 0.0, %v6595
          %v6597 = vpop.f32.mrf.mxu0
          %6598 = vmatprep.mubr.f32.mxu0 0.0
          %6599 = vmatmul.mubr.f32.gmra.mxu0 %v6377
          %v6600 = vpop.f32.mrf.mxu0
          %v6601 = vadd.f32 0.0, %v6600
          %v6602 = vpop.f32.mrf.mxu0
          %6603 = vdwg.mxu0
          %v6604 = vadd.f32 %v6215, %v6446
          %v6605 = vadd.f32 %v6216, %v6451
          %v6606 = vadd.f32 %v6217, %v6456
          %v6607 = vadd.f32 %v6218, %v6461
          %v6608 = vadd.f32 %v6219, %v6466
          %v6609 = vadd.f32 %v6220, %v6471
          %v6610 = vadd.f32 %v6221, %v6476
          %v6611 = vadd.f32 %v6222, %v6481
          %v6612 = vadd.f32 %v6223, %v6486
          %v6613 = vadd.f32 %v6224, %v6491
          %v6614 = vadd.f32 %v6225, %v6496
          %v6615 = vadd.f32 %v6226, %v6501
          %v6616 = vadd.f32 %v6227, %v6506
          %v6617 = vadd.f32 %v6228, %v6511
          %v6618 = vadd.f32 %v6229, %v6516
          %v6619 = vadd.f32 %v6230, %v6521
          %v6620 = vadd.f32 %v6231, %v6526
          %v6621 = vadd.f32 %v6232, %v6531
          %v6622 = vadd.f32 %v6233, %v6536
          %v6623 = vadd.f32 %v6234, %v6541
          %v6624 = vadd.f32 %v6235, %v6546
          %v6625 = vadd.f32 %v6236, %v6551
          %v6626 = vadd.f32 %v6237, %v6556
          %v6627 = vadd.f32 %v6238, %v6561
          %v6628 = vadd.f32 %v6239, %v6566
          %v6629 = vadd.f32 %v6240, %v6571
          %v6630 = vadd.f32 %v6241, %v6576
          %v6631 = vadd.f32 %v6242, %v6581
          %v6632 = vadd.f32 %v6243, %v6586
          %v6633 = vadd.f32 %v6244, %v6591
          %v6634 = vadd.f32 %v6245, %v6596
          %v6635 = vadd.f32 %v6246, %v6601
          %s6636 = scalar_lea.vmem %s1, 64
          %v6637 = vld [vmem:[%s6636] sm:$0xff]
          %vm6638 = vcmask 1041408
          %v6639 = vrot.slane %v3828, 6
          %v6640 = vrot.slane %v3829, 6
          %v6641 = vsel %vm6638, %v6639, %v6640
          %v6642 = vrot.slane %v3830, 6
          %v6643 = vsel %vm6638, %v6640, %v6642
          %v6644 = vrot.slane %v3831, 6
          %v6645 = vsel %vm6638, %v6642, %v6644
          %v6646 = vrot.slane %v3832, 6
          %v6647 = vsel %vm6638, %v6644, %v6646
          %v6648 = vrot.slane %v3833, 6
          %v6649 = vsel %vm6638, %v6646, %v6648
          %v6650 = vrot.slane %v3834, 6
          %v6651 = vsel %vm6638, %v6648, %v6650
          %v6652 = vrot.slane %v3835, 6
          %v6653 = vsel %vm6638, %v6650, %v6652
          %v6654 = vrot.slane %v3836, 6
          %v6655 = vsel %vm6638, %v6652, %v6654
          %v6656 = vrot.slane %v3837, 6
          %v6657 = vsel %vm6638, %v6654, %v6656
          %v6658 = vrot.slane %v3838, 6
          %v6659 = vsel %vm6638, %v6656, %v6658
          %v6660 = vrot.slane %v3839, 6
          %v6661 = vsel %vm6638, %v6658, %v6660
          %v6662 = vrot.slane %v3840, 6
          %v6663 = vsel %vm6638, %v6660, %v6662
          %v6664 = vrot.slane %v3841, 6
          %v6665 = vsel %vm6638, %v6662, %v6664
          %v6666 = vrot.slane %v3842, 6
          %v6667 = vsel %vm6638, %v6664, %v6666
          %v6668 = vrot.slane %v3843, 6
          %v6669 = vsel %vm6638, %v6666, %v6668
          %v6670 = vrot.slane %v3844, 6
          %v6671 = vsel %vm6638, %v6668, %v6670
          %v6672 = vrot.slane %v3845, 6
          %v6673 = vsel %vm6638, %v6670, %v6672
          %v6674 = vrot.slane %v3846, 6
          %v6675 = vsel %vm6638, %v6672, %v6674
          %v6676 = vrot.slane %v3847, 6
          %v6677 = vsel %vm6638, %v6674, %v6676
          %v6678 = vrot.slane %v3848, 6
          %v6679 = vsel %vm6638, %v6676, %v6678
          %v6680 = vrot.slane %v3849, 6
          %v6681 = vsel %vm6638, %v6678, %v6680
          %v6682 = vrot.slane %v3850, 6
          %v6683 = vsel %vm6638, %v6680, %v6682
          %v6684 = vrot.slane %v3851, 6
          %v6685 = vsel %vm6638, %v6682, %v6684
          %v6686 = vrot.slane %v3852, 6
          %v6687 = vsel %vm6638, %v6684, %v6686
          %v6688 = vrot.slane %v3853, 6
          %v6689 = vsel %vm6638, %v6686, %v6688
          %v6690 = vrot.slane %v3854, 6
          %v6691 = vsel %vm6638, %v6688, %v6690
          %v6692 = vrot.slane %v3855, 6
          %v6693 = vsel %vm6638, %v6690, %v6692
          %v6694 = vrot.slane %v3856, 6
          %v6695 = vsel %vm6638, %v6692, %v6694
          %v6696 = vrot.slane %v3857, 6
          %v6697 = vsel %vm6638, %v6694, %v6696
          %v6698 = vrot.slane %v3858, 6
          %v6699 = vsel %vm6638, %v6696, %v6698
          %v6700 = vrot.slane %v3859, 6
          %v6701 = vsel %vm6638, %v6698, %v6700
          %v6702 = vrot.slane %v3860, 6
          %v6703 = vsel %vm6638, %v6700, %v6702
          %v6704 = vsel %vm3963, %v6641, 0
          %v6706 = vsel %vm3963, %v6643, 0
          %v6708 = vsel %vm3963, %v6645, 0
          %v6710 = vsel %vm3963, %v6647, 0
          %v6712 = vsel %vm3963, %v6649, 0
          %v6714 = vsel %vm3963, %v6651, 0
          %v6716 = vsel %vm3963, %v6653, 0
          %v6718 = vsel %vm3963, %v6655, 0
          %v6720 = vsel %vm3963, %v6657, 0
          %v6722 = vsel %vm3963, %v6659, 0
          %v6724 = vsel %vm3963, %v6661, 0
          %v6726 = vsel %vm3963, %v6663, 0
          %v6728 = vsel %vm3963, %v6665, 0
          %v6730 = vsel %vm3963, %v6667, 0
          %v6732 = vsel %vm3963, %v6669, 0
          %v6734 = vsel %vm3963, %v6671, 0
          %v6736 = vsel %vm3963, %v6673, 0
          %v6738 = vsel %vm3963, %v6675, 0
          %v6740 = vsel %vm3963, %v6677, 0
          %v6742 = vsel %vm3963, %v6679, 0
          %v6744 = vsel %vm3963, %v6681, 0
          %v6746 = vsel %vm3963, %v6683, 0
          %v6748 = vsel %vm3963, %v6685, 0
          %v6750 = vsel %vm3963, %v6687, 0
          %v6752 = vsel %vm3963, %v6689, 0
          %v6754 = vsel %vm3963, %v6691, 0
          %v6756 = vsel %vm3963, %v6693, 0
          %v6758 = vsel %vm3963, %v6695, 0
          %v6760 = vsel %vm3963, %v6697, 0
          %v6762 = vsel %vm3963, %v6699, 0
          %v6764 = vsel %vm3963, %v6701, 0
          %v6766 = vsel %vm3963, %v6703, 0
          %6768 = vmatprep.subr.mxu0 0.0
          %6769 = vmatpush1.msra.mxu0 0.0
          %6770 = vmatprep.subr.mxu0 0.0
          %6771 = vmatpush1.msra.mxu0 0.0
          %6772 = vmatprep.subr.mxu0 0.0
          %6773 = vmatpush1.msra.mxu0 0.0
          %6774 = vmatprep.subr.mxu0 0.0
          %6775 = vmatpush1.msra.mxu0 0.0
          %6776 = vmatprep.subr.mxu0 0.0
          %6777 = vmatpush1.msra.mxu0 0.0
          %6778 = vmatprep.subr.mxu0 0.0
          %6779 = vmatpush1.msra.mxu0 0.0
          %6780 = vmatprep.subr.mxu0 0.0
          %6781 = vmatpush1.msra.mxu0 0.0
          %6782 = vmatprep.subr.mxu0 0.0
          %6783 = vmatpush1.msra.mxu0 0.0
          %6784 = vmatprep.subr.mxu0 0.0
          %6785 = vmatpush1.msra.mxu0 0.0
          %6786 = vmatprep.subr.mxu0 0.0
          %6787 = vmatpush1.msra.mxu0 0.0
          %6788 = vmatprep.subr.mxu0 0.0
          %6789 = vmatpush1.msra.mxu0 0.0
          %6790 = vmatprep.subr.mxu0 0.0
          %6791 = vmatpush1.msra.mxu0 0.0
          %6792 = vmatprep.subr.mxu0 0.0
          %6793 = vmatpush1.msra.mxu0 0.0
          %6794 = vmatprep.subr.mxu0 0.0
          %6795 = vmatpush1.msra.mxu0 0.0
          %6796 = vmatprep.subr.mxu0 0.0
          %6797 = vmatpush1.msra.mxu0 0.0
          %6798 = vmatprep.subr.mxu0 0.0
          %6799 = vmatpush1.msra.mxu0 %v6637
          %6800 = vmatprep.subr.mxu0 0.0
          %6801 = vmatpush2.msra.mxu0 0.0
          %6802 = vmatprep.subr.mxu0 0.0
          %6803 = vmatpush2.msra.mxu0 0.0
          %6804 = vmatprep.subr.mxu0 0.0
          %6805 = vmatpush2.msra.mxu0 0.0
          %6806 = vmatprep.subr.mxu0 0.0
          %6807 = vmatpush2.msra.mxu0 0.0
          %6808 = vmatprep.subr.mxu0 0.0
          %6809 = vmatpush2.msra.mxu0 0.0
          %6810 = vmatprep.subr.mxu0 0.0
          %6811 = vmatpush2.msra.mxu0 0.0
          %6812 = vmatprep.subr.mxu0 0.0
          %6813 = vmatpush2.msra.mxu0 0.0
          %6814 = vmatprep.subr.mxu0 0.0
          %6815 = vmatpush2.msra.mxu0 0.0
          %6816 = vmatprep.subr.mxu0 0.0
          %6817 = vmatpush2.msra.mxu0 0.0
          %6818 = vmatprep.subr.mxu0 0.0
          %6819 = vmatpush2.msra.mxu0 0.0
          %6820 = vmatprep.subr.mxu0 0.0
          %6821 = vmatpush2.msra.mxu0 0.0
          %6822 = vmatprep.subr.mxu0 0.0
          %6823 = vmatpush2.msra.mxu0 0.0
          %6824 = vmatprep.subr.mxu0 0.0
          %6825 = vmatpush2.msra.mxu0 0.0
          %6826 = vmatprep.subr.mxu0 0.0
          %6827 = vmatpush2.msra.mxu0 0.0
          %6828 = vmatprep.subr.mxu0 0.0
          %6829 = vmatpush2.msra.mxu0 0.0
          %6830 = vmatprep.subr.mxu0 0.0
          %6831 = vmatpush2.msra.mxu0 0.0
          %6832 = vmatprep.mubr.f32.mxu0 0.0
          %6833 = vmatmul.mubr.f32.gmra.mxu0 %v6704
          %v6834 = vpop.f32.mrf.mxu0
          %v6835 = vadd.f32 0.0, %v6834
          %v6836 = vpop.f32.mrf.mxu0
          %6837 = vmatprep.mubr.f32.mxu0 0.0
          %6838 = vmatmul.mubr.f32.gmra.mxu0 %v6706
          %v6839 = vpop.f32.mrf.mxu0
          %v6840 = vadd.f32 0.0, %v6839
          %v6841 = vpop.f32.mrf.mxu0
          %6842 = vmatprep.mubr.f32.mxu0 0.0
          %6843 = vmatmul.mubr.f32.gmra.mxu0 %v6708
          %v6844 = vpop.f32.mrf.mxu0
          %v6845 = vadd.f32 0.0, %v6844
          %v6846 = vpop.f32.mrf.mxu0
          %6847 = vmatprep.mubr.f32.mxu0 0.0
          %6848 = vmatmul.mubr.f32.gmra.mxu0 %v6710
          %v6849 = vpop.f32.mrf.mxu0
          %v6850 = vadd.f32 0.0, %v6849
          %v6851 = vpop.f32.mrf.mxu0
          %6852 = vmatprep.mubr.f32.mxu0 0.0
          %6853 = vmatmul.mubr.f32.gmra.mxu0 %v6712
          %v6854 = vpop.f32.mrf.mxu0
          %v6855 = vadd.f32 0.0, %v6854
          %v6856 = vpop.f32.mrf.mxu0
          %6857 = vmatprep.mubr.f32.mxu0 0.0
          %6858 = vmatmul.mubr.f32.gmra.mxu0 %v6714
          %v6859 = vpop.f32.mrf.mxu0
          %v6860 = vadd.f32 0.0, %v6859
          %v6861 = vpop.f32.mrf.mxu0
          %6862 = vmatprep.mubr.f32.mxu0 0.0
          %6863 = vmatmul.mubr.f32.gmra.mxu0 %v6716
          %v6864 = vpop.f32.mrf.mxu0
          %v6865 = vadd.f32 0.0, %v6864
          %v6866 = vpop.f32.mrf.mxu0
          %6867 = vmatprep.mubr.f32.mxu0 0.0
          %6868 = vmatmul.mubr.f32.gmra.mxu0 %v6718
          %v6869 = vpop.f32.mrf.mxu0
          %v6870 = vadd.f32 0.0, %v6869
          %v6871 = vpop.f32.mrf.mxu0
          %6872 = vmatprep.mubr.f32.mxu0 0.0
          %6873 = vmatmul.mubr.f32.gmra.mxu0 %v6720
          %v6874 = vpop.f32.mrf.mxu0
          %v6875 = vadd.f32 0.0, %v6874
          %v6876 = vpop.f32.mrf.mxu0
          %6877 = vmatprep.mubr.f32.mxu0 0.0
          %6878 = vmatmul.mubr.f32.gmra.mxu0 %v6722
          %v6879 = vpop.f32.mrf.mxu0
          %v6880 = vadd.f32 0.0, %v6879
          %v6881 = vpop.f32.mrf.mxu0
          %6882 = vmatprep.mubr.f32.mxu0 0.0
          %6883 = vmatmul.mubr.f32.gmra.mxu0 %v6724
          %v6884 = vpop.f32.mrf.mxu0
          %v6885 = vadd.f32 0.0, %v6884
          %v6886 = vpop.f32.mrf.mxu0
          %6887 = vmatprep.mubr.f32.mxu0 0.0
          %6888 = vmatmul.mubr.f32.gmra.mxu0 %v6726
          %v6889 = vpop.f32.mrf.mxu0
          %v6890 = vadd.f32 0.0, %v6889
          %v6891 = vpop.f32.mrf.mxu0
          %6892 = vmatprep.mubr.f32.mxu0 0.0
          %6893 = vmatmul.mubr.f32.gmra.mxu0 %v6728
          %v6894 = vpop.f32.mrf.mxu0
          %v6895 = vadd.f32 0.0, %v6894
          %v6896 = vpop.f32.mrf.mxu0
          %6897 = vmatprep.mubr.f32.mxu0 0.0
          %6898 = vmatmul.mubr.f32.gmra.mxu0 %v6730
          %v6899 = vpop.f32.mrf.mxu0
          %v6900 = vadd.f32 0.0, %v6899
          %v6901 = vpop.f32.mrf.mxu0
          %6902 = vmatprep.mubr.f32.mxu0 0.0
          %6903 = vmatmul.mubr.f32.gmra.mxu0 %v6732
          %v6904 = vpop.f32.mrf.mxu0
          %v6905 = vadd.f32 0.0, %v6904
          %v6906 = vpop.f32.mrf.mxu0
          %6907 = vmatprep.mubr.f32.mxu0 0.0
          %6908 = vmatmul.mubr.f32.gmra.mxu0 %v6734
          %v6909 = vpop.f32.mrf.mxu0
          %v6910 = vadd.f32 0.0, %v6909
          %v6911 = vpop.f32.mrf.mxu0
          %6912 = vmatprep.mubr.f32.mxu0 0.0
          %6913 = vmatmul.mubr.f32.gmra.mxu0 %v6736
          %v6914 = vpop.f32.mrf.mxu0
          %v6915 = vadd.f32 0.0, %v6914
          %v6916 = vpop.f32.mrf.mxu0
          %6917 = vmatprep.mubr.f32.mxu0 0.0
          %6918 = vmatmul.mubr.f32.gmra.mxu0 %v6738
          %v6919 = vpop.f32.mrf.mxu0
          %v6920 = vadd.f32 0.0, %v6919
          %v6921 = vpop.f32.mrf.mxu0
          %6922 = vmatprep.mubr.f32.mxu0 0.0
          %6923 = vmatmul.mubr.f32.gmra.mxu0 %v6740
          %v6924 = vpop.f32.mrf.mxu0
          %v6925 = vadd.f32 0.0, %v6924
          %v6926 = vpop.f32.mrf.mxu0
          %6927 = vmatprep.mubr.f32.mxu0 0.0
          %6928 = vmatmul.mubr.f32.gmra.mxu0 %v6742
          %v6929 = vpop.f32.mrf.mxu0
          %v6930 = vadd.f32 0.0, %v6929
          %v6931 = vpop.f32.mrf.mxu0
          %6932 = vmatprep.mubr.f32.mxu0 0.0
          %6933 = vmatmul.mubr.f32.gmra.mxu0 %v6744
          %v6934 = vpop.f32.mrf.mxu0
          %v6935 = vadd.f32 0.0, %v6934
          %v6936 = vpop.f32.mrf.mxu0
          %6937 = vmatprep.mubr.f32.mxu0 0.0
          %6938 = vmatmul.mubr.f32.gmra.mxu0 %v6746
          %v6939 = vpop.f32.mrf.mxu0
          %v6940 = vadd.f32 0.0, %v6939
          %v6941 = vpop.f32.mrf.mxu0
          %6942 = vmatprep.mubr.f32.mxu0 0.0
          %6943 = vmatmul.mubr.f32.gmra.mxu0 %v6748
          %v6944 = vpop.f32.mrf.mxu0
          %v6945 = vadd.f32 0.0, %v6944
          %v6946 = vpop.f32.mrf.mxu0
          %6947 = vmatprep.mubr.f32.mxu0 0.0
          %6948 = vmatmul.mubr.f32.gmra.mxu0 %v6750
          %v6949 = vpop.f32.mrf.mxu0
          %v6950 = vadd.f32 0.0, %v6949
          %v6951 = vpop.f32.mrf.mxu0
          %6952 = vmatprep.mubr.f32.mxu0 0.0
          %6953 = vmatmul.mubr.f32.gmra.mxu0 %v6752
          %v6954 = vpop.f32.mrf.mxu0
          %v6955 = vadd.f32 0.0, %v6954
          %v6956 = vpop.f32.mrf.mxu0
          %6957 = vmatprep.mubr.f32.mxu0 0.0
          %6958 = vmatmul.mubr.f32.gmra.mxu0 %v6754
          %v6959 = vpop.f32.mrf.mxu0
          %v6960 = vadd.f32 0.0, %v6959
          %v6961 = vpop.f32.mrf.mxu0
          %6962 = vmatprep.mubr.f32.mxu0 0.0
          %6963 = vmatmul.mubr.f32.gmra.mxu0 %v6756
          %v6964 = vpop.f32.mrf.mxu0
          %v6965 = vadd.f32 0.0, %v6964
          %v6966 = vpop.f32.mrf.mxu0
          %6967 = vmatprep.mubr.f32.mxu0 0.0
          %6968 = vmatmul.mubr.f32.gmra.mxu0 %v6758
          %v6969 = vpop.f32.mrf.mxu0
          %v6970 = vadd.f32 0.0, %v6969
          %v6971 = vpop.f32.mrf.mxu0
          %6972 = vmatprep.mubr.f32.mxu0 0.0
          %6973 = vmatmul.mubr.f32.gmra.mxu0 %v6760
          %v6974 = vpop.f32.mrf.mxu0
          %v6975 = vadd.f32 0.0, %v6974
          %v6976 = vpop.f32.mrf.mxu0
          %6977 = vmatprep.mubr.f32.mxu0 0.0
          %6978 = vmatmul.mubr.f32.gmra.mxu0 %v6762
          %v6979 = vpop.f32.mrf.mxu0
          %v6980 = vadd.f32 0.0, %v6979
          %v6981 = vpop.f32.mrf.mxu0
          %6982 = vmatprep.mubr.f32.mxu0 0.0
          %6983 = vmatmul.mubr.f32.gmra.mxu0 %v6764
          %v6984 = vpop.f32.mrf.mxu0
          %v6985 = vadd.f32 0.0, %v6984
          %v6986 = vpop.f32.mrf.mxu0
          %6987 = vmatprep.mubr.f32.mxu0 0.0
          %6988 = vmatmul.mubr.f32.gmra.mxu0 %v6766
          %v6989 = vpop.f32.mrf.mxu0
          %v6990 = vadd.f32 0.0, %v6989
          %v6991 = vpop.f32.mrf.mxu0
          %6992 = vdwg.mxu0
          %v6993 = vadd.f32 %v6604, %v6835
          %v6994 = vadd.f32 %v6605, %v6840
          %v6995 = vadd.f32 %v6606, %v6845
          %v6996 = vadd.f32 %v6607, %v6850
          %v6997 = vadd.f32 %v6608, %v6855
          %v6998 = vadd.f32 %v6609, %v6860
          %v6999 = vadd.f32 %v6610, %v6865
          %v7000 = vadd.f32 %v6611, %v6870
          %v7001 = vadd.f32 %v6612, %v6875
          %v7002 = vadd.f32 %v6613, %v6880
          %v7003 = vadd.f32 %v6614, %v6885
          %v7004 = vadd.f32 %v6615, %v6890
          %v7005 = vadd.f32 %v6616, %v6895
          %v7006 = vadd.f32 %v6617, %v6900
          %v7007 = vadd.f32 %v6618, %v6905
          %v7008 = vadd.f32 %v6619, %v6910
          %v7009 = vadd.f32 %v6620, %v6915
          %v7010 = vadd.f32 %v6621, %v6920
          %v7011 = vadd.f32 %v6622, %v6925
          %v7012 = vadd.f32 %v6623, %v6930
          %v7013 = vadd.f32 %v6624, %v6935
          %v7014 = vadd.f32 %v6625, %v6940
          %v7015 = vadd.f32 %v6626, %v6945
          %v7016 = vadd.f32 %v6627, %v6950
          %v7017 = vadd.f32 %v6628, %v6955
          %v7018 = vadd.f32 %v6629, %v6960
          %v7019 = vadd.f32 %v6630, %v6965
          %v7020 = vadd.f32 %v6631, %v6970
          %v7021 = vadd.f32 %v6632, %v6975
          %v7022 = vadd.f32 %v6633, %v6980
          %v7023 = vadd.f32 %v6634, %v6985
          %v7024 = vadd.f32 %v6635, %v6990
          %v7025 = vld [vmem:[#allocation2] sm:$0x1]
          %v7026 = vmul.f32 %v7025, 0.001953125
          %v7027 = vld [vmem:[#allocation3] sm:$0x1]
          %v7028 = vmul.f32 %v7027, 0.001953125
          %v7029 = vmul.f32 %v7026, %v7026
          %v7030 = vsub.f32 %v7028, %v7029
          %v7031 = vld [vmem:[%s2] sm:$0x1]
          %v7032 = vadd.f32 %v7030, 1e-05
          %v7033 = vrsqrt.pop %v7032
          %v7034 = vmul.f32 %v7031, %v7033
          %v7035 = vld [vmem:[%s3] sm:$0x1]
          %v7036 = vmul.f32 %v7026, %v7034
          %v7037 = vsub.f32 %v7035, %v7036
          %v7039 = vlaneseq
          %v7040 = vshrl.u32 %v7039, 7
          %v7041 = vsub.s32 0, %v7040
          %v7042 = vrot.slane %v7034, %v7041
          %v7044 = vmul.f32 %v6993, %v7042
          %v7045 = vmul.f32 %v6994, %v7042
          %v7046 = vmul.f32 %v6995, %v7042
          %v7047 = vmul.f32 %v6996, %v7042
          %v7048 = vmul.f32 %v6997, %v7042
          %v7049 = vmul.f32 %v6998, %v7042
          %v7050 = vmul.f32 %v6999, %v7042
          %v7051 = vmul.f32 %v7000, %v7042
          %v7052 = vmul.f32 %v7001, %v7042
          %v7053 = vmul.f32 %v7002, %v7042
          %v7054 = vmul.f32 %v7003, %v7042
          %v7055 = vmul.f32 %v7004, %v7042
          %v7056 = vmul.f32 %v7005, %v7042
          %v7057 = vmul.f32 %v7006, %v7042
          %v7058 = vmul.f32 %v7007, %v7042
          %v7059 = vmul.f32 %v7008, %v7042
          %v7060 = vmul.f32 %v7009, %v7042
          %v7061 = vmul.f32 %v7010, %v7042
          %v7062 = vmul.f32 %v7011, %v7042
          %v7063 = vmul.f32 %v7012, %v7042
          %v7064 = vmul.f32 %v7013, %v7042
          %v7065 = vmul.f32 %v7014, %v7042
          %v7066 = vmul.f32 %v7015, %v7042
          %v7067 = vmul.f32 %v7016, %v7042
          %v7068 = vmul.f32 %v7017, %v7042
          %v7069 = vmul.f32 %v7018, %v7042
          %v7070 = vmul.f32 %v7019, %v7042
          %v7071 = vmul.f32 %v7020, %v7042
          %v7072 = vmul.f32 %v7021, %v7042
          %v7073 = vmul.f32 %v7022, %v7042
          %v7074 = vmul.f32 %v7023, %v7042
          %v7075 = vmul.f32 %v7024, %v7042
          %v7077 = vlaneseq
          %v7078 = vshrl.u32 %v7077, 7
          %v7079 = vsub.s32 0, %v7078
          %v7080 = vrot.slane %v7037, %v7079
          %v7082 = vadd.f32 %v7044, %v7080
          %v7083 = vadd.f32 %v7045, %v7080
          %v7084 = vadd.f32 %v7046, %v7080
          %v7085 = vadd.f32 %v7047, %v7080
          %v7086 = vadd.f32 %v7048, %v7080
          %v7087 = vadd.f32 %v7049, %v7080
          %v7088 = vadd.f32 %v7050, %v7080
          %v7089 = vadd.f32 %v7051, %v7080
          %v7090 = vadd.f32 %v7052, %v7080
          %v7091 = vadd.f32 %v7053, %v7080
          %v7092 = vadd.f32 %v7054, %v7080
          %v7093 = vadd.f32 %v7055, %v7080
          %v7094 = vadd.f32 %v7056, %v7080
          %v7095 = vadd.f32 %v7057, %v7080
          %v7096 = vadd.f32 %v7058, %v7080
          %v7097 = vadd.f32 %v7059, %v7080
          %v7098 = vadd.f32 %v7060, %v7080
          %v7099 = vadd.f32 %v7061, %v7080
          %v7100 = vadd.f32 %v7062, %v7080
          %v7101 = vadd.f32 %v7063, %v7080
          %v7102 = vadd.f32 %v7064, %v7080
          %v7103 = vadd.f32 %v7065, %v7080
          %v7104 = vadd.f32 %v7066, %v7080
          %v7105 = vadd.f32 %v7067, %v7080
          %v7106 = vadd.f32 %v7068, %v7080
          %v7107 = vadd.f32 %v7069, %v7080
          %v7108 = vadd.f32 %v7070, %v7080
          %v7109 = vadd.f32 %v7071, %v7080
          %v7110 = vadd.f32 %v7072, %v7080
          %v7111 = vadd.f32 %v7073, %v7080
          %v7112 = vadd.f32 %v7074, %v7080
          %v7113 = vadd.f32 %v7075, %v7080
          %v7114 = vmax.f32 %v7082, 0.0
          %v7115 = vmax.f32 %v7083, 0.0
          %v7116 = vmax.f32 %v7084, 0.0
          %v7117 = vmax.f32 %v7085, 0.0
          %v7118 = vmax.f32 %v7086, 0.0
          %v7119 = vmax.f32 %v7087, 0.0
          %v7120 = vmax.f32 %v7088, 0.0
          %v7121 = vmax.f32 %v7089, 0.0
          %v7122 = vmax.f32 %v7090, 0.0
          %v7123 = vmax.f32 %v7091, 0.0
          %v7124 = vmax.f32 %v7092, 0.0
          %v7125 = vmax.f32 %v7093, 0.0
          %v7126 = vmax.f32 %v7094, 0.0
          %v7127 = vmax.f32 %v7095, 0.0
          %v7128 = vmax.f32 %v7096, 0.0
          %v7129 = vmax.f32 %v7097, 0.0
          %v7130 = vmax.f32 %v7098, 0.0
          %v7131 = vmax.f32 %v7099, 0.0
          %v7132 = vmax.f32 %v7100, 0.0
          %v7133 = vmax.f32 %v7101, 0.0
          %v7134 = vmax.f32 %v7102, 0.0
          %v7135 = vmax.f32 %v7103, 0.0
          %v7136 = vmax.f32 %v7104, 0.0
          %v7137 = vmax.f32 %v7105, 0.0
          %v7138 = vmax.f32 %v7106, 0.0
          %v7139 = vmax.f32 %v7107, 0.0
          %v7140 = vmax.f32 %v7108, 0.0
          %v7141 = vmax.f32 %v7109, 0.0
          %v7142 = vmax.f32 %v7110, 0.0
          %v7143 = vmax.f32 %v7111, 0.0
          %v7144 = vmax.f32 %v7112, 0.0
          %v7145 = vmax.f32 %v7113, 0.0
          %7146 = vst [vmem:[%s230] sm:$0xff] %v7114
          %7147 = vst [vmem:[%s230 + $0x8] sm:$0xff] %v7115
          %7148 = vst [vmem:[%s230 + $0x10] sm:$0xff] %v7116
          %7149 = vst [vmem:[%s230 + $0x18] sm:$0xff] %v7117
          %7150 = vst [vmem:[%s230 + $0x20] sm:$0xff] %v7118
          %7151 = vst [vmem:[%s230 + $0x28] sm:$0xff] %v7119
          %7152 = vst [vmem:[%s230 + $0x30] sm:$0xff] %v7120
          %7153 = vst [vmem:[%s230 + $0x38] sm:$0xff] %v7121
          %7154 = vst [vmem:[%s230 + $0x40] sm:$0xff] %v7122
          %7155 = vst [vmem:[%s230 + $0x48] sm:$0xff] %v7123
          %7156 = vst [vmem:[%s230 + $0x50] sm:$0xff] %v7124
          %7157 = vst [vmem:[%s230 + $0x58] sm:$0xff] %v7125
          %7158 = vst [vmem:[%s230 + $0x60] sm:$0xff] %v7126
          %7159 = vst [vmem:[%s230 + $0x68] sm:$0xff] %v7127
          %7160 = vst [vmem:[%s230 + $0x70] sm:$0xff] %v7128
          %7161 = vst [vmem:[%s230 + $0x78] sm:$0xff] %v7129
          %7162 = vst [vmem:[%s230 + $0x80] sm:$0xff] %v7130
          %7163 = vst [vmem:[%s230 + $0x88] sm:$0xff] %v7131
          %7164 = vst [vmem:[%s230 + $0x90] sm:$0xff] %v7132
          %7165 = vst [vmem:[%s230 + $0x98] sm:$0xff] %v7133
          %7166 = vst [vmem:[%s230 + $0xa0] sm:$0xff] %v7134
          %7167 = vst [vmem:[%s230 + $0xa8] sm:$0xff] %v7135
          %7168 = vst [vmem:[%s230 + $0xb0] sm:$0xff] %v7136
          %7169 = vst [vmem:[%s230 + $0xb8] sm:$0xff] %v7137
          %7170 = vst [vmem:[%s230 + $0xc0] sm:$0xff] %v7138
          %7171 = vst [vmem:[%s230 + $0xc8] sm:$0xff] %v7139
          %7172 = vst [vmem:[%s230 + $0xd0] sm:$0xff] %v7140
          %7173 = vst [vmem:[%s230 + $0xd8] sm:$0xff] %v7141
          %7174 = vst [vmem:[%s230 + $0xe0] sm:$0xff] %v7142
          %7175 = vst [vmem:[%s230 + $0xe8] sm:$0xff] %v7143
          %7176 = vst [vmem:[%s230 + $0xf0] sm:$0xff] %v7144
          %7177 = vst [vmem:[%s230 + $0xf8] sm:$0xff] %v7145
        $region52: #{tpu_custom_call.1} parent=39 // pred_fallthru
          _
        %s7178 = sand.u32 %s149, 1
        %s7179 = scalar_lea.sflag [#allocation5], %s7178
        %s7180 = sand.u32 %s149, 1
        %s7181 = smul.addr %s7180, 256
        %s7182 = scalar_lea.vmem [#allocation4], %s7181
        // Predicated region
        $region53: #{tpu_custom_call.1} parent=39 // pred_check
          %p7183 = pneg %p159
        $region54: #{tpu_custom_call.1} parent=39 // pred_check_branch
          %7185 = sbr.rel (%p7183) target = $region56
        $region55: #{tpu_custom_call.1} parent=39 // pred_region
          %s7186 = smul.u32 32, %s24
          %s7188 = ssub.s32 4096, 4096
          %7189 = vsyncadd %s7179, %s7188
          %s7190 = smul.addr %s7186, 128
          %s7191 = scalar_lea.hbm %s5, %s7190
          %s7192 = sshll.u32 %s7182, 4
          %s7193 = int_to_ptr.vmem [resolvable:$true] %s7192
          %7198 = dma.vmem_to_hbm [thread:$0]  %s7193, 4096, %s7191, %s7179, 128, 128, 8
        $region56: #{tpu_custom_call.1} parent=39 // pred_fallthru
          _
      $region40: #{tpu_custom_call.1} parent=5 // pred_fallthru
        _
      %p7199 = scmp.le.s32.totalorder 2, %s14
      // Predicated region
      $region57: #{tpu_custom_call.1} parent=5 // pred_check
        %p7200 = pneg %p7199
      $region58: #{tpu_custom_call.1} parent=5 // pred_check_branch
        %7202 = sbr.rel (%p7200) target = $region60
      $region59: #{tpu_custom_call.1} parent=5 // pred_region
        %s7203 = ssub.s32 %s14, 2
        // Predicated region
        $region61: #{tpu_custom_call.1} parent=59 // pred_check
          %p7204 = pneg %p165
        $region62: #{tpu_custom_call.1} parent=59 // pred_check_branch
          %7206 = sbr.rel (%p7204) target = $region64
        $region63: #{tpu_custom_call.1} parent=59 // pred_region
          %s7207 = sand.u32 %s150, 1
          %s7208 = scalar_lea.sflag [#allocation5], %s7207
          %s7209 = sand.u32 %s150, 1
          %s7210 = smul.addr %s7209, 256
          %s7211 = scalar_lea.vmem [#allocation4], %s7210
          %7212 = dma.done %s7208, 4096
        $region64: #{tpu_custom_call.1} parent=59 // pred_fallthru
          _
      $region60: #{tpu_custom_call.1} parent=5 // pred_fallthru
        _
    $region6: #{tpu_custom_call.1} parent=1 // loop_footer
      %s18 = sadd.s32 1, %s14
    $region7: #{tpu_custom_call.1} parent=1 // loop_footer_branch
      %13 = sbr.rel target = $region3
    $region8: #{tpu_custom_call.1} parent=1 // loop_exit
      _
    %7213 = vsyncpa [#allocation5], 1
    %s7214 = scalar_lea.sflag [#allocation5], 1
    %7215 = vsyncpa %s7214, 1

</llo_original>
